<compile_context>
chip_gen: v6e
topology: v6e:2x2x1
jax: 0.10.0
libtpu: 0.0.40
codegen_flags: <defaults>
</compile_context>

<pallas_src>
import functools

import jax
import jax.numpy as jnp
from jax.experimental import pallas as pl
from jax.experimental.pallas import tpu as pltpu

C = 256          # channels fixed by the module definition
EPS = 1e-5       # nn.InstanceNorm2d default eps


def _pick_tile(total, cap):
    """Largest divisor of `total` that is <= cap (>= 1)."""
    cap = max(1, min(total, cap))
    for d in range(cap, 0, -1):
        if total % d == 0:
            return d
    return 1


def _vmem_budget():
    """(row-tile M cap, vmem_limit_bytes), chosen from the chip's VMEM size."""
    vmem = 64 * 1024 * 1024                      # conservative default (v7x)
    try:
        info = pltpu.get_tpu_info()
        vmem = int(getattr(info, "vmem_capacity_bytes", vmem) or vmem)
    except Exception:
        pass
    if vmem >= 100 * 1024 * 1024:                # v5e / v6e: 128 MiB VMEM
        return 4096, 96 * 1024 * 1024
    return 2048, 48 * 1024 * 1024                # v7x: 64 MiB per TensorCore


# ----------------------------------------------------------------------------
# Conv3x3 kernel body: one tile of TH output rows.
#   win      : (TH+2, W+2, C) bf16 halo window of the padded input
#   w_ref    : (3, 3C, C)     bf16 weight slabs, resident (constant index map)
#   o_ref    : (1, TH, W, C)  bf16 conv output tile
#   mean/m2  : (1, 1, 1, C)   f32 streamed IN partial stats, resident across
#              the row-tile ("arbitrary") axis; Chan/Welford merge per tile.
# ----------------------------------------------------------------------------
def _conv_body(win, w_ref, o_ref, mean_ref, m2_ref, *, th, out_w):
    c = o_ref.shape[-1]
    m = th * out_w

    acc = jnp.zeros((m, c), jnp.float32)
    for dy in range(3):
        rows = win[dy:dy + th]                                  # (TH, W+2, C)
        # Pack the 3 dx taps into one (M, 3C) bf16 LHS -> one K=768 MXU matmul
        # per dy (3 accumulator updates instead of 9).
        lhs = jnp.concatenate(
            [rows[:, 0:out_w], rows[:, 1:out_w + 1], rows[:, 2:out_w + 2]],
            axis=-1).reshape(m, 3 * c)
        acc = acc + jnp.dot(lhs, w_ref[dy], preferred_element_type=jnp.float32)

    o_ref[...] = acc.reshape(o_ref.shape).astype(o_ref.dtype)

    # Per-tile centered statistics (avoids E[x^2]-E[x]^2 cancellation), merged
    # across row tiles into the resident stat outputs (Chan/Welford combine).
    # NOTE: this relies on the row-tile grid axis staying "arbitrary" and the
    # stat BlockSpec index being constant along it (output residency).
    cnt = float(m)
    mean_b = jnp.sum(acc, axis=0, keepdims=True) / cnt          # (1, C)
    diff = acc - mean_b
    m2_b = jnp.sum(diff * diff, axis=0, keepdims=True)          # (1, C)
    mean_b = mean_b.reshape(mean_ref.shape)
    m2_b = m2_b.reshape(m2_ref.shape)

    i = pl.program_id(2)

    @pl.when(i == 0)
    def _():
        mean_ref[...] = mean_b
        m2_ref[...] = m2_b

    @pl.when(i > 0)
    def _():
        na = i.astype(jnp.float32) * cnt
        nab = na + cnt
        delta = mean_b - mean_ref[...]
        mean_ref[...] = mean_ref[...] + delta * (cnt / nab)
        m2_ref[...] = m2_ref[...] + m2_b + delta * delta * (na * cnt / nab)


def _conv_kernel(xm_ref, xh0_ref, xh1_ref, w_ref, o_ref, mean_ref, m2_ref, *,
                 th, out_w):
    win = jnp.concatenate([xm_ref[0], xh0_ref[0], xh1_ref[0]], axis=0)
    _conv_body(win, w_ref, o_ref, mean_ref, m2_ref, th=th, out_w=out_w)


def _conv_in_relu_kernel(xm_ref, xh0_ref, xh1_ref, mean1_ref, rstd1_ref, w_ref,
                         o_ref, mean_ref, m2_ref, *, th, out_w):
    win = jnp.concatenate([xm_ref[0], xh0_ref[0], xh1_ref[0]], axis=0)
    # Previous InstanceNorm + ReLU fused into this conv's input path, applied
    # ONCE to the whole window (pointwise per (sample, channel), so it commutes
    # with reflection padding).
    win = (win.astype(jnp.float32) - mean1_ref[...]) * rstd1_ref[...]
    win = jnp.maximum(win, 0.0).astype(jnp.bfloat16)
    _conv_body(win, w_ref, o_ref, mean_ref, m2_ref, th=th, out_w=out_w)


def conv3x3_reflect(xp, w_slab, out_hw, pre_norm=None):
    """3x3 'same' conv (no bias) of a reflection-padded bf16 NHWC input.

    xp       (N, H+2, W+2, C) bf16 padded input
    w_slab   (3, 3C, C)       bf16 weights, rows ordered (dx, cin)
    out_hw   (H, W)
    pre_norm optional (mean, rstd), each (N, 1, C) f32 -> fused IN+ReLU input

    Returns (out, mean_part, m2_part):
      out              (N, H, W, C) bf16 conv output
      mean/m2 partials (N, G, 1, C) f32, per row-group of H*W/G elements
                       (finalize with _finalize_stats).
    """
    N = xp.shape[0]
    H, W = out_hw
    Cc = xp.shape[-1]
    Wp = W + 2

    m_cap, vmem_limit = _vmem_budget()
    # Split the row axis into G "parallel" groups with per-group partial stats
    # so both v7x TensorCores stay busy even at batch 1.
    groups = 2 if H % 2 == 0 else 1
    rows_g = H // groups
    th = _pick_tile(rows_g, max(1, m_cap // W))
    n_tiles = rows_g // th
    grid = (N, groups, n_tiles)

    # Halo windowing: each step reads TH main padded rows plus 2 single-row
    # halo blocks of the SAME padded array (no 3x dy-stack, ~(TH+2)/TH reads).
    xm_spec = pl.BlockSpec((1, th, Wp, Cc),
                           lambda n, g, i: (n, g * n_tiles + i, 0, 0))
    h0_spec = pl.BlockSpec((1, 1, Wp, Cc),
                           lambda n, g, i: (n, g * rows_g + (i + 1) * th, 0, 0))
    h1_spec = pl.BlockSpec((1, 1, Wp, Cc),
                           lambda n, g, i: (n, g * rows_g + (i + 1) * th + 1, 0, 0))
    w_spec = pl.BlockSpec((3, 3 * Cc, Cc), lambda n, g, i: (0, 0, 0))  # resident
    o_spec = pl.BlockSpec((1, th, W, Cc),
                          lambda n, g, i: (n, g * n_tiles + i, 0, 0))
    stat_spec = pl.BlockSpec((1, 1, 1, Cc), lambda n, g, i: (n, g, 0, 0))
    norm_spec = pl.BlockSpec((1, 1, Cc), lambda n, g, i: (n, 0, 0))

    if pre_norm is None:
        kernel = functools.partial(_conv_kernel, th=th, out_w=W)
        in_specs = [xm_spec, h0_spec, h1_spec, w_spec]
        args = (xp, xp, xp, w_slab)
    else:
        mean1, rstd1 = pre_norm
        kernel = functools.partial(_conv_in_relu_kernel, th=th, out_w=W)
        in_specs = [xm_spec, h0_spec, h1_spec, norm_spec, norm_spec, w_spec]
        args = (xp, xp, xp, mean1, rstd1, w_slab)

    stat_sds = jax.ShapeDtypeStruct((N, groups, 1, Cc), jnp.float32)
    return pl.pallas_call(
        kernel,
        out_shape=(jax.ShapeDtypeStruct((N, H, W, Cc), jnp.bfloat16),
                   stat_sds, stat_sds),
        grid_spec=pltpu.PrefetchScalarGridSpec(
            num_scalar_prefetch=0,
            grid=grid,
            in_specs=in_specs,
            out_specs=[o_spec, stat_spec, stat_spec],
        ),
        compiler_params=pltpu.CompilerParams(
            # N and the row-group axis are parallel (megacore); the row-tile
            # axis carries the streamed IN-stat residency -> "arbitrary".
            dimension_semantics=("parallel", "parallel", "arbitrary"),
            vmem_limit_bytes=vmem_limit,
        ),
    )(*args)


def _finalize_stats(mean_p, m2_p, hw):
    """Combine per-group (mean, M2) partials into per-(N, C) (mean, rstd)."""
    g = mean_p.shape[1]
    mean = jnp.mean(mean_p, axis=1)                              # (N, 1, C)
    m2 = jnp.sum(m2_p, axis=1)
    m2 = m2 + (hw / g) * jnp.sum((mean_p - mean[:, None]) ** 2, axis=1)
    var = m2 / hw                                                # biased var
    return mean, jax.lax.rsqrt(var + EPS)


# ----------------------------------------------------------------------------
# Final stage: InstanceNorm(apply) + residual skip, tiled over rows.
# ----------------------------------------------------------------------------
def _in_residual_kernel(x_ref, mean_ref, rstd_ref, res_ref, o_ref):
    y = (x_ref[...].astype(jnp.float32) - mean_ref[...]) * rstd_ref[...]
    o_ref[...] = (res_ref[...] + y).astype(o_ref.dtype)


def instnorm_residual(h, mean, rstd, res):
    N, H, W, Cc = h.shape
    ts = _pick_tile(H, max(1, 2048 // W))
    tile = pl.BlockSpec((1, ts, W, Cc), lambda n, i: (n, i, 0, 0))
    stat = pl.BlockSpec((1, 1, Cc), lambda n, i: (n, 0, 0))
    return pl.pallas_call(
        _in_residual_kernel,
        out_shape=jax.ShapeDtypeStruct((N, H, W, Cc), res.dtype),
        grid_spec=pltpu.PrefetchScalarGridSpec(
            num_scalar_prefetch=0,
            grid=(N, H // ts),
            in_specs=[tile, stat, stat, tile],
            out_specs=tile,
        ),
        compiler_params=pltpu.CompilerParams(
            dimension_semantics=("parallel", "parallel")),
    )(h, mean, rstd, res)


# ----------------------------------------------------------------------------
# Parameters / forward
# ----------------------------------------------------------------------------
def make_params(key):
    k1, k2 = jax.random.split(key)
    # PyTorch Conv2d weights are OIHW (Cout, Cin, 3, 3).  Conv biases are
    # dropped: a per-channel bias is exactly cancelled by the affine-free
    # InstanceNorm that immediately follows each conv.
    w1 = jax.random.normal(k1, (C, C, 3, 3), jnp.float32) * 0.02
    w2 = jax.random.normal(k2, (C, C, 3, 3), jnp.float32) * 0.02

    def slab(w):
        # (Cout, Cin, kh, kw) -> (kh, kw, Cin, Cout) -> (kh, 3*Cin, Cout) bf16
        return jnp.transpose(w, (2, 3, 1, 0)).reshape(3, 3 * C, C).astype(
            jnp.bfloat16)

    return slab(w1), slab(w2)


@jax.jit
def resnet_forward(x_nchw, w1_slab, w2_slab):
    # TODO(synk): the NCHW<->NHWC transposes only exist to keep the PyTorch
    # NCHW interface; a surrounding NHWC model could drop both extra passes.
    x = jnp.transpose(x_nchw, (0, 2, 3, 1))                      # NCHW -> NHWC
    N, H, W, Cc = x.shape
    assert H >= 2 and W >= 2
    hw = float(H * W)

    # conv1 on the reflection-padded bf16 input (+ streamed IN1 partial stats).
    xp = jnp.pad(x.astype(jnp.bfloat16), ((0, 0), (1, 1), (1, 1), (0, 0)),
                 mode="reflect")
    h1, m1p, v1p = conv3x3_reflect(xp, w1_slab, (H, W))
    mean1, rstd1 = _finalize_stats(m1p, v1p, hw)

    # TODO(synk): nn.Dropout(0.5) is identity here (inference/eval semantics).

    # conv2 with IN1 + ReLU fused into its input path (+ streamed IN2 stats).
    h1p = jnp.pad(h1, ((0, 0), (1, 1), (1, 1), (0, 0)), mode="reflect")
    h2, m2p, v2p = conv3x3_reflect(h1p, w2_slab, (H, W),
                                   pre_norm=(mean1, rstd1))
    mean2, rstd2 = _finalize_stats(m2p, v2p, hw)

    # IN2 + residual skip (f32 output, matching the module).
    out = instnorm_residual(h2, mean2, rstd2, x)
    return jnp.transpose(out, (0, 3, 1, 2))


def _reference_forward(x_nchw, w1_slab, w2_slab):
    """Pure-JAX reference for a correctness sanity check."""
    hi = jax.lax.Precision.HIGHEST

    def conv(h, w_slab):
        n, hh, ww, cc = h.shape
        w = w_slab.astype(jnp.float32).reshape(3, 3, cc, cc)   # (dy, dx, ci, co)
        hp = jnp.pad(h, ((0, 0), (1, 1), (1, 1), (0, 0)), mode="reflect")
        out = jnp.zeros((n, hh, ww, cc), jnp.float32)
        for dy in range(3):
            for dx in range(3):
                out = out + jnp.einsum(
                    "nhwc,cd->nhwd", hp[:, dy:dy + hh, dx:dx + ww, :],
                    w[dy, dx], precision=hi)
        return out

    def inorm(h):
        m = jnp.mean(h, axis=(1, 2), keepdims=True)
        v = jnp.var(h, axis=(1, 2), keepdims=True)
        return (h - m) * jax.lax.rsqrt(v + EPS)

    x = jnp.transpose(x_nchw, (0, 2, 3, 1)).astype(jnp.float32)
    h = jnp.maximum(inorm(conv(x, w1_slab)), 0.0)
    out = x + inorm(conv(h, w2_slab))
    return jnp.transpose(out, (0, 3, 1, 2))


if __name__ == "__main__":
    key = jax.random.PRNGKey(0)
    kx, kp = jax.random.split(key)
    # channels fixed at 256 by the module; small batch / spatial for the demo
    x = jax.random.normal(kx, (2, C, 16, 16), jnp.float32)
    w1_slab, w2_slab = make_params(kp)

    y = resnet_forward(x, w1_slab, w2_slab)
    jax.block_until_ready(y)
    assert y.shape == x.shape and y.dtype == x.dtype

    y_ref = _reference_forward(x, w1_slab, w2_slab)
    err = float(jnp.max(jnp.abs(y - y_ref)))
    assert err < 0.2, f"max abs error vs reference too large: {err}"
    print("KERNEL_OK")
</pallas_src>

<mosaic_0001>
module attributes {stable_mosaic.version = 11 : i64} {
  func.func @_conv_kernel(%arg0: i32, %arg1: i32, %arg2: i32, %arg3: memref<1x8x18x256xbf16, #tpu.memory_space<vmem>>, %arg4: memref<1x1x18x256xbf16, #tpu.memory_space<vmem>>, %arg5: memref<1x1x18x256xbf16, #tpu.memory_space<vmem>>, %arg6: memref<3x768x256xbf16, #tpu.memory_space<vmem>>, %arg7: memref<1x8x16x256xbf16, #tpu.memory_space<vmem>>, %arg8: memref<1x1x1x256xf32, #tpu.memory_space<vmem>>, %arg9: memref<1x1x1x256xf32, #tpu.memory_space<vmem>>) attributes {dimension_semantics = [#tpu.dimension_semantics<parallel>, #tpu.dimension_semantics<parallel>, #tpu.dimension_semantics<arbitrary>], iteration_bounds = array<i64: 2, 2, 1>, scalar_prefetch = 0 : i64, scratch_operands = 0 : i64, tpu.core_type = #tpu.core_type<tc>, window_params = [{transform_indices = @transform_0, window_bounds = array<i64: 1, 8, 18, 256>}, {transform_indices = @transform_1, window_bounds = array<i64: 1, 1, 18, 256>}, {transform_indices = @transform_2, window_bounds = array<i64: 1, 1, 18, 256>}, {pipeline_mode = #tpu.pipeline_mode<synchronous>, transform_indices = @transform_3, window_bounds = array<i64: 3, 768, 256>}, {transform_indices = @transform_4, window_bounds = array<i64: 1, 8, 16, 256>}, {transform_indices = @transform_5, window_bounds = array<i64: 1, 1, 1, 256>}, {transform_indices = @transform_6, window_bounds = array<i64: 1, 1, 1, 256>}]} {
    %c0 = arith.constant 0 : index
    %c0_0 = arith.constant 0 : index
    %c0_1 = arith.constant 0 : index
    %c0_2 = arith.constant 0 : index
    %0 = vector.load %arg3[%c0, %c0_0, %c0_1, %c0_2] : memref<1x8x18x256xbf16, #tpu.memory_space<vmem>>, vector<1x8x18x256xbf16>
    %1 = vector.shape_cast %0 : vector<1x8x18x256xbf16> to vector<8x18x256xbf16>
    %c0_3 = arith.constant 0 : index
    %c0_4 = arith.constant 0 : index
    %c0_5 = arith.constant 0 : index
    %c0_6 = arith.constant 0 : index
    %2 = vector.load %arg4[%c0_3, %c0_4, %c0_5, %c0_6] : memref<1x1x18x256xbf16, #tpu.memory_space<vmem>>, vector<1x1x18x256xbf16>
    %3 = vector.shape_cast %2 : vector<1x1x18x256xbf16> to vector<1x18x256xbf16>
    %c0_7 = arith.constant 0 : index
    %c0_8 = arith.constant 0 : index
    %c0_9 = arith.constant 0 : index
    %c0_10 = arith.constant 0 : index
    %4 = vector.load %arg5[%c0_7, %c0_8, %c0_9, %c0_10] : memref<1x1x18x256xbf16, #tpu.memory_space<vmem>>, vector<1x1x18x256xbf16>
    %5 = vector.shape_cast %4 : vector<1x1x18x256xbf16> to vector<1x18x256xbf16>
    %6 = tpu.concatenate %1, %3, %5 in 0 : vector<8x18x256xbf16>, vector<1x18x256xbf16>, vector<1x18x256xbf16> -> vector<10x18x256xbf16>
    %cst = arith.constant 0.000000e+00 : f32
    %7 = vector.broadcast %cst : f32 to vector<128x256xf32>
    %8 = vector.extract_strided_slice %6 {offsets = [0, 0, 0], sizes = [8, 18, 256], strides = [1, 1, 1]} : vector<10x18x256xbf16> to vector<8x18x256xbf16>
    %9 = vector.extract_strided_slice %8 {offsets = [0, 0, 0], sizes = [8, 16, 256], strides = [1, 1, 1]} : vector<8x18x256xbf16> to vector<8x16x256xbf16>
    %10 = vector.extract_strided_slice %8 {offsets = [0, 1, 0], sizes = [8, 16, 256], strides = [1, 1, 1]} : vector<8x18x256xbf16> to vector<8x16x256xbf16>
    %11 = vector.extract_strided_slice %8 {offsets = [0, 2, 0], sizes = [8, 16, 256], strides = [1, 1, 1]} : vector<8x18x256xbf16> to vector<8x16x256xbf16>
    %12 = tpu.concatenate %9, %10, %11 in 2 : vector<8x16x256xbf16>, vector<8x16x256xbf16>, vector<8x16x256xbf16> -> vector<8x16x768xbf16>
    %13 = vector.shape_cast %12 : vector<8x16x768xbf16> to vector<128x768xbf16>
    %c0_11 = arith.constant 0 : index
    %c0_12 = arith.constant 0 : index
    %c0_13 = arith.constant 0 : index
    %14 = vector.load %arg6[%c0_11, %c0_12, %c0_13] : memref<3x768x256xbf16, #tpu.memory_space<vmem>>, vector<1x768x256xbf16>
    %15 = vector.shape_cast %14 : vector<1x768x256xbf16> to vector<768x256xbf16>
    %cst_14 = arith.constant dense<0.000000e+00> : vector<128x256xf32>
    %16 = tpu.matmul %13, %15, %cst_14 {dimension_numbers = #tpu.dot_dimension_numbers<[1], [0], [0], [1], [0, 0, 1, 1], [], []>} : vector<128x768xbf16>, vector<768x256xbf16>, vector<128x256xf32> -> vector<128x256xf32>
    %17 = arith.addf %7, %16 : vector<128x256xf32>
    %18 = vector.extract_strided_slice %6 {offsets = [1, 0, 0], sizes = [8, 18, 256], strides = [1, 1, 1]} : vector<10x18x256xbf16> to vector<8x18x256xbf16>
    %19 = vector.extract_strided_slice %18 {offsets = [0, 0, 0], sizes = [8, 16, 256], strides = [1, 1, 1]} : vector<8x18x256xbf16> to vector<8x16x256xbf16>
    %20 = vector.extract_strided_slice %18 {offsets = [0, 1, 0], sizes = [8, 16, 256], strides = [1, 1, 1]} : vector<8x18x256xbf16> to vector<8x16x256xbf16>
    %21 = vector.extract_strided_slice %18 {offsets = [0, 2, 0], sizes = [8, 16, 256], strides = [1, 1, 1]} : vector<8x18x256xbf16> to vector<8x16x256xbf16>
    %22 = tpu.concatenate %19, %20, %21 in 2 : vector<8x16x256xbf16>, vector<8x16x256xbf16>, vector<8x16x256xbf16> -> vector<8x16x768xbf16>
    %23 = vector.shape_cast %22 : vector<8x16x768xbf16> to vector<128x768xbf16>
    %c1 = arith.constant 1 : index
    %c0_15 = arith.constant 0 : index
    %c0_16 = arith.constant 0 : index
    %24 = vector.load %arg6[%c1, %c0_15, %c0_16] : memref<3x768x256xbf16, #tpu.memory_space<vmem>>, vector<1x768x256xbf16>
    %25 = vector.shape_cast %24 : vector<1x768x256xbf16> to vector<768x256xbf16>
    %cst_17 = arith.constant dense<0.000000e+00> : vector<128x256xf32>
    %26 = tpu.matmul %23, %25, %cst_17 {dimension_numbers = #tpu.dot_dimension_numbers<[1], [0], [0], [1], [0, 0, 1, 1], [], []>} : vector<128x768xbf16>, vector<768x256xbf16>, vector<128x256xf32> -> vector<128x256xf32>
    %27 = arith.addf %17, %26 : vector<128x256xf32>
    %28 = vector.extract_strided_slice %6 {offsets = [2, 0, 0], sizes = [8, 18, 256], strides = [1, 1, 1]} : vector<10x18x256xbf16> to vector<8x18x256xbf16>
    %29 = vector.extract_strided_slice %28 {offsets = [0, 0, 0], sizes = [8, 16, 256], strides = [1, 1, 1]} : vector<8x18x256xbf16> to vector<8x16x256xbf16>
    %30 = vector.extract_strided_slice %28 {offsets = [0, 1, 0], sizes = [8, 16, 256], strides = [1, 1, 1]} : vector<8x18x256xbf16> to vector<8x16x256xbf16>
    %31 = vector.extract_strided_slice %28 {offsets = [0, 2, 0], sizes = [8, 16, 256], strides = [1, 1, 1]} : vector<8x18x256xbf16> to vector<8x16x256xbf16>
    %32 = tpu.concatenate %29, %30, %31 in 2 : vector<8x16x256xbf16>, vector<8x16x256xbf16>, vector<8x16x256xbf16> -> vector<8x16x768xbf16>
    %33 = vector.shape_cast %32 : vector<8x16x768xbf16> to vector<128x768xbf16>
    %c2 = arith.constant 2 : index
    %c0_18 = arith.constant 0 : index
    %c0_19 = arith.constant 0 : index
    %34 = vector.load %arg6[%c2, %c0_18, %c0_19] : memref<3x768x256xbf16, #tpu.memory_space<vmem>>, vector<1x768x256xbf16>
    %35 = vector.shape_cast %34 : vector<1x768x256xbf16> to vector<768x256xbf16>
    %cst_20 = arith.constant dense<0.000000e+00> : vector<128x256xf32>
    %36 = tpu.matmul %33, %35, %cst_20 {dimension_numbers = #tpu.dot_dimension_numbers<[1], [0], [0], [1], [0, 0, 1, 1], [], []>} : vector<128x768xbf16>, vector<768x256xbf16>, vector<128x256xf32> -> vector<128x256xf32>
    %37 = arith.addf %27, %36 : vector<128x256xf32>
    %38 = vector.shape_cast %37 : vector<128x256xf32> to vector<1x8x16x256xf32>
    %39 = arith.truncf %38 : vector<1x8x16x256xf32> to vector<1x8x16x256xbf16>
    %c0_21 = arith.constant 0 : index
    %c0_22 = arith.constant 0 : index
    %c0_23 = arith.constant 0 : index
    %c0_24 = arith.constant 0 : index
    %40 = vector.load %arg7[%c0_21, %c0_22, %c0_23, %c0_24] : memref<1x8x16x256xbf16, #tpu.memory_space<vmem>>, vector<1x8x16x256xbf16>
    tpu.vector_store %arg7[%c0_21, %c0_22, %c0_23, %c0_24], %39 {strides = array<i32>} : memref<1x8x16x256xbf16, #tpu.memory_space<vmem>>, vector<1x8x16x256xbf16>,
    %cst_25 = arith.constant dense<0.000000e+00> : vector<256xf32>
    %41 = vector.multi_reduction <add>, %37, %cst_25 [0] : vector<128x256xf32> to vector<256xf32>
    %42 = vector.shape_cast %41 : vector<256xf32> to vector<1x256xf32>
    %cst_26 = arith.constant 1.280000e+02 : f32
    %43 = vector.broadcast %cst_26 : f32 to vector<1x256xf32>
    %44 = arith.divf %42, %43 : vector<1x256xf32>
    %45 = vector.broadcast %44 : vector<1x256xf32> to vector<128x256xf32>
    %46 = arith.subf %37, %45 : vector<128x256xf32>
    %47 = arith.mulf %46, %46 : vector<128x256xf32>
    %cst_27 = arith.constant dense<0.000000e+00> : vector<256xf32>
    %48 = vector.multi_reduction <add>, %47, %cst_27 [0] : vector<128x256xf32> to vector<256xf32>
    %49 = vector.shape_cast %48 : vector<256xf32> to vector<1x256xf32>
    %50 = vector.shape_cast %44 : vector<1x256xf32> to vector<1x1x1x256xf32>
    %51 = vector.shape_cast %49 : vector<1x256xf32> to vector<1x1x1x256xf32>
    %c0_i32 = arith.constant 0 : i32
    %52 = arith.cmpi eq, %arg2, %c0_i32 : i32
    %53 = arith.extui %52 : i1 to i32
    %c0_i32_28 = arith.constant 0 : i32
    %54 = arith.cmpi ne, %53, %c0_i32_28 : i32
    scf.if %54 {
      %c0_31 = arith.constant 0 : index
      %c0_32 = arith.constant 0 : index
      %c0_33 = arith.constant 0 : index
      %c0_34 = arith.constant 0 : index
      %58 = vector.load %arg8[%c0_31, %c0_32, %c0_33, %c0_34] : memref<1x1x1x256xf32, #tpu.memory_space<vmem>>, vector<1x1x1x256xf32>
      tpu.vector_store %arg8[%c0_31, %c0_32, %c0_33, %c0_34], %50 {strides = array<i32>} : memref<1x1x1x256xf32, #tpu.memory_space<vmem>>, vector<1x1x1x256xf32>,
      %c0_35 = arith.constant 0 : index
      %c0_36 = arith.constant 0 : index
      %c0_37 = arith.constant 0 : index
      %c0_38 = arith.constant 0 : index
      %59 = vector.load %arg9[%c0_35, %c0_36, %c0_37, %c0_38] : memref<1x1x1x256xf32, #tpu.memory_space<vmem>>, vector<1x1x1x256xf32>
      tpu.vector_store %arg9[%c0_35, %c0_36, %c0_37, %c0_38], %51 {strides = array<i32>} : memref<1x1x1x256xf32, #tpu.memory_space<vmem>>, vector<1x1x1x256xf32>,
    } else {
    }
    %c0_i32_29 = arith.constant 0 : i32
    %55 = arith.cmpi sgt, %arg2, %c0_i32_29 : i32
    %56 = arith.extui %55 : i1 to i32
    %c0_i32_30 = arith.constant 0 : i32
    %57 = arith.cmpi ne, %56, %c0_i32_30 : i32
    scf.if %57 {
      %58 = arith.sitofp %arg2 : i32 to f32
      %cst_31 = arith.constant 1.280000e+02 : f32
      %59 = arith.mulf %58, %cst_31 : f32
      %cst_32 = arith.constant 1.280000e+02 : f32
      %60 = arith.addf %59, %cst_32 : f32
      %c0_33 = arith.constant 0 : index
      %c0_34 = arith.constant 0 : index
      %c0_35 = arith.constant 0 : index
      %c0_36 = arith.constant 0 : index
      %61 = vector.load %arg8[%c0_33, %c0_34, %c0_35, %c0_36] : memref<1x1x1x256xf32, #tpu.memory_space<vmem>>, vector<1x1x1x256xf32>
      %62 = arith.subf %50, %61 : vector<1x1x1x256xf32>
      %c0_37 = arith.constant 0 : index
      %c0_38 = arith.constant 0 : index
      %c0_39 = arith.constant 0 : index
      %c0_40 = arith.constant 0 : index
      %63 = vector.load %arg8[%c0_37, %c0_38, %c0_39, %c0_40] : memref<1x1x1x256xf32, #tpu.memory_space<vmem>>, vector<1x1x1x256xf32>
      %cst_41 = arith.constant 1.280000e+02 : f32
      %64 = arith.divf %cst_41, %60 : f32
      %65 = vector.broadcast %64 : f32 to vector<1x1x1x256xf32>
      %66 = arith.mulf %62, %65 : vector<1x1x1x256xf32>
      %67 = arith.addf %63, %66 : vector<1x1x1x256xf32>
      %c0_42 = arith.constant 0 : index
      %c0_43 = arith.constant 0 : index
      %c0_44 = arith.constant 0 : index
      %c0_45 = arith.constant 0 : index
      %68 = vector.load %arg8[%c0_42, %c0_43, %c0_44, %c0_45] : memref<1x1x1x256xf32, #tpu.memory_space<vmem>>, vector<1x1x1x256xf32>
      tpu.vector_store %arg8[%c0_42, %c0_43, %c0_44, %c0_45], %67 {strides = array<i32>} : memref<1x1x1x256xf32, #tpu.memory_space<vmem>>, vector<1x1x1x256xf32>,
      %c0_46 = arith.constant 0 : index
      %c0_47 = arith.constant 0 : index
      %c0_48 = arith.constant 0 : index
      %c0_49 = arith.constant 0 : index
      %69 = vector.load %arg9[%c0_46, %c0_47, %c0_48, %c0_49] : memref<1x1x1x256xf32, #tpu.memory_space<vmem>>, vector<1x1x1x256xf32>
      %70 = arith.addf %69, %51 : vector<1x1x1x256xf32>
      %71 = arith.mulf %62, %62 : vector<1x1x1x256xf32>
      %cst_50 = arith.constant 1.280000e+02 : f32
      %72 = arith.mulf %59, %cst_50 : f32
      %73 = arith.divf %72, %60 : f32
      %74 = vector.broadcast %73 : f32 to vector<1x1x1x256xf32>
      %75 = arith.mulf %71, %74 : vector<1x1x1x256xf32>
      %76 = arith.addf %70, %75 : vector<1x1x1x256xf32>
      %c0_51 = arith.constant 0 : index
      %c0_52 = arith.constant 0 : index
      %c0_53 = arith.constant 0 : index
      %c0_54 = arith.constant 0 : index
      %77 = vector.load %arg9[%c0_51, %c0_52, %c0_53, %c0_54] : memref<1x1x1x256xf32, #tpu.memory_space<vmem>>, vector<1x1x1x256xf32>
      tpu.vector_store %arg9[%c0_51, %c0_52, %c0_53, %c0_54], %76 {strides = array<i32>} : memref<1x1x1x256xf32, #tpu.memory_space<vmem>>, vector<1x1x1x256xf32>,
    } else {
    }
    return
  }
  func.func @transform_0(%arg0: i32, %arg1: i32, %arg2: i32) -> (i32, i32, i32, i32) {
    %c1_i32 = arith.constant 1 : i32
    %0 = arith.muli %arg1, %c1_i32 : i32
    %1 = arith.addi %0, %arg2 : i32
    %c0_i32 = arith.constant 0 : i32
    %c0_i32_0 = arith.constant 0 : i32
    %c0_i32_1 = arith.constant 0 : i32
    return %arg0, %1, %c0_i32, %c0_i32_0 : i32, i32, i32, i32
  }
  func.func @transform_1(%arg0: i32, %arg1: i32, %arg2: i32) -> (i32, i32, i32, i32) {
    %c8_i32 = arith.constant 8 : i32
    %0 = arith.muli %arg1, %c8_i32 : i32
    %c1_i32 = arith.constant 1 : i32
    %1 = arith.addi %arg2, %c1_i32 : i32
    %c8_i32_0 = arith.constant 8 : i32
    %2 = arith.muli %1, %c8_i32_0 : i32
    %3 = arith.addi %0, %2 : i32
    %c0_i32 = arith.constant 0 : i32
    %c0_i32_1 = arith.constant 0 : i32
    %c0_i32_2 = arith.constant 0 : i32
    return %arg0, %3, %c0_i32, %c0_i32_1 : i32, i32, i32, i32
  }
  func.func @transform_2(%arg0: i32, %arg1: i32, %arg2: i32) -> (i32, i32, i32, i32) {
    %c8_i32 = arith.constant 8 : i32
    %0 = arith.muli %arg1, %c8_i32 : i32
    %c1_i32 = arith.constant 1 : i32
    %1 = arith.addi %arg2, %c1_i32 : i32
    %c8_i32_0 = arith.constant 8 : i32
    %2 = arith.muli %1, %c8_i32_0 : i32
    %3 = arith.addi %0, %2 : i32
    %c1_i32_1 = arith.constant 1 : i32
    %4 = arith.addi %3, %c1_i32_1 : i32
    %c0_i32 = arith.constant 0 : i32
    %c0_i32_2 = arith.constant 0 : i32
    %c0_i32_3 = arith.constant 0 : i32
    return %arg0, %4, %c0_i32, %c0_i32_2 : i32, i32, i32, i32
  }
  func.func @transform_3(%arg0: i32, %arg1: i32, %arg2: i32) -> (i32, i32, i32) {
    %c0_i32 = arith.constant 0 : i32
    %c0_i32_0 = arith.constant 0 : i32
    %c0_i32_1 = arith.constant 0 : i32
    %c0_i32_2 = arith.constant 0 : i32
    return %c0_i32, %c0_i32_0, %c0_i32_1 : i32, i32, i32
  }
  func.func @transform_4(%arg0: i32, %arg1: i32, %arg2: i32) -> (i32, i32, i32, i32) {
    %c1_i32 = arith.constant 1 : i32
    %0 = arith.muli %arg1, %c1_i32 : i32
    %1 = arith.addi %0, %arg2 : i32
    %c0_i32 = arith.constant 0 : i32
    %c0_i32_0 = arith.constant 0 : i32
    %c0_i32_1 = arith.constant 0 : i32
    return %arg0, %1, %c0_i32, %c0_i32_0 : i32, i32, i32, i32
  }
  func.func @transform_5(%arg0: i32, %arg1: i32, %arg2: i32) -> (i32, i32, i32, i32) {
    %c0_i32 = arith.constant 0 : i32
    %c0_i32_0 = arith.constant 0 : i32
    %c0_i32_1 = arith.constant 0 : i32
    return %arg0, %arg1, %c0_i32, %c0_i32_0 : i32, i32, i32, i32
  }
  func.func @transform_6(%arg0: i32, %arg1: i32, %arg2: i32) -> (i32, i32, i32, i32) {
    %c0_i32 = arith.constant 0 : i32
    %c0_i32_0 = arith.constant 0 : i32
    %c0_i32_1 = arith.constant 0 : i32
    return %arg0, %arg1, %c0_i32, %c0_i32_0 : i32, i32, i32, i32
  }
}

module attributes {stable_mosaic.version = 11 : i64} {
  func.func @_in_residual_kernel(%arg0: i32, %arg1: i32, %arg2: memref<1x16x16x256xbf16, #tpu.memory_space<vmem>>, %arg3: memref<1x1x256xf32, #tpu.memory_space<vmem>>, %arg4: memref<1x1x256xf32, #tpu.memory_space<vmem>>, %arg5: memref<1x16x16x256xf32, #tpu.memory_space<vmem>>, %arg6: memref<1x16x16x256xf32, #tpu.memory_space<vmem>>) attributes {dimension_semantics = [#tpu.dimension_semantics<parallel>, #tpu.dimension_semantics<parallel>], iteration_bounds = array<i64: 2, 1>, scalar_prefetch = 0 : i64, scratch_operands = 0 : i64, tpu.core_type = #tpu.core_type<tc>, window_params = [{transform_indices = @transform_0, window_bounds = array<i64: 1, 16, 16, 256>}, {transform_indices = @transform_1, window_bounds = array<i64: 1, 1, 256>}, {transform_indices = @transform_2, window_bounds = array<i64: 1, 1, 256>}, {transform_indices = @transform_3, window_bounds = array<i64: 1, 16, 16, 256>}, {transform_indices = @transform_4, window_bounds = array<i64: 1, 16, 16, 256>}]} {
    %c0 = arith.constant 0 : index
    %c0_0 = arith.constant 0 : index
    %c0_1 = arith.constant 0 : index
    %c0_2 = arith.constant 0 : index
    %0 = vector.load %arg2[%c0, %c0_0, %c0_1, %c0_2] : memref<1x16x16x256xbf16, #tpu.memory_space<vmem>>, vector<1x16x16x256xbf16>
    %1 = arith.extf %0 : vector<1x16x16x256xbf16> to vector<1x16x16x256xf32>
    %c0_3 = arith.constant 0 : index
    %c0_4 = arith.constant 0 : index
    %c0_5 = arith.constant 0 : index
    %2 = vector.load %arg3[%c0_3, %c0_4, %c0_5] : memref<1x1x256xf32, #tpu.memory_space<vmem>>, vector<1x1x256xf32>
    %3 = vector.shape_cast %2 : vector<1x1x256xf32> to vector<1x1x1x256xf32>
    %4 = vector.broadcast %3 : vector<1x1x1x256xf32> to vector<1x16x16x256xf32>
    %5 = arith.subf %1, %4 : vector<1x16x16x256xf32>
    %c0_6 = arith.constant 0 : index
    %c0_7 = arith.constant 0 : index
    %c0_8 = arith.constant 0 : index
    %6 = vector.load %arg4[%c0_6, %c0_7, %c0_8] : memref<1x1x256xf32, #tpu.memory_space<vmem>>, vector<1x1x256xf32>
    %7 = vector.shape_cast %6 : vector<1x1x256xf32> to vector<1x1x1x256xf32>
    %8 = vector.broadcast %7 : vector<1x1x1x256xf32> to vector<1x16x16x256xf32>
    %9 = arith.mulf %5, %8 : vector<1x16x16x256xf32>
    %c0_9 = arith.constant 0 : index
    %c0_10 = arith.constant 0 : index
    %c0_11 = arith.constant 0 : index
    %c0_12 = arith.constant 0 : index
    %10 = vector.load %arg5[%c0_9, %c0_10, %c0_11, %c0_12] : memref<1x16x16x256xf32, #tpu.memory_space<vmem>>, vector<1x16x16x256xf32>
    %11 = arith.addf %10, %9 : vector<1x16x16x256xf32>
    %c0_13 = arith.constant 0 : index
    %c0_14 = arith.constant 0 : index
    %c0_15 = arith.constant 0 : index
    %c0_16 = arith.constant 0 : index
    %12 = vector.load %arg6[%c0_13, %c0_14, %c0_15, %c0_16] : memref<1x16x16x256xf32, #tpu.memory_space<vmem>>, vector<1x16x16x256xf32>
    tpu.vector_store %arg6[%c0_13, %c0_14, %c0_15, %c0_16], %11 {strides = array<i32>} : memref<1x16x16x256xf32, #tpu.memory_space<vmem>>, vector<1x16x16x256xf32>,
    return
  }
  func.func @transform_0(%arg0: i32, %arg1: i32) -> (i32, i32, i32, i32) {
    %c0_i32 = arith.constant 0 : i32
    %c0_i32_0 = arith.constant 0 : i32
    %c0_i32_1 = arith.constant 0 : i32
    return %arg0, %arg1, %c0_i32, %c0_i32_0 : i32, i32, i32, i32
  }
  func.func @transform_1(%arg0: i32, %arg1: i32) -> (i32, i32, i32) {
    %c0_i32 = arith.constant 0 : i32
    %c0_i32_0 = arith.constant 0 : i32
    %c0_i32_1 = arith.constant 0 : i32
    return %arg0, %c0_i32, %c0_i32_0 : i32, i32, i32
  }
  func.func @transform_2(%arg0: i32, %arg1: i32) -> (i32, i32, i32) {
    %c0_i32 = arith.constant 0 : i32
    %c0_i32_0 = arith.constant 0 : i32
    %c0_i32_1 = arith.constant 0 : i32
    return %arg0, %c0_i32, %c0_i32_0 : i32, i32, i32
  }
  func.func @transform_3(%arg0: i32, %arg1: i32) -> (i32, i32, i32, i32) {
    %c0_i32 = arith.constant 0 : i32
    %c0_i32_0 = arith.constant 0 : i32
    %c0_i32_1 = arith.constant 0 : i32
    return %arg0, %arg1, %c0_i32, %c0_i32_0 : i32, i32, i32, i32
  }
  func.func @transform_4(%arg0: i32, %arg1: i32) -> (i32, i32, i32, i32) {
    %c0_i32 = arith.constant 0 : i32
    %c0_i32_0 = arith.constant 0 : i32
    %c0_i32_1 = arith.constant 0 : i32
    return %arg0, %arg1, %c0_i32, %c0_i32_0 : i32, i32, i32, i32
  }
}

module attributes {stable_mosaic.version = 11 : i64} {
  func.func @_conv_in_relu_kernel(%arg0: i32, %arg1: i32, %arg2: i32, %arg3: memref<1x8x18x256xbf16, #tpu.memory_space<vmem>>, %arg4: memref<1x1x18x256xbf16, #tpu.memory_space<vmem>>, %arg5: memref<1x1x18x256xbf16, #tpu.memory_space<vmem>>, %arg6: memref<1x1x256xf32, #tpu.memory_space<vmem>>, %arg7: memref<1x1x256xf32, #tpu.memory_space<vmem>>, %arg8: memref<3x768x256xbf16, #tpu.memory_space<vmem>>, %arg9: memref<1x8x16x256xbf16, #tpu.memory_space<vmem>>, %arg10: memref<1x1x1x256xf32, #tpu.memory_space<vmem>>, %arg11: memref<1x1x1x256xf32, #tpu.memory_space<vmem>>) attributes {dimension_semantics = [#tpu.dimension_semantics<parallel>, #tpu.dimension_semantics<parallel>, #tpu.dimension_semantics<arbitrary>], iteration_bounds = array<i64: 2, 2, 1>, scalar_prefetch = 0 : i64, scratch_operands = 0 : i64, tpu.core_type = #tpu.core_type<tc>, window_params = [{transform_indices = @transform_0, window_bounds = array<i64: 1, 8, 18, 256>}, {transform_indices = @transform_1, window_bounds = array<i64: 1, 1, 18, 256>}, {transform_indices = @transform_2, window_bounds = array<i64: 1, 1, 18, 256>}, {transform_indices = @transform_3, window_bounds = array<i64: 1, 1, 256>}, {transform_indices = @transform_4, window_bounds = array<i64: 1, 1, 256>}, {pipeline_mode = #tpu.pipeline_mode<synchronous>, transform_indices = @transform_5, window_bounds = array<i64: 3, 768, 256>}, {transform_indices = @transform_6, window_bounds = array<i64: 1, 8, 16, 256>}, {transform_indices = @transform_7, window_bounds = array<i64: 1, 1, 1, 256>}, {transform_indices = @transform_8, window_bounds = array<i64: 1, 1, 1, 256>}]} {
    %c0 = arith.constant 0 : index
    %c0_0 = arith.constant 0 : index
    %c0_1 = arith.constant 0 : index
    %c0_2 = arith.constant 0 : index
    %0 = vector.load %arg3[%c0, %c0_0, %c0_1, %c0_2] : memref<1x8x18x256xbf16, #tpu.memory_space<vmem>>, vector<1x8x18x256xbf16>
    %1 = vector.shape_cast %0 : vector<1x8x18x256xbf16> to vector<8x18x256xbf16>
    %c0_3 = arith.constant 0 : index
    %c0_4 = arith.constant 0 : index
    %c0_5 = arith.constant 0 : index
    %c0_6 = arith.constant 0 : index
    %2 = vector.load %arg4[%c0_3, %c0_4, %c0_5, %c0_6] : memref<1x1x18x256xbf16, #tpu.memory_space<vmem>>, vector<1x1x18x256xbf16>
    %3 = vector.shape_cast %2 : vector<1x1x18x256xbf16> to vector<1x18x256xbf16>
    %c0_7 = arith.constant 0 : index
    %c0_8 = arith.constant 0 : index
    %c0_9 = arith.constant 0 : index
    %c0_10 = arith.constant 0 : index
    %4 = vector.load %arg5[%c0_7, %c0_8, %c0_9, %c0_10] : memref<1x1x18x256xbf16, #tpu.memory_space<vmem>>, vector<1x1x18x256xbf16>
    %5 = vector.shape_cast %4 : vector<1x1x18x256xbf16> to vector<1x18x256xbf16>
    %6 = tpu.concatenate %1, %3, %5 in 0 : vector<8x18x256xbf16>, vector<1x18x256xbf16>, vector<1x18x256xbf16> -> vector<10x18x256xbf16>
    %7 = arith.extf %6 : vector<10x18x256xbf16> to vector<10x18x256xf32>
    %c0_11 = arith.constant 0 : index
    %c0_12 = arith.constant 0 : index
    %c0_13 = arith.constant 0 : index
    %8 = vector.load %arg6[%c0_11, %c0_12, %c0_13] : memref<1x1x256xf32, #tpu.memory_space<vmem>>, vector<1x1x256xf32>
    %9 = vector.broadcast %8 : vector<1x1x256xf32> to vector<10x18x256xf32>
    %10 = arith.subf %7, %9 : vector<10x18x256xf32>
    %c0_14 = arith.constant 0 : index
    %c0_15 = arith.constant 0 : index
    %c0_16 = arith.constant 0 : index
    %11 = vector.load %arg7[%c0_14, %c0_15, %c0_16] : memref<1x1x256xf32, #tpu.memory_space<vmem>>, vector<1x1x256xf32>
    %12 = vector.broadcast %11 : vector<1x1x256xf32> to vector<10x18x256xf32>
    %13 = arith.mulf %10, %12 : vector<10x18x256xf32>
    %cst = arith.constant 0.000000e+00 : f32
    %14 = vector.broadcast %cst : f32 to vector<10x18x256xf32>
    %15 = arith.maximumf %13, %14 : vector<10x18x256xf32>
    %16 = arith.truncf %15 : vector<10x18x256xf32> to vector<10x18x256xbf16>
    %cst_17 = arith.constant 0.000000e+00 : f32
    %17 = vector.broadcast %cst_17 : f32 to vector<128x256xf32>
    %18 = vector.extract_strided_slice %16 {offsets = [0, 0, 0], sizes = [8, 18, 256], strides = [1, 1, 1]} : vector<10x18x256xbf16> to vector<8x18x256xbf16>
    %19 = vector.extract_strided_slice %18 {offsets = [0, 0, 0], sizes = [8, 16, 256], strides = [1, 1, 1]} : vector<8x18x256xbf16> to vector<8x16x256xbf16>
    %20 = vector.extract_strided_slice %18 {offsets = [0, 1, 0], sizes = [8, 16, 256], strides = [1, 1, 1]} : vector<8x18x256xbf16> to vector<8x16x256xbf16>
    %21 = vector.extract_strided_slice %18 {offsets = [0, 2, 0], sizes = [8, 16, 256], strides = [1, 1, 1]} : vector<8x18x256xbf16> to vector<8x16x256xbf16>
    %22 = tpu.concatenate %19, %20, %21 in 2 : vector<8x16x256xbf16>, vector<8x16x256xbf16>, vector<8x16x256xbf16> -> vector<8x16x768xbf16>
    %23 = vector.shape_cast %22 : vector<8x16x768xbf16> to vector<128x768xbf16>
    %c0_18 = arith.constant 0 : index
    %c0_19 = arith.constant 0 : index
    %c0_20 = arith.constant 0 : index
    %24 = vector.load %arg8[%c0_18, %c0_19, %c0_20] : memref<3x768x256xbf16, #tpu.memory_space<vmem>>, vector<1x768x256xbf16>
    %25 = vector.shape_cast %24 : vector<1x768x256xbf16> to vector<768x256xbf16>
    %cst_21 = arith.constant dense<0.000000e+00> : vector<128x256xf32>
    %26 = tpu.matmul %23, %25, %cst_21 {dimension_numbers = #tpu.dot_dimension_numbers<[1], [0], [0], [1], [0, 0, 1, 1], [], []>} : vector<128x768xbf16>, vector<768x256xbf16>, vector<128x256xf32> -> vector<128x256xf32>
    %27 = arith.addf %17, %26 : vector<128x256xf32>
    %28 = vector.extract_strided_slice %16 {offsets = [1, 0, 0], sizes = [8, 18, 256], strides = [1, 1, 1]} : vector<10x18x256xbf16> to vector<8x18x256xbf16>
    %29 = vector.extract_strided_slice %28 {offsets = [0, 0, 0], sizes = [8, 16, 256], strides = [1, 1, 1]} : vector<8x18x256xbf16> to vector<8x16x256xbf16>
    %30 = vector.extract_strided_slice %28 {offsets = [0, 1, 0], sizes = [8, 16, 256], strides = [1, 1, 1]} : vector<8x18x256xbf16> to vector<8x16x256xbf16>
    %31 = vector.extract_strided_slice %28 {offsets = [0, 2, 0], sizes = [8, 16, 256], strides = [1, 1, 1]} : vector<8x18x256xbf16> to vector<8x16x256xbf16>
    %32 = tpu.concatenate %29, %30, %31 in 2 : vector<8x16x256xbf16>, vector<8x16x256xbf16>, vector<8x16x256xbf16> -> vector<8x16x768xbf16>
    %33 = vector.shape_cast %32 : vector<8x16x768xbf16> to vector<128x768xbf16>
    %c1 = arith.constant 1 : index
    %c0_22 = arith.constant 0 : index
    %c0_23 = arith.constant 0 : index
    %34 = vector.load %arg8[%c1, %c0_22, %c0_23] : memref<3x768x256xbf16, #tpu.memory_space<vmem>>, vector<1x768x256xbf16>
    %35 = vector.shape_cast %34 : vector<1x768x256xbf16> to vector<768x256xbf16>
    %cst_24 = arith.constant dense<0.000000e+00> : vector<128x256xf32>
    %36 = tpu.matmul %33, %35, %cst_24 {dimension_numbers = #tpu.dot_dimension_numbers<[1], [0], [0], [1], [0, 0, 1, 1], [], []>} : vector<128x768xbf16>, vector<768x256xbf16>, vector<128x256xf32> -> vector<128x256xf32>
    %37 = arith.addf %27, %36 : vector<128x256xf32>
    %38 = vector.extract_strided_slice %16 {offsets = [2, 0, 0], sizes = [8, 18, 256], strides = [1, 1, 1]} : vector<10x18x256xbf16> to vector<8x18x256xbf16>
    %39 = vector.extract_strided_slice %38 {offsets = [0, 0, 0], sizes = [8, 16, 256], strides = [1, 1, 1]} : vector<8x18x256xbf16> to vector<8x16x256xbf16>
    %40 = vector.extract_strided_slice %38 {offsets = [0, 1, 0], sizes = [8, 16, 256], strides = [1, 1, 1]} : vector<8x18x256xbf16> to vector<8x16x256xbf16>
    %41 = vector.extract_strided_slice %38 {offsets = [0, 2, 0], sizes = [8, 16, 256], strides = [1, 1, 1]} : vector<8x18x256xbf16> to vector<8x16x256xbf16>
    %42 = tpu.concatenate %39, %40, %41 in 2 : vector<8x16x256xbf16>, vector<8x16x256xbf16>, vector<8x16x256xbf16> -> vector<8x16x768xbf16>
    %43 = vector.shape_cast %42 : vector<8x16x768xbf16> to vector<128x768xbf16>
    %c2 = arith.constant 2 : index
    %c0_25 = arith.constant 0 : index
    %c0_26 = arith.constant 0 : index
    %44 = vector.load %arg8[%c2, %c0_25, %c0_26] : memref<3x768x256xbf16, #tpu.memory_space<vmem>>, vector<1x768x256xbf16>
    %45 = vector.shape_cast %44 : vector<1x768x256xbf16> to vector<768x256xbf16>
    %cst_27 = arith.constant dense<0.000000e+00> : vector<128x256xf32>
    %46 = tpu.matmul %43, %45, %cst_27 {dimension_numbers = #tpu.dot_dimension_numbers<[1], [0], [0], [1], [0, 0, 1, 1], [], []>} : vector<128x768xbf16>, vector<768x256xbf16>, vector<128x256xf32> -> vector<128x256xf32>
    %47 = arith.addf %37, %46 : vector<128x256xf32>
    %48 = vector.shape_cast %47 : vector<128x256xf32> to vector<1x8x16x256xf32>
    %49 = arith.truncf %48 : vector<1x8x16x256xf32> to vector<1x8x16x256xbf16>
    %c0_28 = arith.constant 0 : index
    %c0_29 = arith.constant 0 : index
    %c0_30 = arith.constant 0 : index
    %c0_31 = arith.constant 0 : index
    %50 = vector.load %arg9[%c0_28, %c0_29, %c0_30, %c0_31] : memref<1x8x16x256xbf16, #tpu.memory_space<vmem>>, vector<1x8x16x256xbf16>
    tpu.vector_store %arg9[%c0_28, %c0_29, %c0_30, %c0_31], %49 {strides = array<i32>} : memref<1x8x16x256xbf16, #tpu.memory_space<vmem>>, vector<1x8x16x256xbf16>,
    %cst_32 = arith.constant dense<0.000000e+00> : vector<256xf32>
    %51 = vector.multi_reduction <add>, %47, %cst_32 [0] : vector<128x256xf32> to vector<256xf32>
    %52 = vector.shape_cast %51 : vector<256xf32> to vector<1x256xf32>
    %cst_33 = arith.constant 1.280000e+02 : f32
    %53 = vector.broadcast %cst_33 : f32 to vector<1x256xf32>
    %54 = arith.divf %52, %53 : vector<1x256xf32>
    %55 = vector.broadcast %54 : vector<1x256xf32> to vector<128x256xf32>
    %56 = arith.subf %47, %55 : vector<128x256xf32>
    %57 = arith.mulf %56, %56 : vector<128x256xf32>
    %cst_34 = arith.constant dense<0.000000e+00> : vector<256xf32>
    %58 = vector.multi_reduction <add>, %57, %cst_34 [0] : vector<128x256xf32> to vector<256xf32>
    %59 = vector.shape_cast %58 : vector<256xf32> to vector<1x256xf32>
    %60 = vector.shape_cast %54 : vector<1x256xf32> to vector<1x1x1x256xf32>
    %61 = vector.shape_cast %59 : vector<1x256xf32> to vector<1x1x1x256xf32>
    %c0_i32 = arith.constant 0 : i32
    %62 = arith.cmpi eq, %arg2, %c0_i32 : i32
    %63 = arith.extui %62 : i1 to i32
    %c0_i32_35 = arith.constant 0 : i32
    %64 = arith.cmpi ne, %63, %c0_i32_35 : i32
    scf.if %64 {
      %c0_38 = arith.constant 0 : index
      %c0_39 = arith.constant 0 : index
      %c0_40 = arith.constant 0 : index
      %c0_41 = arith.constant 0 : index
      %68 = vector.load %arg10[%c0_38, %c0_39, %c0_40, %c0_41] : memref<1x1x1x256xf32, #tpu.memory_space<vmem>>, vector<1x1x1x256xf32>
      tpu.vector_store %arg10[%c0_38, %c0_39, %c0_40, %c0_41], %60 {strides = array<i32>} : memref<1x1x1x256xf32, #tpu.memory_space<vmem>>, vector<1x1x1x256xf32>,
      %c0_42 = arith.constant 0 : index
      %c0_43 = arith.constant 0 : index
      %c0_44 = arith.constant 0 : index
      %c0_45 = arith.constant 0 : index
      %69 = vector.load %arg11[%c0_42, %c0_43, %c0_44, %c0_45] : memref<1x1x1x256xf32, #tpu.memory_space<vmem>>, vector<1x1x1x256xf32>
      tpu.vector_store %arg11[%c0_42, %c0_43, %c0_44, %c0_45], %61 {strides = array<i32>} : memref<1x1x1x256xf32, #tpu.memory_space<vmem>>, vector<1x1x1x256xf32>,
    } else {
    }
    %c0_i32_36 = arith.constant 0 : i32
    %65 = arith.cmpi sgt, %arg2, %c0_i32_36 : i32
    %66 = arith.extui %65 : i1 to i32
    %c0_i32_37 = arith.constant 0 : i32
    %67 = arith.cmpi ne, %66, %c0_i32_37 : i32
    scf.if %67 {
      %68 = arith.sitofp %arg2 : i32 to f32
      %cst_38 = arith.constant 1.280000e+02 : f32
      %69 = arith.mulf %68, %cst_38 : f32
      %cst_39 = arith.constant 1.280000e+02 : f32
      %70 = arith.addf %69, %cst_39 : f32
      %c0_40 = arith.constant 0 : index
      %c0_41 = arith.constant 0 : index
      %c0_42 = arith.constant 0 : index
      %c0_43 = arith.constant 0 : index
      %71 = vector.load %arg10[%c0_40, %c0_41, %c0_42, %c0_43] : memref<1x1x1x256xf32, #tpu.memory_space<vmem>>, vector<1x1x1x256xf32>
      %72 = arith.subf %60, %71 : vector<1x1x1x256xf32>
      %c0_44 = arith.constant 0 : index
      %c0_45 = arith.constant 0 : index
      %c0_46 = arith.constant 0 : index
      %c0_47 = arith.constant 0 : index
      %73 = vector.load %arg10[%c0_44, %c0_45, %c0_46, %c0_47] : memref<1x1x1x256xf32, #tpu.memory_space<vmem>>, vector<1x1x1x256xf32>
      %cst_48 = arith.constant 1.280000e+02 : f32
      %74 = arith.divf %cst_48, %70 : f32
      %75 = vector.broadcast %74 : f32 to vector<1x1x1x256xf32>
      %76 = arith.mulf %72, %75 : vector<1x1x1x256xf32>
      %77 = arith.addf %73, %76 : vector<1x1x1x256xf32>
      %c0_49 = arith.constant 0 : index
      %c0_50 = arith.constant 0 : index
      %c0_51 = arith.constant 0 : index
      %c0_52 = arith.constant 0 : index
      %78 = vector.load %arg10[%c0_49, %c0_50, %c0_51, %c0_52] : memref<1x1x1x256xf32, #tpu.memory_space<vmem>>, vector<1x1x1x256xf32>
      tpu.vector_store %arg10[%c0_49, %c0_50, %c0_51, %c0_52], %77 {strides = array<i32>} : memref<1x1x1x256xf32, #tpu.memory_space<vmem>>, vector<1x1x1x256xf32>,
      %c0_53 = arith.constant 0 : index
      %c0_54 = arith.constant 0 : index
      %c0_55 = arith.constant 0 : index
      %c0_56 = arith.constant 0 : index
      %79 = vector.load %arg11[%c0_53, %c0_54, %c0_55, %c0_56] : memref<1x1x1x256xf32, #tpu.memory_space<vmem>>, vector<1x1x1x256xf32>
      %80 = arith.addf %79, %61 : vector<1x1x1x256xf32>
      %81 = arith.mulf %72, %72 : vector<1x1x1x256xf32>
      %cst_57 = arith.constant 1.280000e+02 : f32
      %82 = arith.mulf %69, %cst_57 : f32
      %83 = arith.divf %82, %70 : f32
      %84 = vector.broadcast %83 : f32 to vector<1x1x1x256xf32>
      %85 = arith.mulf %81, %84 : vector<1x1x1x256xf32>
      %86 = arith.addf %80, %85 : vector<1x1x1x256xf32>
      %c0_58 = arith.constant 0 : index
      %c0_59 = arith.constant 0 : index
      %c0_60 = arith.constant 0 : index
      %c0_61 = arith.constant 0 : index
      %87 = vector.load %arg11[%c0_58, %c0_59, %c0_60, %c0_61] : memref<1x1x1x256xf32, #tpu.memory_space<vmem>>, vector<1x1x1x256xf32>
      tpu.vector_store %arg11[%c0_58, %c0_59, %c0_60, %c0_61], %86 {strides = array<i32>} : memref<1x1x1x256xf32, #tpu.memory_space<vmem>>, vector<1x1x1x256xf32>,
    } else {
    }
    return
  }
  func.func @transform_0(%arg0: i32, %arg1: i32, %arg2: i32) -> (i32, i32, i32, i32) {
    %c1_i32 = arith.constant 1 : i32
    %0 = arith.muli %arg1, %c1_i32 : i32
    %1 = arith.addi %0, %arg2 : i32
    %c0_i32 = arith.constant 0 : i32
    %c0_i32_0 = arith.constant 0 : i32
    %c0_i32_1 = arith.constant 0 : i32
    return %arg0, %1, %c0_i32, %c0_i32_0 : i32, i32, i32, i32
  }
  func.func @transform_1(%arg0: i32, %arg1: i32, %arg2: i32) -> (i32, i32, i32, i32) {
    %c8_i32 = arith.constant 8 : i32
    %0 = arith.muli %arg1, %c8_i32 : i32
    %c1_i32 = arith.constant 1 : i32
    %1 = arith.addi %arg2, %c1_i32 : i32
    %c8_i32_0 = arith.constant 8 : i32
    %2 = arith.muli %1, %c8_i32_0 : i32
    %3 = arith.addi %0, %2 : i32
    %c0_i32 = arith.constant 0 : i32
    %c0_i32_1 = arith.constant 0 : i32
    %c0_i32_2 = arith.constant 0 : i32
    return %arg0, %3, %c0_i32, %c0_i32_1 : i32, i32, i32, i32
  }
  func.func @transform_2(%arg0: i32, %arg1: i32, %arg2: i32) -> (i32, i32, i32, i32) {
    %c8_i32 = arith.constant 8 : i32
    %0 = arith.muli %arg1, %c8_i32 : i32
    %c1_i32 = arith.constant 1 : i32
    %1 = arith.addi %arg2, %c1_i32 : i32
    %c8_i32_0 = arith.constant 8 : i32
    %2 = arith.muli %1, %c8_i32_0 : i32
    %3 = arith.addi %0, %2 : i32
    %c1_i32_1 = arith.constant 1 : i32
    %4 = arith.addi %3, %c1_i32_1 : i32
    %c0_i32 = arith.constant 0 : i32
    %c0_i32_2 = arith.constant 0 : i32
    %c0_i32_3 = arith.constant 0 : i32
    return %arg0, %4, %c0_i32, %c0_i32_2 : i32, i32, i32, i32
  }
  func.func @transform_3(%arg0: i32, %arg1: i32, %arg2: i32) -> (i32, i32, i32) {
    %c0_i32 = arith.constant 0 : i32
    %c0_i32_0 = arith.constant 0 : i32
    %c0_i32_1 = arith.constant 0 : i32
    return %arg0, %c0_i32, %c0_i32_0 : i32, i32, i32
  }
  func.func @transform_4(%arg0: i32, %arg1: i32, %arg2: i32) -> (i32, i32, i32) {
    %c0_i32 = arith.constant 0 : i32
    %c0_i32_0 = arith.constant 0 : i32
    %c0_i32_1 = arith.constant 0 : i32
    return %arg0, %c0_i32, %c0_i32_0 : i32, i32, i32
  }
  func.func @transform_5(%arg0: i32, %arg1: i32, %arg2: i32) -> (i32, i32, i32) {
    %c0_i32 = arith.constant 0 : i32
    %c0_i32_0 = arith.constant 0 : i32
    %c0_i32_1 = arith.constant 0 : i32
    %c0_i32_2 = arith.constant 0 : i32
    return %c0_i32, %c0_i32_0, %c0_i32_1 : i32, i32, i32
  }
  func.func @transform_6(%arg0: i32, %arg1: i32, %arg2: i32) -> (i32, i32, i32, i32) {
    %c1_i32 = arith.constant 1 : i32
    %0 = arith.muli %arg1, %c1_i32 : i32
    %1 = arith.addi %0, %arg2 : i32
    %c0_i32 = arith.constant 0 : i32
    %c0_i32_0 = arith.constant 0 : i32
    %c0_i32_1 = arith.constant 0 : i32
    return %arg0, %1, %c0_i32, %c0_i32_0 : i32, i32, i32, i32
  }
  func.func @transform_7(%arg0: i32, %arg1: i32, %arg2: i32) -> (i32, i32, i32, i32) {
    %c0_i32 = arith.constant 0 : i32
    %c0_i32_0 = arith.constant 0 : i32
    %c0_i32_1 = arith.constant 0 : i32
    return %arg0, %arg1, %c0_i32, %c0_i32_0 : i32, i32, i32, i32
  }
  func.func @transform_8(%arg0: i32, %arg1: i32, %arg2: i32) -> (i32, i32, i32, i32) {
    %c0_i32 = arith.constant 0 : i32
    %c0_i32_0 = arith.constant 0 : i32
    %c0_i32_1 = arith.constant 0 : i32
    return %arg0, %arg1, %c0_i32, %c0_i32_0 : i32, i32, i32, i32
  }
}

</mosaic_0001>

<llo_original>
// kernel: resnet_forward.5
$region0: #{resnet_forward.5}
  #allocation0 [shape = 'u32[]', space=smem, size = 0x4, offset = 0x4, fixed_abs, tag = 'smem constant byte address 0x4 - core index']
  #allocation1 [shape = 'u32[144,128]{1,0:T(1,128)}', space=vmem, size = 0x12000, scoped, tag = 'internal scratch']
  %s0 = inlined_call_operand.vmem [shape: bf16[2,16,16,256], index: 0, kind: input, shape index: {}]
  %s1 = inlined_call_operand.vmem [shape: f32[2,1,256], index: 1, kind: input, shape index: {}]
  %s2 = inlined_call_operand.vmem [shape: f32[2,1,256], index: 2, kind: input, shape index: {}]
  %s3 = inlined_call_operand.vmem [shape: f32[2,16,16,256], index: 3, kind: input, shape index: {}]
  %s4 = inlined_call_operand.hbm [shape: f32[2,16,16,256], index: 4, kind: output, shape index: {}]
  %s5 = sld [smem:[#allocation0]]
  $region49: #{resnet_forward.5} parent=0
    _
  %s7 = ssub.s32 1, %s5
  %s8 = scalar_select 0, %s7, %s5
  $region1: #{resnet_forward.5} parent=0
    #allocation2 [shape = 'u8[524288]{0}', space=vmem, size = 0x80000, scoped, tag = 'output window, operand 0']
    #allocation3 [shape = 's32[2]{0}', space=sflag, size = 0x8, scoped, tag = 'scoped memory for resnet_forward.5']
    %9 = vsyncpa [#allocation3], 0
    %s10 = scalar_lea.sflag [#allocation3], 1
    %11 = vsyncpa %s10, 0
    loop: start=0, step=1, limit=4
    $region2: #{resnet_forward.5} parent=1 // loop_pre_header
      _
    $region3: #{resnet_forward.5} parent=1 // loop_header
      %s13 = sphi 0, %s17
      %p14 = scmp.ge.s32.totalorder %s13, 4
      %s20 = sphi 0, %s32
      %s21 = sphi 0, %s28
      %s22 = sphi 0, %s20
      %s23 = sphi 0, %s21
      %s24 = sphi 0, %s22
      %s25 = sphi 0, %s23
      %s37 = sphi 0, %s39
      %s40 = sphi 0, %s37
      %s41 = sphi 0, %s40
      %s57 = sphi 0, %s41
      %s63 = sphi 0, %s65
      %s66 = sphi 0, %s63
      %s67 = sphi 0, %s66
      %s83 = sphi 0, %s67
      %s89 = sphi 0, %s91
      %s92 = sphi 0, %s89
      %s93 = sphi 0, %s92
      %s109 = sphi 0, %s93
      %s117 = sphi 0, %s119
      %s120 = sphi 0, %s117
      %s121 = sphi 0, %s120
      %s137 = sphi 0, %s121
      %s145 = sphi 0, %s147
      %s148 = sphi 0, %s145
      %s149 = sphi 0, %s148
      %s165 = sphi 0, %s149
    $region4: #{resnet_forward.5} parent=1 // loop_header_branch
      %16 = sbr.rel (%p14) target = $region8
    $region5: #{resnet_forward.5} parent=1 // loop_body
      %s18 = ssub.s32 %s13, 1
      %s19 = ssub.s32 %s13, 2
      %s26 = sadd.s32 1, %s21
      %p27 = scmp.ge.s32.totalorder %s26, 1
      %s28 = scalar_select %p27, 0, %s26
      %s29 = sadd.s32 1, %s20
      %s30 = scalar_select %p27, %s29, %s20
      %p31 = scmp.ge.s32.totalorder %s30, 2
      %s32 = scalar_select %p31, 0, %s30
      %s33 = ssub.s32 %s20, %s32
      %s34 = ssub.s32 %s21, %s28
      %s35 = sor.u32 %s33, %s34
      %p36 = scmp.eq.s32.totalorder %s35, 0
      %s38 = sadd.s32 %s37, 1
      %s39 = scalar_select %p36, %s37, %s38
      %p42 = pneg %p36
      %p43 = scmp.eq.s32.totalorder %s13, 1
      %p44 = por %p42, %p43
      %p45 = scmp.ne.s32.totalorder %s37, %s40
      %p46 = scmp.eq.s32.totalorder %s13, 0
      %p47 = por %p45, %p46
      %p48 = scmp.ne.s32.totalorder %s37, %s40
      %p49 = scmp.eq.s32.totalorder %s18, 1
      %p50 = por %p48, %p49
      %p51 = scmp.ne.s32.totalorder %s40, %s41
      %p52 = scmp.eq.s32.totalorder %s18, 0
      %p53 = por %p51, %p52
      %p54 = scmp.ne.s32.totalorder %s40, %s41
      %p55 = scmp.eq.s32.totalorder %s19, 1
      %p56 = por %p54, %p55
      %p58 = scmp.ne.s32.totalorder %s41, %s57
      %p59 = scmp.eq.s32.totalorder %s19, 0
      %p60 = por %p58, %p59
      %s61 = ssub.s32 %s20, %s32
      %p62 = scmp.eq.s32.totalorder %s61, 0
      %s64 = sadd.s32 %s63, 1
      %s65 = scalar_select %p62, %s63, %s64
      %p68 = pneg %p62
      %p69 = scmp.eq.s32.totalorder %s13, 1
      %p70 = por %p68, %p69
      %p71 = scmp.ne.s32.totalorder %s63, %s66
      %p72 = scmp.eq.s32.totalorder %s13, 0
      %p73 = por %p71, %p72
      %p74 = scmp.ne.s32.totalorder %s63, %s66
      %p75 = scmp.eq.s32.totalorder %s18, 1
      %p76 = por %p74, %p75
      %p77 = scmp.ne.s32.totalorder %s66, %s67
      %p78 = scmp.eq.s32.totalorder %s18, 0
      %p79 = por %p77, %p78
      %p80 = scmp.ne.s32.totalorder %s66, %s67
      %p81 = scmp.eq.s32.totalorder %s19, 1
      %p82 = por %p80, %p81
      %p84 = scmp.ne.s32.totalorder %s67, %s83
      %p85 = scmp.eq.s32.totalorder %s19, 0
      %p86 = por %p84, %p85
      %s87 = ssub.s32 %s20, %s32
      %p88 = scmp.eq.s32.totalorder %s87, 0
      %s90 = sadd.s32 %s89, 1
      %s91 = scalar_select %p88, %s89, %s90
      %p94 = pneg %p88
      %p95 = scmp.eq.s32.totalorder %s13, 1
      %p96 = por %p94, %p95
      %p97 = scmp.ne.s32.totalorder %s89, %s92
      %p98 = scmp.eq.s32.totalorder %s13, 0
      %p99 = por %p97, %p98
      %p100 = scmp.ne.s32.totalorder %s89, %s92
      %p101 = scmp.eq.s32.totalorder %s18, 1
      %p102 = por %p100, %p101
      %p103 = scmp.ne.s32.totalorder %s92, %s93
      %p104 = scmp.eq.s32.totalorder %s18, 0
      %p105 = por %p103, %p104
      %p106 = scmp.ne.s32.totalorder %s92, %s93
      %p107 = scmp.eq.s32.totalorder %s19, 1
      %p108 = por %p106, %p107
      %p110 = scmp.ne.s32.totalorder %s93, %s109
      %p111 = scmp.eq.s32.totalorder %s19, 0
      %p112 = por %p110, %p111
      %s113 = ssub.s32 %s20, %s32
      %s114 = ssub.s32 %s21, %s28
      %s115 = sor.u32 %s113, %s114
      %p116 = scmp.eq.s32.totalorder %s115, 0
      %s118 = sadd.s32 %s117, 1
      %s119 = scalar_select %p116, %s117, %s118
      %p122 = pneg %p116
      %p123 = scmp.eq.s32.totalorder %s13, 1
      %p124 = por %p122, %p123
      %p125 = scmp.ne.s32.totalorder %s117, %s120
      %p126 = scmp.eq.s32.totalorder %s13, 0
      %p127 = por %p125, %p126
      %p128 = scmp.ne.s32.totalorder %s117, %s120
      %p129 = scmp.eq.s32.totalorder %s18, 1
      %p130 = por %p128, %p129
      %p131 = scmp.ne.s32.totalorder %s120, %s121
      %p132 = scmp.eq.s32.totalorder %s18, 0
      %p133 = por %p131, %p132
      %p134 = scmp.ne.s32.totalorder %s120, %s121
      %p135 = scmp.eq.s32.totalorder %s19, 1
      %p136 = por %p134, %p135
      %p138 = scmp.ne.s32.totalorder %s121, %s137
      %p139 = scmp.eq.s32.totalorder %s19, 0
      %p140 = por %p138, %p139
      %s141 = ssub.s32 %s20, %s32
      %s142 = ssub.s32 %s21, %s28
      %s143 = sor.u32 %s141, %s142
      %p144 = scmp.eq.s32.totalorder %s143, 0
      %s146 = sadd.s32 %s145, 1
      %s147 = scalar_select %p144, %s145, %s146
      %p150 = pneg %p144
      %p151 = scmp.eq.s32.totalorder %s13, 1
      %p152 = por %p150, %p151
      %p153 = scmp.ne.s32.totalorder %s145, %s148
      %p154 = scmp.eq.s32.totalorder %s13, 0
      %p155 = por %p153, %p154
      %p156 = scmp.ne.s32.totalorder %s145, %s148
      %p157 = scmp.eq.s32.totalorder %s18, 1
      %p158 = por %p156, %p157
      %p159 = scmp.ne.s32.totalorder %s148, %s149
      %p160 = scmp.eq.s32.totalorder %s18, 0
      %p161 = por %p159, %p160
      %p162 = scmp.ne.s32.totalorder %s148, %s149
      %p163 = scmp.eq.s32.totalorder %s19, 1
      %p164 = por %p162, %p163
      %p166 = scmp.ne.s32.totalorder %s149, %s165
      %p167 = scmp.eq.s32.totalorder %s19, 0
      %p168 = por %p166, %p167
      %p169 = scmp.le.s32.totalorder 1, %s13
      %p170 = scmp.lt.s32.totalorder %s13, 3
      %p171 = pnand %p169, %p170
      %p172 = pneg %p171
      // Predicated region
      $region9: #{resnet_forward.5} parent=5 // pred_check
        _
      $region10: #{resnet_forward.5} parent=5 // pred_check_branch
        %174 = sbr.rel (%p171) target = $region12
      $region11: #{resnet_forward.5} parent=5 // pred_region
        %s175 = ssub.s32 %s13, 1
      $region12: #{resnet_forward.5} parent=5 // pred_fallthru
        _
      %p176 = scmp.lt.s32.totalorder %s13, 2
      // Predicated region
      $region13: #{resnet_forward.5} parent=5 // pred_check
        %p177 = pneg %p176
      $region14: #{resnet_forward.5} parent=5 // pred_check_branch
        %179 = sbr.rel (%p177) target = $region16
      $region15: #{resnet_forward.5} parent=5 // pred_region
        // Predicated region
        $region17: #{resnet_forward.5} parent=15 // pred_check
          %p180 = pneg %p47
        $region18: #{resnet_forward.5} parent=15 // pred_check_branch
          %182 = sbr.rel (%p180) target = $region20
        $region19: #{resnet_forward.5} parent=15 // pred_region
          %s183 = smul.u32 16, %s21
          %p184 = scmp.lt.s32.totalorder %s20, 1
          %s185 = scalar_select %p184, %s20, 1
          %p186 = scmp.lt.s32.totalorder %s183, 15
          %s187 = scalar_select %p186, %s183, 15
          %s188 = smul.addr %s187, 4
          %s189 = smul.addr %s185, 64
          %s190 = sadd.s32 %s188, %s189
          %s191 = smul.addr %s190, 4
          %s192 = scalar_lea.vmem %s0, %s191
          %s193 = smul.u32 16, %s21
        $region20: #{resnet_forward.5} parent=15 // pred_fallthru
          _
        // Predicated region
        $region21: #{resnet_forward.5} parent=15 // pred_check
          %p194 = pneg %p73
        $region22: #{resnet_forward.5} parent=15 // pred_check_branch
          %196 = sbr.rel (%p194) target = $region24
        $region23: #{resnet_forward.5} parent=15 // pred_region
          %p197 = scmp.lt.s32.totalorder %s20, 1
          %s198 = scalar_select %p197, %s20, 1
          %s199 = smul.addr %s198, 2
          %s200 = scalar_lea.vmem %s1, %s199
        $region24: #{resnet_forward.5} parent=15 // pred_fallthru
          _
        // Predicated region
        $region25: #{resnet_forward.5} parent=15 // pred_check
          %p201 = pneg %p99
        $region26: #{resnet_forward.5} parent=15 // pred_check_branch
          %203 = sbr.rel (%p201) target = $region28
        $region27: #{resnet_forward.5} parent=15 // pred_region
          %p204 = scmp.lt.s32.totalorder %s20, 1
          %s205 = scalar_select %p204, %s20, 1
          %s206 = smul.addr %s205, 2
          %s207 = scalar_lea.vmem %s2, %s206
        $region28: #{resnet_forward.5} parent=15 // pred_fallthru
          _
        // Predicated region
        $region29: #{resnet_forward.5} parent=15 // pred_check
          %p208 = pneg %p127
        $region30: #{resnet_forward.5} parent=15 // pred_check_branch
          %210 = sbr.rel (%p208) target = $region32
        $region31: #{resnet_forward.5} parent=15 // pred_region
          %s211 = smul.u32 16, %s21
          %p212 = scmp.lt.s32.totalorder %s20, 1
          %s213 = scalar_select %p212, %s20, 1
          %p214 = scmp.lt.s32.totalorder %s211, 15
          %s215 = scalar_select %p214, %s211, 15
          %s216 = smul.addr %s215, 4
          %s217 = smul.addr %s213, 64
          %s218 = sadd.s32 %s216, %s217
          %s219 = smul.addr %s218, 8
          %s220 = scalar_lea.vmem %s3, %s219
          %s221 = smul.u32 16, %s21
        $region32: #{resnet_forward.5} parent=15 // pred_fallthru
          _
      $region16: #{resnet_forward.5} parent=5 // pred_fallthru
        _
      %p222 = scmp.le.s32.totalorder 1, %s13
      %p223 = scmp.lt.s32.totalorder %s13, 3
      %p224 = pnand %p222, %p223
      %p225 = pneg %p224
      // Predicated region
      $region33: #{resnet_forward.5} parent=5 // pred_check
        _
      $region34: #{resnet_forward.5} parent=5 // pred_check_branch
        %227 = sbr.rel (%p224) target = $region36
      $region35: #{resnet_forward.5} parent=5 // pred_region
        %s228 = ssub.s32 %s13, 1
        %s229 = smul.u32 16, %s23
        %p230 = scmp.lt.s32.totalorder %s22, 1
        %s231 = scalar_select %p230, %s22, 1
        %p232 = scmp.lt.s32.totalorder %s229, 15
        %s233 = scalar_select %p232, %s229, 15
        %s234 = smul.addr %s233, 4
        %s235 = smul.addr %s231, 64
        %s236 = sadd.s32 %s234, %s235
        %s237 = smul.addr %s236, 4
        %s238 = scalar_lea.vmem %s0, %s237
        %p239 = pneg %p53
        %p240 = pneg %p50
        %p241 = scmp.lt.s32.totalorder %s22, 1
        %s242 = scalar_select %p241, %s22, 1
        %s243 = smul.addr %s242, 2
        %s244 = scalar_lea.vmem %s1, %s243
        %p245 = pneg %p79
        %p246 = pneg %p76
        %p247 = scmp.lt.s32.totalorder %s22, 1
        %s248 = scalar_select %p247, %s22, 1
        %s249 = smul.addr %s248, 2
        %s250 = scalar_lea.vmem %s2, %s249
        %p251 = pneg %p105
        %p252 = pneg %p102
        %s253 = smul.u32 16, %s23
        %p254 = scmp.lt.s32.totalorder %s22, 1
        %s255 = scalar_select %p254, %s22, 1
        %p256 = scmp.lt.s32.totalorder %s253, 15
        %s257 = scalar_select %p256, %s253, 15
        %s258 = smul.addr %s257, 4
        %s259 = smul.addr %s255, 64
        %s260 = sadd.s32 %s258, %s259
        %s261 = smul.addr %s260, 8
        %s262 = scalar_lea.vmem %s3, %s261
        %p263 = pneg %p133
        %p264 = pneg %p130
        %p265 = pneg %p161
        %p266 = pneg %p158
        %s267 = sand.u32 %s148, 1
        %s268 = scalar_lea.sflag [#allocation3], %s267
        %s269 = sand.u32 %s148, 1
        %s270 = smul.addr %s269, 512
        %s271 = scalar_lea.vmem [#allocation2], %s270
        %s272 = smul.u32 16, %s23
        %p273 = scmp.lt.s32.totalorder %s22, 1
        %s274 = scalar_select %p273, %s22, 1
        %p275 = scmp.lt.s32.totalorder %s272, 15
        %s276 = scalar_select %p275, %s272, 15
        %s277 = smul.addr %s276, 4
        %s278 = smul.addr %s274, 64
        %s279 = sadd.s32 %s277, %s278
        %s280 = smul.addr %s279, 4
        %s281 = scalar_lea.vmem %s0, %s280
        %s282 = smul.u32 16, %s23
        %p283 = scmp.lt.s32.totalorder %s22, 1
        %s284 = scalar_select %p283, %s22, 1
        %s285 = smul.addr %s284, 2
        %s286 = scalar_lea.vmem %s1, %s285
        %p287 = scmp.lt.s32.totalorder %s22, 1
        %s288 = scalar_select %p287, %s22, 1
        %s289 = smul.addr %s288, 2
        %s290 = scalar_lea.vmem %s2, %s289
        %s291 = smul.u32 16, %s23
        %p292 = scmp.lt.s32.totalorder %s22, 1
        %s293 = scalar_select %p292, %s22, 1
        %p294 = scmp.lt.s32.totalorder %s291, 15
        %s295 = scalar_select %p294, %s291, 15
        %s296 = smul.addr %s295, 4
        %s297 = smul.addr %s293, 64
        %s298 = sadd.s32 %s296, %s297
        %s299 = smul.addr %s298, 8
        %s300 = scalar_lea.vmem %s3, %s299
        %s301 = smul.u32 16, %s23
        %s302 = smul.u32 16, %s23
        %v303 = vld [vmem:[%s281] sm:$0xff]
        %v304 = vld [vmem:[%s281 + $0x8] sm:$0xff]
        %v305 = vld [vmem:[%s281 + $0x10] sm:$0xff]
        %v306 = vld [vmem:[%s281 + $0x18] sm:$0xff]
        %v307 = vld [vmem:[%s281 + $0x20] sm:$0xff]
        %v308 = vld [vmem:[%s281 + $0x28] sm:$0xff]
        %v309 = vld [vmem:[%s281 + $0x30] sm:$0xff]
        %v310 = vld [vmem:[%s281 + $0x38] sm:$0xff]
        %v311 = vld [vmem:[%s281 + $0x40] sm:$0xff]
        %v312 = vld [vmem:[%s281 + $0x48] sm:$0xff]
        %v313 = vld [vmem:[%s281 + $0x50] sm:$0xff]
        %v314 = vld [vmem:[%s281 + $0x58] sm:$0xff]
        %v315 = vld [vmem:[%s281 + $0x60] sm:$0xff]
        %v316 = vld [vmem:[%s281 + $0x68] sm:$0xff]
        %v317 = vld [vmem:[%s281 + $0x70] sm:$0xff]
        %v318 = vld [vmem:[%s281 + $0x78] sm:$0xff]
        %v319 = vld [vmem:[%s281 + $0x80] sm:$0xff]
        %v320 = vld [vmem:[%s281 + $0x88] sm:$0xff]
        %v321 = vld [vmem:[%s281 + $0x90] sm:$0xff]
        %v322 = vld [vmem:[%s281 + $0x98] sm:$0xff]
        %v323 = vld [vmem:[%s281 + $0xa0] sm:$0xff]
        %v324 = vld [vmem:[%s281 + $0xa8] sm:$0xff]
        %v325 = vld [vmem:[%s281 + $0xb0] sm:$0xff]
        %v326 = vld [vmem:[%s281 + $0xb8] sm:$0xff]
        %v327 = vld [vmem:[%s281 + $0xc0] sm:$0xff]
        %v328 = vld [vmem:[%s281 + $0xc8] sm:$0xff]
        %v329 = vld [vmem:[%s281 + $0xd0] sm:$0xff]
        %v330 = vld [vmem:[%s281 + $0xd8] sm:$0xff]
        %v331 = vld [vmem:[%s281 + $0xe0] sm:$0xff]
        %v332 = vld [vmem:[%s281 + $0xe8] sm:$0xff]
        %v333 = vld [vmem:[%s281 + $0xf0] sm:$0xff]
        %v334 = vld [vmem:[%s281 + $0xf8] sm:$0xff]
        %v335 = vunpack.c.l.bf16 %v303
        %v336 = vunpack.c.h.bf16 %v303
        %v337 = vunpack.c.l.bf16 %v304
        %v338 = vunpack.c.h.bf16 %v304
        %v339 = vunpack.c.l.bf16 %v305
        %v340 = vunpack.c.h.bf16 %v305
        %v341 = vunpack.c.l.bf16 %v306
        %v342 = vunpack.c.h.bf16 %v306
        %v343 = vunpack.c.l.bf16 %v307
        %v344 = vunpack.c.h.bf16 %v307
        %v345 = vunpack.c.l.bf16 %v308
        %v346 = vunpack.c.h.bf16 %v308
        %v347 = vunpack.c.l.bf16 %v309
        %v348 = vunpack.c.h.bf16 %v309
        %v349 = vunpack.c.l.bf16 %v310
        %v350 = vunpack.c.h.bf16 %v310
        %v351 = vunpack.c.l.bf16 %v311
        %v352 = vunpack.c.h.bf16 %v311
        %v353 = vunpack.c.l.bf16 %v312
        %v354 = vunpack.c.h.bf16 %v312
        %v355 = vunpack.c.l.bf16 %v313
        %v356 = vunpack.c.h.bf16 %v313
        %v357 = vunpack.c.l.bf16 %v314
        %v358 = vunpack.c.h.bf16 %v314
        %v359 = vunpack.c.l.bf16 %v315
        %v360 = vunpack.c.h.bf16 %v315
        %v361 = vunpack.c.l.bf16 %v316
        %v362 = vunpack.c.h.bf16 %v316
        %v363 = vunpack.c.l.bf16 %v317
        %v364 = vunpack.c.h.bf16 %v317
        %v365 = vunpack.c.l.bf16 %v318
        %v366 = vunpack.c.h.bf16 %v318
        %v367 = vunpack.c.l.bf16 %v319
        %v368 = vunpack.c.h.bf16 %v319
        %v369 = vunpack.c.l.bf16 %v320
        %v370 = vunpack.c.h.bf16 %v320
        %v371 = vunpack.c.l.bf16 %v321
        %v372 = vunpack.c.h.bf16 %v321
        %v373 = vunpack.c.l.bf16 %v322
        %v374 = vunpack.c.h.bf16 %v322
        %v375 = vunpack.c.l.bf16 %v323
        %v376 = vunpack.c.h.bf16 %v323
        %v377 = vunpack.c.l.bf16 %v324
        %v378 = vunpack.c.h.bf16 %v324
        %v379 = vunpack.c.l.bf16 %v325
        %v380 = vunpack.c.h.bf16 %v325
        %v381 = vunpack.c.l.bf16 %v326
        %v382 = vunpack.c.h.bf16 %v326
        %v383 = vunpack.c.l.bf16 %v327
        %v384 = vunpack.c.h.bf16 %v327
        %v385 = vunpack.c.l.bf16 %v328
        %v386 = vunpack.c.h.bf16 %v328
        %v387 = vunpack.c.l.bf16 %v329
        %v388 = vunpack.c.h.bf16 %v329
        %v389 = vunpack.c.l.bf16 %v330
        %v390 = vunpack.c.h.bf16 %v330
        %v391 = vunpack.c.l.bf16 %v331
        %v392 = vunpack.c.h.bf16 %v331
        %v393 = vunpack.c.l.bf16 %v332
        %v394 = vunpack.c.h.bf16 %v332
        %v395 = vunpack.c.l.bf16 %v333
        %v396 = vunpack.c.h.bf16 %v333
        %v397 = vunpack.c.l.bf16 %v334
        %v398 = vunpack.c.h.bf16 %v334
        %v399 = vld [vmem:[%s286] sm:$0x3]
        %v401 = vlaneseq
        %v402 = vshrl.u32 %v401, 7
        %v403 = vsub.s32 0, %v402
        %v404 = vrot.slane %v399, %v403
        %v405 = vlaneseq
        %v406 = vshrl.u32 %v405, 7
        %v407 = vsub.s32 1, %v406
        %v408 = vrot.slane %v399, %v407
        %v411 = vsub.f32 %v335, %v404
        %v412 = vsub.f32 %v336, %v408
        %v413 = vsub.f32 %v337, %v404
        %v414 = vsub.f32 %v338, %v408
        %v415 = vsub.f32 %v339, %v404
        %v416 = vsub.f32 %v340, %v408
        %v417 = vsub.f32 %v341, %v404
        %v418 = vsub.f32 %v342, %v408
        %v419 = vsub.f32 %v343, %v404
        %v420 = vsub.f32 %v344, %v408
        %v421 = vsub.f32 %v345, %v404
        %v422 = vsub.f32 %v346, %v408
        %v423 = vsub.f32 %v347, %v404
        %v424 = vsub.f32 %v348, %v408
        %v425 = vsub.f32 %v349, %v404
        %v426 = vsub.f32 %v350, %v408
        %v427 = vsub.f32 %v351, %v404
        %v428 = vsub.f32 %v352, %v408
        %v429 = vsub.f32 %v353, %v404
        %v430 = vsub.f32 %v354, %v408
        %v431 = vsub.f32 %v355, %v404
        %v432 = vsub.f32 %v356, %v408
        %v433 = vsub.f32 %v357, %v404
        %v434 = vsub.f32 %v358, %v408
        %v435 = vsub.f32 %v359, %v404
        %v436 = vsub.f32 %v360, %v408
        %v437 = vsub.f32 %v361, %v404
        %v438 = vsub.f32 %v362, %v408
        %v439 = vsub.f32 %v363, %v404
        %v440 = vsub.f32 %v364, %v408
        %v441 = vsub.f32 %v365, %v404
        %v442 = vsub.f32 %v366, %v408
        %v443 = vsub.f32 %v367, %v404
        %v444 = vsub.f32 %v368, %v408
        %v445 = vsub.f32 %v369, %v404
        %v446 = vsub.f32 %v370, %v408
        %v447 = vsub.f32 %v371, %v404
        %v448 = vsub.f32 %v372, %v408
        %v449 = vsub.f32 %v373, %v404
        %v450 = vsub.f32 %v374, %v408
        %v451 = vsub.f32 %v375, %v404
        %v452 = vsub.f32 %v376, %v408
        %v453 = vsub.f32 %v377, %v404
        %v454 = vsub.f32 %v378, %v408
        %v455 = vsub.f32 %v379, %v404
        %v456 = vsub.f32 %v380, %v408
        %v457 = vsub.f32 %v381, %v404
        %v458 = vsub.f32 %v382, %v408
        %v459 = vsub.f32 %v383, %v404
        %v460 = vsub.f32 %v384, %v408
        %v461 = vsub.f32 %v385, %v404
        %v462 = vsub.f32 %v386, %v408
        %v463 = vsub.f32 %v387, %v404
        %v464 = vsub.f32 %v388, %v408
        %v465 = vsub.f32 %v389, %v404
        %v466 = vsub.f32 %v390, %v408
        %v467 = vsub.f32 %v391, %v404
        %v468 = vsub.f32 %v392, %v408
        %v469 = vsub.f32 %v393, %v404
        %v470 = vsub.f32 %v394, %v408
        %v471 = vsub.f32 %v395, %v404
        %v472 = vsub.f32 %v396, %v408
        %v473 = vsub.f32 %v397, %v404
        %v474 = vsub.f32 %v398, %v408
        %v475 = vld [vmem:[%s290] sm:$0x3]
        %v477 = vlaneseq
        %v478 = vshrl.u32 %v477, 7
        %v479 = vsub.s32 0, %v478
        %v480 = vrot.slane %v475, %v479
        %v481 = vlaneseq
        %v482 = vshrl.u32 %v481, 7
        %v483 = vsub.s32 1, %v482
        %v484 = vrot.slane %v475, %v483
        %v487 = vmul.f32 %v411, %v480
        %v488 = vmul.f32 %v412, %v484
        %v489 = vmul.f32 %v413, %v480
        %v490 = vmul.f32 %v414, %v484
        %v491 = vmul.f32 %v415, %v480
        %v492 = vmul.f32 %v416, %v484
        %v493 = vmul.f32 %v417, %v480
        %v494 = vmul.f32 %v418, %v484
        %v495 = vmul.f32 %v419, %v480
        %v496 = vmul.f32 %v420, %v484
        %v497 = vmul.f32 %v421, %v480
        %v498 = vmul.f32 %v422, %v484
        %v499 = vmul.f32 %v423, %v480
        %v500 = vmul.f32 %v424, %v484
        %v501 = vmul.f32 %v425, %v480
        %v502 = vmul.f32 %v426, %v484
        %v503 = vmul.f32 %v427, %v480
        %v504 = vmul.f32 %v428, %v484
        %v505 = vmul.f32 %v429, %v480
        %v506 = vmul.f32 %v430, %v484
        %v507 = vmul.f32 %v431, %v480
        %v508 = vmul.f32 %v432, %v484
        %v509 = vmul.f32 %v433, %v480
        %v510 = vmul.f32 %v434, %v484
        %v511 = vmul.f32 %v435, %v480
        %v512 = vmul.f32 %v436, %v484
        %v513 = vmul.f32 %v437, %v480
        %v514 = vmul.f32 %v438, %v484
        %v515 = vmul.f32 %v439, %v480
        %v516 = vmul.f32 %v440, %v484
        %v517 = vmul.f32 %v441, %v480
        %v518 = vmul.f32 %v442, %v484
        %v519 = vmul.f32 %v443, %v480
        %v520 = vmul.f32 %v444, %v484
        %v521 = vmul.f32 %v445, %v480
        %v522 = vmul.f32 %v446, %v484
        %v523 = vmul.f32 %v447, %v480
        %v524 = vmul.f32 %v448, %v484
        %v525 = vmul.f32 %v449, %v480
        %v526 = vmul.f32 %v450, %v484
        %v527 = vmul.f32 %v451, %v480
        %v528 = vmul.f32 %v452, %v484
        %v529 = vmul.f32 %v453, %v480
        %v530 = vmul.f32 %v454, %v484
        %v531 = vmul.f32 %v455, %v480
        %v532 = vmul.f32 %v456, %v484
        %v533 = vmul.f32 %v457, %v480
        %v534 = vmul.f32 %v458, %v484
        %v535 = vmul.f32 %v459, %v480
        %v536 = vmul.f32 %v460, %v484
        %v537 = vmul.f32 %v461, %v480
        %v538 = vmul.f32 %v462, %v484
        %v539 = vmul.f32 %v463, %v480
        %v540 = vmul.f32 %v464, %v484
        %v541 = vmul.f32 %v465, %v480
        %v542 = vmul.f32 %v466, %v484
        %v543 = vmul.f32 %v467, %v480
        %v544 = vmul.f32 %v468, %v484
        %v545 = vmul.f32 %v469, %v480
        %v546 = vmul.f32 %v470, %v484
        %v547 = vmul.f32 %v471, %v480
        %v548 = vmul.f32 %v472, %v484
        %v549 = vmul.f32 %v473, %v480
        %v550 = vmul.f32 %v474, %v484
        %v551 = vld [vmem:[%s300] sm:$0xff]
        %v552 = vld [vmem:[%s300 + $0x8] sm:$0xff]
        %v553 = vld [vmem:[%s300 + $0x10] sm:$0xff]
        %v554 = vld [vmem:[%s300 + $0x18] sm:$0xff]
        %v555 = vld [vmem:[%s300 + $0x20] sm:$0xff]
        %v556 = vld [vmem:[%s300 + $0x28] sm:$0xff]
        %v557 = vld [vmem:[%s300 + $0x30] sm:$0xff]
        %v558 = vld [vmem:[%s300 + $0x38] sm:$0xff]
        %v559 = vld [vmem:[%s300 + $0x40] sm:$0xff]
        %v560 = vld [vmem:[%s300 + $0x48] sm:$0xff]
        %v561 = vld [vmem:[%s300 + $0x50] sm:$0xff]
        %v562 = vld [vmem:[%s300 + $0x58] sm:$0xff]
        %v563 = vld [vmem:[%s300 + $0x60] sm:$0xff]
        %v564 = vld [vmem:[%s300 + $0x68] sm:$0xff]
        %v565 = vld [vmem:[%s300 + $0x70] sm:$0xff]
        %v566 = vld [vmem:[%s300 + $0x78] sm:$0xff]
        %v567 = vld [vmem:[%s300 + $0x80] sm:$0xff]
        %v568 = vld [vmem:[%s300 + $0x88] sm:$0xff]
        %v569 = vld [vmem:[%s300 + $0x90] sm:$0xff]
        %v570 = vld [vmem:[%s300 + $0x98] sm:$0xff]
        %v571 = vld [vmem:[%s300 + $0xa0] sm:$0xff]
        %v572 = vld [vmem:[%s300 + $0xa8] sm:$0xff]
        %v573 = vld [vmem:[%s300 + $0xb0] sm:$0xff]
        %v574 = vld [vmem:[%s300 + $0xb8] sm:$0xff]
        %v575 = vld [vmem:[%s300 + $0xc0] sm:$0xff]
        %v576 = vld [vmem:[%s300 + $0xc8] sm:$0xff]
        %v577 = vld [vmem:[%s300 + $0xd0] sm:$0xff]
        %v578 = vld [vmem:[%s300 + $0xd8] sm:$0xff]
        %v579 = vld [vmem:[%s300 + $0xe0] sm:$0xff]
        %v580 = vld [vmem:[%s300 + $0xe8] sm:$0xff]
        %v581 = vld [vmem:[%s300 + $0xf0] sm:$0xff]
        %v582 = vld [vmem:[%s300 + $0xf8] sm:$0xff]
        %v583 = vld [vmem:[%s300 + $0x100] sm:$0xff]
        %v584 = vld [vmem:[%s300 + $0x108] sm:$0xff]
        %v585 = vld [vmem:[%s300 + $0x110] sm:$0xff]
        %v586 = vld [vmem:[%s300 + $0x118] sm:$0xff]
        %v587 = vld [vmem:[%s300 + $0x120] sm:$0xff]
        %v588 = vld [vmem:[%s300 + $0x128] sm:$0xff]
        %v589 = vld [vmem:[%s300 + $0x130] sm:$0xff]
        %v590 = vld [vmem:[%s300 + $0x138] sm:$0xff]
        %v591 = vld [vmem:[%s300 + $0x140] sm:$0xff]
        %v592 = vld [vmem:[%s300 + $0x148] sm:$0xff]
        %v593 = vld [vmem:[%s300 + $0x150] sm:$0xff]
        %v594 = vld [vmem:[%s300 + $0x158] sm:$0xff]
        %v595 = vld [vmem:[%s300 + $0x160] sm:$0xff]
        %v596 = vld [vmem:[%s300 + $0x168] sm:$0xff]
        %v597 = vld [vmem:[%s300 + $0x170] sm:$0xff]
        %v598 = vld [vmem:[%s300 + $0x178] sm:$0xff]
        %v599 = vld [vmem:[%s300 + $0x180] sm:$0xff]
        %v600 = vld [vmem:[%s300 + $0x188] sm:$0xff]
        %v601 = vld [vmem:[%s300 + $0x190] sm:$0xff]
        %v602 = vld [vmem:[%s300 + $0x198] sm:$0xff]
        %v603 = vld [vmem:[%s300 + $0x1a0] sm:$0xff]
        %v604 = vld [vmem:[%s300 + $0x1a8] sm:$0xff]
        %v605 = vld [vmem:[%s300 + $0x1b0] sm:$0xff]
        %v606 = vld [vmem:[%s300 + $0x1b8] sm:$0xff]
        %v607 = vld [vmem:[%s300 + $0x1c0] sm:$0xff]
        %v608 = vld [vmem:[%s300 + $0x1c8] sm:$0xff]
        %v609 = vld [vmem:[%s300 + $0x1d0] sm:$0xff]
        %v610 = vld [vmem:[%s300 + $0x1d8] sm:$0xff]
        %v611 = vld [vmem:[%s300 + $0x1e0] sm:$0xff]
        %v612 = vld [vmem:[%s300 + $0x1e8] sm:$0xff]
        %v613 = vld [vmem:[%s300 + $0x1f0] sm:$0xff]
        %v614 = vld [vmem:[%s300 + $0x1f8] sm:$0xff]
        %v615 = vadd.f32 %v551, %v487
        %v616 = vadd.f32 %v552, %v488
        %v617 = vadd.f32 %v553, %v489
        %v618 = vadd.f32 %v554, %v490
        %v619 = vadd.f32 %v555, %v491
        %v620 = vadd.f32 %v556, %v492
        %v621 = vadd.f32 %v557, %v493
        %v622 = vadd.f32 %v558, %v494
        %v623 = vadd.f32 %v559, %v495
        %v624 = vadd.f32 %v560, %v496
        %v625 = vadd.f32 %v561, %v497
        %v626 = vadd.f32 %v562, %v498
        %v627 = vadd.f32 %v563, %v499
        %v628 = vadd.f32 %v564, %v500
        %v629 = vadd.f32 %v565, %v501
        %v630 = vadd.f32 %v566, %v502
        %v631 = vadd.f32 %v567, %v503
        %v632 = vadd.f32 %v568, %v504
        %v633 = vadd.f32 %v569, %v505
        %v634 = vadd.f32 %v570, %v506
        %v635 = vadd.f32 %v571, %v507
        %v636 = vadd.f32 %v572, %v508
        %v637 = vadd.f32 %v573, %v509
        %v638 = vadd.f32 %v574, %v510
        %v639 = vadd.f32 %v575, %v511
        %v640 = vadd.f32 %v576, %v512
        %v641 = vadd.f32 %v577, %v513
        %v642 = vadd.f32 %v578, %v514
        %v643 = vadd.f32 %v579, %v515
        %v644 = vadd.f32 %v580, %v516
        %v645 = vadd.f32 %v581, %v517
        %v646 = vadd.f32 %v582, %v518
        %v647 = vadd.f32 %v583, %v519
        %v648 = vadd.f32 %v584, %v520
        %v649 = vadd.f32 %v585, %v521
        %v650 = vadd.f32 %v586, %v522
        %v651 = vadd.f32 %v587, %v523
        %v652 = vadd.f32 %v588, %v524
        %v653 = vadd.f32 %v589, %v525
        %v654 = vadd.f32 %v590, %v526
        %v655 = vadd.f32 %v591, %v527
        %v656 = vadd.f32 %v592, %v528
        %v657 = vadd.f32 %v593, %v529
        %v658 = vadd.f32 %v594, %v530
        %v659 = vadd.f32 %v595, %v531
        %v660 = vadd.f32 %v596, %v532
        %v661 = vadd.f32 %v597, %v533
        %v662 = vadd.f32 %v598, %v534
        %v663 = vadd.f32 %v599, %v535
        %v664 = vadd.f32 %v600, %v536
        %v665 = vadd.f32 %v601, %v537
        %v666 = vadd.f32 %v602, %v538
        %v667 = vadd.f32 %v603, %v539
        %v668 = vadd.f32 %v604, %v540
        %v669 = vadd.f32 %v605, %v541
        %v670 = vadd.f32 %v606, %v542
        %v671 = vadd.f32 %v607, %v543
        %v672 = vadd.f32 %v608, %v544
        %v673 = vadd.f32 %v609, %v545
        %v674 = vadd.f32 %v610, %v546
        %v675 = vadd.f32 %v611, %v547
        %v676 = vadd.f32 %v612, %v548
        %v677 = vadd.f32 %v613, %v549
        %v678 = vadd.f32 %v614, %v550
        %679 = vst [vmem:[%s271] sm:$0xff] %v615
        %680 = vst [vmem:[%s271 + $0x8] sm:$0xff] %v616
        %681 = vst [vmem:[%s271 + $0x10] sm:$0xff] %v617
        %682 = vst [vmem:[%s271 + $0x18] sm:$0xff] %v618
        %683 = vst [vmem:[%s271 + $0x20] sm:$0xff] %v619
        %684 = vst [vmem:[%s271 + $0x28] sm:$0xff] %v620
        %685 = vst [vmem:[%s271 + $0x30] sm:$0xff] %v621
        %686 = vst [vmem:[%s271 + $0x38] sm:$0xff] %v622
        %687 = vst [vmem:[%s271 + $0x40] sm:$0xff] %v623
        %688 = vst [vmem:[%s271 + $0x48] sm:$0xff] %v624
        %689 = vst [vmem:[%s271 + $0x50] sm:$0xff] %v625
        %690 = vst [vmem:[%s271 + $0x58] sm:$0xff] %v626
        %691 = vst [vmem:[%s271 + $0x60] sm:$0xff] %v627
        %692 = vst [vmem:[%s271 + $0x68] sm:$0xff] %v628
        %693 = vst [vmem:[%s271 + $0x70] sm:$0xff] %v629
        %694 = vst [vmem:[%s271 + $0x78] sm:$0xff] %v630
        %695 = vst [vmem:[%s271 + $0x80] sm:$0xff] %v631
        %696 = vst [vmem:[%s271 + $0x88] sm:$0xff] %v632
        %697 = vst [vmem:[%s271 + $0x90] sm:$0xff] %v633
        %698 = vst [vmem:[%s271 + $0x98] sm:$0xff] %v634
        %699 = vst [vmem:[%s271 + $0xa0] sm:$0xff] %v635
        %700 = vst [vmem:[%s271 + $0xa8] sm:$0xff] %v636
        %701 = vst [vmem:[%s271 + $0xb0] sm:$0xff] %v637
        %702 = vst [vmem:[%s271 + $0xb8] sm:$0xff] %v638
        %703 = vst [vmem:[%s271 + $0xc0] sm:$0xff] %v639
        %704 = vst [vmem:[%s271 + $0xc8] sm:$0xff] %v640
        %705 = vst [vmem:[%s271 + $0xd0] sm:$0xff] %v641
        %706 = vst [vmem:[%s271 + $0xd8] sm:$0xff] %v642
        %707 = vst [vmem:[%s271 + $0xe0] sm:$0xff] %v643
        %708 = vst [vmem:[%s271 + $0xe8] sm:$0xff] %v644
        %709 = vst [vmem:[%s271 + $0xf0] sm:$0xff] %v645
        %710 = vst [vmem:[%s271 + $0xf8] sm:$0xff] %v646
        %711 = vst [vmem:[%s271 + $0x100] sm:$0xff] %v647
        %712 = vst [vmem:[%s271 + $0x108] sm:$0xff] %v648
        %713 = vst [vmem:[%s271 + $0x110] sm:$0xff] %v649
        %714 = vst [vmem:[%s271 + $0x118] sm:$0xff] %v650
        %715 = vst [vmem:[%s271 + $0x120] sm:$0xff] %v651
        %716 = vst [vmem:[%s271 + $0x128] sm:$0xff] %v652
        %717 = vst [vmem:[%s271 + $0x130] sm:$0xff] %v653
        %718 = vst [vmem:[%s271 + $0x138] sm:$0xff] %v654
        %719 = vst [vmem:[%s271 + $0x140] sm:$0xff] %v655
        %720 = vst [vmem:[%s271 + $0x148] sm:$0xff] %v656
        %721 = vst [vmem:[%s271 + $0x150] sm:$0xff] %v657
        %722 = vst [vmem:[%s271 + $0x158] sm:$0xff] %v658
        %723 = vst [vmem:[%s271 + $0x160] sm:$0xff] %v659
        %724 = vst [vmem:[%s271 + $0x168] sm:$0xff] %v660
        %725 = vst [vmem:[%s271 + $0x170] sm:$0xff] %v661
        %726 = vst [vmem:[%s271 + $0x178] sm:$0xff] %v662
        %727 = vst [vmem:[%s271 + $0x180] sm:$0xff] %v663
        %728 = vst [vmem:[%s271 + $0x188] sm:$0xff] %v664
        %729 = vst [vmem:[%s271 + $0x190] sm:$0xff] %v665
        %730 = vst [vmem:[%s271 + $0x198] sm:$0xff] %v666
        %731 = vst [vmem:[%s271 + $0x1a0] sm:$0xff] %v667
        %732 = vst [vmem:[%s271 + $0x1a8] sm:$0xff] %v668
        %733 = vst [vmem:[%s271 + $0x1b0] sm:$0xff] %v669
        %734 = vst [vmem:[%s271 + $0x1b8] sm:$0xff] %v670
        %735 = vst [vmem:[%s271 + $0x1c0] sm:$0xff] %v671
        %736 = vst [vmem:[%s271 + $0x1c8] sm:$0xff] %v672
        %737 = vst [vmem:[%s271 + $0x1d0] sm:$0xff] %v673
        %738 = vst [vmem:[%s271 + $0x1d8] sm:$0xff] %v674
        %739 = vst [vmem:[%s271 + $0x1e0] sm:$0xff] %v675
        %740 = vst [vmem:[%s271 + $0x1e8] sm:$0xff] %v676
        %741 = vst [vmem:[%s271 + $0x1f0] sm:$0xff] %v677
        %742 = vst [vmem:[%s271 + $0x1f8] sm:$0xff] %v678
        %s743 = sand.u32 %s148, 1
        %s744 = scalar_lea.sflag [#allocation3], %s743
        %s745 = sand.u32 %s148, 1
        %s746 = smul.addr %s745, 512
        %s747 = scalar_lea.vmem [#allocation2], %s746
        // Predicated region
        $region37: #{resnet_forward.5} parent=35 // pred_check
          %p748 = pneg %p158
        $region38: #{resnet_forward.5} parent=35 // pred_check_branch
          %750 = sbr.rel (%p748) target = $region40
        $region39: #{resnet_forward.5} parent=35 // pred_region
          %s751 = smul.u32 16, %s23
          %s753 = ssub.s32 8192, 8192
          %754 = vsyncadd %s744, %s753
          %s755 = smul.addr %s751, 4
          %s756 = smul.addr %s22, 64
          %s757 = sadd.s32 %s755, %s756
          %s758 = smul.addr %s757, 128
          %s759 = scalar_lea.hbm %s4, %s758
          %s760 = sshll.u32 %s747, 4
          %s761 = int_to_ptr.vmem [resolvable:$true] %s760
          %766 = dma.vmem_to_hbm [thread:$0]  %s761, 8192, %s759, %s744, 256, 256, 16
        $region40: #{resnet_forward.5} parent=35 // pred_fallthru
          _
      $region36: #{resnet_forward.5} parent=5 // pred_fallthru
        _
      %p767 = scmp.le.s32.totalorder 2, %s13
      // Predicated region
      $region41: #{resnet_forward.5} parent=5 // pred_check
        %p768 = pneg %p767
      $region42: #{resnet_forward.5} parent=5 // pred_check_branch
        %770 = sbr.rel (%p768) target = $region44
      $region43: #{resnet_forward.5} parent=5 // pred_region
        %s771 = ssub.s32 %s13, 2
        // Predicated region
        $region45: #{resnet_forward.5} parent=43 // pred_check
          %p772 = pneg %p164
        $region46: #{resnet_forward.5} parent=43 // pred_check_branch
          %774 = sbr.rel (%p772) target = $region48
        $region47: #{resnet_forward.5} parent=43 // pred_region
          %s775 = sand.u32 %s149, 1
          %s776 = scalar_lea.sflag [#allocation3], %s775
          %s777 = sand.u32 %s149, 1
          %s778 = smul.addr %s777, 512
          %s779 = scalar_lea.vmem [#allocation2], %s778
          %780 = dma.done %s776, 8192
        $region48: #{resnet_forward.5} parent=43 // pred_fallthru
          _
      $region44: #{resnet_forward.5} parent=5 // pred_fallthru
        _
    $region6: #{resnet_forward.5} parent=1 // loop_footer
      %s17 = sadd.s32 1, %s13
    $region7: #{resnet_forward.5} parent=1 // loop_footer_branch
      %12 = sbr.rel target = $region3
    $region8: #{resnet_forward.5} parent=1 // loop_exit
      _
    %781 = vsyncpa [#allocation3], 1
    %s782 = scalar_lea.sflag [#allocation3], 1
    %783 = vsyncpa %s782, 1

// kernel: resnet_forward.3
$region0: #{resnet_forward.3}
  #allocation0 [shape = 'u32[]', space=smem, size = 0x4, offset = 0x4, fixed_abs, tag = 'smem constant byte address 0x4 - core index']
  #allocation1 [shape = 'u32[144,128]{1,0:T(1,128)}', space=vmem, size = 0x12000, scoped, tag = 'internal scratch']
  %s0 = inlined_call_operand.vmem [shape: bf16[2,18,18,256], index: 0, kind: input, shape index: {}, may-alias: {0,1,2}]
  %s1 = inlined_call_operand.vmem [shape: bf16[2,18,18,256], index: 1, kind: input, shape index: {}, may-alias: {0,1,2}]
  %s2 = inlined_call_operand.vmem [shape: bf16[2,18,18,256], index: 2, kind: input, shape index: {}, may-alias: {0,1,2}]
  %s3 = inlined_call_operand.vmem [shape: bf16[3,768,256], index: 3, kind: input, shape index: {}]
  %s4 = inlined_call_operand.vmem [shape: bf16[2,16,16,256], index: 4, kind: output, shape index: {0}]
  %s5 = inlined_call_operand.vmem [shape: f32[2,2,1,256], index: 5, kind: output, shape index: {1}]
  %s6 = inlined_call_operand.vmem [shape: f32[2,2,1,256], index: 6, kind: output, shape index: {2}]
  %7 = xla_tuple %s4, %s5, %s6
  %s8 = sld [smem:[#allocation0]]
  $region73: #{resnet_forward.3} parent=0
    _
  %s10 = ssub.s32 1, %s8
  %s11 = scalar_select 0, %s10, %s8
  loop: start=0, step=1, limit=6
  $region2: #{resnet_forward.3} parent=0 // loop_pre_header
    _
  $region3: #{resnet_forward.3} parent=0 // loop_header
    %s13 = sphi 0, %s17
    %p14 = scmp.ge.s32.totalorder %s13, 6
    %s20 = sphi 0, %s39
    %s21 = sphi 0, %s35
    %s22 = sphi 0, %s31
    %s23 = sphi 0, %s20
    %s24 = sphi 0, %s21
    %s25 = sphi 0, %s22
    %s26 = sphi 0, %s23
    %s27 = sphi 0, %s24
    %s28 = sphi 0, %s25
    %s46 = sphi 0, %s48
    %s49 = sphi 0, %s46
    %s50 = sphi 0, %s49
    %s66 = sphi 0, %s50
    %s82 = sphi 0, %s84
    %s85 = sphi 0, %s82
    %s86 = sphi 0, %s85
    %s102 = sphi 0, %s86
    %s120 = sphi 0, %s122
    %s123 = sphi 0, %s120
    %s124 = sphi 0, %s123
    %s140 = sphi 0, %s124
    %s144 = sphi 0, %s144
    %s146 = sphi 0, %s144
    %s147 = sphi 0, %s146
    %s161 = sphi 0, %s147
    %s171 = sphi 0, %s173
    %s174 = sphi 0, %s171
    %s175 = sphi 0, %s174
    %s191 = sphi 0, %s175
    %s199 = sphi 0, %s201
    %s202 = sphi 0, %s199
    %s203 = sphi 0, %s202
    %s219 = sphi 0, %s203
    %s227 = sphi 0, %s229
    %s230 = sphi 0, %s227
    %s231 = sphi 0, %s230
    %s247 = sphi 0, %s231
  $region4: #{resnet_forward.3} parent=0 // loop_header_branch
    %16 = sbr.rel (%p14) target = $region8
  $region5: #{resnet_forward.3} parent=0 // loop_body
    %s18 = ssub.s32 %s13, 1
    %s19 = ssub.s32 %s13, 2
    %s29 = sadd.s32 1, %s22
    %p30 = scmp.ge.s32.totalorder %s29, 1
    %s31 = scalar_select %p30, 0, %s29
    %s32 = sadd.s32 1, %s21
    %s33 = scalar_select %p30, %s32, %s21
    %p34 = scmp.ge.s32.totalorder %s33, 2
    %s35 = scalar_select %p34, 0, %s33
    %s36 = sadd.s32 1, %s20
    %s37 = scalar_select %p34, %s36, %s20
    %p38 = scmp.ge.s32.totalorder %s37, 2
    %s39 = scalar_select %p38, 0, %s37
    %s40 = sadd.s32 %s21, %s22
    %s41 = sadd.s32 %s35, %s31
    %s42 = ssub.s32 %s20, %s39
    %s43 = ssub.s32 %s40, %s41
    %s44 = sor.u32 %s42, %s43
    %p45 = scmp.eq.s32.totalorder %s44, 0
    %s47 = sadd.s32 %s46, 1
    %s48 = scalar_select %p45, %s46, %s47
    %p51 = pneg %p45
    %p52 = scmp.eq.s32.totalorder %s13, 3
    %p53 = por %p51, %p52
    %p54 = scmp.ne.s32.totalorder %s46, %s49
    %p55 = scmp.eq.s32.totalorder %s13, 0
    %p56 = por %p54, %p55
    %p57 = scmp.ne.s32.totalorder %s46, %s49
    %p58 = scmp.eq.s32.totalorder %s18, 3
    %p59 = por %p57, %p58
    %p60 = scmp.ne.s32.totalorder %s49, %s50
    %p61 = scmp.eq.s32.totalorder %s18, 0
    %p62 = por %p60, %p61
    %p63 = scmp.ne.s32.totalorder %s49, %s50
    %p64 = scmp.eq.s32.totalorder %s19, 3
    %p65 = por %p63, %p64
    %p67 = scmp.ne.s32.totalorder %s50, %s66
    %p68 = scmp.eq.s32.totalorder %s19, 0
    %p69 = por %p67, %p68
    %s70 = smul.u32 %s21, 8
    %s71 = sadd.s32 %s22, 1
    %s72 = smul.u32 %s71, 8
    %s73 = sadd.s32 %s70, %s72
    %s74 = smul.u32 %s35, 8
    %s75 = sadd.s32 %s31, 1
    %s76 = smul.u32 %s75, 8
    %s77 = sadd.s32 %s74, %s76
    %s78 = ssub.s32 %s20, %s39
    %s79 = ssub.s32 %s73, %s77
    %s80 = sor.u32 %s78, %s79
    %p81 = scmp.eq.s32.totalorder %s80, 0
    %s83 = sadd.s32 %s82, 1
    %s84 = scalar_select %p81, %s82, %s83
    %p87 = pneg %p81
    %p88 = scmp.eq.s32.totalorder %s13, 3
    %p89 = por %p87, %p88
    %p90 = scmp.ne.s32.totalorder %s82, %s85
    %p91 = scmp.eq.s32.totalorder %s13, 0
    %p92 = por %p90, %p91
    %p93 = scmp.ne.s32.totalorder %s82, %s85
    %p94 = scmp.eq.s32.totalorder %s18, 3
    %p95 = por %p93, %p94
    %p96 = scmp.ne.s32.totalorder %s85, %s86
    %p97 = scmp.eq.s32.totalorder %s18, 0
    %p98 = por %p96, %p97
    %p99 = scmp.ne.s32.totalorder %s85, %s86
    %p100 = scmp.eq.s32.totalorder %s19, 3
    %p101 = por %p99, %p100
    %p103 = scmp.ne.s32.totalorder %s86, %s102
    %p104 = scmp.eq.s32.totalorder %s19, 0
    %p105 = por %p103, %p104
    %s106 = smul.u32 %s21, 8
    %s107 = sadd.s32 %s22, 1
    %s108 = smul.u32 %s107, 8
    %s109 = sadd.s32 %s106, %s108
    %s110 = sadd.s32 %s109, 1
    %s111 = smul.u32 %s35, 8
    %s112 = sadd.s32 %s31, 1
    %s113 = smul.u32 %s112, 8
    %s114 = sadd.s32 %s111, %s113
    %s115 = sadd.s32 %s114, 1
    %s116 = ssub.s32 %s20, %s39
    %s117 = ssub.s32 %s110, %s115
    %s118 = sor.u32 %s116, %s117
    %p119 = scmp.eq.s32.totalorder %s118, 0
    %s121 = sadd.s32 %s120, 1
    %s122 = scalar_select %p119, %s120, %s121
    %p125 = pneg %p119
    %p126 = scmp.eq.s32.totalorder %s13, 3
    %p127 = por %p125, %p126
    %p128 = scmp.ne.s32.totalorder %s120, %s123
    %p129 = scmp.eq.s32.totalorder %s13, 0
    %p130 = por %p128, %p129
    %p131 = scmp.ne.s32.totalorder %s120, %s123
    %p132 = scmp.eq.s32.totalorder %s18, 3
    %p133 = por %p131, %p132
    %p134 = scmp.ne.s32.totalorder %s123, %s124
    %p135 = scmp.eq.s32.totalorder %s18, 0
    %p136 = por %p134, %p135
    %p137 = scmp.ne.s32.totalorder %s123, %s124
    %p138 = scmp.eq.s32.totalorder %s19, 3
    %p139 = por %p137, %p138
    %p141 = scmp.ne.s32.totalorder %s124, %s140
    %p142 = scmp.eq.s32.totalorder %s19, 0
    %p143 = por %p141, %p142
    %s145 = sadd.s32 %s144, 1
    %p148 = scmp.eq.s32.totalorder %s13, 3
    %p149 = scmp.ne.s32.totalorder %s144, %s146
    %p150 = scmp.eq.s32.totalorder %s13, 0
    %p151 = por %p149, %p150
    %p152 = scmp.ne.s32.totalorder %s144, %s146
    %p153 = scmp.eq.s32.totalorder %s18, 3
    %p154 = por %p152, %p153
    %p155 = scmp.ne.s32.totalorder %s146, %s147
    %p156 = scmp.eq.s32.totalorder %s18, 0
    %p157 = por %p155, %p156
    %p158 = scmp.ne.s32.totalorder %s146, %s147
    %p159 = scmp.eq.s32.totalorder %s19, 3
    %p160 = por %p158, %p159
    %p162 = scmp.ne.s32.totalorder %s147, %s161
    %p163 = scmp.eq.s32.totalorder %s19, 0
    %p164 = por %p162, %p163
    %s165 = sadd.s32 %s21, %s22
    %s166 = sadd.s32 %s35, %s31
    %s167 = ssub.s32 %s20, %s39
    %s168 = ssub.s32 %s165, %s166
    %s169 = sor.u32 %s167, %s168
    %p170 = scmp.eq.s32.totalorder %s169, 0
    %s172 = sadd.s32 %s171, 1
    %s173 = scalar_select %p170, %s171, %s172
    %p176 = pneg %p170
    %p177 = scmp.eq.s32.totalorder %s13, 3
    %p178 = por %p176, %p177
    %p179 = scmp.ne.s32.totalorder %s171, %s174
    %p180 = scmp.eq.s32.totalorder %s13, 0
    %p181 = por %p179, %p180
    %p182 = scmp.ne.s32.totalorder %s171, %s174
    %p183 = scmp.eq.s32.totalorder %s18, 3
    %p184 = por %p182, %p183
    %p185 = scmp.ne.s32.totalorder %s174, %s175
    %p186 = scmp.eq.s32.totalorder %s18, 0
    %p187 = por %p185, %p186
    %p188 = scmp.ne.s32.totalorder %s174, %s175
    %p189 = scmp.eq.s32.totalorder %s19, 3
    %p190 = por %p188, %p189
    %p192 = scmp.ne.s32.totalorder %s175, %s191
    %p193 = scmp.eq.s32.totalorder %s19, 0
    %p194 = por %p192, %p193
    %s195 = ssub.s32 %s20, %s39
    %s196 = ssub.s32 %s21, %s35
    %s197 = sor.u32 %s195, %s196
    %p198 = scmp.eq.s32.totalorder %s197, 0
    %s200 = sadd.s32 %s199, 1
    %s201 = scalar_select %p198, %s199, %s200
    %p204 = pneg %p198
    %p205 = scmp.eq.s32.totalorder %s13, 3
    %p206 = por %p204, %p205
    %p207 = scmp.ne.s32.totalorder %s199, %s202
    %p208 = scmp.eq.s32.totalorder %s13, 0
    %p209 = por %p207, %p208
    %p210 = scmp.ne.s32.totalorder %s199, %s202
    %p211 = scmp.eq.s32.totalorder %s18, 3
    %p212 = por %p210, %p211
    %p213 = scmp.ne.s32.totalorder %s202, %s203
    %p214 = scmp.eq.s32.totalorder %s18, 0
    %p215 = por %p213, %p214
    %p216 = scmp.ne.s32.totalorder %s202, %s203
    %p217 = scmp.eq.s32.totalorder %s19, 3
    %p218 = por %p216, %p217
    %p220 = scmp.ne.s32.totalorder %s203, %s219
    %p221 = scmp.eq.s32.totalorder %s19, 0
    %p222 = por %p220, %p221
    %s223 = ssub.s32 %s20, %s39
    %s224 = ssub.s32 %s21, %s35
    %s225 = sor.u32 %s223, %s224
    %p226 = scmp.eq.s32.totalorder %s225, 0
    %s228 = sadd.s32 %s227, 1
    %s229 = scalar_select %p226, %s227, %s228
    %p232 = pneg %p226
    %p233 = scmp.eq.s32.totalorder %s13, 3
    %p234 = por %p232, %p233
    %p235 = scmp.ne.s32.totalorder %s227, %s230
    %p236 = scmp.eq.s32.totalorder %s13, 0
    %p237 = por %p235, %p236
    %p238 = scmp.ne.s32.totalorder %s227, %s230
    %p239 = scmp.eq.s32.totalorder %s18, 3
    %p240 = por %p238, %p239
    %p241 = scmp.ne.s32.totalorder %s230, %s231
    %p242 = scmp.eq.s32.totalorder %s18, 0
    %p243 = por %p241, %p242
    %p244 = scmp.ne.s32.totalorder %s230, %s231
    %p245 = scmp.eq.s32.totalorder %s19, 3
    %p246 = por %p244, %p245
    %p248 = scmp.ne.s32.totalorder %s231, %s247
    %p249 = scmp.eq.s32.totalorder %s19, 0
    %p250 = por %p248, %p249
    %p251 = scmp.le.s32.totalorder 1, %s13
    %p252 = scmp.lt.s32.totalorder %s13, 5
    %p253 = pnand %p251, %p252
    %p254 = pneg %p253
    // Predicated region
    $region9: #{resnet_forward.3} parent=5 // pred_check
      _
    $region10: #{resnet_forward.3} parent=5 // pred_check_branch
      %256 = sbr.rel (%p253) target = $region12
    $region11: #{resnet_forward.3} parent=5 // pred_region
      %s257 = ssub.s32 %s13, 1
      // Predicated region
      $region13: #{resnet_forward.3} parent=11 // pred_check
        %p258 = pneg %p157
      $region14: #{resnet_forward.3} parent=11 // pred_check_branch
        %260 = sbr.rel (%p258) target = $region16
      $region15: #{resnet_forward.3} parent=11 // pred_region
        _
      $region16: #{resnet_forward.3} parent=11 // pred_fallthru
        _
    $region12: #{resnet_forward.3} parent=5 // pred_fallthru
      _
    %p261 = scmp.lt.s32.totalorder %s13, 4
    // Predicated region
    $region17: #{resnet_forward.3} parent=5 // pred_check
      %p262 = pneg %p261
    $region18: #{resnet_forward.3} parent=5 // pred_check_branch
      %264 = sbr.rel (%p262) target = $region20
    $region19: #{resnet_forward.3} parent=5 // pred_region
      // Predicated region
      $region21: #{resnet_forward.3} parent=19 // pred_check
        %p265 = pneg %p56
      $region22: #{resnet_forward.3} parent=19 // pred_check_branch
        %267 = sbr.rel (%p265) target = $region24
      $region23: #{resnet_forward.3} parent=19 // pred_region
        %s268 = sadd.s32 %s21, %s22
        %s269 = smul.u32 8, %s268
        %s270 = ssub.s32 18, %s269
        %p271 = scmp.lt.s32.totalorder %s270, 8
        %s272 = scalar_select %p271, %s270, 8
        %s273 = smul.u32 64, %s272
        %s274 = smul.u32 %s273, 3
        %s275 = smul.u32 %s274, 2
        %p276 = scmp.lt.s32.totalorder %s20, 1
        %s277 = scalar_select %p276, %s20, 1
        %p278 = scmp.lt.s32.totalorder %s269, 17
        %s279 = scalar_select %p278, %s269, 17
        %s280 = smul.addr %s279, 6
        %s281 = smul.addr %s277, 108
        %s282 = sadd.s32 %s280, %s281
        %s283 = smul.addr %s282, 4
        %s284 = scalar_lea.vmem %s0, %s283
        %s285 = sadd.s32 %s21, %s22
        %s286 = smul.u32 8, %s285
        %s287 = ssub.s32 18, %s286
        %p288 = scmp.lt.s32.totalorder %s287, 8
        %s289 = scalar_select %p288, %s287, 8
        %s290 = smul.u32 64, %s289
        %s291 = smul.u32 %s290, 3
        %s292 = smul.u32 %s291, 2
      $region24: #{resnet_forward.3} parent=19 // pred_fallthru
        _
      // Predicated region
      $region25: #{resnet_forward.3} parent=19 // pred_check
        %p293 = pneg %p92
      $region26: #{resnet_forward.3} parent=19 // pred_check_branch
        %295 = sbr.rel (%p293) target = $region28
      $region27: #{resnet_forward.3} parent=19 // pred_region
        %s296 = smul.u32 %s21, 8
        %s297 = sadd.s32 %s22, 1
        %s298 = smul.u32 %s297, 8
        %s299 = sadd.s32 %s296, %s298
        %p300 = scmp.lt.s32.totalorder %s20, 1
        %s301 = scalar_select %p300, %s20, 1
        %p302 = scmp.lt.s32.totalorder %s299, 17
        %s303 = scalar_select %p302, %s299, 17
        %s304 = smul.addr %s303, 6
        %s305 = smul.addr %s301, 108
        %s306 = sadd.s32 %s304, %s305
        %s307 = smul.addr %s306, 4
        %s308 = scalar_lea.vmem %s1, %s307
        %s309 = smul.u32 %s21, 8
        %s310 = sadd.s32 %s22, 1
        %s311 = smul.u32 %s310, 8
        %s312 = sadd.s32 %s309, %s311
      $region28: #{resnet_forward.3} parent=19 // pred_fallthru
        _
      // Predicated region
      $region29: #{resnet_forward.3} parent=19 // pred_check
        %p313 = pneg %p130
      $region30: #{resnet_forward.3} parent=19 // pred_check_branch
        %315 = sbr.rel (%p313) target = $region32
      $region31: #{resnet_forward.3} parent=19 // pred_region
        %s316 = smul.u32 %s21, 8
        %s317 = sadd.s32 %s22, 1
        %s318 = smul.u32 %s317, 8
        %s319 = sadd.s32 %s316, %s318
        %s320 = sadd.s32 %s319, 1
        %p321 = scmp.lt.s32.totalorder %s20, 1
        %s322 = scalar_select %p321, %s20, 1
        %p323 = scmp.lt.s32.totalorder %s320, 17
        %s324 = scalar_select %p323, %s320, 17
        %s325 = smul.addr %s324, 6
        %s326 = smul.addr %s322, 108
        %s327 = sadd.s32 %s325, %s326
        %s328 = smul.addr %s327, 4
        %s329 = scalar_lea.vmem %s2, %s328
        %s330 = smul.u32 %s21, 8
        %s331 = sadd.s32 %s22, 1
        %s332 = smul.u32 %s331, 8
        %s333 = sadd.s32 %s330, %s332
        %s334 = sadd.s32 %s333, 1
      $region32: #{resnet_forward.3} parent=19 // pred_fallthru
        _
    $region20: #{resnet_forward.3} parent=5 // pred_fallthru
      _
    %p335 = scmp.le.s32.totalorder 1, %s13
    %p336 = scmp.lt.s32.totalorder %s13, 5
    %p337 = pnand %p335, %p336
    %p338 = pneg %p337
    // Predicated region
    $region33: #{resnet_forward.3} parent=5 // pred_check
      _
    $region34: #{resnet_forward.3} parent=5 // pred_check_branch
      %340 = sbr.rel (%p337) target = $region36
    $region35: #{resnet_forward.3} parent=5 // pred_region
      %s341 = ssub.s32 %s13, 1
      %s342 = sadd.s32 %s24, %s25
      %s343 = smul.u32 8, %s342
      %s344 = ssub.s32 18, %s343
      %p345 = scmp.lt.s32.totalorder %s344, 8
      %s346 = scalar_select %p345, %s344, 8
      %s347 = smul.u32 64, %s346
      %s348 = smul.u32 %s347, 3
      %s349 = smul.u32 %s348, 2
      %p350 = scmp.lt.s32.totalorder %s23, 1
      %s351 = scalar_select %p350, %s23, 1
      %p352 = scmp.lt.s32.totalorder %s343, 17
      %s353 = scalar_select %p352, %s343, 17
      %s354 = smul.addr %s353, 6
      %s355 = smul.addr %s351, 108
      %s356 = sadd.s32 %s354, %s355
      %s357 = smul.addr %s356, 4
      %s358 = scalar_lea.vmem %s0, %s357
      %p359 = pneg %p62
      %p360 = pneg %p59
      %s361 = smul.u32 %s24, 8
      %s362 = sadd.s32 %s25, 1
      %s363 = smul.u32 %s362, 8
      %s364 = sadd.s32 %s361, %s363
      %p365 = scmp.lt.s32.totalorder %s23, 1
      %s366 = scalar_select %p365, %s23, 1
      %p367 = scmp.lt.s32.totalorder %s364, 17
      %s368 = scalar_select %p367, %s364, 17
      %s369 = smul.addr %s368, 6
      %s370 = smul.addr %s366, 108
      %s371 = sadd.s32 %s369, %s370
      %s372 = smul.addr %s371, 4
      %s373 = scalar_lea.vmem %s1, %s372
      %p374 = pneg %p98
      %p375 = pneg %p95
      %s376 = smul.u32 %s24, 8
      %s377 = sadd.s32 %s25, 1
      %s378 = smul.u32 %s377, 8
      %s379 = sadd.s32 %s376, %s378
      %s380 = sadd.s32 %s379, 1
      %p381 = scmp.lt.s32.totalorder %s23, 1
      %s382 = scalar_select %p381, %s23, 1
      %p383 = scmp.lt.s32.totalorder %s380, 17
      %s384 = scalar_select %p383, %s380, 17
      %s385 = smul.addr %s384, 6
      %s386 = smul.addr %s382, 108
      %s387 = sadd.s32 %s385, %s386
      %s388 = smul.addr %s387, 4
      %s389 = scalar_lea.vmem %s2, %s388
      %p390 = pneg %p136
      %p391 = pneg %p133
      %p392 = pneg %p157
      %p393 = pneg %p154
      %p394 = pneg %p187
      %p395 = pneg %p184
      %s396 = sadd.s32 %s24, %s25
      %s397 = smul.u32 8, %s396
      %p398 = scmp.lt.s32.totalorder %s23, 1
      %s399 = scalar_select %p398, %s23, 1
      %p400 = scmp.lt.s32.totalorder %s397, 15
      %s401 = scalar_select %p400, %s397, 15
      %s402 = smul.addr %s401, 4
      %s403 = smul.addr %s399, 64
      %s404 = sadd.s32 %s402, %s403
      %s405 = smul.addr %s404, 4
      %s406 = scalar_lea.vmem %s4, %s405
      %p407 = pneg %p215
      %p408 = pneg %p212
      %p409 = scmp.lt.s32.totalorder %s23, 1
      %s410 = scalar_select %p409, %s23, 1
      %p411 = scmp.lt.s32.totalorder %s24, 1
      %s412 = scalar_select %p411, %s24, 1
      %s413 = smul.addr %s412, 2
      %s414 = smul.addr %s410, 4
      %s415 = sadd.s32 %s413, %s414
      %s416 = scalar_lea.vmem %s5, %s415
      %p417 = pneg %p243
      %p418 = pneg %p240
      %p419 = scmp.lt.s32.totalorder %s23, 1
      %s420 = scalar_select %p419, %s23, 1
      %p421 = scmp.lt.s32.totalorder %s24, 1
      %s422 = scalar_select %p421, %s24, 1
      %s423 = smul.addr %s422, 2
      %s424 = smul.addr %s420, 4
      %s425 = sadd.s32 %s423, %s424
      %s426 = scalar_lea.vmem %s6, %s425
      %s427 = sadd.s32 %s24, %s25
      %s428 = smul.u32 8, %s427
      %s429 = ssub.s32 18, %s428
      %p430 = scmp.lt.s32.totalorder %s429, 8
      %s431 = scalar_select %p430, %s429, 8
      %s432 = smul.u32 64, %s431
      %s433 = smul.u32 %s432, 3
      %s434 = smul.u32 %s433, 2
      %p435 = scmp.lt.s32.totalorder %s23, 1
      %s436 = scalar_select %p435, %s23, 1
      %p437 = scmp.lt.s32.totalorder %s428, 17
      %s438 = scalar_select %p437, %s428, 17
      %s439 = smul.addr %s438, 6
      %s440 = smul.addr %s436, 108
      %s441 = sadd.s32 %s439, %s440
      %s442 = smul.addr %s441, 4
      %s443 = scalar_lea.vmem %s0, %s442
      %s444 = sadd.s32 %s24, %s25
      %s445 = smul.u32 8, %s444
      %s446 = ssub.s32 18, %s445
      %p447 = scmp.lt.s32.totalorder %s446, 8
      %s448 = scalar_select %p447, %s446, 8
      %s449 = smul.u32 64, %s448
      %s450 = smul.u32 %s449, 3
      %s451 = smul.u32 %s450, 2
      %s452 = smul.u32 %s24, 8
      %s453 = sadd.s32 %s25, 1
      %s454 = smul.u32 %s453, 8
      %s455 = sadd.s32 %s452, %s454
      %p456 = scmp.lt.s32.totalorder %s23, 1
      %s457 = scalar_select %p456, %s23, 1
      %p458 = scmp.lt.s32.totalorder %s455, 17
      %s459 = scalar_select %p458, %s455, 17
      %s460 = smul.addr %s459, 6
      %s461 = smul.addr %s457, 108
      %s462 = sadd.s32 %s460, %s461
      %s463 = smul.addr %s462, 4
      %s464 = scalar_lea.vmem %s1, %s463
      %s465 = smul.u32 %s24, 8
      %s466 = sadd.s32 %s25, 1
      %s467 = smul.u32 %s466, 8
      %s468 = sadd.s32 %s465, %s467
      %s469 = smul.u32 %s24, 8
      %s470 = sadd.s32 %s25, 1
      %s471 = smul.u32 %s470, 8
      %s472 = sadd.s32 %s469, %s471
      %s473 = sadd.s32 %s472, 1
      %p474 = scmp.lt.s32.totalorder %s23, 1
      %s475 = scalar_select %p474, %s23, 1
      %p476 = scmp.lt.s32.totalorder %s473, 17
      %s477 = scalar_select %p476, %s473, 17
      %s478 = smul.addr %s477, 6
      %s479 = smul.addr %s475, 108
      %s480 = sadd.s32 %s478, %s479
      %s481 = smul.addr %s480, 4
      %s482 = scalar_lea.vmem %s2, %s481
      %s483 = smul.u32 %s24, 8
      %s484 = sadd.s32 %s25, 1
      %s485 = smul.u32 %s484, 8
      %s486 = sadd.s32 %s483, %s485
      %s487 = sadd.s32 %s486, 1
      %s488 = sadd.s32 %s24, %s25
      %s489 = smul.u32 8, %s488
      %p490 = scmp.lt.s32.totalorder %s23, 1
      %s491 = scalar_select %p490, %s23, 1
      %p492 = scmp.lt.s32.totalorder %s489, 15
      %s493 = scalar_select %p492, %s489, 15
      %s494 = smul.addr %s493, 4
      %s495 = smul.addr %s491, 64
      %s496 = sadd.s32 %s494, %s495
      %s497 = smul.addr %s496, 4
      %s498 = scalar_lea.vmem %s4, %s497
      %s499 = sadd.s32 %s24, %s25
      %s500 = smul.u32 8, %s499
      %p501 = scmp.lt.s32.totalorder %s23, 1
      %s502 = scalar_select %p501, %s23, 1
      %p503 = scmp.lt.s32.totalorder %s24, 1
      %s504 = scalar_select %p503, %s24, 1
      %s505 = smul.addr %s504, 2
      %s506 = smul.addr %s502, 4
      %s507 = sadd.s32 %s505, %s506
      %s508 = scalar_lea.vmem %s5, %s507
      %p509 = scmp.lt.s32.totalorder %s23, 1
      %s510 = scalar_select %p509, %s23, 1
      %p511 = scmp.lt.s32.totalorder %s24, 1
      %s512 = scalar_select %p511, %s24, 1
      %s513 = smul.addr %s512, 2
      %s514 = smul.addr %s510, 4
      %s515 = sadd.s32 %s513, %s514
      %s516 = scalar_lea.vmem %s6, %s515
      %v517 = vld [vmem:[%s443] sm:$0xff]
      %v518 = vld [vmem:[%s443 + $0x8] sm:$0xff]
      %v519 = vld [vmem:[%s443 + $0x10] sm:$0x11]
      %v520 = vld [vmem:[%s443 + $0x18] sm:$0xff]
      %v521 = vld [vmem:[%s443 + $0x20] sm:$0xff]
      %v522 = vld [vmem:[%s443 + $0x28] sm:$0x11]
      %v523 = vld [vmem:[%s443 + $0x30] sm:$0xff]
      %v524 = vld [vmem:[%s443 + $0x38] sm:$0xff]
      %v525 = vld [vmem:[%s443 + $0x40] sm:$0x11]
      %v526 = vld [vmem:[%s443 + $0x48] sm:$0xff]
      %v527 = vld [vmem:[%s443 + $0x50] sm:$0xff]
      %v528 = vld [vmem:[%s443 + $0x58] sm:$0x11]
      %v529 = vld [vmem:[%s443 + $0x60] sm:$0xff]
      %v530 = vld [vmem:[%s443 + $0x68] sm:$0xff]
      %v531 = vld [vmem:[%s443 + $0x70] sm:$0x11]
      %v532 = vld [vmem:[%s443 + $0x78] sm:$0xff]
      %v533 = vld [vmem:[%s443 + $0x80] sm:$0xff]
      %v534 = vld [vmem:[%s443 + $0x88] sm:$0x11]
      %v535 = vld [vmem:[%s443 + $0x90] sm:$0xff]
      %v536 = vld [vmem:[%s443 + $0x98] sm:$0xff]
      %v537 = vld [vmem:[%s443 + $0xa0] sm:$0x11]
      %v538 = vld [vmem:[%s443 + $0xa8] sm:$0xff]
      %v539 = vld [vmem:[%s443 + $0xb0] sm:$0xff]
      %v540 = vld [vmem:[%s443 + $0xb8] sm:$0x11]
      %v541 = vld [vmem:[%s464] sm:$0xff]
      %v542 = vld [vmem:[%s464 + $0x8] sm:$0xff]
      %v543 = vld [vmem:[%s464 + $0x10] sm:$0x11]
      %v544 = vld [vmem:[%s482] sm:$0xff]
      %v545 = vld [vmem:[%s482 + $0x8] sm:$0xff]
      %v546 = vld [vmem:[%s482 + $0x10] sm:$0x11]
      %v563 = vunpack.c.l.b16 %v517
      %v564 = vunpack.c.h.b16 %v517
      %v565 = vunpack.c.l.b16 %v518
      %v566 = vunpack.c.h.b16 %v518
      %v567 = vunpack.c.l.b16 %v520
      %v568 = vunpack.c.h.b16 %v520
      %v569 = vunpack.c.l.b16 %v521
      %v570 = vunpack.c.h.b16 %v521
      %v571 = vunpack.c.l.b16 %v523
      %v572 = vunpack.c.h.b16 %v523
      %v573 = vunpack.c.l.b16 %v524
      %v574 = vunpack.c.h.b16 %v524
      %v575 = vunpack.c.l.b16 %v526
      %v576 = vunpack.c.h.b16 %v526
      %v577 = vunpack.c.l.b16 %v527
      %v578 = vunpack.c.h.b16 %v527
      %v579 = vunpack.c.l.b16 %v529
      %v580 = vunpack.c.h.b16 %v529
      %v581 = vunpack.c.l.b16 %v530
      %v582 = vunpack.c.h.b16 %v530
      %v583 = vunpack.c.l.b16 %v532
      %v584 = vunpack.c.h.b16 %v532
      %v585 = vunpack.c.l.b16 %v533
      %v586 = vunpack.c.h.b16 %v533
      %v587 = vunpack.c.l.b16 %v535
      %v588 = vunpack.c.h.b16 %v535
      %v589 = vunpack.c.l.b16 %v536
      %v590 = vunpack.c.h.b16 %v536
      %v591 = vunpack.c.l.b16 %v538
      %v592 = vunpack.c.h.b16 %v538
      %v593 = vunpack.c.l.b16 %v539
      %v594 = vunpack.c.h.b16 %v539
      %v595 = vpack.c.b16 %v565, %v563
      %v596 = vpack.c.b16 %v566, %v564
      %v597 = vpack.c.b16 %v569, %v567
      %v598 = vpack.c.b16 %v570, %v568
      %v599 = vpack.c.b16 %v573, %v571
      %v600 = vpack.c.b16 %v574, %v572
      %v601 = vpack.c.b16 %v577, %v575
      %v602 = vpack.c.b16 %v578, %v576
      %v603 = vpack.c.b16 %v581, %v579
      %v604 = vpack.c.b16 %v582, %v580
      %v605 = vpack.c.b16 %v585, %v583
      %v606 = vpack.c.b16 %v586, %v584
      %v607 = vpack.c.b16 %v589, %v587
      %v608 = vpack.c.b16 %v590, %v588
      %v609 = vpack.c.b16 %v593, %v591
      %v610 = vpack.c.b16 %v594, %v592
      %v635 = vunpack.c.l.b16 %v519
      %v636 = vunpack.c.h.b16 %v519
      %v637 = vunpack.c.l.b16 %v522
      %v638 = vunpack.c.h.b16 %v522
      %v639 = vunpack.c.l.b16 %v525
      %v640 = vunpack.c.h.b16 %v525
      %v641 = vunpack.c.l.b16 %v528
      %v642 = vunpack.c.h.b16 %v528
      %v643 = vunpack.c.l.b16 %v531
      %v644 = vunpack.c.h.b16 %v531
      %v645 = vunpack.c.l.b16 %v534
      %v646 = vunpack.c.h.b16 %v534
      %v647 = vunpack.c.l.b16 %v537
      %v648 = vunpack.c.h.b16 %v537
      %v649 = vunpack.c.l.b16 %v540
      %v650 = vunpack.c.h.b16 %v540
      %v651 = vpack.c.b16 %v635, %v635
      %v652 = vpack.c.b16 %v636, %v636
      %v653 = vpack.c.b16 %v637, %v637
      %v654 = vpack.c.b16 %v638, %v638
      %v655 = vpack.c.b16 %v639, %v639
      %v656 = vpack.c.b16 %v640, %v640
      %v657 = vpack.c.b16 %v641, %v641
      %v658 = vpack.c.b16 %v642, %v642
      %v659 = vpack.c.b16 %v643, %v643
      %v660 = vpack.c.b16 %v644, %v644
      %v661 = vpack.c.b16 %v645, %v645
      %v662 = vpack.c.b16 %v646, %v646
      %v663 = vpack.c.b16 %v647, %v647
      %v664 = vpack.c.b16 %v648, %v648
      %v665 = vpack.c.b16 %v649, %v649
      %v666 = vpack.c.b16 %v650, %v650
      %vm667 = vsmask.f32 7424
      %v669 = vshrl.u32 %v595, 16
      %v671 = vshll.u32 %v595, 16
      %v673 = vrot.slane %v671, 1
      %v674 = vor.u32 %v669, %v673
      %v676 = vshll.u32 %v651, 16
      %v678 = vrot.slane %v676, 1
      %v679 = vsel %vm667, %v674, %v678
      %v681 = vshrl.u32 %v596, 16
      %v683 = vshll.u32 %v596, 16
      %v685 = vrot.slane %v683, 1
      %v686 = vor.u32 %v681, %v685
      %v688 = vshll.u32 %v652, 16
      %v690 = vrot.slane %v688, 1
      %v691 = vsel %vm667, %v686, %v690
      %v693 = vshrl.u32 %v597, 16
      %v695 = vshll.u32 %v597, 16
      %v697 = vrot.slane %v695, 1
      %v698 = vor.u32 %v693, %v697
      %v700 = vshll.u32 %v653, 16
      %v702 = vrot.slane %v700, 1
      %v703 = vsel %vm667, %v698, %v702
      %v705 = vshrl.u32 %v598, 16
      %v707 = vshll.u32 %v598, 16
      %v709 = vrot.slane %v707, 1
      %v710 = vor.u32 %v705, %v709
      %v712 = vshll.u32 %v654, 16
      %v714 = vrot.slane %v712, 1
      %v715 = vsel %vm667, %v710, %v714
      %v717 = vshrl.u32 %v599, 16
      %v719 = vshll.u32 %v599, 16
      %v721 = vrot.slane %v719, 1
      %v722 = vor.u32 %v717, %v721
      %v724 = vshll.u32 %v655, 16
      %v726 = vrot.slane %v724, 1
      %v727 = vsel %vm667, %v722, %v726
      %v729 = vshrl.u32 %v600, 16
      %v731 = vshll.u32 %v600, 16
      %v733 = vrot.slane %v731, 1
      %v734 = vor.u32 %v729, %v733
      %v736 = vshll.u32 %v656, 16
      %v738 = vrot.slane %v736, 1
      %v739 = vsel %vm667, %v734, %v738
      %v741 = vshrl.u32 %v601, 16
      %v743 = vshll.u32 %v601, 16
      %v745 = vrot.slane %v743, 1
      %v746 = vor.u32 %v741, %v745
      %v748 = vshll.u32 %v657, 16
      %v750 = vrot.slane %v748, 1
      %v751 = vsel %vm667, %v746, %v750
      %v753 = vshrl.u32 %v602, 16
      %v755 = vshll.u32 %v602, 16
      %v757 = vrot.slane %v755, 1
      %v758 = vor.u32 %v753, %v757
      %v760 = vshll.u32 %v658, 16
      %v762 = vrot.slane %v760, 1
      %v763 = vsel %vm667, %v758, %v762
      %v765 = vshrl.u32 %v603, 16
      %v767 = vshll.u32 %v603, 16
      %v769 = vrot.slane %v767, 1
      %v770 = vor.u32 %v765, %v769
      %v772 = vshll.u32 %v659, 16
      %v774 = vrot.slane %v772, 1
      %v775 = vsel %vm667, %v770, %v774
      %v777 = vshrl.u32 %v604, 16
      %v779 = vshll.u32 %v604, 16
      %v781 = vrot.slane %v779, 1
      %v782 = vor.u32 %v777, %v781
      %v784 = vshll.u32 %v660, 16
      %v786 = vrot.slane %v784, 1
      %v787 = vsel %vm667, %v782, %v786
      %v789 = vshrl.u32 %v605, 16
      %v791 = vshll.u32 %v605, 16
      %v793 = vrot.slane %v791, 1
      %v794 = vor.u32 %v789, %v793
      %v796 = vshll.u32 %v661, 16
      %v798 = vrot.slane %v796, 1
      %v799 = vsel %vm667, %v794, %v798
      %v801 = vshrl.u32 %v606, 16
      %v803 = vshll.u32 %v606, 16
      %v805 = vrot.slane %v803, 1
      %v806 = vor.u32 %v801, %v805
      %v808 = vshll.u32 %v662, 16
      %v810 = vrot.slane %v808, 1
      %v811 = vsel %vm667, %v806, %v810
      %v813 = vshrl.u32 %v607, 16
      %v815 = vshll.u32 %v607, 16
      %v817 = vrot.slane %v815, 1
      %v818 = vor.u32 %v813, %v817
      %v820 = vshll.u32 %v663, 16
      %v822 = vrot.slane %v820, 1
      %v823 = vsel %vm667, %v818, %v822
      %v825 = vshrl.u32 %v608, 16
      %v827 = vshll.u32 %v608, 16
      %v829 = vrot.slane %v827, 1
      %v830 = vor.u32 %v825, %v829
      %v832 = vshll.u32 %v664, 16
      %v834 = vrot.slane %v832, 1
      %v835 = vsel %vm667, %v830, %v834
      %v837 = vshrl.u32 %v609, 16
      %v839 = vshll.u32 %v609, 16
      %v841 = vrot.slane %v839, 1
      %v842 = vor.u32 %v837, %v841
      %v844 = vshll.u32 %v665, 16
      %v846 = vrot.slane %v844, 1
      %v847 = vsel %vm667, %v842, %v846
      %v849 = vshrl.u32 %v610, 16
      %v851 = vshll.u32 %v610, 16
      %v853 = vrot.slane %v851, 1
      %v854 = vor.u32 %v849, %v853
      %v856 = vshll.u32 %v666, 16
      %v858 = vrot.slane %v856, 1
      %v859 = vsel %vm667, %v854, %v858
      %vm876 = vcmask 1046528
      %v877 = vrot.slane %v595, 1
      %v878 = vrot.slane %v651, 1
      %v879 = vsel %vm876, %v877, %v878
      %v880 = vrot.slane %v596, 1
      %v881 = vrot.slane %v652, 1
      %v882 = vsel %vm876, %v880, %v881
      %v883 = vrot.slane %v597, 1
      %v884 = vrot.slane %v653, 1
      %v885 = vsel %vm876, %v883, %v884
      %v886 = vrot.slane %v598, 1
      %v887 = vrot.slane %v654, 1
      %v888 = vsel %vm876, %v886, %v887
      %v889 = vrot.slane %v599, 1
      %v890 = vrot.slane %v655, 1
      %v891 = vsel %vm876, %v889, %v890
      %v892 = vrot.slane %v600, 1
      %v893 = vrot.slane %v656, 1
      %v894 = vsel %vm876, %v892, %v893
      %v895 = vrot.slane %v601, 1
      %v896 = vrot.slane %v657, 1
      %v897 = vsel %vm876, %v895, %v896
      %v898 = vrot.slane %v602, 1
      %v899 = vrot.slane %v658, 1
      %v900 = vsel %vm876, %v898, %v899
      %v901 = vrot.slane %v603, 1
      %v902 = vrot.slane %v659, 1
      %v903 = vsel %vm876, %v901, %v902
      %v904 = vrot.slane %v604, 1
      %v905 = vrot.slane %v660, 1
      %v906 = vsel %vm876, %v904, %v905
      %v907 = vrot.slane %v605, 1
      %v908 = vrot.slane %v661, 1
      %v909 = vsel %vm876, %v907, %v908
      %v910 = vrot.slane %v606, 1
      %v911 = vrot.slane %v662, 1
      %v912 = vsel %vm876, %v910, %v911
      %v913 = vrot.slane %v607, 1
      %v914 = vrot.slane %v663, 1
      %v915 = vsel %vm876, %v913, %v914
      %v916 = vrot.slane %v608, 1
      %v917 = vrot.slane %v664, 1
      %v918 = vsel %vm876, %v916, %v917
      %v919 = vrot.slane %v609, 1
      %v920 = vrot.slane %v665, 1
      %v921 = vsel %vm876, %v919, %v920
      %v922 = vrot.slane %v610, 1
      %v923 = vrot.slane %v666, 1
      %v924 = vsel %vm876, %v922, %v923
      %v941 = vld [vmem:[%s3] sm:$0xff]
      %v942 = vld [vmem:[%s3 + $0x8] sm:$0xff]
      %v943 = vld [vmem:[%s3 + $0x10] sm:$0xff]
      %v944 = vld [vmem:[%s3 + $0x18] sm:$0xff]
      %v945 = vld [vmem:[%s3 + $0x20] sm:$0xff]
      %v946 = vld [vmem:[%s3 + $0x28] sm:$0xff]
      %v947 = vld [vmem:[%s3 + $0x30] sm:$0xff]
      %v948 = vld [vmem:[%s3 + $0x38] sm:$0xff]
      %v949 = vld [vmem:[%s3 + $0x40] sm:$0xff]
      %v950 = vld [vmem:[%s3 + $0x48] sm:$0xff]
      %v951 = vld [vmem:[%s3 + $0x50] sm:$0xff]
      %v952 = vld [vmem:[%s3 + $0x58] sm:$0xff]
      %v953 = vld [vmem:[%s3 + $0x60] sm:$0xff]
      %v954 = vld [vmem:[%s3 + $0x68] sm:$0xff]
      %v955 = vld [vmem:[%s3 + $0x70] sm:$0xff]
      %v956 = vld [vmem:[%s3 + $0x78] sm:$0xff]
      %v957 = vld [vmem:[%s3 + $0x80] sm:$0xff]
      %v958 = vld [vmem:[%s3 + $0x88] sm:$0xff]
      %v959 = vld [vmem:[%s3 + $0x90] sm:$0xff]
      %v960 = vld [vmem:[%s3 + $0x98] sm:$0xff]
      %v961 = vld [vmem:[%s3 + $0xa0] sm:$0xff]
      %v962 = vld [vmem:[%s3 + $0xa8] sm:$0xff]
      %v963 = vld [vmem:[%s3 + $0xb0] sm:$0xff]
      %v964 = vld [vmem:[%s3 + $0xb8] sm:$0xff]
      %v965 = vld [vmem:[%s3 + $0xc0] sm:$0xff]
      %v966 = vld [vmem:[%s3 + $0xc8] sm:$0xff]
      %v967 = vld [vmem:[%s3 + $0xd0] sm:$0xff]
      %v968 = vld [vmem:[%s3 + $0xd8] sm:$0xff]
      %v969 = vld [vmem:[%s3 + $0xe0] sm:$0xff]
      %v970 = vld [vmem:[%s3 + $0xe8] sm:$0xff]
      %v971 = vld [vmem:[%s3 + $0xf0] sm:$0xff]
      %v972 = vld [vmem:[%s3 + $0xf8] sm:$0xff]
      %v973 = vld [vmem:[%s3 + $0x100] sm:$0xff]
      %v974 = vld [vmem:[%s3 + $0x108] sm:$0xff]
      %v975 = vld [vmem:[%s3 + $0x110] sm:$0xff]
      %v976 = vld [vmem:[%s3 + $0x118] sm:$0xff]
      %v977 = vld [vmem:[%s3 + $0x120] sm:$0xff]
      %v978 = vld [vmem:[%s3 + $0x128] sm:$0xff]
      %v979 = vld [vmem:[%s3 + $0x130] sm:$0xff]
      %v980 = vld [vmem:[%s3 + $0x138] sm:$0xff]
      %v981 = vld [vmem:[%s3 + $0x140] sm:$0xff]
      %v982 = vld [vmem:[%s3 + $0x148] sm:$0xff]
      %v983 = vld [vmem:[%s3 + $0x150] sm:$0xff]
      %v984 = vld [vmem:[%s3 + $0x158] sm:$0xff]
      %v985 = vld [vmem:[%s3 + $0x160] sm:$0xff]
      %v986 = vld [vmem:[%s3 + $0x168] sm:$0xff]
      %v987 = vld [vmem:[%s3 + $0x170] sm:$0xff]
      %v988 = vld [vmem:[%s3 + $0x178] sm:$0xff]
      %v989 = vld [vmem:[%s3 + $0x180] sm:$0xff]
      %v990 = vld [vmem:[%s3 + $0x188] sm:$0xff]
      %v991 = vld [vmem:[%s3 + $0x190] sm:$0xff]
      %v992 = vld [vmem:[%s3 + $0x198] sm:$0xff]
      %v993 = vld [vmem:[%s3 + $0x1a0] sm:$0xff]
      %v994 = vld [vmem:[%s3 + $0x1a8] sm:$0xff]
      %v995 = vld [vmem:[%s3 + $0x1b0] sm:$0xff]
      %v996 = vld [vmem:[%s3 + $0x1b8] sm:$0xff]
      %v997 = vld [vmem:[%s3 + $0x1c0] sm:$0xff]
      %v998 = vld [vmem:[%s3 + $0x1c8] sm:$0xff]
      %v999 = vld [vmem:[%s3 + $0x1d0] sm:$0xff]
      %v1000 = vld [vmem:[%s3 + $0x1d8] sm:$0xff]
      %v1001 = vld [vmem:[%s3 + $0x1e0] sm:$0xff]
      %v1002 = vld [vmem:[%s3 + $0x1e8] sm:$0xff]
      %v1003 = vld [vmem:[%s3 + $0x1f0] sm:$0xff]
      %v1004 = vld [vmem:[%s3 + $0x1f8] sm:$0xff]
      %v1005 = vld [vmem:[%s3 + $0x200] sm:$0xff]
      %v1006 = vld [vmem:[%s3 + $0x208] sm:$0xff]
      %v1007 = vld [vmem:[%s3 + $0x210] sm:$0xff]
      %v1008 = vld [vmem:[%s3 + $0x218] sm:$0xff]
      %v1009 = vld [vmem:[%s3 + $0x220] sm:$0xff]
      %v1010 = vld [vmem:[%s3 + $0x228] sm:$0xff]
      %v1011 = vld [vmem:[%s3 + $0x230] sm:$0xff]
      %v1012 = vld [vmem:[%s3 + $0x238] sm:$0xff]
      %v1013 = vld [vmem:[%s3 + $0x240] sm:$0xff]
      %v1014 = vld [vmem:[%s3 + $0x248] sm:$0xff]
      %v1015 = vld [vmem:[%s3 + $0x250] sm:$0xff]
      %v1016 = vld [vmem:[%s3 + $0x258] sm:$0xff]
      %v1017 = vld [vmem:[%s3 + $0x260] sm:$0xff]
      %v1018 = vld [vmem:[%s3 + $0x268] sm:$0xff]
      %v1019 = vld [vmem:[%s3 + $0x270] sm:$0xff]
      %v1020 = vld [vmem:[%s3 + $0x278] sm:$0xff]
      %v1021 = vld [vmem:[%s3 + $0x280] sm:$0xff]
      %v1022 = vld [vmem:[%s3 + $0x288] sm:$0xff]
      %v1023 = vld [vmem:[%s3 + $0x290] sm:$0xff]
      %v1024 = vld [vmem:[%s3 + $0x298] sm:$0xff]
      %v1025 = vld [vmem:[%s3 + $0x2a0] sm:$0xff]
      %v1026 = vld [vmem:[%s3 + $0x2a8] sm:$0xff]
      %v1027 = vld [vmem:[%s3 + $0x2b0] sm:$0xff]
      %v1028 = vld [vmem:[%s3 + $0x2b8] sm:$0xff]
      %v1029 = vld [vmem:[%s3 + $0x2c0] sm:$0xff]
      %v1030 = vld [vmem:[%s3 + $0x2c8] sm:$0xff]
      %v1031 = vld [vmem:[%s3 + $0x2d0] sm:$0xff]
      %v1032 = vld [vmem:[%s3 + $0x2d8] sm:$0xff]
      %v1033 = vld [vmem:[%s3 + $0x2e0] sm:$0xff]
      %v1034 = vld [vmem:[%s3 + $0x2e8] sm:$0xff]
      %v1035 = vld [vmem:[%s3 + $0x2f0] sm:$0xff]
      %v1036 = vld [vmem:[%s3 + $0x2f8] sm:$0xff]
      %v1039 = vunpack.c.l.b16 %v541
      %v1040 = vunpack.c.h.b16 %v541
      %v1041 = vunpack.c.l.b16 %v542
      %v1042 = vunpack.c.h.b16 %v542
      %v1043 = vpack.c.b16 %v1041, %v1039
      %v1044 = vpack.c.b16 %v1042, %v1040
      %v1048 = vunpack.c.l.b16 %v543
      %v1049 = vunpack.c.h.b16 %v543
      %v1050 = vpack.c.b16 %v1048, %v1048
      %v1051 = vpack.c.b16 %v1049, %v1049
      %v1053 = vshrl.u32 %v1043, 16
      %v1055 = vshll.u32 %v1043, 16
      %v1057 = vrot.slane %v1055, 1
      %v1058 = vor.u32 %v1053, %v1057
      %v1060 = vshll.u32 %v1050, 16
      %v1062 = vrot.slane %v1060, 1
      %v1063 = vsel %vm667, %v1058, %v1062
      %v1065 = vshrl.u32 %v1044, 16
      %v1067 = vshll.u32 %v1044, 16
      %v1069 = vrot.slane %v1067, 1
      %v1070 = vor.u32 %v1065, %v1069
      %v1072 = vshll.u32 %v1051, 16
      %v1074 = vrot.slane %v1072, 1
      %v1075 = vsel %vm667, %v1070, %v1074
      %v1078 = vrot.slane %v1043, 1
      %v1079 = vrot.slane %v1050, 1
      %v1080 = vsel %vm876, %v1078, %v1079
      %v1081 = vrot.slane %v1044, 1
      %v1082 = vrot.slane %v1051, 1
      %v1083 = vsel %vm876, %v1081, %v1082
      %s1086 = scalar_lea.vmem %s3, 768
      %v1087 = vld [vmem:[%s1086] sm:$0xff]
      %v1088 = vld [vmem:[%s1086 + $0x8] sm:$0xff]
      %v1089 = vld [vmem:[%s1086 + $0x10] sm:$0xff]
      %v1090 = vld [vmem:[%s1086 + $0x18] sm:$0xff]
      %v1091 = vld [vmem:[%s1086 + $0x20] sm:$0xff]
      %v1092 = vld [vmem:[%s1086 + $0x28] sm:$0xff]
      %v1093 = vld [vmem:[%s1086 + $0x30] sm:$0xff]
      %v1094 = vld [vmem:[%s1086 + $0x38] sm:$0xff]
      %v1095 = vld [vmem:[%s1086 + $0x40] sm:$0xff]
      %v1096 = vld [vmem:[%s1086 + $0x48] sm:$0xff]
      %v1097 = vld [vmem:[%s1086 + $0x50] sm:$0xff]
      %v1098 = vld [vmem:[%s1086 + $0x58] sm:$0xff]
      %v1099 = vld [vmem:[%s1086 + $0x60] sm:$0xff]
      %v1100 = vld [vmem:[%s1086 + $0x68] sm:$0xff]
      %v1101 = vld [vmem:[%s1086 + $0x70] sm:$0xff]
      %v1102 = vld [vmem:[%s1086 + $0x78] sm:$0xff]
      %v1103 = vld [vmem:[%s1086 + $0x80] sm:$0xff]
      %v1104 = vld [vmem:[%s1086 + $0x88] sm:$0xff]
      %v1105 = vld [vmem:[%s1086 + $0x90] sm:$0xff]
      %v1106 = vld [vmem:[%s1086 + $0x98] sm:$0xff]
      %v1107 = vld [vmem:[%s1086 + $0xa0] sm:$0xff]
      %v1108 = vld [vmem:[%s1086 + $0xa8] sm:$0xff]
      %v1109 = vld [vmem:[%s1086 + $0xb0] sm:$0xff]
      %v1110 = vld [vmem:[%s1086 + $0xb8] sm:$0xff]
      %v1111 = vld [vmem:[%s1086 + $0xc0] sm:$0xff]
      %v1112 = vld [vmem:[%s1086 + $0xc8] sm:$0xff]
      %v1113 = vld [vmem:[%s1086 + $0xd0] sm:$0xff]
      %v1114 = vld [vmem:[%s1086 + $0xd8] sm:$0xff]
      %v1115 = vld [vmem:[%s1086 + $0xe0] sm:$0xff]
      %v1116 = vld [vmem:[%s1086 + $0xe8] sm:$0xff]
      %v1117 = vld [vmem:[%s1086 + $0xf0] sm:$0xff]
      %v1118 = vld [vmem:[%s1086 + $0xf8] sm:$0xff]
      %v1119 = vld [vmem:[%s1086 + $0x100] sm:$0xff]
      %v1120 = vld [vmem:[%s1086 + $0x108] sm:$0xff]
      %v1121 = vld [vmem:[%s1086 + $0x110] sm:$0xff]
      %v1122 = vld [vmem:[%s1086 + $0x118] sm:$0xff]
      %v1123 = vld [vmem:[%s1086 + $0x120] sm:$0xff]
      %v1124 = vld [vmem:[%s1086 + $0x128] sm:$0xff]
      %v1125 = vld [vmem:[%s1086 + $0x130] sm:$0xff]
      %v1126 = vld [vmem:[%s1086 + $0x138] sm:$0xff]
      %v1127 = vld [vmem:[%s1086 + $0x140] sm:$0xff]
      %v1128 = vld [vmem:[%s1086 + $0x148] sm:$0xff]
      %v1129 = vld [vmem:[%s1086 + $0x150] sm:$0xff]
      %v1130 = vld [vmem:[%s1086 + $0x158] sm:$0xff]
      %v1131 = vld [vmem:[%s1086 + $0x160] sm:$0xff]
      %v1132 = vld [vmem:[%s1086 + $0x168] sm:$0xff]
      %v1133 = vld [vmem:[%s1086 + $0x170] sm:$0xff]
      %v1134 = vld [vmem:[%s1086 + $0x178] sm:$0xff]
      %v1135 = vld [vmem:[%s1086 + $0x180] sm:$0xff]
      %v1136 = vld [vmem:[%s1086 + $0x188] sm:$0xff]
      %v1137 = vld [vmem:[%s1086 + $0x190] sm:$0xff]
      %v1138 = vld [vmem:[%s1086 + $0x198] sm:$0xff]
      %v1139 = vld [vmem:[%s1086 + $0x1a0] sm:$0xff]
      %v1140 = vld [vmem:[%s1086 + $0x1a8] sm:$0xff]
      %v1141 = vld [vmem:[%s1086 + $0x1b0] sm:$0xff]
      %v1142 = vld [vmem:[%s1086 + $0x1b8] sm:$0xff]
      %v1143 = vld [vmem:[%s1086 + $0x1c0] sm:$0xff]
      %v1144 = vld [vmem:[%s1086 + $0x1c8] sm:$0xff]
      %v1145 = vld [vmem:[%s1086 + $0x1d0] sm:$0xff]
      %v1146 = vld [vmem:[%s1086 + $0x1d8] sm:$0xff]
      %v1147 = vld [vmem:[%s1086 + $0x1e0] sm:$0xff]
      %v1148 = vld [vmem:[%s1086 + $0x1e8] sm:$0xff]
      %v1149 = vld [vmem:[%s1086 + $0x1f0] sm:$0xff]
      %v1150 = vld [vmem:[%s1086 + $0x1f8] sm:$0xff]
      %v1151 = vld [vmem:[%s1086 + $0x200] sm:$0xff]
      %v1152 = vld [vmem:[%s1086 + $0x208] sm:$0xff]
      %v1153 = vld [vmem:[%s1086 + $0x210] sm:$0xff]
      %v1154 = vld [vmem:[%s1086 + $0x218] sm:$0xff]
      %v1155 = vld [vmem:[%s1086 + $0x220] sm:$0xff]
      %v1156 = vld [vmem:[%s1086 + $0x228] sm:$0xff]
      %v1157 = vld [vmem:[%s1086 + $0x230] sm:$0xff]
      %v1158 = vld [vmem:[%s1086 + $0x238] sm:$0xff]
      %v1159 = vld [vmem:[%s1086 + $0x240] sm:$0xff]
      %v1160 = vld [vmem:[%s1086 + $0x248] sm:$0xff]
      %v1161 = vld [vmem:[%s1086 + $0x250] sm:$0xff]
      %v1162 = vld [vmem:[%s1086 + $0x258] sm:$0xff]
      %v1163 = vld [vmem:[%s1086 + $0x260] sm:$0xff]
      %v1164 = vld [vmem:[%s1086 + $0x268] sm:$0xff]
      %v1165 = vld [vmem:[%s1086 + $0x270] sm:$0xff]
      %v1166 = vld [vmem:[%s1086 + $0x278] sm:$0xff]
      %v1167 = vld [vmem:[%s1086 + $0x280] sm:$0xff]
      %v1168 = vld [vmem:[%s1086 + $0x288] sm:$0xff]
      %v1169 = vld [vmem:[%s1086 + $0x290] sm:$0xff]
      %v1170 = vld [vmem:[%s1086 + $0x298] sm:$0xff]
      %v1171 = vld [vmem:[%s1086 + $0x2a0] sm:$0xff]
      %v1172 = vld [vmem:[%s1086 + $0x2a8] sm:$0xff]
      %v1173 = vld [vmem:[%s1086 + $0x2b0] sm:$0xff]
      %v1174 = vld [vmem:[%s1086 + $0x2b8] sm:$0xff]
      %v1175 = vld [vmem:[%s1086 + $0x2c0] sm:$0xff]
      %v1176 = vld [vmem:[%s1086 + $0x2c8] sm:$0xff]
      %v1177 = vld [vmem:[%s1086 + $0x2d0] sm:$0xff]
      %v1178 = vld [vmem:[%s1086 + $0x2d8] sm:$0xff]
      %v1179 = vld [vmem:[%s1086 + $0x2e0] sm:$0xff]
      %v1180 = vld [vmem:[%s1086 + $0x2e8] sm:$0xff]
      %v1181 = vld [vmem:[%s1086 + $0x2f0] sm:$0xff]
      %v1182 = vld [vmem:[%s1086 + $0x2f8] sm:$0xff]
      %v1279 = vunpack.c.l.b16 %v1087
      %v1280 = vunpack.c.h.b16 %v1087
      %v1281 = vunpack.c.l.b16 %v1088
      %v1282 = vunpack.c.h.b16 %v1088
      %v1283 = vunpack.c.l.b16 %v1089
      %v1284 = vunpack.c.h.b16 %v1089
      %v1285 = vunpack.c.l.b16 %v1090
      %v1286 = vunpack.c.h.b16 %v1090
      %v1287 = vunpack.c.l.b16 %v1091
      %v1288 = vunpack.c.h.b16 %v1091
      %v1289 = vunpack.c.l.b16 %v1092
      %v1290 = vunpack.c.h.b16 %v1092
      %v1291 = vunpack.c.l.b16 %v1093
      %v1292 = vunpack.c.h.b16 %v1093
      %v1293 = vunpack.c.l.b16 %v1094
      %v1294 = vunpack.c.h.b16 %v1094
      %v1295 = vunpack.c.l.b16 %v1095
      %v1296 = vunpack.c.h.b16 %v1095
      %v1297 = vunpack.c.l.b16 %v1096
      %v1298 = vunpack.c.h.b16 %v1096
      %v1299 = vunpack.c.l.b16 %v1097
      %v1300 = vunpack.c.h.b16 %v1097
      %v1301 = vunpack.c.l.b16 %v1098
      %v1302 = vunpack.c.h.b16 %v1098
      %v1303 = vunpack.c.l.b16 %v1099
      %v1304 = vunpack.c.h.b16 %v1099
      %v1305 = vunpack.c.l.b16 %v1100
      %v1306 = vunpack.c.h.b16 %v1100
      %v1307 = vunpack.c.l.b16 %v1101
      %v1308 = vunpack.c.h.b16 %v1101
      %v1309 = vunpack.c.l.b16 %v1102
      %v1310 = vunpack.c.h.b16 %v1102
      %v1311 = vunpack.c.l.b16 %v1103
      %v1312 = vunpack.c.h.b16 %v1103
      %v1313 = vunpack.c.l.b16 %v1104
      %v1314 = vunpack.c.h.b16 %v1104
      %v1315 = vunpack.c.l.b16 %v1105
      %v1316 = vunpack.c.h.b16 %v1105
      %v1317 = vunpack.c.l.b16 %v1106
      %v1318 = vunpack.c.h.b16 %v1106
      %v1319 = vunpack.c.l.b16 %v1107
      %v1320 = vunpack.c.h.b16 %v1107
      %v1321 = vunpack.c.l.b16 %v1108
      %v1322 = vunpack.c.h.b16 %v1108
      %v1323 = vunpack.c.l.b16 %v1109
      %v1324 = vunpack.c.h.b16 %v1109
      %v1325 = vunpack.c.l.b16 %v1110
      %v1326 = vunpack.c.h.b16 %v1110
      %v1327 = vunpack.c.l.b16 %v1111
      %v1328 = vunpack.c.h.b16 %v1111
      %v1329 = vunpack.c.l.b16 %v1112
      %v1330 = vunpack.c.h.b16 %v1112
      %v1331 = vunpack.c.l.b16 %v1113
      %v1332 = vunpack.c.h.b16 %v1113
      %v1333 = vunpack.c.l.b16 %v1114
      %v1334 = vunpack.c.h.b16 %v1114
      %v1335 = vunpack.c.l.b16 %v1115
      %v1336 = vunpack.c.h.b16 %v1115
      %v1337 = vunpack.c.l.b16 %v1116
      %v1338 = vunpack.c.h.b16 %v1116
      %v1339 = vunpack.c.l.b16 %v1117
      %v1340 = vunpack.c.h.b16 %v1117
      %v1341 = vunpack.c.l.b16 %v1118
      %v1342 = vunpack.c.h.b16 %v1118
      %v1343 = vunpack.c.l.b16 %v1119
      %v1344 = vunpack.c.h.b16 %v1119
      %v1345 = vunpack.c.l.b16 %v1120
      %v1346 = vunpack.c.h.b16 %v1120
      %v1347 = vunpack.c.l.b16 %v1121
      %v1348 = vunpack.c.h.b16 %v1121
      %v1349 = vunpack.c.l.b16 %v1122
      %v1350 = vunpack.c.h.b16 %v1122
      %v1351 = vunpack.c.l.b16 %v1123
      %v1352 = vunpack.c.h.b16 %v1123
      %v1353 = vunpack.c.l.b16 %v1124
      %v1354 = vunpack.c.h.b16 %v1124
      %v1355 = vunpack.c.l.b16 %v1125
      %v1356 = vunpack.c.h.b16 %v1125
      %v1357 = vunpack.c.l.b16 %v1126
      %v1358 = vunpack.c.h.b16 %v1126
      %v1359 = vunpack.c.l.b16 %v1127
      %v1360 = vunpack.c.h.b16 %v1127
      %v1361 = vunpack.c.l.b16 %v1128
      %v1362 = vunpack.c.h.b16 %v1128
      %v1363 = vunpack.c.l.b16 %v1129
      %v1364 = vunpack.c.h.b16 %v1129
      %v1365 = vunpack.c.l.b16 %v1130
      %v1366 = vunpack.c.h.b16 %v1130
      %v1367 = vunpack.c.l.b16 %v1131
      %v1368 = vunpack.c.h.b16 %v1131
      %v1369 = vunpack.c.l.b16 %v1132
      %v1370 = vunpack.c.h.b16 %v1132
      %v1371 = vunpack.c.l.b16 %v1133
      %v1372 = vunpack.c.h.b16 %v1133
      %v1373 = vunpack.c.l.b16 %v1134
      %v1374 = vunpack.c.h.b16 %v1134
      %v1375 = vunpack.c.l.b16 %v1135
      %v1376 = vunpack.c.h.b16 %v1135
      %v1377 = vunpack.c.l.b16 %v1136
      %v1378 = vunpack.c.h.b16 %v1136
      %v1379 = vunpack.c.l.b16 %v1137
      %v1380 = vunpack.c.h.b16 %v1137
      %v1381 = vunpack.c.l.b16 %v1138
      %v1382 = vunpack.c.h.b16 %v1138
      %v1383 = vunpack.c.l.b16 %v1139
      %v1384 = vunpack.c.h.b16 %v1139
      %v1385 = vunpack.c.l.b16 %v1140
      %v1386 = vunpack.c.h.b16 %v1140
      %v1387 = vunpack.c.l.b16 %v1141
      %v1388 = vunpack.c.h.b16 %v1141
      %v1389 = vunpack.c.l.b16 %v1142
      %v1390 = vunpack.c.h.b16 %v1142
      %v1391 = vunpack.c.l.b16 %v1143
      %v1392 = vunpack.c.h.b16 %v1143
      %v1393 = vunpack.c.l.b16 %v1144
      %v1394 = vunpack.c.h.b16 %v1144
      %v1395 = vunpack.c.l.b16 %v1145
      %v1396 = vunpack.c.h.b16 %v1145
      %v1397 = vunpack.c.l.b16 %v1146
      %v1398 = vunpack.c.h.b16 %v1146
      %v1399 = vunpack.c.l.b16 %v1147
      %v1400 = vunpack.c.h.b16 %v1147
      %v1401 = vunpack.c.l.b16 %v1148
      %v1402 = vunpack.c.h.b16 %v1148
      %v1403 = vunpack.c.l.b16 %v1149
      %v1404 = vunpack.c.h.b16 %v1149
      %v1405 = vunpack.c.l.b16 %v1150
      %v1406 = vunpack.c.h.b16 %v1150
      %v1407 = vunpack.c.l.b16 %v1151
      %v1408 = vunpack.c.h.b16 %v1151
      %v1409 = vunpack.c.l.b16 %v1152
      %v1410 = vunpack.c.h.b16 %v1152
      %v1411 = vunpack.c.l.b16 %v1153
      %v1412 = vunpack.c.h.b16 %v1153
      %v1413 = vunpack.c.l.b16 %v1154
      %v1414 = vunpack.c.h.b16 %v1154
      %v1415 = vunpack.c.l.b16 %v1155
      %v1416 = vunpack.c.h.b16 %v1155
      %v1417 = vunpack.c.l.b16 %v1156
      %v1418 = vunpack.c.h.b16 %v1156
      %v1419 = vunpack.c.l.b16 %v1157
      %v1420 = vunpack.c.h.b16 %v1157
      %v1421 = vunpack.c.l.b16 %v1158
      %v1422 = vunpack.c.h.b16 %v1158
      %v1423 = vunpack.c.l.b16 %v1159
      %v1424 = vunpack.c.h.b16 %v1159
      %v1425 = vunpack.c.l.b16 %v1160
      %v1426 = vunpack.c.h.b16 %v1160
      %v1427 = vunpack.c.l.b16 %v1161
      %v1428 = vunpack.c.h.b16 %v1161
      %v1429 = vunpack.c.l.b16 %v1162
      %v1430 = vunpack.c.h.b16 %v1162
      %v1431 = vunpack.c.l.b16 %v1163
      %v1432 = vunpack.c.h.b16 %v1163
      %v1433 = vunpack.c.l.b16 %v1164
      %v1434 = vunpack.c.h.b16 %v1164
      %v1435 = vunpack.c.l.b16 %v1165
      %v1436 = vunpack.c.h.b16 %v1165
      %v1437 = vunpack.c.l.b16 %v1166
      %v1438 = vunpack.c.h.b16 %v1166
      %v1439 = vunpack.c.l.b16 %v1167
      %v1440 = vunpack.c.h.b16 %v1167
      %v1441 = vunpack.c.l.b16 %v1168
      %v1442 = vunpack.c.h.b16 %v1168
      %v1443 = vunpack.c.l.b16 %v1169
      %v1444 = vunpack.c.h.b16 %v1169
      %v1445 = vunpack.c.l.b16 %v1170
      %v1446 = vunpack.c.h.b16 %v1170
      %v1447 = vunpack.c.l.b16 %v1171
      %v1448 = vunpack.c.h.b16 %v1171
      %v1449 = vunpack.c.l.b16 %v1172
      %v1450 = vunpack.c.h.b16 %v1172
      %v1451 = vunpack.c.l.b16 %v1173
      %v1452 = vunpack.c.h.b16 %v1173
      %v1453 = vunpack.c.l.b16 %v1174
      %v1454 = vunpack.c.h.b16 %v1174
      %v1455 = vunpack.c.l.b16 %v1175
      %v1456 = vunpack.c.h.b16 %v1175
      %v1457 = vunpack.c.l.b16 %v1176
      %v1458 = vunpack.c.h.b16 %v1176
      %v1459 = vunpack.c.l.b16 %v1177
      %v1460 = vunpack.c.h.b16 %v1177
      %v1461 = vunpack.c.l.b16 %v1178
      %v1462 = vunpack.c.h.b16 %v1178
      %v1463 = vunpack.c.l.b16 %v1179
      %v1464 = vunpack.c.h.b16 %v1179
      %v1465 = vunpack.c.l.b16 %v1180
      %v1466 = vunpack.c.h.b16 %v1180
      %v1467 = vunpack.c.l.b16 %v1181
      %v1468 = vunpack.c.h.b16 %v1181
      %v1469 = vunpack.c.l.b16 %v1182
      %v1470 = vunpack.c.h.b16 %v1182
      %v1471 = vpack.c.b16 %v1281, %v1279
      %v1472 = vpack.c.b16 %v1282, %v1280
      %v1473 = vpack.c.b16 %v1285, %v1283
      %v1474 = vpack.c.b16 %v1286, %v1284
      %v1475 = vpack.c.b16 %v1289, %v1287
      %v1476 = vpack.c.b16 %v1290, %v1288
      %v1477 = vpack.c.b16 %v1293, %v1291
      %v1478 = vpack.c.b16 %v1294, %v1292
      %v1479 = vpack.c.b16 %v1297, %v1295
      %v1480 = vpack.c.b16 %v1298, %v1296
      %v1481 = vpack.c.b16 %v1301, %v1299
      %v1482 = vpack.c.b16 %v1302, %v1300
      %v1483 = vpack.c.b16 %v1305, %v1303
      %v1484 = vpack.c.b16 %v1306, %v1304
      %v1485 = vpack.c.b16 %v1309, %v1307
      %v1486 = vpack.c.b16 %v1310, %v1308
      %v1487 = vpack.c.b16 %v1313, %v1311
      %v1488 = vpack.c.b16 %v1314, %v1312
      %v1489 = vpack.c.b16 %v1317, %v1315
      %v1490 = vpack.c.b16 %v1318, %v1316
      %v1491 = vpack.c.b16 %v1321, %v1319
      %v1492 = vpack.c.b16 %v1322, %v1320
      %v1493 = vpack.c.b16 %v1325, %v1323
      %v1494 = vpack.c.b16 %v1326, %v1324
      %v1495 = vpack.c.b16 %v1329, %v1327
      %v1496 = vpack.c.b16 %v1330, %v1328
      %v1497 = vpack.c.b16 %v1333, %v1331
      %v1498 = vpack.c.b16 %v1334, %v1332
      %v1499 = vpack.c.b16 %v1337, %v1335
      %v1500 = vpack.c.b16 %v1338, %v1336
      %v1501 = vpack.c.b16 %v1341, %v1339
      %v1502 = vpack.c.b16 %v1342, %v1340
      %v1503 = vpack.c.b16 %v1345, %v1343
      %v1504 = vpack.c.b16 %v1346, %v1344
      %v1505 = vpack.c.b16 %v1349, %v1347
      %v1506 = vpack.c.b16 %v1350, %v1348
      %v1507 = vpack.c.b16 %v1353, %v1351
      %v1508 = vpack.c.b16 %v1354, %v1352
      %v1509 = vpack.c.b16 %v1357, %v1355
      %v1510 = vpack.c.b16 %v1358, %v1356
      %v1511 = vpack.c.b16 %v1361, %v1359
      %v1512 = vpack.c.b16 %v1362, %v1360
      %v1513 = vpack.c.b16 %v1365, %v1363
      %v1514 = vpack.c.b16 %v1366, %v1364
      %v1515 = vpack.c.b16 %v1369, %v1367
      %v1516 = vpack.c.b16 %v1370, %v1368
      %v1517 = vpack.c.b16 %v1373, %v1371
      %v1518 = vpack.c.b16 %v1374, %v1372
      %v1519 = vpack.c.b16 %v1377, %v1375
      %v1520 = vpack.c.b16 %v1378, %v1376
      %v1521 = vpack.c.b16 %v1381, %v1379
      %v1522 = vpack.c.b16 %v1382, %v1380
      %v1523 = vpack.c.b16 %v1385, %v1383
      %v1524 = vpack.c.b16 %v1386, %v1384
      %v1525 = vpack.c.b16 %v1389, %v1387
      %v1526 = vpack.c.b16 %v1390, %v1388
      %v1527 = vpack.c.b16 %v1393, %v1391
      %v1528 = vpack.c.b16 %v1394, %v1392
      %v1529 = vpack.c.b16 %v1397, %v1395
      %v1530 = vpack.c.b16 %v1398, %v1396
      %v1531 = vpack.c.b16 %v1401, %v1399
      %v1532 = vpack.c.b16 %v1402, %v1400
      %v1533 = vpack.c.b16 %v1405, %v1403
      %v1534 = vpack.c.b16 %v1406, %v1404
      %v1535 = vpack.c.b16 %v1409, %v1407
      %v1536 = vpack.c.b16 %v1410, %v1408
      %v1537 = vpack.c.b16 %v1413, %v1411
      %v1538 = vpack.c.b16 %v1414, %v1412
      %v1539 = vpack.c.b16 %v1417, %v1415
      %v1540 = vpack.c.b16 %v1418, %v1416
      %v1541 = vpack.c.b16 %v1421, %v1419
      %v1542 = vpack.c.b16 %v1422, %v1420
      %v1543 = vpack.c.b16 %v1425, %v1423
      %v1544 = vpack.c.b16 %v1426, %v1424
      %v1545 = vpack.c.b16 %v1429, %v1427
      %v1546 = vpack.c.b16 %v1430, %v1428
      %v1547 = vpack.c.b16 %v1433, %v1431
      %v1548 = vpack.c.b16 %v1434, %v1432
      %v1549 = vpack.c.b16 %v1437, %v1435
      %v1550 = vpack.c.b16 %v1438, %v1436
      %v1551 = vpack.c.b16 %v1441, %v1439
      %v1552 = vpack.c.b16 %v1442, %v1440
      %v1553 = vpack.c.b16 %v1445, %v1443
      %v1554 = vpack.c.b16 %v1446, %v1444
      %v1555 = vpack.c.b16 %v1449, %v1447
      %v1556 = vpack.c.b16 %v1450, %v1448
      %v1557 = vpack.c.b16 %v1453, %v1451
      %v1558 = vpack.c.b16 %v1454, %v1452
      %v1559 = vpack.c.b16 %v1457, %v1455
      %v1560 = vpack.c.b16 %v1458, %v1456
      %v1561 = vpack.c.b16 %v1461, %v1459
      %v1562 = vpack.c.b16 %v1462, %v1460
      %v1563 = vpack.c.b16 %v1465, %v1463
      %v1564 = vpack.c.b16 %v1466, %v1464
      %v1565 = vpack.c.b16 %v1469, %v1467
      %v1566 = vpack.c.b16 %v1470, %v1468
      %1663 = vmatprep.subr.bf16.mxu0 %v1486
      %1664 = vmatpush1.bf16.msra.mxu0 %v1485
      %1665 = vmatprep.subr.bf16.mxu0 %v1484
      %1666 = vmatpush1.bf16.msra.mxu0 %v1483
      %1667 = vmatprep.subr.bf16.mxu0 %v1482
      %1668 = vmatpush1.bf16.msra.mxu0 %v1481
      %1669 = vmatprep.subr.bf16.mxu0 %v1480
      %1670 = vmatpush1.bf16.msra.mxu0 %v1479
      %1671 = vmatprep.subr.bf16.mxu0 %v1478
      %1672 = vmatpush1.bf16.msra.mxu0 %v1477
      %1673 = vmatprep.subr.bf16.mxu0 %v1476
      %1674 = vmatpush1.bf16.msra.mxu0 %v1475
      %1675 = vmatprep.subr.bf16.mxu0 %v1474
      %1676 = vmatpush1.bf16.msra.mxu0 %v1473
      %1677 = vmatprep.subr.bf16.mxu0 %v1472
      %1678 = vmatpush1.bf16.msra.mxu0 %v1471
      %1679 = vmatprep.subr.bf16.mxu0 %v1502
      %1680 = vmatpush2.bf16.msra.mxu0 %v1501
      %1681 = vmatprep.subr.bf16.mxu0 %v1500
      %1682 = vmatpush2.bf16.msra.mxu0 %v1499
      %1683 = vmatprep.subr.bf16.mxu0 %v1498
      %1684 = vmatpush2.bf16.msra.mxu0 %v1497
      %1685 = vmatprep.subr.bf16.mxu0 %v1496
      %1686 = vmatpush2.bf16.msra.mxu0 %v1495
      %1687 = vmatprep.subr.bf16.mxu0 %v1494
      %1688 = vmatpush2.bf16.msra.mxu0 %v1493
      %1689 = vmatprep.subr.bf16.mxu0 %v1492
      %1690 = vmatpush2.bf16.msra.mxu0 %v1491
      %1691 = vmatprep.subr.bf16.mxu0 %v1490
      %1692 = vmatpush2.bf16.msra.mxu0 %v1489
      %1693 = vmatprep.subr.bf16.mxu0 %v1488
      %1694 = vmatpush2.bf16.msra.mxu0 %v1487
      %1695 = vmatprep.mubr.bf16.mxu0 %v598
      %1696 = vmatmul.mubr.bf16.gmra.mxu0 %v597
      %v1697 = vpop.f32.mrf.mxu0
      %v1698 = vadd.f32 0.0, %v1697
      %v1699 = vpop.f32.mrf.mxu0
      %v1700 = vadd.f32 0.0, %v1699
      %v1701 = vpop.f32.mrf.mxu0
      %v1702 = vadd.f32 0.0, %v1701
      %v1703 = vpop.f32.mrf.mxu0
      %v1704 = vadd.f32 0.0, %v1703
      %1705 = vmatprep.mubr.bf16.mxu0 %v600
      %1706 = vmatmul.mubr.bf16.gmra.mxu0 %v599
      %v1707 = vpop.f32.mrf.mxu0
      %v1708 = vadd.f32 0.0, %v1707
      %v1709 = vpop.f32.mrf.mxu0
      %v1710 = vadd.f32 0.0, %v1709
      %v1711 = vpop.f32.mrf.mxu0
      %v1712 = vadd.f32 0.0, %v1711
      %v1713 = vpop.f32.mrf.mxu0
      %v1714 = vadd.f32 0.0, %v1713
      %1715 = vmatprep.mubr.bf16.mxu0 %v602
      %1716 = vmatmul.mubr.bf16.gmra.mxu0 %v601
      %v1717 = vpop.f32.mrf.mxu0
      %v1718 = vadd.f32 0.0, %v1717
      %v1719 = vpop.f32.mrf.mxu0
      %v1720 = vadd.f32 0.0, %v1719
      %v1721 = vpop.f32.mrf.mxu0
      %v1722 = vadd.f32 0.0, %v1721
      %v1723 = vpop.f32.mrf.mxu0
      %v1724 = vadd.f32 0.0, %v1723
      %1725 = vmatprep.mubr.bf16.mxu0 %v604
      %1726 = vmatmul.mubr.bf16.gmra.mxu0 %v603
      %v1727 = vpop.f32.mrf.mxu0
      %v1728 = vadd.f32 0.0, %v1727
      %v1729 = vpop.f32.mrf.mxu0
      %v1730 = vadd.f32 0.0, %v1729
      %v1731 = vpop.f32.mrf.mxu0
      %v1732 = vadd.f32 0.0, %v1731
      %v1733 = vpop.f32.mrf.mxu0
      %v1734 = vadd.f32 0.0, %v1733
      %1735 = vmatprep.mubr.bf16.mxu0 %v606
      %1736 = vmatmul.mubr.bf16.gmra.mxu0 %v605
      %v1737 = vpop.f32.mrf.mxu0
      %v1738 = vadd.f32 0.0, %v1737
      %v1739 = vpop.f32.mrf.mxu0
      %v1740 = vadd.f32 0.0, %v1739
      %v1741 = vpop.f32.mrf.mxu0
      %v1742 = vadd.f32 0.0, %v1741
      %v1743 = vpop.f32.mrf.mxu0
      %v1744 = vadd.f32 0.0, %v1743
      %1745 = vmatprep.mubr.bf16.mxu0 %v608
      %1746 = vmatmul.mubr.bf16.gmra.mxu0 %v607
      %v1747 = vpop.f32.mrf.mxu0
      %v1748 = vadd.f32 0.0, %v1747
      %v1749 = vpop.f32.mrf.mxu0
      %v1750 = vadd.f32 0.0, %v1749
      %v1751 = vpop.f32.mrf.mxu0
      %v1752 = vadd.f32 0.0, %v1751
      %v1753 = vpop.f32.mrf.mxu0
      %v1754 = vadd.f32 0.0, %v1753
      %1755 = vmatprep.mubr.bf16.mxu0 %v610
      %1756 = vmatmul.mubr.bf16.gmra.mxu0 %v609
      %v1757 = vpop.f32.mrf.mxu0
      %v1758 = vadd.f32 0.0, %v1757
      %v1759 = vpop.f32.mrf.mxu0
      %v1760 = vadd.f32 0.0, %v1759
      %v1761 = vpop.f32.mrf.mxu0
      %v1762 = vadd.f32 0.0, %v1761
      %v1763 = vpop.f32.mrf.mxu0
      %v1764 = vadd.f32 0.0, %v1763
      %1765 = vmatprep.mubr.bf16.mxu0 %v1044
      %1766 = vmatmul.mubr.bf16.gmra.mxu0 %v1043
      %v1767 = vpop.f32.mrf.mxu0
      %v1768 = vadd.f32 0.0, %v1767
      %v1769 = vpop.f32.mrf.mxu0
      %v1770 = vadd.f32 0.0, %v1769
      %v1771 = vpop.f32.mrf.mxu0
      %v1772 = vadd.f32 0.0, %v1771
      %v1773 = vpop.f32.mrf.mxu0
      %v1774 = vadd.f32 0.0, %v1773
      %1775 = vdwg.mxu0
      %1776 = vmatprep.subr.bf16.mxu0 %v1518
      %1777 = vmatpush1.bf16.msra.mxu0 %v1517
      %1778 = vmatprep.subr.bf16.mxu0 %v1516
      %1779 = vmatpush1.bf16.msra.mxu0 %v1515
      %1780 = vmatprep.subr.bf16.mxu0 %v1514
      %1781 = vmatpush1.bf16.msra.mxu0 %v1513
      %1782 = vmatprep.subr.bf16.mxu0 %v1512
      %1783 = vmatpush1.bf16.msra.mxu0 %v1511
      %1784 = vmatprep.subr.bf16.mxu0 %v1510
      %1785 = vmatpush1.bf16.msra.mxu0 %v1509
      %1786 = vmatprep.subr.bf16.mxu0 %v1508
      %1787 = vmatpush1.bf16.msra.mxu0 %v1507
      %1788 = vmatprep.subr.bf16.mxu0 %v1506
      %1789 = vmatpush1.bf16.msra.mxu0 %v1505
      %1790 = vmatprep.subr.bf16.mxu0 %v1504
      %1791 = vmatpush1.bf16.msra.mxu0 %v1503
      %1792 = vmatprep.subr.bf16.mxu0 %v1534
      %1793 = vmatpush2.bf16.msra.mxu0 %v1533
      %1794 = vmatprep.subr.bf16.mxu0 %v1532
      %1795 = vmatpush2.bf16.msra.mxu0 %v1531
      %1796 = vmatprep.subr.bf16.mxu0 %v1530
      %1797 = vmatpush2.bf16.msra.mxu0 %v1529
      %1798 = vmatprep.subr.bf16.mxu0 %v1528
      %1799 = vmatpush2.bf16.msra.mxu0 %v1527
      %1800 = vmatprep.subr.bf16.mxu0 %v1526
      %1801 = vmatpush2.bf16.msra.mxu0 %v1525
      %1802 = vmatprep.subr.bf16.mxu0 %v1524
      %1803 = vmatpush2.bf16.msra.mxu0 %v1523
      %1804 = vmatprep.subr.bf16.mxu0 %v1522
      %1805 = vmatpush2.bf16.msra.mxu0 %v1521
      %1806 = vmatprep.subr.bf16.mxu0 %v1520
      %1807 = vmatpush2.bf16.msra.mxu0 %v1519
      %1808 = vmatprep.mubr.bf16.mxu0 %v715
      %1809 = vmatmul.mubr.bf16.gmra.mxu0 %v703
      %v1810 = vpop.f32.mrf.mxu0
      %v1811 = vadd.f32 %v1698, %v1810
      %v1812 = vpop.f32.mrf.mxu0
      %v1813 = vadd.f32 %v1700, %v1812
      %v1814 = vpop.f32.mrf.mxu0
      %v1815 = vadd.f32 %v1702, %v1814
      %v1816 = vpop.f32.mrf.mxu0
      %v1817 = vadd.f32 %v1704, %v1816
      %1818 = vmatprep.mubr.bf16.mxu0 %v739
      %1819 = vmatmul.mubr.bf16.gmra.mxu0 %v727
      %v1820 = vpop.f32.mrf.mxu0
      %v1821 = vadd.f32 %v1708, %v1820
      %v1822 = vpop.f32.mrf.mxu0
      %v1823 = vadd.f32 %v1710, %v1822
      %v1824 = vpop.f32.mrf.mxu0
      %v1825 = vadd.f32 %v1712, %v1824
      %v1826 = vpop.f32.mrf.mxu0
      %v1827 = vadd.f32 %v1714, %v1826
      %1828 = vmatprep.mubr.bf16.mxu0 %v763
      %1829 = vmatmul.mubr.bf16.gmra.mxu0 %v751
      %v1830 = vpop.f32.mrf.mxu0
      %v1831 = vadd.f32 %v1718, %v1830
      %v1832 = vpop.f32.mrf.mxu0
      %v1833 = vadd.f32 %v1720, %v1832
      %v1834 = vpop.f32.mrf.mxu0
      %v1835 = vadd.f32 %v1722, %v1834
      %v1836 = vpop.f32.mrf.mxu0
      %v1837 = vadd.f32 %v1724, %v1836
      %1838 = vmatprep.mubr.bf16.mxu0 %v787
      %1839 = vmatmul.mubr.bf16.gmra.mxu0 %v775
      %v1840 = vpop.f32.mrf.mxu0
      %v1841 = vadd.f32 %v1728, %v1840
      %v1842 = vpop.f32.mrf.mxu0
      %v1843 = vadd.f32 %v1730, %v1842
      %v1844 = vpop.f32.mrf.mxu0
      %v1845 = vadd.f32 %v1732, %v1844
      %v1846 = vpop.f32.mrf.mxu0
      %v1847 = vadd.f32 %v1734, %v1846
      %1848 = vmatprep.mubr.bf16.mxu0 %v811
      %1849 = vmatmul.mubr.bf16.gmra.mxu0 %v799
      %v1850 = vpop.f32.mrf.mxu0
      %v1851 = vadd.f32 %v1738, %v1850
      %v1852 = vpop.f32.mrf.mxu0
      %v1853 = vadd.f32 %v1740, %v1852
      %v1854 = vpop.f32.mrf.mxu0
      %v1855 = vadd.f32 %v1742, %v1854
      %v1856 = vpop.f32.mrf.mxu0
      %v1857 = vadd.f32 %v1744, %v1856
      %1858 = vmatprep.mubr.bf16.mxu0 %v835
      %1859 = vmatmul.mubr.bf16.gmra.mxu0 %v823
      %v1860 = vpop.f32.mrf.mxu0
      %v1861 = vadd.f32 %v1748, %v1860
      %v1862 = vpop.f32.mrf.mxu0
      %v1863 = vadd.f32 %v1750, %v1862
      %v1864 = vpop.f32.mrf.mxu0
      %v1865 = vadd.f32 %v1752, %v1864
      %v1866 = vpop.f32.mrf.mxu0
      %v1867 = vadd.f32 %v1754, %v1866
      %1868 = vmatprep.mubr.bf16.mxu0 %v859
      %1869 = vmatmul.mubr.bf16.gmra.mxu0 %v847
      %v1870 = vpop.f32.mrf.mxu0
      %v1871 = vadd.f32 %v1758, %v1870
      %v1872 = vpop.f32.mrf.mxu0
      %v1873 = vadd.f32 %v1760, %v1872
      %v1874 = vpop.f32.mrf.mxu0
      %v1875 = vadd.f32 %v1762, %v1874
      %v1876 = vpop.f32.mrf.mxu0
      %v1877 = vadd.f32 %v1764, %v1876
      %1878 = vmatprep.mubr.bf16.mxu0 %v1075
      %1879 = vmatmul.mubr.bf16.gmra.mxu0 %v1063
      %v1880 = vpop.f32.mrf.mxu0
      %v1881 = vadd.f32 %v1768, %v1880
      %v1882 = vpop.f32.mrf.mxu0
      %v1883 = vadd.f32 %v1770, %v1882
      %v1884 = vpop.f32.mrf.mxu0
      %v1885 = vadd.f32 %v1772, %v1884
      %v1886 = vpop.f32.mrf.mxu0
      %v1887 = vadd.f32 %v1774, %v1886
      %1888 = vdwg.mxu0
      %1889 = vmatprep.subr.bf16.mxu0 %v1550
      %1890 = vmatpush1.bf16.msra.mxu0 %v1549
      %1891 = vmatprep.subr.bf16.mxu0 %v1548
      %1892 = vmatpush1.bf16.msra.mxu0 %v1547
      %1893 = vmatprep.subr.bf16.mxu0 %v1546
      %1894 = vmatpush1.bf16.msra.mxu0 %v1545
      %1895 = vmatprep.subr.bf16.mxu0 %v1544
      %1896 = vmatpush1.bf16.msra.mxu0 %v1543
      %1897 = vmatprep.subr.bf16.mxu0 %v1542
      %1898 = vmatpush1.bf16.msra.mxu0 %v1541
      %1899 = vmatprep.subr.bf16.mxu0 %v1540
      %1900 = vmatpush1.bf16.msra.mxu0 %v1539
      %1901 = vmatprep.subr.bf16.mxu0 %v1538
      %1902 = vmatpush1.bf16.msra.mxu0 %v1537
      %1903 = vmatprep.subr.bf16.mxu0 %v1536
      %1904 = vmatpush1.bf16.msra.mxu0 %v1535
      %1905 = vmatprep.subr.bf16.mxu0 %v1566
      %1906 = vmatpush2.bf16.msra.mxu0 %v1565
      %1907 = vmatprep.subr.bf16.mxu0 %v1564
      %1908 = vmatpush2.bf16.msra.mxu0 %v1563
      %1909 = vmatprep.subr.bf16.mxu0 %v1562
      %1910 = vmatpush2.bf16.msra.mxu0 %v1561
      %1911 = vmatprep.subr.bf16.mxu0 %v1560
      %1912 = vmatpush2.bf16.msra.mxu0 %v1559
      %1913 = vmatprep.subr.bf16.mxu0 %v1558
      %1914 = vmatpush2.bf16.msra.mxu0 %v1557
      %1915 = vmatprep.subr.bf16.mxu0 %v1556
      %1916 = vmatpush2.bf16.msra.mxu0 %v1555
      %1917 = vmatprep.subr.bf16.mxu0 %v1554
      %1918 = vmatpush2.bf16.msra.mxu0 %v1553
      %1919 = vmatprep.subr.bf16.mxu0 %v1552
      %1920 = vmatpush2.bf16.msra.mxu0 %v1551
      %1921 = vmatprep.mubr.bf16.mxu0 %v888
      %1922 = vmatmul.mubr.bf16.gmra.mxu0 %v885
      %v1923 = vpop.f32.mrf.mxu0
      %v1924 = vadd.f32 %v1811, %v1923
      %v1925 = vpop.f32.mrf.mxu0
      %v1926 = vadd.f32 %v1813, %v1925
      %v1927 = vpop.f32.mrf.mxu0
      %v1928 = vadd.f32 %v1815, %v1927
      %v1929 = vpop.f32.mrf.mxu0
      %v1930 = vadd.f32 %v1817, %v1929
      %1931 = vmatprep.mubr.bf16.mxu0 %v894
      %1932 = vmatmul.mubr.bf16.gmra.mxu0 %v891
      %v1933 = vpop.f32.mrf.mxu0
      %v1934 = vadd.f32 %v1821, %v1933
      %v1935 = vpop.f32.mrf.mxu0
      %v1936 = vadd.f32 %v1823, %v1935
      %v1937 = vpop.f32.mrf.mxu0
      %v1938 = vadd.f32 %v1825, %v1937
      %v1939 = vpop.f32.mrf.mxu0
      %v1940 = vadd.f32 %v1827, %v1939
      %1941 = vmatprep.mubr.bf16.mxu0 %v900
      %1942 = vmatmul.mubr.bf16.gmra.mxu0 %v897
      %v1943 = vpop.f32.mrf.mxu0
      %v1944 = vadd.f32 %v1831, %v1943
      %v1945 = vpop.f32.mrf.mxu0
      %v1946 = vadd.f32 %v1833, %v1945
      %v1947 = vpop.f32.mrf.mxu0
      %v1948 = vadd.f32 %v1835, %v1947
      %v1949 = vpop.f32.mrf.mxu0
      %v1950 = vadd.f32 %v1837, %v1949
      %1951 = vmatprep.mubr.bf16.mxu0 %v906
      %1952 = vmatmul.mubr.bf16.gmra.mxu0 %v903
      %v1953 = vpop.f32.mrf.mxu0
      %v1954 = vadd.f32 %v1841, %v1953
      %v1955 = vpop.f32.mrf.mxu0
      %v1956 = vadd.f32 %v1843, %v1955
      %v1957 = vpop.f32.mrf.mxu0
      %v1958 = vadd.f32 %v1845, %v1957
      %v1959 = vpop.f32.mrf.mxu0
      %v1960 = vadd.f32 %v1847, %v1959
      %1961 = vmatprep.mubr.bf16.mxu0 %v912
      %1962 = vmatmul.mubr.bf16.gmra.mxu0 %v909
      %v1963 = vpop.f32.mrf.mxu0
      %v1964 = vadd.f32 %v1851, %v1963
      %v1965 = vpop.f32.mrf.mxu0
      %v1966 = vadd.f32 %v1853, %v1965
      %v1967 = vpop.f32.mrf.mxu0
      %v1968 = vadd.f32 %v1855, %v1967
      %v1969 = vpop.f32.mrf.mxu0
      %v1970 = vadd.f32 %v1857, %v1969
      %1971 = vmatprep.mubr.bf16.mxu0 %v918
      %1972 = vmatmul.mubr.bf16.gmra.mxu0 %v915
      %v1973 = vpop.f32.mrf.mxu0
      %v1974 = vadd.f32 %v1861, %v1973
      %v1975 = vpop.f32.mrf.mxu0
      %v1976 = vadd.f32 %v1863, %v1975
      %v1977 = vpop.f32.mrf.mxu0
      %v1978 = vadd.f32 %v1865, %v1977
      %v1979 = vpop.f32.mrf.mxu0
      %v1980 = vadd.f32 %v1867, %v1979
      %1981 = vmatprep.mubr.bf16.mxu0 %v924
      %1982 = vmatmul.mubr.bf16.gmra.mxu0 %v921
      %v1983 = vpop.f32.mrf.mxu0
      %v1984 = vadd.f32 %v1871, %v1983
      %v1985 = vpop.f32.mrf.mxu0
      %v1986 = vadd.f32 %v1873, %v1985
      %v1987 = vpop.f32.mrf.mxu0
      %v1988 = vadd.f32 %v1875, %v1987
      %v1989 = vpop.f32.mrf.mxu0
      %v1990 = vadd.f32 %v1877, %v1989
      %1991 = vmatprep.mubr.bf16.mxu0 %v1083
      %1992 = vmatmul.mubr.bf16.gmra.mxu0 %v1080
      %v1993 = vpop.f32.mrf.mxu0
      %v1994 = vadd.f32 %v1881, %v1993
      %v1995 = vpop.f32.mrf.mxu0
      %v1996 = vadd.f32 %v1883, %v1995
      %v1997 = vpop.f32.mrf.mxu0
      %v1998 = vadd.f32 %v1885, %v1997
      %v1999 = vpop.f32.mrf.mxu0
      %v2000 = vadd.f32 %v1887, %v1999
      %2001 = vdwg.mxu0
      %v2098 = vunpack.c.l.b16 %v941
      %v2099 = vunpack.c.h.b16 %v941
      %v2100 = vunpack.c.l.b16 %v942
      %v2101 = vunpack.c.h.b16 %v942
      %v2102 = vunpack.c.l.b16 %v943
      %v2103 = vunpack.c.h.b16 %v943
      %v2104 = vunpack.c.l.b16 %v944
      %v2105 = vunpack.c.h.b16 %v944
      %v2106 = vunpack.c.l.b16 %v945
      %v2107 = vunpack.c.h.b16 %v945
      %v2108 = vunpack.c.l.b16 %v946
      %v2109 = vunpack.c.h.b16 %v946
      %v2110 = vunpack.c.l.b16 %v947
      %v2111 = vunpack.c.h.b16 %v947
      %v2112 = vunpack.c.l.b16 %v948
      %v2113 = vunpack.c.h.b16 %v948
      %v2114 = vunpack.c.l.b16 %v949
      %v2115 = vunpack.c.h.b16 %v949
      %v2116 = vunpack.c.l.b16 %v950
      %v2117 = vunpack.c.h.b16 %v950
      %v2118 = vunpack.c.l.b16 %v951
      %v2119 = vunpack.c.h.b16 %v951
      %v2120 = vunpack.c.l.b16 %v952
      %v2121 = vunpack.c.h.b16 %v952
      %v2122 = vunpack.c.l.b16 %v953
      %v2123 = vunpack.c.h.b16 %v953
      %v2124 = vunpack.c.l.b16 %v954
      %v2125 = vunpack.c.h.b16 %v954
      %v2126 = vunpack.c.l.b16 %v955
      %v2127 = vunpack.c.h.b16 %v955
      %v2128 = vunpack.c.l.b16 %v956
      %v2129 = vunpack.c.h.b16 %v956
      %v2130 = vunpack.c.l.b16 %v957
      %v2131 = vunpack.c.h.b16 %v957
      %v2132 = vunpack.c.l.b16 %v958
      %v2133 = vunpack.c.h.b16 %v958
      %v2134 = vunpack.c.l.b16 %v959
      %v2135 = vunpack.c.h.b16 %v959
      %v2136 = vunpack.c.l.b16 %v960
      %v2137 = vunpack.c.h.b16 %v960
      %v2138 = vunpack.c.l.b16 %v961
      %v2139 = vunpack.c.h.b16 %v961
      %v2140 = vunpack.c.l.b16 %v962
      %v2141 = vunpack.c.h.b16 %v962
      %v2142 = vunpack.c.l.b16 %v963
      %v2143 = vunpack.c.h.b16 %v963
      %v2144 = vunpack.c.l.b16 %v964
      %v2145 = vunpack.c.h.b16 %v964
      %v2146 = vunpack.c.l.b16 %v965
      %v2147 = vunpack.c.h.b16 %v965
      %v2148 = vunpack.c.l.b16 %v966
      %v2149 = vunpack.c.h.b16 %v966
      %v2150 = vunpack.c.l.b16 %v967
      %v2151 = vunpack.c.h.b16 %v967
      %v2152 = vunpack.c.l.b16 %v968
      %v2153 = vunpack.c.h.b16 %v968
      %v2154 = vunpack.c.l.b16 %v969
      %v2155 = vunpack.c.h.b16 %v969
      %v2156 = vunpack.c.l.b16 %v970
      %v2157 = vunpack.c.h.b16 %v970
      %v2158 = vunpack.c.l.b16 %v971
      %v2159 = vunpack.c.h.b16 %v971
      %v2160 = vunpack.c.l.b16 %v972
      %v2161 = vunpack.c.h.b16 %v972
      %v2162 = vunpack.c.l.b16 %v973
      %v2163 = vunpack.c.h.b16 %v973
      %v2164 = vunpack.c.l.b16 %v974
      %v2165 = vunpack.c.h.b16 %v974
      %v2166 = vunpack.c.l.b16 %v975
      %v2167 = vunpack.c.h.b16 %v975
      %v2168 = vunpack.c.l.b16 %v976
      %v2169 = vunpack.c.h.b16 %v976
      %v2170 = vunpack.c.l.b16 %v977
      %v2171 = vunpack.c.h.b16 %v977
      %v2172 = vunpack.c.l.b16 %v978
      %v2173 = vunpack.c.h.b16 %v978
      %v2174 = vunpack.c.l.b16 %v979
      %v2175 = vunpack.c.h.b16 %v979
      %v2176 = vunpack.c.l.b16 %v980
      %v2177 = vunpack.c.h.b16 %v980
      %v2178 = vunpack.c.l.b16 %v981
      %v2179 = vunpack.c.h.b16 %v981
      %v2180 = vunpack.c.l.b16 %v982
      %v2181 = vunpack.c.h.b16 %v982
      %v2182 = vunpack.c.l.b16 %v983
      %v2183 = vunpack.c.h.b16 %v983
      %v2184 = vunpack.c.l.b16 %v984
      %v2185 = vunpack.c.h.b16 %v984
      %v2186 = vunpack.c.l.b16 %v985
      %v2187 = vunpack.c.h.b16 %v985
      %v2188 = vunpack.c.l.b16 %v986
      %v2189 = vunpack.c.h.b16 %v986
      %v2190 = vunpack.c.l.b16 %v987
      %v2191 = vunpack.c.h.b16 %v987
      %v2192 = vunpack.c.l.b16 %v988
      %v2193 = vunpack.c.h.b16 %v988
      %v2194 = vunpack.c.l.b16 %v989
      %v2195 = vunpack.c.h.b16 %v989
      %v2196 = vunpack.c.l.b16 %v990
      %v2197 = vunpack.c.h.b16 %v990
      %v2198 = vunpack.c.l.b16 %v991
      %v2199 = vunpack.c.h.b16 %v991
      %v2200 = vunpack.c.l.b16 %v992
      %v2201 = vunpack.c.h.b16 %v992
      %v2202 = vunpack.c.l.b16 %v993
      %v2203 = vunpack.c.h.b16 %v993
      %v2204 = vunpack.c.l.b16 %v994
      %v2205 = vunpack.c.h.b16 %v994
      %v2206 = vunpack.c.l.b16 %v995
      %v2207 = vunpack.c.h.b16 %v995
      %v2208 = vunpack.c.l.b16 %v996
      %v2209 = vunpack.c.h.b16 %v996
      %v2210 = vunpack.c.l.b16 %v997
      %v2211 = vunpack.c.h.b16 %v997
      %v2212 = vunpack.c.l.b16 %v998
      %v2213 = vunpack.c.h.b16 %v998
      %v2214 = vunpack.c.l.b16 %v999
      %v2215 = vunpack.c.h.b16 %v999
      %v2216 = vunpack.c.l.b16 %v1000
      %v2217 = vunpack.c.h.b16 %v1000
      %v2218 = vunpack.c.l.b16 %v1001
      %v2219 = vunpack.c.h.b16 %v1001
      %v2220 = vunpack.c.l.b16 %v1002
      %v2221 = vunpack.c.h.b16 %v1002
      %v2222 = vunpack.c.l.b16 %v1003
      %v2223 = vunpack.c.h.b16 %v1003
      %v2224 = vunpack.c.l.b16 %v1004
      %v2225 = vunpack.c.h.b16 %v1004
      %v2226 = vunpack.c.l.b16 %v1005
      %v2227 = vunpack.c.h.b16 %v1005
      %v2228 = vunpack.c.l.b16 %v1006
      %v2229 = vunpack.c.h.b16 %v1006
      %v2230 = vunpack.c.l.b16 %v1007
      %v2231 = vunpack.c.h.b16 %v1007
      %v2232 = vunpack.c.l.b16 %v1008
      %v2233 = vunpack.c.h.b16 %v1008
      %v2234 = vunpack.c.l.b16 %v1009
      %v2235 = vunpack.c.h.b16 %v1009
      %v2236 = vunpack.c.l.b16 %v1010
      %v2237 = vunpack.c.h.b16 %v1010
      %v2238 = vunpack.c.l.b16 %v1011
      %v2239 = vunpack.c.h.b16 %v1011
      %v2240 = vunpack.c.l.b16 %v1012
      %v2241 = vunpack.c.h.b16 %v1012
      %v2242 = vunpack.c.l.b16 %v1013
      %v2243 = vunpack.c.h.b16 %v1013
      %v2244 = vunpack.c.l.b16 %v1014
      %v2245 = vunpack.c.h.b16 %v1014
      %v2246 = vunpack.c.l.b16 %v1015
      %v2247 = vunpack.c.h.b16 %v1015
      %v2248 = vunpack.c.l.b16 %v1016
      %v2249 = vunpack.c.h.b16 %v1016
      %v2250 = vunpack.c.l.b16 %v1017
      %v2251 = vunpack.c.h.b16 %v1017
      %v2252 = vunpack.c.l.b16 %v1018
      %v2253 = vunpack.c.h.b16 %v1018
      %v2254 = vunpack.c.l.b16 %v1019
      %v2255 = vunpack.c.h.b16 %v1019
      %v2256 = vunpack.c.l.b16 %v1020
      %v2257 = vunpack.c.h.b16 %v1020
      %v2258 = vunpack.c.l.b16 %v1021
      %v2259 = vunpack.c.h.b16 %v1021
      %v2260 = vunpack.c.l.b16 %v1022
      %v2261 = vunpack.c.h.b16 %v1022
      %v2262 = vunpack.c.l.b16 %v1023
      %v2263 = vunpack.c.h.b16 %v1023
      %v2264 = vunpack.c.l.b16 %v1024
      %v2265 = vunpack.c.h.b16 %v1024
      %v2266 = vunpack.c.l.b16 %v1025
      %v2267 = vunpack.c.h.b16 %v1025
      %v2268 = vunpack.c.l.b16 %v1026
      %v2269 = vunpack.c.h.b16 %v1026
      %v2270 = vunpack.c.l.b16 %v1027
      %v2271 = vunpack.c.h.b16 %v1027
      %v2272 = vunpack.c.l.b16 %v1028
      %v2273 = vunpack.c.h.b16 %v1028
      %v2274 = vunpack.c.l.b16 %v1029
      %v2275 = vunpack.c.h.b16 %v1029
      %v2276 = vunpack.c.l.b16 %v1030
      %v2277 = vunpack.c.h.b16 %v1030
      %v2278 = vunpack.c.l.b16 %v1031
      %v2279 = vunpack.c.h.b16 %v1031
      %v2280 = vunpack.c.l.b16 %v1032
      %v2281 = vunpack.c.h.b16 %v1032
      %v2282 = vunpack.c.l.b16 %v1033
      %v2283 = vunpack.c.h.b16 %v1033
      %v2284 = vunpack.c.l.b16 %v1034
      %v2285 = vunpack.c.h.b16 %v1034
      %v2286 = vunpack.c.l.b16 %v1035
      %v2287 = vunpack.c.h.b16 %v1035
      %v2288 = vunpack.c.l.b16 %v1036
      %v2289 = vunpack.c.h.b16 %v1036
      %v2290 = vpack.c.b16 %v2100, %v2098
      %v2291 = vpack.c.b16 %v2101, %v2099
      %v2292 = vpack.c.b16 %v2104, %v2102
      %v2293 = vpack.c.b16 %v2105, %v2103
      %v2294 = vpack.c.b16 %v2108, %v2106
      %v2295 = vpack.c.b16 %v2109, %v2107
      %v2296 = vpack.c.b16 %v2112, %v2110
      %v2297 = vpack.c.b16 %v2113, %v2111
      %v2298 = vpack.c.b16 %v2116, %v2114
      %v2299 = vpack.c.b16 %v2117, %v2115
      %v2300 = vpack.c.b16 %v2120, %v2118
      %v2301 = vpack.c.b16 %v2121, %v2119
      %v2302 = vpack.c.b16 %v2124, %v2122
      %v2303 = vpack.c.b16 %v2125, %v2123
      %v2304 = vpack.c.b16 %v2128, %v2126
      %v2305 = vpack.c.b16 %v2129, %v2127
      %v2306 = vpack.c.b16 %v2132, %v2130
      %v2307 = vpack.c.b16 %v2133, %v2131
      %v2308 = vpack.c.b16 %v2136, %v2134
      %v2309 = vpack.c.b16 %v2137, %v2135
      %v2310 = vpack.c.b16 %v2140, %v2138
      %v2311 = vpack.c.b16 %v2141, %v2139
      %v2312 = vpack.c.b16 %v2144, %v2142
      %v2313 = vpack.c.b16 %v2145, %v2143
      %v2314 = vpack.c.b16 %v2148, %v2146
      %v2315 = vpack.c.b16 %v2149, %v2147
      %v2316 = vpack.c.b16 %v2152, %v2150
      %v2317 = vpack.c.b16 %v2153, %v2151
      %v2318 = vpack.c.b16 %v2156, %v2154
      %v2319 = vpack.c.b16 %v2157, %v2155
      %v2320 = vpack.c.b16 %v2160, %v2158
      %v2321 = vpack.c.b16 %v2161, %v2159
      %v2322 = vpack.c.b16 %v2164, %v2162
      %v2323 = vpack.c.b16 %v2165, %v2163
      %v2324 = vpack.c.b16 %v2168, %v2166
      %v2325 = vpack.c.b16 %v2169, %v2167
      %v2326 = vpack.c.b16 %v2172, %v2170
      %v2327 = vpack.c.b16 %v2173, %v2171
      %v2328 = vpack.c.b16 %v2176, %v2174
      %v2329 = vpack.c.b16 %v2177, %v2175
      %v2330 = vpack.c.b16 %v2180, %v2178
      %v2331 = vpack.c.b16 %v2181, %v2179
      %v2332 = vpack.c.b16 %v2184, %v2182
      %v2333 = vpack.c.b16 %v2185, %v2183
      %v2334 = vpack.c.b16 %v2188, %v2186
      %v2335 = vpack.c.b16 %v2189, %v2187
      %v2336 = vpack.c.b16 %v2192, %v2190
      %v2337 = vpack.c.b16 %v2193, %v2191
      %v2338 = vpack.c.b16 %v2196, %v2194
      %v2339 = vpack.c.b16 %v2197, %v2195
      %v2340 = vpack.c.b16 %v2200, %v2198
      %v2341 = vpack.c.b16 %v2201, %v2199
      %v2342 = vpack.c.b16 %v2204, %v2202
      %v2343 = vpack.c.b16 %v2205, %v2203
      %v2344 = vpack.c.b16 %v2208, %v2206
      %v2345 = vpack.c.b16 %v2209, %v2207
      %v2346 = vpack.c.b16 %v2212, %v2210
      %v2347 = vpack.c.b16 %v2213, %v2211
      %v2348 = vpack.c.b16 %v2216, %v2214
      %v2349 = vpack.c.b16 %v2217, %v2215
      %v2350 = vpack.c.b16 %v2220, %v2218
      %v2351 = vpack.c.b16 %v2221, %v2219
      %v2352 = vpack.c.b16 %v2224, %v2222
      %v2353 = vpack.c.b16 %v2225, %v2223
      %v2354 = vpack.c.b16 %v2228, %v2226
      %v2355 = vpack.c.b16 %v2229, %v2227
      %v2356 = vpack.c.b16 %v2232, %v2230
      %v2357 = vpack.c.b16 %v2233, %v2231
      %v2358 = vpack.c.b16 %v2236, %v2234
      %v2359 = vpack.c.b16 %v2237, %v2235
      %v2360 = vpack.c.b16 %v2240, %v2238
      %v2361 = vpack.c.b16 %v2241, %v2239
      %v2362 = vpack.c.b16 %v2244, %v2242
      %v2363 = vpack.c.b16 %v2245, %v2243
      %v2364 = vpack.c.b16 %v2248, %v2246
      %v2365 = vpack.c.b16 %v2249, %v2247
      %v2366 = vpack.c.b16 %v2252, %v2250
      %v2367 = vpack.c.b16 %v2253, %v2251
      %v2368 = vpack.c.b16 %v2256, %v2254
      %v2369 = vpack.c.b16 %v2257, %v2255
      %v2370 = vpack.c.b16 %v2260, %v2258
      %v2371 = vpack.c.b16 %v2261, %v2259
      %v2372 = vpack.c.b16 %v2264, %v2262
      %v2373 = vpack.c.b16 %v2265, %v2263
      %v2374 = vpack.c.b16 %v2268, %v2266
      %v2375 = vpack.c.b16 %v2269, %v2267
      %v2376 = vpack.c.b16 %v2272, %v2270
      %v2377 = vpack.c.b16 %v2273, %v2271
      %v2378 = vpack.c.b16 %v2276, %v2274
      %v2379 = vpack.c.b16 %v2277, %v2275
      %v2380 = vpack.c.b16 %v2280, %v2278
      %v2381 = vpack.c.b16 %v2281, %v2279
      %v2382 = vpack.c.b16 %v2284, %v2282
      %v2383 = vpack.c.b16 %v2285, %v2283
      %v2384 = vpack.c.b16 %v2288, %v2286
      %v2385 = vpack.c.b16 %v2289, %v2287
      %2482 = vmatprep.subr.bf16.mxu0 %v2305
      %2483 = vmatpush1.bf16.msra.mxu0 %v2304
      %2484 = vmatprep.subr.bf16.mxu0 %v2303
      %2485 = vmatpush1.bf16.msra.mxu0 %v2302
      %2486 = vmatprep.subr.bf16.mxu0 %v2301
      %2487 = vmatpush1.bf16.msra.mxu0 %v2300
      %2488 = vmatprep.subr.bf16.mxu0 %v2299
      %2489 = vmatpush1.bf16.msra.mxu0 %v2298
      %2490 = vmatprep.subr.bf16.mxu0 %v2297
      %2491 = vmatpush1.bf16.msra.mxu0 %v2296
      %2492 = vmatprep.subr.bf16.mxu0 %v2295
      %2493 = vmatpush1.bf16.msra.mxu0 %v2294
      %2494 = vmatprep.subr.bf16.mxu0 %v2293
      %2495 = vmatpush1.bf16.msra.mxu0 %v2292
      %2496 = vmatprep.subr.bf16.mxu0 %v2291
      %2497 = vmatpush1.bf16.msra.mxu0 %v2290
      %2498 = vmatprep.subr.bf16.mxu0 %v2321
      %2499 = vmatpush2.bf16.msra.mxu0 %v2320
      %2500 = vmatprep.subr.bf16.mxu0 %v2319
      %2501 = vmatpush2.bf16.msra.mxu0 %v2318
      %2502 = vmatprep.subr.bf16.mxu0 %v2317
      %2503 = vmatpush2.bf16.msra.mxu0 %v2316
      %2504 = vmatprep.subr.bf16.mxu0 %v2315
      %2505 = vmatpush2.bf16.msra.mxu0 %v2314
      %2506 = vmatprep.subr.bf16.mxu0 %v2313
      %2507 = vmatpush2.bf16.msra.mxu0 %v2312
      %2508 = vmatprep.subr.bf16.mxu0 %v2311
      %2509 = vmatpush2.bf16.msra.mxu0 %v2310
      %2510 = vmatprep.subr.bf16.mxu0 %v2309
      %2511 = vmatpush2.bf16.msra.mxu0 %v2308
      %2512 = vmatprep.subr.bf16.mxu0 %v2307
      %2513 = vmatpush2.bf16.msra.mxu0 %v2306
      %2514 = vmatprep.mubr.bf16.mxu0 %v596
      %2515 = vmatmul.mubr.bf16.gmra.mxu0 %v595
      %v2516 = vpop.f32.mrf.mxu0
      %v2517 = vadd.f32 %v1924, %v2516
      %v2518 = vpop.f32.mrf.mxu0
      %v2519 = vadd.f32 %v1926, %v2518
      %v2520 = vpop.f32.mrf.mxu0
      %v2521 = vadd.f32 %v1928, %v2520
      %v2522 = vpop.f32.mrf.mxu0
      %v2523 = vadd.f32 %v1930, %v2522
      %2524 = vmatprep.mubr.bf16.mxu0 %v598
      %2525 = vmatmul.mubr.bf16.gmra.mxu0 %v597
      %v2526 = vpop.f32.mrf.mxu0
      %v2527 = vadd.f32 %v1934, %v2526
      %v2528 = vpop.f32.mrf.mxu0
      %v2529 = vadd.f32 %v1936, %v2528
      %v2530 = vpop.f32.mrf.mxu0
      %v2531 = vadd.f32 %v1938, %v2530
      %v2532 = vpop.f32.mrf.mxu0
      %v2533 = vadd.f32 %v1940, %v2532
      %2534 = vmatprep.mubr.bf16.mxu0 %v600
      %2535 = vmatmul.mubr.bf16.gmra.mxu0 %v599
      %v2536 = vpop.f32.mrf.mxu0
      %v2537 = vadd.f32 %v1944, %v2536
      %v2538 = vpop.f32.mrf.mxu0
      %v2539 = vadd.f32 %v1946, %v2538
      %v2540 = vpop.f32.mrf.mxu0
      %v2541 = vadd.f32 %v1948, %v2540
      %v2542 = vpop.f32.mrf.mxu0
      %v2543 = vadd.f32 %v1950, %v2542
      %2544 = vmatprep.mubr.bf16.mxu0 %v602
      %2545 = vmatmul.mubr.bf16.gmra.mxu0 %v601
      %v2546 = vpop.f32.mrf.mxu0
      %v2547 = vadd.f32 %v1954, %v2546
      %v2548 = vpop.f32.mrf.mxu0
      %v2549 = vadd.f32 %v1956, %v2548
      %v2550 = vpop.f32.mrf.mxu0
      %v2551 = vadd.f32 %v1958, %v2550
      %v2552 = vpop.f32.mrf.mxu0
      %v2553 = vadd.f32 %v1960, %v2552
      %2554 = vmatprep.mubr.bf16.mxu0 %v604
      %2555 = vmatmul.mubr.bf16.gmra.mxu0 %v603
      %v2556 = vpop.f32.mrf.mxu0
      %v2557 = vadd.f32 %v1964, %v2556
      %v2558 = vpop.f32.mrf.mxu0
      %v2559 = vadd.f32 %v1966, %v2558
      %v2560 = vpop.f32.mrf.mxu0
      %v2561 = vadd.f32 %v1968, %v2560
      %v2562 = vpop.f32.mrf.mxu0
      %v2563 = vadd.f32 %v1970, %v2562
      %2564 = vmatprep.mubr.bf16.mxu0 %v606
      %2565 = vmatmul.mubr.bf16.gmra.mxu0 %v605
      %v2566 = vpop.f32.mrf.mxu0
      %v2567 = vadd.f32 %v1974, %v2566
      %v2568 = vpop.f32.mrf.mxu0
      %v2569 = vadd.f32 %v1976, %v2568
      %v2570 = vpop.f32.mrf.mxu0
      %v2571 = vadd.f32 %v1978, %v2570
      %v2572 = vpop.f32.mrf.mxu0
      %v2573 = vadd.f32 %v1980, %v2572
      %2574 = vmatprep.mubr.bf16.mxu0 %v608
      %2575 = vmatmul.mubr.bf16.gmra.mxu0 %v607
      %v2576 = vpop.f32.mrf.mxu0
      %v2577 = vadd.f32 %v1984, %v2576
      %v2578 = vpop.f32.mrf.mxu0
      %v2579 = vadd.f32 %v1986, %v2578
      %v2580 = vpop.f32.mrf.mxu0
      %v2581 = vadd.f32 %v1988, %v2580
      %v2582 = vpop.f32.mrf.mxu0
      %v2583 = vadd.f32 %v1990, %v2582
      %2584 = vmatprep.mubr.bf16.mxu0 %v610
      %2585 = vmatmul.mubr.bf16.gmra.mxu0 %v609
      %v2586 = vpop.f32.mrf.mxu0
      %v2587 = vadd.f32 %v1994, %v2586
      %v2588 = vpop.f32.mrf.mxu0
      %v2589 = vadd.f32 %v1996, %v2588
      %v2590 = vpop.f32.mrf.mxu0
      %v2591 = vadd.f32 %v1998, %v2590
      %v2592 = vpop.f32.mrf.mxu0
      %v2593 = vadd.f32 %v2000, %v2592
      %2594 = vdwg.mxu0
      %2595 = vmatprep.subr.bf16.mxu0 %v2337
      %2596 = vmatpush1.bf16.msra.mxu0 %v2336
      %2597 = vmatprep.subr.bf16.mxu0 %v2335
      %2598 = vmatpush1.bf16.msra.mxu0 %v2334
      %2599 = vmatprep.subr.bf16.mxu0 %v2333
      %2600 = vmatpush1.bf16.msra.mxu0 %v2332
      %2601 = vmatprep.subr.bf16.mxu0 %v2331
      %2602 = vmatpush1.bf16.msra.mxu0 %v2330
      %2603 = vmatprep.subr.bf16.mxu0 %v2329
      %2604 = vmatpush1.bf16.msra.mxu0 %v2328
      %2605 = vmatprep.subr.bf16.mxu0 %v2327
      %2606 = vmatpush1.bf16.msra.mxu0 %v2326
      %2607 = vmatprep.subr.bf16.mxu0 %v2325
      %2608 = vmatpush1.bf16.msra.mxu0 %v2324
      %2609 = vmatprep.subr.bf16.mxu0 %v2323
      %2610 = vmatpush1.bf16.msra.mxu0 %v2322
      %2611 = vmatprep.subr.bf16.mxu0 %v2353
      %2612 = vmatpush2.bf16.msra.mxu0 %v2352
      %2613 = vmatprep.subr.bf16.mxu0 %v2351
      %2614 = vmatpush2.bf16.msra.mxu0 %v2350
      %2615 = vmatprep.subr.bf16.mxu0 %v2349
      %2616 = vmatpush2.bf16.msra.mxu0 %v2348
      %2617 = vmatprep.subr.bf16.mxu0 %v2347
      %2618 = vmatpush2.bf16.msra.mxu0 %v2346
      %2619 = vmatprep.subr.bf16.mxu0 %v2345
      %2620 = vmatpush2.bf16.msra.mxu0 %v2344
      %2621 = vmatprep.subr.bf16.mxu0 %v2343
      %2622 = vmatpush2.bf16.msra.mxu0 %v2342
      %2623 = vmatprep.subr.bf16.mxu0 %v2341
      %2624 = vmatpush2.bf16.msra.mxu0 %v2340
      %2625 = vmatprep.subr.bf16.mxu0 %v2339
      %2626 = vmatpush2.bf16.msra.mxu0 %v2338
      %2627 = vmatprep.mubr.bf16.mxu0 %v691
      %2628 = vmatmul.mubr.bf16.gmra.mxu0 %v679
      %v2629 = vpop.f32.mrf.mxu0
      %v2630 = vadd.f32 %v2517, %v2629
      %v2631 = vpop.f32.mrf.mxu0
      %v2632 = vadd.f32 %v2519, %v2631
      %v2633 = vpop.f32.mrf.mxu0
      %v2634 = vadd.f32 %v2521, %v2633
      %v2635 = vpop.f32.mrf.mxu0
      %v2636 = vadd.f32 %v2523, %v2635
      %2637 = vmatprep.mubr.bf16.mxu0 %v715
      %2638 = vmatmul.mubr.bf16.gmra.mxu0 %v703
      %v2639 = vpop.f32.mrf.mxu0
      %v2640 = vadd.f32 %v2527, %v2639
      %v2641 = vpop.f32.mrf.mxu0
      %v2642 = vadd.f32 %v2529, %v2641
      %v2643 = vpop.f32.mrf.mxu0
      %v2644 = vadd.f32 %v2531, %v2643
      %v2645 = vpop.f32.mrf.mxu0
      %v2646 = vadd.f32 %v2533, %v2645
      %2647 = vmatprep.mubr.bf16.mxu0 %v739
      %2648 = vmatmul.mubr.bf16.gmra.mxu0 %v727
      %v2649 = vpop.f32.mrf.mxu0
      %v2650 = vadd.f32 %v2537, %v2649
      %v2651 = vpop.f32.mrf.mxu0
      %v2652 = vadd.f32 %v2539, %v2651
      %v2653 = vpop.f32.mrf.mxu0
      %v2654 = vadd.f32 %v2541, %v2653
      %v2655 = vpop.f32.mrf.mxu0
      %v2656 = vadd.f32 %v2543, %v2655
      %2657 = vmatprep.mubr.bf16.mxu0 %v763
      %2658 = vmatmul.mubr.bf16.gmra.mxu0 %v751
      %v2659 = vpop.f32.mrf.mxu0
      %v2660 = vadd.f32 %v2547, %v2659
      %v2661 = vpop.f32.mrf.mxu0
      %v2662 = vadd.f32 %v2549, %v2661
      %v2663 = vpop.f32.mrf.mxu0
      %v2664 = vadd.f32 %v2551, %v2663
      %v2665 = vpop.f32.mrf.mxu0
      %v2666 = vadd.f32 %v2553, %v2665
      %2667 = vmatprep.mubr.bf16.mxu0 %v787
      %2668 = vmatmul.mubr.bf16.gmra.mxu0 %v775
      %v2669 = vpop.f32.mrf.mxu0
      %v2670 = vadd.f32 %v2557, %v2669
      %v2671 = vpop.f32.mrf.mxu0
      %v2672 = vadd.f32 %v2559, %v2671
      %v2673 = vpop.f32.mrf.mxu0
      %v2674 = vadd.f32 %v2561, %v2673
      %v2675 = vpop.f32.mrf.mxu0
      %v2676 = vadd.f32 %v2563, %v2675
      %2677 = vmatprep.mubr.bf16.mxu0 %v811
      %2678 = vmatmul.mubr.bf16.gmra.mxu0 %v799
      %v2679 = vpop.f32.mrf.mxu0
      %v2680 = vadd.f32 %v2567, %v2679
      %v2681 = vpop.f32.mrf.mxu0
      %v2682 = vadd.f32 %v2569, %v2681
      %v2683 = vpop.f32.mrf.mxu0
      %v2684 = vadd.f32 %v2571, %v2683
      %v2685 = vpop.f32.mrf.mxu0
      %v2686 = vadd.f32 %v2573, %v2685
      %2687 = vmatprep.mubr.bf16.mxu0 %v835
      %2688 = vmatmul.mubr.bf16.gmra.mxu0 %v823
      %v2689 = vpop.f32.mrf.mxu0
      %v2690 = vadd.f32 %v2577, %v2689
      %v2691 = vpop.f32.mrf.mxu0
      %v2692 = vadd.f32 %v2579, %v2691
      %v2693 = vpop.f32.mrf.mxu0
      %v2694 = vadd.f32 %v2581, %v2693
      %v2695 = vpop.f32.mrf.mxu0
      %v2696 = vadd.f32 %v2583, %v2695
      %2697 = vmatprep.mubr.bf16.mxu0 %v859
      %2698 = vmatmul.mubr.bf16.gmra.mxu0 %v847
      %v2699 = vpop.f32.mrf.mxu0
      %v2700 = vadd.f32 %v2587, %v2699
      %v2701 = vpop.f32.mrf.mxu0
      %v2702 = vadd.f32 %v2589, %v2701
      %v2703 = vpop.f32.mrf.mxu0
      %v2704 = vadd.f32 %v2591, %v2703
      %v2705 = vpop.f32.mrf.mxu0
      %v2706 = vadd.f32 %v2593, %v2705
      %2707 = vdwg.mxu0
      %2708 = vmatprep.subr.bf16.mxu0 %v2369
      %2709 = vmatpush1.bf16.msra.mxu0 %v2368
      %2710 = vmatprep.subr.bf16.mxu0 %v2367
      %2711 = vmatpush1.bf16.msra.mxu0 %v2366
      %2712 = vmatprep.subr.bf16.mxu0 %v2365
      %2713 = vmatpush1.bf16.msra.mxu0 %v2364
      %2714 = vmatprep.subr.bf16.mxu0 %v2363
      %2715 = vmatpush1.bf16.msra.mxu0 %v2362
      %2716 = vmatprep.subr.bf16.mxu0 %v2361
      %2717 = vmatpush1.bf16.msra.mxu0 %v2360
      %2718 = vmatprep.subr.bf16.mxu0 %v2359
      %2719 = vmatpush1.bf16.msra.mxu0 %v2358
      %2720 = vmatprep.subr.bf16.mxu0 %v2357
      %2721 = vmatpush1.bf16.msra.mxu0 %v2356
      %2722 = vmatprep.subr.bf16.mxu0 %v2355
      %2723 = vmatpush1.bf16.msra.mxu0 %v2354
      %2724 = vmatprep.subr.bf16.mxu0 %v2385
      %2725 = vmatpush2.bf16.msra.mxu0 %v2384
      %2726 = vmatprep.subr.bf16.mxu0 %v2383
      %2727 = vmatpush2.bf16.msra.mxu0 %v2382
      %2728 = vmatprep.subr.bf16.mxu0 %v2381
      %2729 = vmatpush2.bf16.msra.mxu0 %v2380
      %2730 = vmatprep.subr.bf16.mxu0 %v2379
      %2731 = vmatpush2.bf16.msra.mxu0 %v2378
      %2732 = vmatprep.subr.bf16.mxu0 %v2377
      %2733 = vmatpush2.bf16.msra.mxu0 %v2376
      %2734 = vmatprep.subr.bf16.mxu0 %v2375
      %2735 = vmatpush2.bf16.msra.mxu0 %v2374
      %2736 = vmatprep.subr.bf16.mxu0 %v2373
      %2737 = vmatpush2.bf16.msra.mxu0 %v2372
      %2738 = vmatprep.subr.bf16.mxu0 %v2371
      %2739 = vmatpush2.bf16.msra.mxu0 %v2370
      %2740 = vmatprep.mubr.bf16.mxu0 %v882
      %2741 = vmatmul.mubr.bf16.gmra.mxu0 %v879
      %v2742 = vpop.f32.mrf.mxu0
      %v2743 = vadd.f32 %v2630, %v2742
      %v2744 = vpop.f32.mrf.mxu0
      %v2745 = vadd.f32 %v2632, %v2744
      %v2746 = vpop.f32.mrf.mxu0
      %v2747 = vadd.f32 %v2634, %v2746
      %v2748 = vpop.f32.mrf.mxu0
      %v2749 = vadd.f32 %v2636, %v2748
      %2750 = vmatprep.mubr.bf16.mxu0 %v888
      %2751 = vmatmul.mubr.bf16.gmra.mxu0 %v885
      %v2752 = vpop.f32.mrf.mxu0
      %v2753 = vadd.f32 %v2640, %v2752
      %v2754 = vpop.f32.mrf.mxu0
      %v2755 = vadd.f32 %v2642, %v2754
      %v2756 = vpop.f32.mrf.mxu0
      %v2757 = vadd.f32 %v2644, %v2756
      %v2758 = vpop.f32.mrf.mxu0
      %v2759 = vadd.f32 %v2646, %v2758
      %2760 = vmatprep.mubr.bf16.mxu0 %v894
      %2761 = vmatmul.mubr.bf16.gmra.mxu0 %v891
      %v2762 = vpop.f32.mrf.mxu0
      %v2763 = vadd.f32 %v2650, %v2762
      %v2764 = vpop.f32.mrf.mxu0
      %v2765 = vadd.f32 %v2652, %v2764
      %v2766 = vpop.f32.mrf.mxu0
      %v2767 = vadd.f32 %v2654, %v2766
      %v2768 = vpop.f32.mrf.mxu0
      %v2769 = vadd.f32 %v2656, %v2768
      %2770 = vmatprep.mubr.bf16.mxu0 %v900
      %2771 = vmatmul.mubr.bf16.gmra.mxu0 %v897
      %v2772 = vpop.f32.mrf.mxu0
      %v2773 = vadd.f32 %v2660, %v2772
      %v2774 = vpop.f32.mrf.mxu0
      %v2775 = vadd.f32 %v2662, %v2774
      %v2776 = vpop.f32.mrf.mxu0
      %v2777 = vadd.f32 %v2664, %v2776
      %v2778 = vpop.f32.mrf.mxu0
      %v2779 = vadd.f32 %v2666, %v2778
      %2780 = vmatprep.mubr.bf16.mxu0 %v906
      %2781 = vmatmul.mubr.bf16.gmra.mxu0 %v903
      %v2782 = vpop.f32.mrf.mxu0
      %v2783 = vadd.f32 %v2670, %v2782
      %v2784 = vpop.f32.mrf.mxu0
      %v2785 = vadd.f32 %v2672, %v2784
      %v2786 = vpop.f32.mrf.mxu0
      %v2787 = vadd.f32 %v2674, %v2786
      %v2788 = vpop.f32.mrf.mxu0
      %v2789 = vadd.f32 %v2676, %v2788
      %2790 = vmatprep.mubr.bf16.mxu0 %v912
      %2791 = vmatmul.mubr.bf16.gmra.mxu0 %v909
      %v2792 = vpop.f32.mrf.mxu0
      %v2793 = vadd.f32 %v2680, %v2792
      %v2794 = vpop.f32.mrf.mxu0
      %v2795 = vadd.f32 %v2682, %v2794
      %v2796 = vpop.f32.mrf.mxu0
      %v2797 = vadd.f32 %v2684, %v2796
      %v2798 = vpop.f32.mrf.mxu0
      %v2799 = vadd.f32 %v2686, %v2798
      %2800 = vmatprep.mubr.bf16.mxu0 %v918
      %2801 = vmatmul.mubr.bf16.gmra.mxu0 %v915
      %v2802 = vpop.f32.mrf.mxu0
      %v2803 = vadd.f32 %v2690, %v2802
      %v2804 = vpop.f32.mrf.mxu0
      %v2805 = vadd.f32 %v2692, %v2804
      %v2806 = vpop.f32.mrf.mxu0
      %v2807 = vadd.f32 %v2694, %v2806
      %v2808 = vpop.f32.mrf.mxu0
      %v2809 = vadd.f32 %v2696, %v2808
      %2810 = vmatprep.mubr.bf16.mxu0 %v924
      %2811 = vmatmul.mubr.bf16.gmra.mxu0 %v921
      %v2812 = vpop.f32.mrf.mxu0
      %v2813 = vadd.f32 %v2700, %v2812
      %v2814 = vpop.f32.mrf.mxu0
      %v2815 = vadd.f32 %v2702, %v2814
      %v2816 = vpop.f32.mrf.mxu0
      %v2817 = vadd.f32 %v2704, %v2816
      %v2818 = vpop.f32.mrf.mxu0
      %v2819 = vadd.f32 %v2706, %v2818
      %2820 = vdwg.mxu0
      %v2823 = vunpack.c.l.b16 %v544
      %v2824 = vunpack.c.h.b16 %v544
      %v2825 = vunpack.c.l.b16 %v545
      %v2826 = vunpack.c.h.b16 %v545
      %v2827 = vpack.c.b16 %v2825, %v2823
      %v2828 = vpack.c.b16 %v2826, %v2824
      %v2832 = vunpack.c.l.b16 %v546
      %v2833 = vunpack.c.h.b16 %v546
      %v2834 = vpack.c.b16 %v2832, %v2832
      %v2835 = vpack.c.b16 %v2833, %v2833
      %v2837 = vshrl.u32 %v2827, 16
      %v2839 = vshll.u32 %v2827, 16
      %v2841 = vrot.slane %v2839, 1
      %v2842 = vor.u32 %v2837, %v2841
      %v2844 = vshll.u32 %v2834, 16
      %v2846 = vrot.slane %v2844, 1
      %v2847 = vsel %vm667, %v2842, %v2846
      %v2849 = vshrl.u32 %v2828, 16
      %v2851 = vshll.u32 %v2828, 16
      %v2853 = vrot.slane %v2851, 1
      %v2854 = vor.u32 %v2849, %v2853
      %v2856 = vshll.u32 %v2835, 16
      %v2858 = vrot.slane %v2856, 1
      %v2859 = vsel %vm667, %v2854, %v2858
      %v2862 = vrot.slane %v2827, 1
      %v2863 = vrot.slane %v2834, 1
      %v2864 = vsel %vm876, %v2862, %v2863
      %v2865 = vrot.slane %v2828, 1
      %v2866 = vrot.slane %v2835, 1
      %v2867 = vsel %vm876, %v2865, %v2866
      %s2870 = scalar_lea.vmem %s3, 1536
      %v2871 = vld [vmem:[%s2870] sm:$0xff]
      %v2872 = vld [vmem:[%s2870 + $0x8] sm:$0xff]
      %v2873 = vld [vmem:[%s2870 + $0x10] sm:$0xff]
      %v2874 = vld [vmem:[%s2870 + $0x18] sm:$0xff]
      %v2875 = vld [vmem:[%s2870 + $0x20] sm:$0xff]
      %v2876 = vld [vmem:[%s2870 + $0x28] sm:$0xff]
      %v2877 = vld [vmem:[%s2870 + $0x30] sm:$0xff]
      %v2878 = vld [vmem:[%s2870 + $0x38] sm:$0xff]
      %v2879 = vld [vmem:[%s2870 + $0x40] sm:$0xff]
      %v2880 = vld [vmem:[%s2870 + $0x48] sm:$0xff]
      %v2881 = vld [vmem:[%s2870 + $0x50] sm:$0xff]
      %v2882 = vld [vmem:[%s2870 + $0x58] sm:$0xff]
      %v2883 = vld [vmem:[%s2870 + $0x60] sm:$0xff]
      %v2884 = vld [vmem:[%s2870 + $0x68] sm:$0xff]
      %v2885 = vld [vmem:[%s2870 + $0x70] sm:$0xff]
      %v2886 = vld [vmem:[%s2870 + $0x78] sm:$0xff]
      %v2887 = vld [vmem:[%s2870 + $0x80] sm:$0xff]
      %v2888 = vld [vmem:[%s2870 + $0x88] sm:$0xff]
      %v2889 = vld [vmem:[%s2870 + $0x90] sm:$0xff]
      %v2890 = vld [vmem:[%s2870 + $0x98] sm:$0xff]
      %v2891 = vld [vmem:[%s2870 + $0xa0] sm:$0xff]
      %v2892 = vld [vmem:[%s2870 + $0xa8] sm:$0xff]
      %v2893 = vld [vmem:[%s2870 + $0xb0] sm:$0xff]
      %v2894 = vld [vmem:[%s2870 + $0xb8] sm:$0xff]
      %v2895 = vld [vmem:[%s2870 + $0xc0] sm:$0xff]
      %v2896 = vld [vmem:[%s2870 + $0xc8] sm:$0xff]
      %v2897 = vld [vmem:[%s2870 + $0xd0] sm:$0xff]
      %v2898 = vld [vmem:[%s2870 + $0xd8] sm:$0xff]
      %v2899 = vld [vmem:[%s2870 + $0xe0] sm:$0xff]
      %v2900 = vld [vmem:[%s2870 + $0xe8] sm:$0xff]
      %v2901 = vld [vmem:[%s2870 + $0xf0] sm:$0xff]
      %v2902 = vld [vmem:[%s2870 + $0xf8] sm:$0xff]
      %v2903 = vld [vmem:[%s2870 + $0x100] sm:$0xff]
      %v2904 = vld [vmem:[%s2870 + $0x108] sm:$0xff]
      %v2905 = vld [vmem:[%s2870 + $0x110] sm:$0xff]
      %v2906 = vld [vmem:[%s2870 + $0x118] sm:$0xff]
      %v2907 = vld [vmem:[%s2870 + $0x120] sm:$0xff]
      %v2908 = vld [vmem:[%s2870 + $0x128] sm:$0xff]
      %v2909 = vld [vmem:[%s2870 + $0x130] sm:$0xff]
      %v2910 = vld [vmem:[%s2870 + $0x138] sm:$0xff]
      %v2911 = vld [vmem:[%s2870 + $0x140] sm:$0xff]
      %v2912 = vld [vmem:[%s2870 + $0x148] sm:$0xff]
      %v2913 = vld [vmem:[%s2870 + $0x150] sm:$0xff]
      %v2914 = vld [vmem:[%s2870 + $0x158] sm:$0xff]
      %v2915 = vld [vmem:[%s2870 + $0x160] sm:$0xff]
      %v2916 = vld [vmem:[%s2870 + $0x168] sm:$0xff]
      %v2917 = vld [vmem:[%s2870 + $0x170] sm:$0xff]
      %v2918 = vld [vmem:[%s2870 + $0x178] sm:$0xff]
      %v2919 = vld [vmem:[%s2870 + $0x180] sm:$0xff]
      %v2920 = vld [vmem:[%s2870 + $0x188] sm:$0xff]
      %v2921 = vld [vmem:[%s2870 + $0x190] sm:$0xff]
      %v2922 = vld [vmem:[%s2870 + $0x198] sm:$0xff]
      %v2923 = vld [vmem:[%s2870 + $0x1a0] sm:$0xff]
      %v2924 = vld [vmem:[%s2870 + $0x1a8] sm:$0xff]
      %v2925 = vld [vmem:[%s2870 + $0x1b0] sm:$0xff]
      %v2926 = vld [vmem:[%s2870 + $0x1b8] sm:$0xff]
      %v2927 = vld [vmem:[%s2870 + $0x1c0] sm:$0xff]
      %v2928 = vld [vmem:[%s2870 + $0x1c8] sm:$0xff]
      %v2929 = vld [vmem:[%s2870 + $0x1d0] sm:$0xff]
      %v2930 = vld [vmem:[%s2870 + $0x1d8] sm:$0xff]
      %v2931 = vld [vmem:[%s2870 + $0x1e0] sm:$0xff]
      %v2932 = vld [vmem:[%s2870 + $0x1e8] sm:$0xff]
      %v2933 = vld [vmem:[%s2870 + $0x1f0] sm:$0xff]
      %v2934 = vld [vmem:[%s2870 + $0x1f8] sm:$0xff]
      %v2935 = vld [vmem:[%s2870 + $0x200] sm:$0xff]
      %v2936 = vld [vmem:[%s2870 + $0x208] sm:$0xff]
      %v2937 = vld [vmem:[%s2870 + $0x210] sm:$0xff]
      %v2938 = vld [vmem:[%s2870 + $0x218] sm:$0xff]
      %v2939 = vld [vmem:[%s2870 + $0x220] sm:$0xff]
      %v2940 = vld [vmem:[%s2870 + $0x228] sm:$0xff]
      %v2941 = vld [vmem:[%s2870 + $0x230] sm:$0xff]
      %v2942 = vld [vmem:[%s2870 + $0x238] sm:$0xff]
      %v2943 = vld [vmem:[%s2870 + $0x240] sm:$0xff]
      %v2944 = vld [vmem:[%s2870 + $0x248] sm:$0xff]
      %v2945 = vld [vmem:[%s2870 + $0x250] sm:$0xff]
      %v2946 = vld [vmem:[%s2870 + $0x258] sm:$0xff]
      %v2947 = vld [vmem:[%s2870 + $0x260] sm:$0xff]
      %v2948 = vld [vmem:[%s2870 + $0x268] sm:$0xff]
      %v2949 = vld [vmem:[%s2870 + $0x270] sm:$0xff]
      %v2950 = vld [vmem:[%s2870 + $0x278] sm:$0xff]
      %v2951 = vld [vmem:[%s2870 + $0x280] sm:$0xff]
      %v2952 = vld [vmem:[%s2870 + $0x288] sm:$0xff]
      %v2953 = vld [vmem:[%s2870 + $0x290] sm:$0xff]
      %v2954 = vld [vmem:[%s2870 + $0x298] sm:$0xff]
      %v2955 = vld [vmem:[%s2870 + $0x2a0] sm:$0xff]
      %v2956 = vld [vmem:[%s2870 + $0x2a8] sm:$0xff]
      %v2957 = vld [vmem:[%s2870 + $0x2b0] sm:$0xff]
      %v2958 = vld [vmem:[%s2870 + $0x2b8] sm:$0xff]
      %v2959 = vld [vmem:[%s2870 + $0x2c0] sm:$0xff]
      %v2960 = vld [vmem:[%s2870 + $0x2c8] sm:$0xff]
      %v2961 = vld [vmem:[%s2870 + $0x2d0] sm:$0xff]
      %v2962 = vld [vmem:[%s2870 + $0x2d8] sm:$0xff]
      %v2963 = vld [vmem:[%s2870 + $0x2e0] sm:$0xff]
      %v2964 = vld [vmem:[%s2870 + $0x2e8] sm:$0xff]
      %v2965 = vld [vmem:[%s2870 + $0x2f0] sm:$0xff]
      %v2966 = vld [vmem:[%s2870 + $0x2f8] sm:$0xff]
      %v3063 = vunpack.c.l.b16 %v2871
      %v3064 = vunpack.c.h.b16 %v2871
      %v3065 = vunpack.c.l.b16 %v2872
      %v3066 = vunpack.c.h.b16 %v2872
      %v3067 = vunpack.c.l.b16 %v2873
      %v3068 = vunpack.c.h.b16 %v2873
      %v3069 = vunpack.c.l.b16 %v2874
      %v3070 = vunpack.c.h.b16 %v2874
      %v3071 = vunpack.c.l.b16 %v2875
      %v3072 = vunpack.c.h.b16 %v2875
      %v3073 = vunpack.c.l.b16 %v2876
      %v3074 = vunpack.c.h.b16 %v2876
      %v3075 = vunpack.c.l.b16 %v2877
      %v3076 = vunpack.c.h.b16 %v2877
      %v3077 = vunpack.c.l.b16 %v2878
      %v3078 = vunpack.c.h.b16 %v2878
      %v3079 = vunpack.c.l.b16 %v2879
      %v3080 = vunpack.c.h.b16 %v2879
      %v3081 = vunpack.c.l.b16 %v2880
      %v3082 = vunpack.c.h.b16 %v2880
      %v3083 = vunpack.c.l.b16 %v2881
      %v3084 = vunpack.c.h.b16 %v2881
      %v3085 = vunpack.c.l.b16 %v2882
      %v3086 = vunpack.c.h.b16 %v2882
      %v3087 = vunpack.c.l.b16 %v2883
      %v3088 = vunpack.c.h.b16 %v2883
      %v3089 = vunpack.c.l.b16 %v2884
      %v3090 = vunpack.c.h.b16 %v2884
      %v3091 = vunpack.c.l.b16 %v2885
      %v3092 = vunpack.c.h.b16 %v2885
      %v3093 = vunpack.c.l.b16 %v2886
      %v3094 = vunpack.c.h.b16 %v2886
      %v3095 = vunpack.c.l.b16 %v2887
      %v3096 = vunpack.c.h.b16 %v2887
      %v3097 = vunpack.c.l.b16 %v2888
      %v3098 = vunpack.c.h.b16 %v2888
      %v3099 = vunpack.c.l.b16 %v2889
      %v3100 = vunpack.c.h.b16 %v2889
      %v3101 = vunpack.c.l.b16 %v2890
      %v3102 = vunpack.c.h.b16 %v2890
      %v3103 = vunpack.c.l.b16 %v2891
      %v3104 = vunpack.c.h.b16 %v2891
      %v3105 = vunpack.c.l.b16 %v2892
      %v3106 = vunpack.c.h.b16 %v2892
      %v3107 = vunpack.c.l.b16 %v2893
      %v3108 = vunpack.c.h.b16 %v2893
      %v3109 = vunpack.c.l.b16 %v2894
      %v3110 = vunpack.c.h.b16 %v2894
      %v3111 = vunpack.c.l.b16 %v2895
      %v3112 = vunpack.c.h.b16 %v2895
      %v3113 = vunpack.c.l.b16 %v2896
      %v3114 = vunpack.c.h.b16 %v2896
      %v3115 = vunpack.c.l.b16 %v2897
      %v3116 = vunpack.c.h.b16 %v2897
      %v3117 = vunpack.c.l.b16 %v2898
      %v3118 = vunpack.c.h.b16 %v2898
      %v3119 = vunpack.c.l.b16 %v2899
      %v3120 = vunpack.c.h.b16 %v2899
      %v3121 = vunpack.c.l.b16 %v2900
      %v3122 = vunpack.c.h.b16 %v2900
      %v3123 = vunpack.c.l.b16 %v2901
      %v3124 = vunpack.c.h.b16 %v2901
      %v3125 = vunpack.c.l.b16 %v2902
      %v3126 = vunpack.c.h.b16 %v2902
      %v3127 = vunpack.c.l.b16 %v2903
      %v3128 = vunpack.c.h.b16 %v2903
      %v3129 = vunpack.c.l.b16 %v2904
      %v3130 = vunpack.c.h.b16 %v2904
      %v3131 = vunpack.c.l.b16 %v2905
      %v3132 = vunpack.c.h.b16 %v2905
      %v3133 = vunpack.c.l.b16 %v2906
      %v3134 = vunpack.c.h.b16 %v2906
      %v3135 = vunpack.c.l.b16 %v2907
      %v3136 = vunpack.c.h.b16 %v2907
      %v3137 = vunpack.c.l.b16 %v2908
      %v3138 = vunpack.c.h.b16 %v2908
      %v3139 = vunpack.c.l.b16 %v2909
      %v3140 = vunpack.c.h.b16 %v2909
      %v3141 = vunpack.c.l.b16 %v2910
      %v3142 = vunpack.c.h.b16 %v2910
      %v3143 = vunpack.c.l.b16 %v2911
      %v3144 = vunpack.c.h.b16 %v2911
      %v3145 = vunpack.c.l.b16 %v2912
      %v3146 = vunpack.c.h.b16 %v2912
      %v3147 = vunpack.c.l.b16 %v2913
      %v3148 = vunpack.c.h.b16 %v2913
      %v3149 = vunpack.c.l.b16 %v2914
      %v3150 = vunpack.c.h.b16 %v2914
      %v3151 = vunpack.c.l.b16 %v2915
      %v3152 = vunpack.c.h.b16 %v2915
      %v3153 = vunpack.c.l.b16 %v2916
      %v3154 = vunpack.c.h.b16 %v2916
      %v3155 = vunpack.c.l.b16 %v2917
      %v3156 = vunpack.c.h.b16 %v2917
      %v3157 = vunpack.c.l.b16 %v2918
      %v3158 = vunpack.c.h.b16 %v2918
      %v3159 = vunpack.c.l.b16 %v2919
      %v3160 = vunpack.c.h.b16 %v2919
      %v3161 = vunpack.c.l.b16 %v2920
      %v3162 = vunpack.c.h.b16 %v2920
      %v3163 = vunpack.c.l.b16 %v2921
      %v3164 = vunpack.c.h.b16 %v2921
      %v3165 = vunpack.c.l.b16 %v2922
      %v3166 = vunpack.c.h.b16 %v2922
      %v3167 = vunpack.c.l.b16 %v2923
      %v3168 = vunpack.c.h.b16 %v2923
      %v3169 = vunpack.c.l.b16 %v2924
      %v3170 = vunpack.c.h.b16 %v2924
      %v3171 = vunpack.c.l.b16 %v2925
      %v3172 = vunpack.c.h.b16 %v2925
      %v3173 = vunpack.c.l.b16 %v2926
      %v3174 = vunpack.c.h.b16 %v2926
      %v3175 = vunpack.c.l.b16 %v2927
      %v3176 = vunpack.c.h.b16 %v2927
      %v3177 = vunpack.c.l.b16 %v2928
      %v3178 = vunpack.c.h.b16 %v2928
      %v3179 = vunpack.c.l.b16 %v2929
      %v3180 = vunpack.c.h.b16 %v2929
      %v3181 = vunpack.c.l.b16 %v2930
      %v3182 = vunpack.c.h.b16 %v2930
      %v3183 = vunpack.c.l.b16 %v2931
      %v3184 = vunpack.c.h.b16 %v2931
      %v3185 = vunpack.c.l.b16 %v2932
      %v3186 = vunpack.c.h.b16 %v2932
      %v3187 = vunpack.c.l.b16 %v2933
      %v3188 = vunpack.c.h.b16 %v2933
      %v3189 = vunpack.c.l.b16 %v2934
      %v3190 = vunpack.c.h.b16 %v2934
      %v3191 = vunpack.c.l.b16 %v2935
      %v3192 = vunpack.c.h.b16 %v2935
      %v3193 = vunpack.c.l.b16 %v2936
      %v3194 = vunpack.c.h.b16 %v2936
      %v3195 = vunpack.c.l.b16 %v2937
      %v3196 = vunpack.c.h.b16 %v2937
      %v3197 = vunpack.c.l.b16 %v2938
      %v3198 = vunpack.c.h.b16 %v2938
      %v3199 = vunpack.c.l.b16 %v2939
      %v3200 = vunpack.c.h.b16 %v2939
      %v3201 = vunpack.c.l.b16 %v2940
      %v3202 = vunpack.c.h.b16 %v2940
      %v3203 = vunpack.c.l.b16 %v2941
      %v3204 = vunpack.c.h.b16 %v2941
      %v3205 = vunpack.c.l.b16 %v2942
      %v3206 = vunpack.c.h.b16 %v2942
      %v3207 = vunpack.c.l.b16 %v2943
      %v3208 = vunpack.c.h.b16 %v2943
      %v3209 = vunpack.c.l.b16 %v2944
      %v3210 = vunpack.c.h.b16 %v2944
      %v3211 = vunpack.c.l.b16 %v2945
      %v3212 = vunpack.c.h.b16 %v2945
      %v3213 = vunpack.c.l.b16 %v2946
      %v3214 = vunpack.c.h.b16 %v2946
      %v3215 = vunpack.c.l.b16 %v2947
      %v3216 = vunpack.c.h.b16 %v2947
      %v3217 = vunpack.c.l.b16 %v2948
      %v3218 = vunpack.c.h.b16 %v2948
      %v3219 = vunpack.c.l.b16 %v2949
      %v3220 = vunpack.c.h.b16 %v2949
      %v3221 = vunpack.c.l.b16 %v2950
      %v3222 = vunpack.c.h.b16 %v2950
      %v3223 = vunpack.c.l.b16 %v2951
      %v3224 = vunpack.c.h.b16 %v2951
      %v3225 = vunpack.c.l.b16 %v2952
      %v3226 = vunpack.c.h.b16 %v2952
      %v3227 = vunpack.c.l.b16 %v2953
      %v3228 = vunpack.c.h.b16 %v2953
      %v3229 = vunpack.c.l.b16 %v2954
      %v3230 = vunpack.c.h.b16 %v2954
      %v3231 = vunpack.c.l.b16 %v2955
      %v3232 = vunpack.c.h.b16 %v2955
      %v3233 = vunpack.c.l.b16 %v2956
      %v3234 = vunpack.c.h.b16 %v2956
      %v3235 = vunpack.c.l.b16 %v2957
      %v3236 = vunpack.c.h.b16 %v2957
      %v3237 = vunpack.c.l.b16 %v2958
      %v3238 = vunpack.c.h.b16 %v2958
      %v3239 = vunpack.c.l.b16 %v2959
      %v3240 = vunpack.c.h.b16 %v2959
      %v3241 = vunpack.c.l.b16 %v2960
      %v3242 = vunpack.c.h.b16 %v2960
      %v3243 = vunpack.c.l.b16 %v2961
      %v3244 = vunpack.c.h.b16 %v2961
      %v3245 = vunpack.c.l.b16 %v2962
      %v3246 = vunpack.c.h.b16 %v2962
      %v3247 = vunpack.c.l.b16 %v2963
      %v3248 = vunpack.c.h.b16 %v2963
      %v3249 = vunpack.c.l.b16 %v2964
      %v3250 = vunpack.c.h.b16 %v2964
      %v3251 = vunpack.c.l.b16 %v2965
      %v3252 = vunpack.c.h.b16 %v2965
      %v3253 = vunpack.c.l.b16 %v2966
      %v3254 = vunpack.c.h.b16 %v2966
      %v3255 = vpack.c.b16 %v3065, %v3063
      %v3256 = vpack.c.b16 %v3066, %v3064
      %v3257 = vpack.c.b16 %v3069, %v3067
      %v3258 = vpack.c.b16 %v3070, %v3068
      %v3259 = vpack.c.b16 %v3073, %v3071
      %v3260 = vpack.c.b16 %v3074, %v3072
      %v3261 = vpack.c.b16 %v3077, %v3075
      %v3262 = vpack.c.b16 %v3078, %v3076
      %v3263 = vpack.c.b16 %v3081, %v3079
      %v3264 = vpack.c.b16 %v3082, %v3080
      %v3265 = vpack.c.b16 %v3085, %v3083
      %v3266 = vpack.c.b16 %v3086, %v3084
      %v3267 = vpack.c.b16 %v3089, %v3087
      %v3268 = vpack.c.b16 %v3090, %v3088
      %v3269 = vpack.c.b16 %v3093, %v3091
      %v3270 = vpack.c.b16 %v3094, %v3092
      %v3271 = vpack.c.b16 %v3097, %v3095
      %v3272 = vpack.c.b16 %v3098, %v3096
      %v3273 = vpack.c.b16 %v3101, %v3099
      %v3274 = vpack.c.b16 %v3102, %v3100
      %v3275 = vpack.c.b16 %v3105, %v3103
      %v3276 = vpack.c.b16 %v3106, %v3104
      %v3277 = vpack.c.b16 %v3109, %v3107
      %v3278 = vpack.c.b16 %v3110, %v3108
      %v3279 = vpack.c.b16 %v3113, %v3111
      %v3280 = vpack.c.b16 %v3114, %v3112
      %v3281 = vpack.c.b16 %v3117, %v3115
      %v3282 = vpack.c.b16 %v3118, %v3116
      %v3283 = vpack.c.b16 %v3121, %v3119
      %v3284 = vpack.c.b16 %v3122, %v3120
      %v3285 = vpack.c.b16 %v3125, %v3123
      %v3286 = vpack.c.b16 %v3126, %v3124
      %v3287 = vpack.c.b16 %v3129, %v3127
      %v3288 = vpack.c.b16 %v3130, %v3128
      %v3289 = vpack.c.b16 %v3133, %v3131
      %v3290 = vpack.c.b16 %v3134, %v3132
      %v3291 = vpack.c.b16 %v3137, %v3135
      %v3292 = vpack.c.b16 %v3138, %v3136
      %v3293 = vpack.c.b16 %v3141, %v3139
      %v3294 = vpack.c.b16 %v3142, %v3140
      %v3295 = vpack.c.b16 %v3145, %v3143
      %v3296 = vpack.c.b16 %v3146, %v3144
      %v3297 = vpack.c.b16 %v3149, %v3147
      %v3298 = vpack.c.b16 %v3150, %v3148
      %v3299 = vpack.c.b16 %v3153, %v3151
      %v3300 = vpack.c.b16 %v3154, %v3152
      %v3301 = vpack.c.b16 %v3157, %v3155
      %v3302 = vpack.c.b16 %v3158, %v3156
      %v3303 = vpack.c.b16 %v3161, %v3159
      %v3304 = vpack.c.b16 %v3162, %v3160
      %v3305 = vpack.c.b16 %v3165, %v3163
      %v3306 = vpack.c.b16 %v3166, %v3164
      %v3307 = vpack.c.b16 %v3169, %v3167
      %v3308 = vpack.c.b16 %v3170, %v3168
      %v3309 = vpack.c.b16 %v3173, %v3171
      %v3310 = vpack.c.b16 %v3174, %v3172
      %v3311 = vpack.c.b16 %v3177, %v3175
      %v3312 = vpack.c.b16 %v3178, %v3176
      %v3313 = vpack.c.b16 %v3181, %v3179
      %v3314 = vpack.c.b16 %v3182, %v3180
      %v3315 = vpack.c.b16 %v3185, %v3183
      %v3316 = vpack.c.b16 %v3186, %v3184
      %v3317 = vpack.c.b16 %v3189, %v3187
      %v3318 = vpack.c.b16 %v3190, %v3188
      %v3319 = vpack.c.b16 %v3193, %v3191
      %v3320 = vpack.c.b16 %v3194, %v3192
      %v3321 = vpack.c.b16 %v3197, %v3195
      %v3322 = vpack.c.b16 %v3198, %v3196
      %v3323 = vpack.c.b16 %v3201, %v3199
      %v3324 = vpack.c.b16 %v3202, %v3200
      %v3325 = vpack.c.b16 %v3205, %v3203
      %v3326 = vpack.c.b16 %v3206, %v3204
      %v3327 = vpack.c.b16 %v3209, %v3207
      %v3328 = vpack.c.b16 %v3210, %v3208
      %v3329 = vpack.c.b16 %v3213, %v3211
      %v3330 = vpack.c.b16 %v3214, %v3212
      %v3331 = vpack.c.b16 %v3217, %v3215
      %v3332 = vpack.c.b16 %v3218, %v3216
      %v3333 = vpack.c.b16 %v3221, %v3219
      %v3334 = vpack.c.b16 %v3222, %v3220
      %v3335 = vpack.c.b16 %v3225, %v3223
      %v3336 = vpack.c.b16 %v3226, %v3224
      %v3337 = vpack.c.b16 %v3229, %v3227
      %v3338 = vpack.c.b16 %v3230, %v3228
      %v3339 = vpack.c.b16 %v3233, %v3231
      %v3340 = vpack.c.b16 %v3234, %v3232
      %v3341 = vpack.c.b16 %v3237, %v3235
      %v3342 = vpack.c.b16 %v3238, %v3236
      %v3343 = vpack.c.b16 %v3241, %v3239
      %v3344 = vpack.c.b16 %v3242, %v3240
      %v3345 = vpack.c.b16 %v3245, %v3243
      %v3346 = vpack.c.b16 %v3246, %v3244
      %v3347 = vpack.c.b16 %v3249, %v3247
      %v3348 = vpack.c.b16 %v3250, %v3248
      %v3349 = vpack.c.b16 %v3253, %v3251
      %v3350 = vpack.c.b16 %v3254, %v3252
      %3447 = vmatprep.subr.bf16.mxu0 %v3270
      %3448 = vmatpush1.bf16.msra.mxu0 %v3269
      %3449 = vmatprep.subr.bf16.mxu0 %v3268
      %3450 = vmatpush1.bf16.msra.mxu0 %v3267
      %3451 = vmatprep.subr.bf16.mxu0 %v3266
      %3452 = vmatpush1.bf16.msra.mxu0 %v3265
      %3453 = vmatprep.subr.bf16.mxu0 %v3264
      %3454 = vmatpush1.bf16.msra.mxu0 %v3263
      %3455 = vmatprep.subr.bf16.mxu0 %v3262
      %3456 = vmatpush1.bf16.msra.mxu0 %v3261
      %3457 = vmatprep.subr.bf16.mxu0 %v3260
      %3458 = vmatpush1.bf16.msra.mxu0 %v3259
      %3459 = vmatprep.subr.bf16.mxu0 %v3258
      %3460 = vmatpush1.bf16.msra.mxu0 %v3257
      %3461 = vmatprep.subr.bf16.mxu0 %v3256
      %3462 = vmatpush1.bf16.msra.mxu0 %v3255
      %3463 = vmatprep.subr.bf16.mxu0 %v3286
      %3464 = vmatpush2.bf16.msra.mxu0 %v3285
      %3465 = vmatprep.subr.bf16.mxu0 %v3284
      %3466 = vmatpush2.bf16.msra.mxu0 %v3283
      %3467 = vmatprep.subr.bf16.mxu0 %v3282
      %3468 = vmatpush2.bf16.msra.mxu0 %v3281
      %3469 = vmatprep.subr.bf16.mxu0 %v3280
      %3470 = vmatpush2.bf16.msra.mxu0 %v3279
      %3471 = vmatprep.subr.bf16.mxu0 %v3278
      %3472 = vmatpush2.bf16.msra.mxu0 %v3277
      %3473 = vmatprep.subr.bf16.mxu0 %v3276
      %3474 = vmatpush2.bf16.msra.mxu0 %v3275
      %3475 = vmatprep.subr.bf16.mxu0 %v3274
      %3476 = vmatpush2.bf16.msra.mxu0 %v3273
      %3477 = vmatprep.subr.bf16.mxu0 %v3272
      %3478 = vmatpush2.bf16.msra.mxu0 %v3271
      %3479 = vmatprep.mubr.bf16.mxu0 %v600
      %3480 = vmatmul.mubr.bf16.gmra.mxu0 %v599
      %v3481 = vpop.f32.mrf.mxu0
      %v3482 = vadd.f32 0.0, %v3481
      %v3483 = vpop.f32.mrf.mxu0
      %v3484 = vadd.f32 0.0, %v3483
      %v3485 = vpop.f32.mrf.mxu0
      %v3486 = vadd.f32 0.0, %v3485
      %v3487 = vpop.f32.mrf.mxu0
      %v3488 = vadd.f32 0.0, %v3487
      %3489 = vmatprep.mubr.bf16.mxu0 %v602
      %3490 = vmatmul.mubr.bf16.gmra.mxu0 %v601
      %v3491 = vpop.f32.mrf.mxu0
      %v3492 = vadd.f32 0.0, %v3491
      %v3493 = vpop.f32.mrf.mxu0
      %v3494 = vadd.f32 0.0, %v3493
      %v3495 = vpop.f32.mrf.mxu0
      %v3496 = vadd.f32 0.0, %v3495
      %v3497 = vpop.f32.mrf.mxu0
      %v3498 = vadd.f32 0.0, %v3497
      %3499 = vmatprep.mubr.bf16.mxu0 %v604
      %3500 = vmatmul.mubr.bf16.gmra.mxu0 %v603
      %v3501 = vpop.f32.mrf.mxu0
      %v3502 = vadd.f32 0.0, %v3501
      %v3503 = vpop.f32.mrf.mxu0
      %v3504 = vadd.f32 0.0, %v3503
      %v3505 = vpop.f32.mrf.mxu0
      %v3506 = vadd.f32 0.0, %v3505
      %v3507 = vpop.f32.mrf.mxu0
      %v3508 = vadd.f32 0.0, %v3507
      %3509 = vmatprep.mubr.bf16.mxu0 %v606
      %3510 = vmatmul.mubr.bf16.gmra.mxu0 %v605
      %v3511 = vpop.f32.mrf.mxu0
      %v3512 = vadd.f32 0.0, %v3511
      %v3513 = vpop.f32.mrf.mxu0
      %v3514 = vadd.f32 0.0, %v3513
      %v3515 = vpop.f32.mrf.mxu0
      %v3516 = vadd.f32 0.0, %v3515
      %v3517 = vpop.f32.mrf.mxu0
      %v3518 = vadd.f32 0.0, %v3517
      %3519 = vmatprep.mubr.bf16.mxu0 %v608
      %3520 = vmatmul.mubr.bf16.gmra.mxu0 %v607
      %v3521 = vpop.f32.mrf.mxu0
      %v3522 = vadd.f32 0.0, %v3521
      %v3523 = vpop.f32.mrf.mxu0
      %v3524 = vadd.f32 0.0, %v3523
      %v3525 = vpop.f32.mrf.mxu0
      %v3526 = vadd.f32 0.0, %v3525
      %v3527 = vpop.f32.mrf.mxu0
      %v3528 = vadd.f32 0.0, %v3527
      %3529 = vmatprep.mubr.bf16.mxu0 %v610
      %3530 = vmatmul.mubr.bf16.gmra.mxu0 %v609
      %v3531 = vpop.f32.mrf.mxu0
      %v3532 = vadd.f32 0.0, %v3531
      %v3533 = vpop.f32.mrf.mxu0
      %v3534 = vadd.f32 0.0, %v3533
      %v3535 = vpop.f32.mrf.mxu0
      %v3536 = vadd.f32 0.0, %v3535
      %v3537 = vpop.f32.mrf.mxu0
      %v3538 = vadd.f32 0.0, %v3537
      %3539 = vmatprep.mubr.bf16.mxu0 %v1044
      %3540 = vmatmul.mubr.bf16.gmra.mxu0 %v1043
      %v3541 = vpop.f32.mrf.mxu0
      %v3542 = vadd.f32 0.0, %v3541
      %v3543 = vpop.f32.mrf.mxu0
      %v3544 = vadd.f32 0.0, %v3543
      %v3545 = vpop.f32.mrf.mxu0
      %v3546 = vadd.f32 0.0, %v3545
      %v3547 = vpop.f32.mrf.mxu0
      %v3548 = vadd.f32 0.0, %v3547
      %3549 = vmatprep.mubr.bf16.mxu0 %v2828
      %3550 = vmatmul.mubr.bf16.gmra.mxu0 %v2827
      %v3551 = vpop.f32.mrf.mxu0
      %v3552 = vadd.f32 0.0, %v3551
      %v3553 = vpop.f32.mrf.mxu0
      %v3554 = vadd.f32 0.0, %v3553
      %v3555 = vpop.f32.mrf.mxu0
      %v3556 = vadd.f32 0.0, %v3555
      %v3557 = vpop.f32.mrf.mxu0
      %v3558 = vadd.f32 0.0, %v3557
      %3559 = vdwg.mxu0
      %3560 = vmatprep.subr.bf16.mxu0 %v3302
      %3561 = vmatpush1.bf16.msra.mxu0 %v3301
      %3562 = vmatprep.subr.bf16.mxu0 %v3300
      %3563 = vmatpush1.bf16.msra.mxu0 %v3299
      %3564 = vmatprep.subr.bf16.mxu0 %v3298
      %3565 = vmatpush1.bf16.msra.mxu0 %v3297
      %3566 = vmatprep.subr.bf16.mxu0 %v3296
      %3567 = vmatpush1.bf16.msra.mxu0 %v3295
      %3568 = vmatprep.subr.bf16.mxu0 %v3294
      %3569 = vmatpush1.bf16.msra.mxu0 %v3293
      %3570 = vmatprep.subr.bf16.mxu0 %v3292
      %3571 = vmatpush1.bf16.msra.mxu0 %v3291
      %3572 = vmatprep.subr.bf16.mxu0 %v3290
      %3573 = vmatpush1.bf16.msra.mxu0 %v3289
      %3574 = vmatprep.subr.bf16.mxu0 %v3288
      %3575 = vmatpush1.bf16.msra.mxu0 %v3287
      %3576 = vmatprep.subr.bf16.mxu0 %v3318
      %3577 = vmatpush2.bf16.msra.mxu0 %v3317
      %3578 = vmatprep.subr.bf16.mxu0 %v3316
      %3579 = vmatpush2.bf16.msra.mxu0 %v3315
      %3580 = vmatprep.subr.bf16.mxu0 %v3314
      %3581 = vmatpush2.bf16.msra.mxu0 %v3313
      %3582 = vmatprep.subr.bf16.mxu0 %v3312
      %3583 = vmatpush2.bf16.msra.mxu0 %v3311
      %3584 = vmatprep.subr.bf16.mxu0 %v3310
      %3585 = vmatpush2.bf16.msra.mxu0 %v3309
      %3586 = vmatprep.subr.bf16.mxu0 %v3308
      %3587 = vmatpush2.bf16.msra.mxu0 %v3307
      %3588 = vmatprep.subr.bf16.mxu0 %v3306
      %3589 = vmatpush2.bf16.msra.mxu0 %v3305
      %3590 = vmatprep.subr.bf16.mxu0 %v3304
      %3591 = vmatpush2.bf16.msra.mxu0 %v3303
      %3592 = vmatprep.mubr.bf16.mxu0 %v739
      %3593 = vmatmul.mubr.bf16.gmra.mxu0 %v727
      %v3594 = vpop.f32.mrf.mxu0
      %v3595 = vadd.f32 %v3482, %v3594
      %v3596 = vpop.f32.mrf.mxu0
      %v3597 = vadd.f32 %v3484, %v3596
      %v3598 = vpop.f32.mrf.mxu0
      %v3599 = vadd.f32 %v3486, %v3598
      %v3600 = vpop.f32.mrf.mxu0
      %v3601 = vadd.f32 %v3488, %v3600
      %3602 = vmatprep.mubr.bf16.mxu0 %v763
      %3603 = vmatmul.mubr.bf16.gmra.mxu0 %v751
      %v3604 = vpop.f32.mrf.mxu0
      %v3605 = vadd.f32 %v3492, %v3604
      %v3606 = vpop.f32.mrf.mxu0
      %v3607 = vadd.f32 %v3494, %v3606
      %v3608 = vpop.f32.mrf.mxu0
      %v3609 = vadd.f32 %v3496, %v3608
      %v3610 = vpop.f32.mrf.mxu0
      %v3611 = vadd.f32 %v3498, %v3610
      %3612 = vmatprep.mubr.bf16.mxu0 %v787
      %3613 = vmatmul.mubr.bf16.gmra.mxu0 %v775
      %v3614 = vpop.f32.mrf.mxu0
      %v3615 = vadd.f32 %v3502, %v3614
      %v3616 = vpop.f32.mrf.mxu0
      %v3617 = vadd.f32 %v3504, %v3616
      %v3618 = vpop.f32.mrf.mxu0
      %v3619 = vadd.f32 %v3506, %v3618
      %v3620 = vpop.f32.mrf.mxu0
      %v3621 = vadd.f32 %v3508, %v3620
      %3622 = vmatprep.mubr.bf16.mxu0 %v811
      %3623 = vmatmul.mubr.bf16.gmra.mxu0 %v799
      %v3624 = vpop.f32.mrf.mxu0
      %v3625 = vadd.f32 %v3512, %v3624
      %v3626 = vpop.f32.mrf.mxu0
      %v3627 = vadd.f32 %v3514, %v3626
      %v3628 = vpop.f32.mrf.mxu0
      %v3629 = vadd.f32 %v3516, %v3628
      %v3630 = vpop.f32.mrf.mxu0
      %v3631 = vadd.f32 %v3518, %v3630
      %3632 = vmatprep.mubr.bf16.mxu0 %v835
      %3633 = vmatmul.mubr.bf16.gmra.mxu0 %v823
      %v3634 = vpop.f32.mrf.mxu0
      %v3635 = vadd.f32 %v3522, %v3634
      %v3636 = vpop.f32.mrf.mxu0
      %v3637 = vadd.f32 %v3524, %v3636
      %v3638 = vpop.f32.mrf.mxu0
      %v3639 = vadd.f32 %v3526, %v3638
      %v3640 = vpop.f32.mrf.mxu0
      %v3641 = vadd.f32 %v3528, %v3640
      %3642 = vmatprep.mubr.bf16.mxu0 %v859
      %3643 = vmatmul.mubr.bf16.gmra.mxu0 %v847
      %v3644 = vpop.f32.mrf.mxu0
      %v3645 = vadd.f32 %v3532, %v3644
      %v3646 = vpop.f32.mrf.mxu0
      %v3647 = vadd.f32 %v3534, %v3646
      %v3648 = vpop.f32.mrf.mxu0
      %v3649 = vadd.f32 %v3536, %v3648
      %v3650 = vpop.f32.mrf.mxu0
      %v3651 = vadd.f32 %v3538, %v3650
      %3652 = vmatprep.mubr.bf16.mxu0 %v1075
      %3653 = vmatmul.mubr.bf16.gmra.mxu0 %v1063
      %v3654 = vpop.f32.mrf.mxu0
      %v3655 = vadd.f32 %v3542, %v3654
      %v3656 = vpop.f32.mrf.mxu0
      %v3657 = vadd.f32 %v3544, %v3656
      %v3658 = vpop.f32.mrf.mxu0
      %v3659 = vadd.f32 %v3546, %v3658
      %v3660 = vpop.f32.mrf.mxu0
      %v3661 = vadd.f32 %v3548, %v3660
      %3662 = vmatprep.mubr.bf16.mxu0 %v2859
      %3663 = vmatmul.mubr.bf16.gmra.mxu0 %v2847
      %v3664 = vpop.f32.mrf.mxu0
      %v3665 = vadd.f32 %v3552, %v3664
      %v3666 = vpop.f32.mrf.mxu0
      %v3667 = vadd.f32 %v3554, %v3666
      %v3668 = vpop.f32.mrf.mxu0
      %v3669 = vadd.f32 %v3556, %v3668
      %v3670 = vpop.f32.mrf.mxu0
      %v3671 = vadd.f32 %v3558, %v3670
      %3672 = vdwg.mxu0
      %3673 = vmatprep.subr.bf16.mxu0 %v3334
      %3674 = vmatpush1.bf16.msra.mxu0 %v3333
      %3675 = vmatprep.subr.bf16.mxu0 %v3332
      %3676 = vmatpush1.bf16.msra.mxu0 %v3331
      %3677 = vmatprep.subr.bf16.mxu0 %v3330
      %3678 = vmatpush1.bf16.msra.mxu0 %v3329
      %3679 = vmatprep.subr.bf16.mxu0 %v3328
      %3680 = vmatpush1.bf16.msra.mxu0 %v3327
      %3681 = vmatprep.subr.bf16.mxu0 %v3326
      %3682 = vmatpush1.bf16.msra.mxu0 %v3325
      %3683 = vmatprep.subr.bf16.mxu0 %v3324
      %3684 = vmatpush1.bf16.msra.mxu0 %v3323
      %3685 = vmatprep.subr.bf16.mxu0 %v3322
      %3686 = vmatpush1.bf16.msra.mxu0 %v3321
      %3687 = vmatprep.subr.bf16.mxu0 %v3320
      %3688 = vmatpush1.bf16.msra.mxu0 %v3319
      %3689 = vmatprep.subr.bf16.mxu0 %v3350
      %3690 = vmatpush2.bf16.msra.mxu0 %v3349
      %3691 = vmatprep.subr.bf16.mxu0 %v3348
      %3692 = vmatpush2.bf16.msra.mxu0 %v3347
      %3693 = vmatprep.subr.bf16.mxu0 %v3346
      %3694 = vmatpush2.bf16.msra.mxu0 %v3345
      %3695 = vmatprep.subr.bf16.mxu0 %v3344
      %3696 = vmatpush2.bf16.msra.mxu0 %v3343
      %3697 = vmatprep.subr.bf16.mxu0 %v3342
      %3698 = vmatpush2.bf16.msra.mxu0 %v3341
      %3699 = vmatprep.subr.bf16.mxu0 %v3340
      %3700 = vmatpush2.bf16.msra.mxu0 %v3339
      %3701 = vmatprep.subr.bf16.mxu0 %v3338
      %3702 = vmatpush2.bf16.msra.mxu0 %v3337
      %3703 = vmatprep.subr.bf16.mxu0 %v3336
      %3704 = vmatpush2.bf16.msra.mxu0 %v3335
      %3705 = vmatprep.mubr.bf16.mxu0 %v894
      %3706 = vmatmul.mubr.bf16.gmra.mxu0 %v891
      %v3707 = vpop.f32.mrf.mxu0
      %v3708 = vadd.f32 %v3595, %v3707
      %v3709 = vpop.f32.mrf.mxu0
      %v3710 = vadd.f32 %v3597, %v3709
      %v3711 = vpop.f32.mrf.mxu0
      %v3712 = vadd.f32 %v3599, %v3711
      %v3713 = vpop.f32.mrf.mxu0
      %v3714 = vadd.f32 %v3601, %v3713
      %3715 = vmatprep.mubr.bf16.mxu0 %v900
      %3716 = vmatmul.mubr.bf16.gmra.mxu0 %v897
      %v3717 = vpop.f32.mrf.mxu0
      %v3718 = vadd.f32 %v3605, %v3717
      %v3719 = vpop.f32.mrf.mxu0
      %v3720 = vadd.f32 %v3607, %v3719
      %v3721 = vpop.f32.mrf.mxu0
      %v3722 = vadd.f32 %v3609, %v3721
      %v3723 = vpop.f32.mrf.mxu0
      %v3724 = vadd.f32 %v3611, %v3723
      %3725 = vmatprep.mubr.bf16.mxu0 %v906
      %3726 = vmatmul.mubr.bf16.gmra.mxu0 %v903
      %v3727 = vpop.f32.mrf.mxu0
      %v3728 = vadd.f32 %v3615, %v3727
      %v3729 = vpop.f32.mrf.mxu0
      %v3730 = vadd.f32 %v3617, %v3729
      %v3731 = vpop.f32.mrf.mxu0
      %v3732 = vadd.f32 %v3619, %v3731
      %v3733 = vpop.f32.mrf.mxu0
      %v3734 = vadd.f32 %v3621, %v3733
      %3735 = vmatprep.mubr.bf16.mxu0 %v912
      %3736 = vmatmul.mubr.bf16.gmra.mxu0 %v909
      %v3737 = vpop.f32.mrf.mxu0
      %v3738 = vadd.f32 %v3625, %v3737
      %v3739 = vpop.f32.mrf.mxu0
      %v3740 = vadd.f32 %v3627, %v3739
      %v3741 = vpop.f32.mrf.mxu0
      %v3742 = vadd.f32 %v3629, %v3741
      %v3743 = vpop.f32.mrf.mxu0
      %v3744 = vadd.f32 %v3631, %v3743
      %3745 = vmatprep.mubr.bf16.mxu0 %v918
      %3746 = vmatmul.mubr.bf16.gmra.mxu0 %v915
      %v3747 = vpop.f32.mrf.mxu0
      %v3748 = vadd.f32 %v3635, %v3747
      %v3749 = vpop.f32.mrf.mxu0
      %v3750 = vadd.f32 %v3637, %v3749
      %v3751 = vpop.f32.mrf.mxu0
      %v3752 = vadd.f32 %v3639, %v3751
      %v3753 = vpop.f32.mrf.mxu0
      %v3754 = vadd.f32 %v3641, %v3753
      %3755 = vmatprep.mubr.bf16.mxu0 %v924
      %3756 = vmatmul.mubr.bf16.gmra.mxu0 %v921
      %v3757 = vpop.f32.mrf.mxu0
      %v3758 = vadd.f32 %v3645, %v3757
      %v3759 = vpop.f32.mrf.mxu0
      %v3760 = vadd.f32 %v3647, %v3759
      %v3761 = vpop.f32.mrf.mxu0
      %v3762 = vadd.f32 %v3649, %v3761
      %v3763 = vpop.f32.mrf.mxu0
      %v3764 = vadd.f32 %v3651, %v3763
      %3765 = vmatprep.mubr.bf16.mxu0 %v1083
      %3766 = vmatmul.mubr.bf16.gmra.mxu0 %v1080
      %v3767 = vpop.f32.mrf.mxu0
      %v3768 = vadd.f32 %v3655, %v3767
      %v3769 = vpop.f32.mrf.mxu0
      %v3770 = vadd.f32 %v3657, %v3769
      %v3771 = vpop.f32.mrf.mxu0
      %v3772 = vadd.f32 %v3659, %v3771
      %v3773 = vpop.f32.mrf.mxu0
      %v3774 = vadd.f32 %v3661, %v3773
      %3775 = vmatprep.mubr.bf16.mxu0 %v2867
      %3776 = vmatmul.mubr.bf16.gmra.mxu0 %v2864
      %v3777 = vpop.f32.mrf.mxu0
      %v3778 = vadd.f32 %v3665, %v3777
      %v3779 = vpop.f32.mrf.mxu0
      %v3780 = vadd.f32 %v3667, %v3779
      %v3781 = vpop.f32.mrf.mxu0
      %v3782 = vadd.f32 %v3669, %v3781
      %v3783 = vpop.f32.mrf.mxu0
      %v3784 = vadd.f32 %v3671, %v3783
      %3785 = vdwg.mxu0
      %v3786 = vadd.f32 %v2743, %v3708
      %v3787 = vadd.f32 %v2745, %v3710
      %v3788 = vadd.f32 %v2747, %v3712
      %v3789 = vadd.f32 %v2749, %v3714
      %v3790 = vadd.f32 %v2753, %v3718
      %v3791 = vadd.f32 %v2755, %v3720
      %v3792 = vadd.f32 %v2757, %v3722
      %v3793 = vadd.f32 %v2759, %v3724
      %v3794 = vadd.f32 %v2763, %v3728
      %v3795 = vadd.f32 %v2765, %v3730
      %v3796 = vadd.f32 %v2767, %v3732
      %v3797 = vadd.f32 %v2769, %v3734
      %v3798 = vadd.f32 %v2773, %v3738
      %v3799 = vadd.f32 %v2775, %v3740
      %v3800 = vadd.f32 %v2777, %v3742
      %v3801 = vadd.f32 %v2779, %v3744
      %v3802 = vadd.f32 %v2783, %v3748
      %v3803 = vadd.f32 %v2785, %v3750
      %v3804 = vadd.f32 %v2787, %v3752
      %v3805 = vadd.f32 %v2789, %v3754
      %v3806 = vadd.f32 %v2793, %v3758
      %v3807 = vadd.f32 %v2795, %v3760
      %v3808 = vadd.f32 %v2797, %v3762
      %v3809 = vadd.f32 %v2799, %v3764
      %v3810 = vadd.f32 %v2803, %v3768
      %v3811 = vadd.f32 %v2805, %v3770
      %v3812 = vadd.f32 %v2807, %v3772
      %v3813 = vadd.f32 %v2809, %v3774
      %v3814 = vadd.f32 %v2813, %v3778
      %v3815 = vadd.f32 %v2815, %v3780
      %v3816 = vadd.f32 %v2817, %v3782
      %v3817 = vadd.f32 %v2819, %v3784
      %v3818 = vpack.c.bf16 %v3788, %v3786
      %v3819 = vpack.c.bf16 %v3789, %v3787
      %v3820 = vpack.c.bf16 %v3792, %v3790
      %v3821 = vpack.c.bf16 %v3793, %v3791
      %v3822 = vpack.c.bf16 %v3796, %v3794
      %v3823 = vpack.c.bf16 %v3797, %v3795
      %v3824 = vpack.c.bf16 %v3800, %v3798
      %v3825 = vpack.c.bf16 %v3801, %v3799
      %v3826 = vpack.c.bf16 %v3804, %v3802
      %v3827 = vpack.c.bf16 %v3805, %v3803
      %v3828 = vpack.c.bf16 %v3808, %v3806
      %v3829 = vpack.c.bf16 %v3809, %v3807
      %v3830 = vpack.c.bf16 %v3812, %v3810
      %v3831 = vpack.c.bf16 %v3813, %v3811
      %v3832 = vpack.c.bf16 %v3816, %v3814
      %v3833 = vpack.c.bf16 %v3817, %v3815
      %v3850 = vunpack.c.l.b16 %v3818
      %v3851 = vunpack.c.l.b16 %v3819
      %v3852 = vunpack.c.h.b16 %v3818
      %v3853 = vunpack.c.h.b16 %v3819
      %v3854 = vunpack.c.l.b16 %v3820
      %v3855 = vunpack.c.l.b16 %v3821
      %v3856 = vunpack.c.h.b16 %v3820
      %v3857 = vunpack.c.h.b16 %v3821
      %v3858 = vunpack.c.l.b16 %v3822
      %v3859 = vunpack.c.l.b16 %v3823
      %v3860 = vunpack.c.h.b16 %v3822
      %v3861 = vunpack.c.h.b16 %v3823
      %v3862 = vunpack.c.l.b16 %v3824
      %v3863 = vunpack.c.l.b16 %v3825
      %v3864 = vunpack.c.h.b16 %v3824
      %v3865 = vunpack.c.h.b16 %v3825
      %v3866 = vunpack.c.l.b16 %v3826
      %v3867 = vunpack.c.l.b16 %v3827
      %v3868 = vunpack.c.h.b16 %v3826
      %v3869 = vunpack.c.h.b16 %v3827
      %v3870 = vunpack.c.l.b16 %v3828
      %v3871 = vunpack.c.l.b16 %v3829
      %v3872 = vunpack.c.h.b16 %v3828
      %v3873 = vunpack.c.h.b16 %v3829
      %v3874 = vunpack.c.l.b16 %v3830
      %v3875 = vunpack.c.l.b16 %v3831
      %v3876 = vunpack.c.h.b16 %v3830
      %v3877 = vunpack.c.h.b16 %v3831
      %v3878 = vunpack.c.l.b16 %v3832
      %v3879 = vunpack.c.l.b16 %v3833
      %v3880 = vunpack.c.h.b16 %v3832
      %v3881 = vunpack.c.h.b16 %v3833
      %v3882 = vpack.c.b16 %v3851, %v3850
      %v3883 = vpack.c.b16 %v3853, %v3852
      %v3884 = vpack.c.b16 %v3855, %v3854
      %v3885 = vpack.c.b16 %v3857, %v3856
      %v3886 = vpack.c.b16 %v3859, %v3858
      %v3887 = vpack.c.b16 %v3861, %v3860
      %v3888 = vpack.c.b16 %v3863, %v3862
      %v3889 = vpack.c.b16 %v3865, %v3864
      %v3890 = vpack.c.b16 %v3867, %v3866
      %v3891 = vpack.c.b16 %v3869, %v3868
      %v3892 = vpack.c.b16 %v3871, %v3870
      %v3893 = vpack.c.b16 %v3873, %v3872
      %v3894 = vpack.c.b16 %v3875, %v3874
      %v3895 = vpack.c.b16 %v3877, %v3876
      %v3896 = vpack.c.b16 %v3879, %v3878
      %v3897 = vpack.c.b16 %v3881, %v3880
      %3914 = vst [vmem:[%s498] sm:$0xff] %v3882
      %3915 = vst [vmem:[%s498 + $0x8] sm:$0xff] %v3883
      %3916 = vst [vmem:[%s498 + $0x10] sm:$0xff] %v3884
      %3917 = vst [vmem:[%s498 + $0x18] sm:$0xff] %v3885
      %3918 = vst [vmem:[%s498 + $0x20] sm:$0xff] %v3886
      %3919 = vst [vmem:[%s498 + $0x28] sm:$0xff] %v3887
      %3920 = vst [vmem:[%s498 + $0x30] sm:$0xff] %v3888
      %3921 = vst [vmem:[%s498 + $0x38] sm:$0xff] %v3889
      %3922 = vst [vmem:[%s498 + $0x40] sm:$0xff] %v3890
      %3923 = vst [vmem:[%s498 + $0x48] sm:$0xff] %v3891
      %3924 = vst [vmem:[%s498 + $0x50] sm:$0xff] %v3892
      %3925 = vst [vmem:[%s498 + $0x58] sm:$0xff] %v3893
      %3926 = vst [vmem:[%s498 + $0x60] sm:$0xff] %v3894
      %3927 = vst [vmem:[%s498 + $0x68] sm:$0xff] %v3895
      %3928 = vst [vmem:[%s498 + $0x70] sm:$0xff] %v3896
      %3929 = vst [vmem:[%s498 + $0x78] sm:$0xff] %v3897
      %v3930 = vadd.f32 %v3786, %v3788
      %v3931 = vadd.f32 %v3930, %v3790
      %v3932 = vadd.f32 %v3931, %v3792
      %v3933 = vadd.f32 %v3932, %v3794
      %v3934 = vadd.f32 %v3933, %v3796
      %v3935 = vadd.f32 %v3934, %v3798
      %v3936 = vadd.f32 %v3935, %v3800
      %v3937 = vadd.f32 %v3936, %v3802
      %v3938 = vadd.f32 %v3937, %v3804
      %v3939 = vadd.f32 %v3938, %v3806
      %v3940 = vadd.f32 %v3939, %v3808
      %v3941 = vadd.f32 %v3940, %v3810
      %v3942 = vadd.f32 %v3941, %v3812
      %v3943 = vadd.f32 %v3942, %v3814
      %v3944 = vadd.f32 %v3943, %v3816
      %v3945 = vrot.slane %v3944, 4
      %v3946 = vadd.f32 %v3944, %v3945
      %v3947 = vrot.slane %v3946, 2
      %v3948 = vadd.f32 %v3946, %v3947
      %v3949 = vrot.slane %v3948, 1
      %v3950 = vadd.f32 %v3948, %v3949
      %v3951 = vadd.f32 %v3787, %v3789
      %v3952 = vadd.f32 %v3951, %v3791
      %v3953 = vadd.f32 %v3952, %v3793
      %v3954 = vadd.f32 %v3953, %v3795
      %v3955 = vadd.f32 %v3954, %v3797
      %v3956 = vadd.f32 %v3955, %v3799
      %v3957 = vadd.f32 %v3956, %v3801
      %v3958 = vadd.f32 %v3957, %v3803
      %v3959 = vadd.f32 %v3958, %v3805
      %v3960 = vadd.f32 %v3959, %v3807
      %v3961 = vadd.f32 %v3960, %v3809
      %v3962 = vadd.f32 %v3961, %v3811
      %v3963 = vadd.f32 %v3962, %v3813
      %v3964 = vadd.f32 %v3963, %v3815
      %v3965 = vadd.f32 %v3964, %v3817
      %v3966 = vrot.slane %v3965, 4
      %v3967 = vadd.f32 %v3965, %v3966
      %v3968 = vrot.slane %v3967, 2
      %v3969 = vadd.f32 %v3967, %v3968
      %v3970 = vrot.slane %v3969, 1
      %v3971 = vadd.f32 %v3969, %v3970
      %v3972 = vrcp.pop 128.0
      %v3973 = vmul.f32 %v3950, %v3972
      %v3974 = vmul.f32 %v3971, %v3972
      %v3975 = vsub.f32 %v3786, %v3973
      %v3976 = vsub.f32 %v3787, %v3974
      %v3977 = vsub.f32 %v3788, %v3973
      %v3978 = vsub.f32 %v3789, %v3974
      %v3979 = vsub.f32 %v3790, %v3973
      %v3980 = vsub.f32 %v3791, %v3974
      %v3981 = vsub.f32 %v3792, %v3973
      %v3982 = vsub.f32 %v3793, %v3974
      %v3983 = vsub.f32 %v3794, %v3973
      %v3984 = vsub.f32 %v3795, %v3974
      %v3985 = vsub.f32 %v3796, %v3973
      %v3986 = vsub.f32 %v3797, %v3974
      %v3987 = vsub.f32 %v3798, %v3973
      %v3988 = vsub.f32 %v3799, %v3974
      %v3989 = vsub.f32 %v3800, %v3973
      %v3990 = vsub.f32 %v3801, %v3974
      %v3991 = vsub.f32 %v3802, %v3973
      %v3992 = vsub.f32 %v3803, %v3974
      %v3993 = vsub.f32 %v3804, %v3973
      %v3994 = vsub.f32 %v3805, %v3974
      %v3995 = vsub.f32 %v3806, %v3973
      %v3996 = vsub.f32 %v3807, %v3974
      %v3997 = vsub.f32 %v3808, %v3973
      %v3998 = vsub.f32 %v3809, %v3974
      %v3999 = vsub.f32 %v3810, %v3973
      %v4000 = vsub.f32 %v3811, %v3974
      %v4001 = vsub.f32 %v3812, %v3973
      %v4002 = vsub.f32 %v3813, %v3974
      %v4003 = vsub.f32 %v3814, %v3973
      %v4004 = vsub.f32 %v3815, %v3974
      %v4005 = vsub.f32 %v3816, %v3973
      %v4006 = vsub.f32 %v3817, %v3974
      %v4007 = vmul.f32 %v3975, %v3975
      %v4008 = vmul.f32 %v3976, %v3976
      %v4009 = vmul.f32 %v3977, %v3977
      %v4010 = vmul.f32 %v3978, %v3978
      %v4011 = vmul.f32 %v3979, %v3979
      %v4012 = vmul.f32 %v3980, %v3980
      %v4013 = vmul.f32 %v3981, %v3981
      %v4014 = vmul.f32 %v3982, %v3982
      %v4015 = vmul.f32 %v3983, %v3983
      %v4016 = vmul.f32 %v3984, %v3984
      %v4017 = vmul.f32 %v3985, %v3985
      %v4018 = vmul.f32 %v3986, %v3986
      %v4019 = vmul.f32 %v3987, %v3987
      %v4020 = vmul.f32 %v3988, %v3988
      %v4021 = vmul.f32 %v3989, %v3989
      %v4022 = vmul.f32 %v3990, %v3990
      %v4023 = vmul.f32 %v3991, %v3991
      %v4024 = vmul.f32 %v3992, %v3992
      %v4025 = vmul.f32 %v3993, %v3993
      %v4026 = vmul.f32 %v3994, %v3994
      %v4027 = vmul.f32 %v3995, %v3995
      %v4028 = vmul.f32 %v3996, %v3996
      %v4029 = vmul.f32 %v3997, %v3997
      %v4030 = vmul.f32 %v3998, %v3998
      %v4031 = vmul.f32 %v3999, %v3999
      %v4032 = vmul.f32 %v4000, %v4000
      %v4033 = vmul.f32 %v4001, %v4001
      %v4034 = vmul.f32 %v4002, %v4002
      %v4035 = vmul.f32 %v4003, %v4003
      %v4036 = vmul.f32 %v4004, %v4004
      %v4037 = vmul.f32 %v4005, %v4005
      %v4038 = vmul.f32 %v4006, %v4006
      %v4039 = vadd.f32 %v4007, %v4009
      %v4040 = vadd.f32 %v4039, %v4011
      %v4041 = vadd.f32 %v4040, %v4013
      %v4042 = vadd.f32 %v4041, %v4015
      %v4043 = vadd.f32 %v4042, %v4017
      %v4044 = vadd.f32 %v4043, %v4019
      %v4045 = vadd.f32 %v4044, %v4021
      %v4046 = vadd.f32 %v4045, %v4023
      %v4047 = vadd.f32 %v4046, %v4025
      %v4048 = vadd.f32 %v4047, %v4027
      %v4049 = vadd.f32 %v4048, %v4029
      %v4050 = vadd.f32 %v4049, %v4031
      %v4051 = vadd.f32 %v4050, %v4033
      %v4052 = vadd.f32 %v4051, %v4035
      %v4053 = vadd.f32 %v4052, %v4037
      %v4054 = vrot.slane %v4053, 4
      %v4055 = vadd.f32 %v4053, %v4054
      %v4056 = vrot.slane %v4055, 2
      %v4057 = vadd.f32 %v4055, %v4056
      %v4058 = vrot.slane %v4057, 1
      %v4059 = vadd.f32 %v4057, %v4058
      %v4060 = vadd.f32 %v4008, %v4010
      %v4061 = vadd.f32 %v4060, %v4012
      %v4062 = vadd.f32 %v4061, %v4014
      %v4063 = vadd.f32 %v4062, %v4016
      %v4064 = vadd.f32 %v4063, %v4018
      %v4065 = vadd.f32 %v4064, %v4020
      %v4066 = vadd.f32 %v4065, %v4022
      %v4067 = vadd.f32 %v4066, %v4024
      %v4068 = vadd.f32 %v4067, %v4026
      %v4069 = vadd.f32 %v4068, %v4028
      %v4070 = vadd.f32 %v4069, %v4030
      %v4071 = vadd.f32 %v4070, %v4032
      %v4072 = vadd.f32 %v4071, %v4034
      %v4073 = vadd.f32 %v4072, %v4036
      %v4074 = vadd.f32 %v4073, %v4038
      %v4075 = vrot.slane %v4074, 4
      %v4076 = vadd.f32 %v4074, %v4075
      %v4077 = vrot.slane %v4076, 2
      %v4078 = vadd.f32 %v4076, %v4077
      %v4079 = vrot.slane %v4078, 1
      %v4080 = vadd.f32 %v4078, %v4079
      %p4081 = scmp.eq.s32.totalorder %s25, 0
      // Predicated region
      $region37: #{resnet_forward.3} parent=35 // pred_check
        %p4082 = pneg %p4081
      $region38: #{resnet_forward.3} parent=35 // pred_check_branch
        %4084 = sbr.rel (%p4082) target = $region40
      $region39: #{resnet_forward.3} parent=35 // pred_region
        %v4087 = vcombine.low %v3973, %v3974
        %v4089 = vunpack.c.l.s4 1966171168
        %v4090 = vunpack.c.0.s8 %v4089
        %v4091 = vlaneseq
        %v4092 = vshrl.u32 %v4091, 7
        %v4093 = vsub.s32 %v4090, %v4092
        %v4094 = vrot.slane %v4087, %v4093
        %v4096 = vunpack.c.l.s4 1966171168
        %v4097 = vunpack.c.0.s8 %v4096
        %v4098 = vlaneseq
        %v4099 = vshrl.u32 %v4098, 7
        %v4100 = vsub.s32 %v4097, %v4099
        %v4101 = vrot.slane %v4094, %v4100
        %v4103 = vlaneseq
        %vm4104 = vcmp.ge.s32.totalorder %v4103, 0
        %vm4105 = vcmp.lt.s32.totalorder %v4103, 256
        %vm4106 = vmand %vm4104, %vm4105
        %4107 = vst.msk [vmem:[%s508] sm:$0x3] %vm4106, %v4101
        %v4110 = vcombine.low %v4059, %v4080
        %v4112 = vunpack.c.l.s4 1966171168
        %v4113 = vunpack.c.0.s8 %v4112
        %v4114 = vlaneseq
        %v4115 = vshrl.u32 %v4114, 7
        %v4116 = vsub.s32 %v4113, %v4115
        %v4117 = vrot.slane %v4110, %v4116
        %v4119 = vunpack.c.l.s4 1966171168
        %v4120 = vunpack.c.0.s8 %v4119
        %v4121 = vlaneseq
        %v4122 = vshrl.u32 %v4121, 7
        %v4123 = vsub.s32 %v4120, %v4122
        %v4124 = vrot.slane %v4117, %v4123
        %4126 = vst.msk [vmem:[%s516] sm:$0x3] %vm4106, %v4124
      $region40: #{resnet_forward.3} parent=35 // pred_fallthru
        _
      %p4127 = scmp.gt.s32.totalorder %s25, 0
      // Predicated region
      $region41: #{resnet_forward.3} parent=35 // pred_check
        %p4128 = pneg %p4127
      $region42: #{resnet_forward.3} parent=35 // pred_check_branch
        %4130 = sbr.rel (%p4128) target = $region44
      $region43: #{resnet_forward.3} parent=35 // pred_region
        %s4131 = scvt.s32.f32 %s25
        %s4132 = smul.f32 %s4131, 128.0
        %s4133 = sadd.f32 %s4132, 128.0
        %v4134 = vld [vmem:[%s508] sm:$0x3]
        %v4136 = vlaneseq
        %v4137 = vshrl.u32 %v4136, 7
        %v4138 = vsub.s32 0, %v4137
        %v4139 = vrot.slane %v4134, %v4138
        %v4140 = vlaneseq
        %v4141 = vshrl.u32 %v4140, 7
        %v4142 = vsub.s32 1, %v4141
        %v4143 = vrot.slane %v4134, %v4142
        %v4146 = vsub.f32 %v3973, %v4139
        %v4147 = vsub.f32 %v3974, %v4143
        %v4148 = vstv %s4133
        %v4149 = vrcp.pop %v4148
        %s4150 = vtos %v4149
        %s4151 = smul.f32 128.0, %s4150
        %v4152 = vstv %s4151
        %v4153 = vmul.f32 %v4146, %v4152
        %v4154 = vmul.f32 %v4147, %v4152
        %v4157 = vcombine.low %v4153, %v4154
        %v4159 = vunpack.c.l.s4 1966171168
        %v4160 = vunpack.c.0.s8 %v4159
        %v4161 = vlaneseq
        %v4162 = vshrl.u32 %v4161, 7
        %v4163 = vsub.s32 %v4160, %v4162
        %v4164 = vrot.slane %v4157, %v4163
        %v4166 = vunpack.c.l.s4 1966171168
        %v4167 = vunpack.c.0.s8 %v4166
        %v4168 = vlaneseq
        %v4169 = vshrl.u32 %v4168, 7
        %v4170 = vsub.s32 %v4167, %v4169
        %v4171 = vrot.slane %v4164, %v4170
        %v4173 = vadd.f32 %v4134, %v4171
        %v4174 = vlaneseq
        %vm4175 = vcmp.ge.s32.totalorder %v4174, 0
        %vm4176 = vcmp.lt.s32.totalorder %v4174, 256
        %vm4177 = vmand %vm4175, %vm4176
        %4178 = vst.msk [vmem:[%s508] sm:$0x3] %vm4177, %v4173
        %v4179 = vld [vmem:[%s516] sm:$0x3]
        %v4182 = vcombine.low %v4059, %v4080
        %v4184 = vunpack.c.l.s4 1966171168
        %v4185 = vunpack.c.0.s8 %v4184
        %v4186 = vlaneseq
        %v4187 = vshrl.u32 %v4186, 7
        %v4188 = vsub.s32 %v4185, %v4187
        %v4189 = vrot.slane %v4182, %v4188
        %v4191 = vunpack.c.l.s4 1966171168
        %v4192 = vunpack.c.0.s8 %v4191
        %v4193 = vlaneseq
        %v4194 = vshrl.u32 %v4193, 7
        %v4195 = vsub.s32 %v4192, %v4194
        %v4196 = vrot.slane %v4189, %v4195
        %v4198 = vadd.f32 %v4179, %v4196
        %v4199 = vmul.f32 %v4146, %v4146
        %v4200 = vmul.f32 %v4147, %v4147
        %s4201 = smul.f32 %s4132, 128.0
        %v4202 = vstv %s4133
        %v4203 = vrcp.pop %v4202
        %s4204 = vtos %v4203
        %s4205 = smul.f32 %s4201, %s4204
        %v4206 = vstv %s4205
        %v4207 = vmul.f32 %v4199, %v4206
        %v4208 = vmul.f32 %v4200, %v4206
        %v4211 = vcombine.low %v4207, %v4208
        %v4213 = vunpack.c.l.s4 1966171168
        %v4214 = vunpack.c.0.s8 %v4213
        %v4215 = vlaneseq
        %v4216 = vshrl.u32 %v4215, 7
        %v4217 = vsub.s32 %v4214, %v4216
        %v4218 = vrot.slane %v4211, %v4217
        %v4220 = vunpack.c.l.s4 1966171168
        %v4221 = vunpack.c.0.s8 %v4220
        %v4222 = vlaneseq
        %v4223 = vshrl.u32 %v4222, 7
        %v4224 = vsub.s32 %v4221, %v4223
        %v4225 = vrot.slane %v4218, %v4224
        %v4227 = vadd.f32 %v4198, %v4225
        %4228 = vst.msk [vmem:[%s516] sm:$0x3] %vm4177, %v4227
      $region44: #{resnet_forward.3} parent=35 // pred_fallthru
        _
      %s4229 = sadd.s32 %s24, %s25
      %s4230 = smul.u32 8, %s4229
      %p4231 = scmp.lt.s32.totalorder %s23, 1
      %s4232 = scalar_select %p4231, %s23, 1
      %p4233 = scmp.lt.s32.totalorder %s4230, 15
      %s4234 = scalar_select %p4233, %s4230, 15
      %s4235 = smul.addr %s4234, 4
      %s4236 = smul.addr %s4232, 64
      %s4237 = sadd.s32 %s4235, %s4236
      %s4238 = smul.addr %s4237, 4
      %s4239 = scalar_lea.vmem %s4, %s4238
      %p4240 = scmp.lt.s32.totalorder %s23, 1
      %s4241 = scalar_select %p4240, %s23, 1
      %p4242 = scmp.lt.s32.totalorder %s24, 1
      %s4243 = scalar_select %p4242, %s24, 1
      %s4244 = smul.addr %s4243, 2
      %s4245 = smul.addr %s4241, 4
      %s4246 = sadd.s32 %s4244, %s4245
      %s4247 = scalar_lea.vmem %s5, %s4246
      %p4248 = scmp.lt.s32.totalorder %s23, 1
      %s4249 = scalar_select %p4248, %s23, 1
      %p4250 = scmp.lt.s32.totalorder %s24, 1
      %s4251 = scalar_select %p4250, %s24, 1
      %s4252 = smul.addr %s4251, 2
      %s4253 = smul.addr %s4249, 4
      %s4254 = sadd.s32 %s4252, %s4253
      %s4255 = scalar_lea.vmem %s6, %s4254
      // Predicated region
      $region45: #{resnet_forward.3} parent=35 // pred_check
        %p4256 = pneg %p184
      $region46: #{resnet_forward.3} parent=35 // pred_check_branch
        %4258 = sbr.rel (%p4256) target = $region48
      $region47: #{resnet_forward.3} parent=35 // pred_region
        %s4259 = sadd.s32 %s24, %s25
        %s4260 = smul.u32 8, %s4259
      $region48: #{resnet_forward.3} parent=35 // pred_fallthru
        _
      // Predicated region
      $region49: #{resnet_forward.3} parent=35 // pred_check
        %p4261 = pneg %p212
      $region50: #{resnet_forward.3} parent=35 // pred_check_branch
        %4263 = sbr.rel (%p4261) target = $region52
      $region51: #{resnet_forward.3} parent=35 // pred_region
        _
      $region52: #{resnet_forward.3} parent=35 // pred_fallthru
        _
      // Predicated region
      $region53: #{resnet_forward.3} parent=35 // pred_check
        %p4264 = pneg %p240
      $region54: #{resnet_forward.3} parent=35 // pred_check_branch
        %4266 = sbr.rel (%p4264) target = $region56
      $region55: #{resnet_forward.3} parent=35 // pred_region
        _
      $region56: #{resnet_forward.3} parent=35 // pred_fallthru
        _
    $region36: #{resnet_forward.3} parent=5 // pred_fallthru
      _
    %p4267 = scmp.le.s32.totalorder 2, %s13
    // Predicated region
    $region57: #{resnet_forward.3} parent=5 // pred_check
      %p4268 = pneg %p4267
    $region58: #{resnet_forward.3} parent=5 // pred_check_branch
      %4270 = sbr.rel (%p4268) target = $region60
    $region59: #{resnet_forward.3} parent=5 // pred_region
      %s4271 = ssub.s32 %s13, 2
      // Predicated region
      $region61: #{resnet_forward.3} parent=59 // pred_check
        %p4272 = pneg %p190
      $region62: #{resnet_forward.3} parent=59 // pred_check_branch
        %4274 = sbr.rel (%p4272) target = $region64
      $region63: #{resnet_forward.3} parent=59 // pred_region
        %s4275 = sadd.s32 %s27, %s28
        %s4276 = smul.u32 8, %s4275
        %p4277 = scmp.lt.s32.totalorder %s26, 1
        %s4278 = scalar_select %p4277, %s26, 1
        %p4279 = scmp.lt.s32.totalorder %s4276, 15
        %s4280 = scalar_select %p4279, %s4276, 15
        %s4281 = smul.addr %s4280, 4
        %s4282 = smul.addr %s4278, 64
        %s4283 = sadd.s32 %s4281, %s4282
        %s4284 = smul.addr %s4283, 4
        %s4285 = scalar_lea.vmem %s4, %s4284
      $region64: #{resnet_forward.3} parent=59 // pred_fallthru
        _
      // Predicated region
      $region65: #{resnet_forward.3} parent=59 // pred_check
        %p4286 = pneg %p218
      $region66: #{resnet_forward.3} parent=59 // pred_check_branch
        %4288 = sbr.rel (%p4286) target = $region68
      $region67: #{resnet_forward.3} parent=59 // pred_region
        %p4289 = scmp.lt.s32.totalorder %s26, 1
        %s4290 = scalar_select %p4289, %s26, 1
        %p4291 = scmp.lt.s32.totalorder %s27, 1
        %s4292 = scalar_select %p4291, %s27, 1
        %s4293 = smul.addr %s4292, 2
        %s4294 = smul.addr %s4290, 4
        %s4295 = sadd.s32 %s4293, %s4294
        %s4296 = scalar_lea.vmem %s5, %s4295
      $region68: #{resnet_forward.3} parent=59 // pred_fallthru
        _
      // Predicated region
      $region69: #{resnet_forward.3} parent=59 // pred_check
        %p4297 = pneg %p246
      $region70: #{resnet_forward.3} parent=59 // pred_check_branch
        %4299 = sbr.rel (%p4297) target = $region72
      $region71: #{resnet_forward.3} parent=59 // pred_region
        %p4300 = scmp.lt.s32.totalorder %s26, 1
        %s4301 = scalar_select %p4300, %s26, 1
        %p4302 = scmp.lt.s32.totalorder %s27, 1
        %s4303 = scalar_select %p4302, %s27, 1
        %s4304 = smul.addr %s4303, 2
        %s4305 = smul.addr %s4301, 4
        %s4306 = sadd.s32 %s4304, %s4305
        %s4307 = scalar_lea.vmem %s6, %s4306
      $region72: #{resnet_forward.3} parent=59 // pred_fallthru
        _
    $region60: #{resnet_forward.3} parent=5 // pred_fallthru
      _
  $region6: #{resnet_forward.3} parent=0 // loop_footer
    %s17 = sadd.s32 1, %s13
  $region7: #{resnet_forward.3} parent=0 // loop_footer_branch
    %12 = sbr.rel target = $region3
  $region8: #{resnet_forward.3} parent=0 // loop_exit
    _

// kernel: resnet_forward.4
$region0: #{resnet_forward.4}
  #allocation0 [shape = 'u32[]', space=smem, size = 0x4, offset = 0x4, fixed_abs, tag = 'smem constant byte address 0x4 - core index']
  #allocation1 [shape = 'u32[144,128]{1,0:T(1,128)}', space=vmem, size = 0x12000, scoped, tag = 'internal scratch']
  %s0 = inlined_call_operand.vmem [shape: bf16[2,18,18,256], index: 0, kind: input, shape index: {}, may-alias: {0,1,2}]
  %s1 = inlined_call_operand.vmem [shape: bf16[2,18,18,256], index: 1, kind: input, shape index: {}, may-alias: {0,1,2}]
  %s2 = inlined_call_operand.vmem [shape: bf16[2,18,18,256], index: 2, kind: input, shape index: {}, may-alias: {0,1,2}]
  %s3 = inlined_call_operand.vmem [shape: f32[2,1,256], index: 3, kind: input, shape index: {}]
  %s4 = inlined_call_operand.vmem [shape: f32[2,1,256], index: 4, kind: input, shape index: {}]
  %s5 = inlined_call_operand.vmem [shape: bf16[3,768,256], index: 5, kind: input, shape index: {}]
  %s6 = inlined_call_operand.vmem [shape: bf16[2,16,16,256], index: 6, kind: output, shape index: {0}]
  %s7 = inlined_call_operand.vmem [shape: f32[2,2,1,256], index: 7, kind: output, shape index: {1}]
  %s8 = inlined_call_operand.vmem [shape: f32[2,2,1,256], index: 8, kind: output, shape index: {2}]
  %9 = xla_tuple %s6, %s7, %s8
  %s10 = sld [smem:[#allocation0]]
  $region81: #{resnet_forward.4} parent=0
    _
  %s12 = ssub.s32 1, %s10
  %s13 = scalar_select 0, %s12, %s10
  loop: start=0, step=1, limit=6
  $region2: #{resnet_forward.4} parent=0 // loop_pre_header
    _
  $region3: #{resnet_forward.4} parent=0 // loop_header
    %s15 = sphi 0, %s19
    %p16 = scmp.ge.s32.totalorder %s15, 6
    %s22 = sphi 0, %s41
    %s23 = sphi 0, %s37
    %s24 = sphi 0, %s33
    %s25 = sphi 0, %s22
    %s26 = sphi 0, %s23
    %s27 = sphi 0, %s24
    %s28 = sphi 0, %s25
    %s29 = sphi 0, %s26
    %s30 = sphi 0, %s27
    %s48 = sphi 0, %s50
    %s51 = sphi 0, %s48
    %s52 = sphi 0, %s51
    %s68 = sphi 0, %s52
    %s84 = sphi 0, %s86
    %s87 = sphi 0, %s84
    %s88 = sphi 0, %s87
    %s104 = sphi 0, %s88
    %s122 = sphi 0, %s124
    %s125 = sphi 0, %s122
    %s126 = sphi 0, %s125
    %s142 = sphi 0, %s126
    %s148 = sphi 0, %s150
    %s151 = sphi 0, %s148
    %s152 = sphi 0, %s151
    %s168 = sphi 0, %s152
    %s174 = sphi 0, %s176
    %s177 = sphi 0, %s174
    %s178 = sphi 0, %s177
    %s194 = sphi 0, %s178
    %s198 = sphi 0, %s198
    %s200 = sphi 0, %s198
    %s201 = sphi 0, %s200
    %s215 = sphi 0, %s201
    %s225 = sphi 0, %s227
    %s228 = sphi 0, %s225
    %s229 = sphi 0, %s228
    %s245 = sphi 0, %s229
    %s253 = sphi 0, %s255
    %s256 = sphi 0, %s253
    %s257 = sphi 0, %s256
    %s273 = sphi 0, %s257
    %s281 = sphi 0, %s283
    %s284 = sphi 0, %s281
    %s285 = sphi 0, %s284
    %s301 = sphi 0, %s285
  $region4: #{resnet_forward.4} parent=0 // loop_header_branch
    %18 = sbr.rel (%p16) target = $region8
  $region5: #{resnet_forward.4} parent=0 // loop_body
    %s20 = ssub.s32 %s15, 1
    %s21 = ssub.s32 %s15, 2
    %s31 = sadd.s32 1, %s24
    %p32 = scmp.ge.s32.totalorder %s31, 1
    %s33 = scalar_select %p32, 0, %s31
    %s34 = sadd.s32 1, %s23
    %s35 = scalar_select %p32, %s34, %s23
    %p36 = scmp.ge.s32.totalorder %s35, 2
    %s37 = scalar_select %p36, 0, %s35
    %s38 = sadd.s32 1, %s22
    %s39 = scalar_select %p36, %s38, %s22
    %p40 = scmp.ge.s32.totalorder %s39, 2
    %s41 = scalar_select %p40, 0, %s39
    %s42 = sadd.s32 %s23, %s24
    %s43 = sadd.s32 %s37, %s33
    %s44 = ssub.s32 %s22, %s41
    %s45 = ssub.s32 %s42, %s43
    %s46 = sor.u32 %s44, %s45
    %p47 = scmp.eq.s32.totalorder %s46, 0
    %s49 = sadd.s32 %s48, 1
    %s50 = scalar_select %p47, %s48, %s49
    %p53 = pneg %p47
    %p54 = scmp.eq.s32.totalorder %s15, 3
    %p55 = por %p53, %p54
    %p56 = scmp.ne.s32.totalorder %s48, %s51
    %p57 = scmp.eq.s32.totalorder %s15, 0
    %p58 = por %p56, %p57
    %p59 = scmp.ne.s32.totalorder %s48, %s51
    %p60 = scmp.eq.s32.totalorder %s20, 3
    %p61 = por %p59, %p60
    %p62 = scmp.ne.s32.totalorder %s51, %s52
    %p63 = scmp.eq.s32.totalorder %s20, 0
    %p64 = por %p62, %p63
    %p65 = scmp.ne.s32.totalorder %s51, %s52
    %p66 = scmp.eq.s32.totalorder %s21, 3
    %p67 = por %p65, %p66
    %p69 = scmp.ne.s32.totalorder %s52, %s68
    %p70 = scmp.eq.s32.totalorder %s21, 0
    %p71 = por %p69, %p70
    %s72 = smul.u32 %s23, 8
    %s73 = sadd.s32 %s24, 1
    %s74 = smul.u32 %s73, 8
    %s75 = sadd.s32 %s72, %s74
    %s76 = smul.u32 %s37, 8
    %s77 = sadd.s32 %s33, 1
    %s78 = smul.u32 %s77, 8
    %s79 = sadd.s32 %s76, %s78
    %s80 = ssub.s32 %s22, %s41
    %s81 = ssub.s32 %s75, %s79
    %s82 = sor.u32 %s80, %s81
    %p83 = scmp.eq.s32.totalorder %s82, 0
    %s85 = sadd.s32 %s84, 1
    %s86 = scalar_select %p83, %s84, %s85
    %p89 = pneg %p83
    %p90 = scmp.eq.s32.totalorder %s15, 3
    %p91 = por %p89, %p90
    %p92 = scmp.ne.s32.totalorder %s84, %s87
    %p93 = scmp.eq.s32.totalorder %s15, 0
    %p94 = por %p92, %p93
    %p95 = scmp.ne.s32.totalorder %s84, %s87
    %p96 = scmp.eq.s32.totalorder %s20, 3
    %p97 = por %p95, %p96
    %p98 = scmp.ne.s32.totalorder %s87, %s88
    %p99 = scmp.eq.s32.totalorder %s20, 0
    %p100 = por %p98, %p99
    %p101 = scmp.ne.s32.totalorder %s87, %s88
    %p102 = scmp.eq.s32.totalorder %s21, 3
    %p103 = por %p101, %p102
    %p105 = scmp.ne.s32.totalorder %s88, %s104
    %p106 = scmp.eq.s32.totalorder %s21, 0
    %p107 = por %p105, %p106
    %s108 = smul.u32 %s23, 8
    %s109 = sadd.s32 %s24, 1
    %s110 = smul.u32 %s109, 8
    %s111 = sadd.s32 %s108, %s110
    %s112 = sadd.s32 %s111, 1
    %s113 = smul.u32 %s37, 8
    %s114 = sadd.s32 %s33, 1
    %s115 = smul.u32 %s114, 8
    %s116 = sadd.s32 %s113, %s115
    %s117 = sadd.s32 %s116, 1
    %s118 = ssub.s32 %s22, %s41
    %s119 = ssub.s32 %s112, %s117
    %s120 = sor.u32 %s118, %s119
    %p121 = scmp.eq.s32.totalorder %s120, 0
    %s123 = sadd.s32 %s122, 1
    %s124 = scalar_select %p121, %s122, %s123
    %p127 = pneg %p121
    %p128 = scmp.eq.s32.totalorder %s15, 3
    %p129 = por %p127, %p128
    %p130 = scmp.ne.s32.totalorder %s122, %s125
    %p131 = scmp.eq.s32.totalorder %s15, 0
    %p132 = por %p130, %p131
    %p133 = scmp.ne.s32.totalorder %s122, %s125
    %p134 = scmp.eq.s32.totalorder %s20, 3
    %p135 = por %p133, %p134
    %p136 = scmp.ne.s32.totalorder %s125, %s126
    %p137 = scmp.eq.s32.totalorder %s20, 0
    %p138 = por %p136, %p137
    %p139 = scmp.ne.s32.totalorder %s125, %s126
    %p140 = scmp.eq.s32.totalorder %s21, 3
    %p141 = por %p139, %p140
    %p143 = scmp.ne.s32.totalorder %s126, %s142
    %p144 = scmp.eq.s32.totalorder %s21, 0
    %p145 = por %p143, %p144
    %s146 = ssub.s32 %s22, %s41
    %p147 = scmp.eq.s32.totalorder %s146, 0
    %s149 = sadd.s32 %s148, 1
    %s150 = scalar_select %p147, %s148, %s149
    %p153 = pneg %p147
    %p154 = scmp.eq.s32.totalorder %s15, 3
    %p155 = por %p153, %p154
    %p156 = scmp.ne.s32.totalorder %s148, %s151
    %p157 = scmp.eq.s32.totalorder %s15, 0
    %p158 = por %p156, %p157
    %p159 = scmp.ne.s32.totalorder %s148, %s151
    %p160 = scmp.eq.s32.totalorder %s20, 3
    %p161 = por %p159, %p160
    %p162 = scmp.ne.s32.totalorder %s151, %s152
    %p163 = scmp.eq.s32.totalorder %s20, 0
    %p164 = por %p162, %p163
    %p165 = scmp.ne.s32.totalorder %s151, %s152
    %p166 = scmp.eq.s32.totalorder %s21, 3
    %p167 = por %p165, %p166
    %p169 = scmp.ne.s32.totalorder %s152, %s168
    %p170 = scmp.eq.s32.totalorder %s21, 0
    %p171 = por %p169, %p170
    %s172 = ssub.s32 %s22, %s41
    %p173 = scmp.eq.s32.totalorder %s172, 0
    %s175 = sadd.s32 %s174, 1
    %s176 = scalar_select %p173, %s174, %s175
    %p179 = pneg %p173
    %p180 = scmp.eq.s32.totalorder %s15, 3
    %p181 = por %p179, %p180
    %p182 = scmp.ne.s32.totalorder %s174, %s177
    %p183 = scmp.eq.s32.totalorder %s15, 0
    %p184 = por %p182, %p183
    %p185 = scmp.ne.s32.totalorder %s174, %s177
    %p186 = scmp.eq.s32.totalorder %s20, 3
    %p187 = por %p185, %p186
    %p188 = scmp.ne.s32.totalorder %s177, %s178
    %p189 = scmp.eq.s32.totalorder %s20, 0
    %p190 = por %p188, %p189
    %p191 = scmp.ne.s32.totalorder %s177, %s178
    %p192 = scmp.eq.s32.totalorder %s21, 3
    %p193 = por %p191, %p192
    %p195 = scmp.ne.s32.totalorder %s178, %s194
    %p196 = scmp.eq.s32.totalorder %s21, 0
    %p197 = por %p195, %p196
    %s199 = sadd.s32 %s198, 1
    %p202 = scmp.eq.s32.totalorder %s15, 3
    %p203 = scmp.ne.s32.totalorder %s198, %s200
    %p204 = scmp.eq.s32.totalorder %s15, 0
    %p205 = por %p203, %p204
    %p206 = scmp.ne.s32.totalorder %s198, %s200
    %p207 = scmp.eq.s32.totalorder %s20, 3
    %p208 = por %p206, %p207
    %p209 = scmp.ne.s32.totalorder %s200, %s201
    %p210 = scmp.eq.s32.totalorder %s20, 0
    %p211 = por %p209, %p210
    %p212 = scmp.ne.s32.totalorder %s200, %s201
    %p213 = scmp.eq.s32.totalorder %s21, 3
    %p214 = por %p212, %p213
    %p216 = scmp.ne.s32.totalorder %s201, %s215
    %p217 = scmp.eq.s32.totalorder %s21, 0
    %p218 = por %p216, %p217
    %s219 = sadd.s32 %s23, %s24
    %s220 = sadd.s32 %s37, %s33
    %s221 = ssub.s32 %s22, %s41
    %s222 = ssub.s32 %s219, %s220
    %s223 = sor.u32 %s221, %s222
    %p224 = scmp.eq.s32.totalorder %s223, 0
    %s226 = sadd.s32 %s225, 1
    %s227 = scalar_select %p224, %s225, %s226
    %p230 = pneg %p224
    %p231 = scmp.eq.s32.totalorder %s15, 3
    %p232 = por %p230, %p231
    %p233 = scmp.ne.s32.totalorder %s225, %s228
    %p234 = scmp.eq.s32.totalorder %s15, 0
    %p235 = por %p233, %p234
    %p236 = scmp.ne.s32.totalorder %s225, %s228
    %p237 = scmp.eq.s32.totalorder %s20, 3
    %p238 = por %p236, %p237
    %p239 = scmp.ne.s32.totalorder %s228, %s229
    %p240 = scmp.eq.s32.totalorder %s20, 0
    %p241 = por %p239, %p240
    %p242 = scmp.ne.s32.totalorder %s228, %s229
    %p243 = scmp.eq.s32.totalorder %s21, 3
    %p244 = por %p242, %p243
    %p246 = scmp.ne.s32.totalorder %s229, %s245
    %p247 = scmp.eq.s32.totalorder %s21, 0
    %p248 = por %p246, %p247
    %s249 = ssub.s32 %s22, %s41
    %s250 = ssub.s32 %s23, %s37
    %s251 = sor.u32 %s249, %s250
    %p252 = scmp.eq.s32.totalorder %s251, 0
    %s254 = sadd.s32 %s253, 1
    %s255 = scalar_select %p252, %s253, %s254
    %p258 = pneg %p252
    %p259 = scmp.eq.s32.totalorder %s15, 3
    %p260 = por %p258, %p259
    %p261 = scmp.ne.s32.totalorder %s253, %s256
    %p262 = scmp.eq.s32.totalorder %s15, 0
    %p263 = por %p261, %p262
    %p264 = scmp.ne.s32.totalorder %s253, %s256
    %p265 = scmp.eq.s32.totalorder %s20, 3
    %p266 = por %p264, %p265
    %p267 = scmp.ne.s32.totalorder %s256, %s257
    %p268 = scmp.eq.s32.totalorder %s20, 0
    %p269 = por %p267, %p268
    %p270 = scmp.ne.s32.totalorder %s256, %s257
    %p271 = scmp.eq.s32.totalorder %s21, 3
    %p272 = por %p270, %p271
    %p274 = scmp.ne.s32.totalorder %s257, %s273
    %p275 = scmp.eq.s32.totalorder %s21, 0
    %p276 = por %p274, %p275
    %s277 = ssub.s32 %s22, %s41
    %s278 = ssub.s32 %s23, %s37
    %s279 = sor.u32 %s277, %s278
    %p280 = scmp.eq.s32.totalorder %s279, 0
    %s282 = sadd.s32 %s281, 1
    %s283 = scalar_select %p280, %s281, %s282
    %p286 = pneg %p280
    %p287 = scmp.eq.s32.totalorder %s15, 3
    %p288 = por %p286, %p287
    %p289 = scmp.ne.s32.totalorder %s281, %s284
    %p290 = scmp.eq.s32.totalorder %s15, 0
    %p291 = por %p289, %p290
    %p292 = scmp.ne.s32.totalorder %s281, %s284
    %p293 = scmp.eq.s32.totalorder %s20, 3
    %p294 = por %p292, %p293
    %p295 = scmp.ne.s32.totalorder %s284, %s285
    %p296 = scmp.eq.s32.totalorder %s20, 0
    %p297 = por %p295, %p296
    %p298 = scmp.ne.s32.totalorder %s284, %s285
    %p299 = scmp.eq.s32.totalorder %s21, 3
    %p300 = por %p298, %p299
    %p302 = scmp.ne.s32.totalorder %s285, %s301
    %p303 = scmp.eq.s32.totalorder %s21, 0
    %p304 = por %p302, %p303
    %p305 = scmp.le.s32.totalorder 1, %s15
    %p306 = scmp.lt.s32.totalorder %s15, 5
    %p307 = pnand %p305, %p306
    %p308 = pneg %p307
    // Predicated region
    $region9: #{resnet_forward.4} parent=5 // pred_check
      _
    $region10: #{resnet_forward.4} parent=5 // pred_check_branch
      %310 = sbr.rel (%p307) target = $region12
    $region11: #{resnet_forward.4} parent=5 // pred_region
      %s311 = ssub.s32 %s15, 1
      // Predicated region
      $region13: #{resnet_forward.4} parent=11 // pred_check
        %p312 = pneg %p211
      $region14: #{resnet_forward.4} parent=11 // pred_check_branch
        %314 = sbr.rel (%p312) target = $region16
      $region15: #{resnet_forward.4} parent=11 // pred_region
        _
      $region16: #{resnet_forward.4} parent=11 // pred_fallthru
        _
    $region12: #{resnet_forward.4} parent=5 // pred_fallthru
      _
    %p315 = scmp.lt.s32.totalorder %s15, 4
    // Predicated region
    $region17: #{resnet_forward.4} parent=5 // pred_check
      %p316 = pneg %p315
    $region18: #{resnet_forward.4} parent=5 // pred_check_branch
      %318 = sbr.rel (%p316) target = $region20
    $region19: #{resnet_forward.4} parent=5 // pred_region
      // Predicated region
      $region21: #{resnet_forward.4} parent=19 // pred_check
        %p319 = pneg %p58
      $region22: #{resnet_forward.4} parent=19 // pred_check_branch
        %321 = sbr.rel (%p319) target = $region24
      $region23: #{resnet_forward.4} parent=19 // pred_region
        %s322 = sadd.s32 %s23, %s24
        %s323 = smul.u32 8, %s322
        %s324 = ssub.s32 18, %s323
        %p325 = scmp.lt.s32.totalorder %s324, 8
        %s326 = scalar_select %p325, %s324, 8
        %s327 = smul.u32 64, %s326
        %s328 = smul.u32 %s327, 3
        %s329 = smul.u32 %s328, 2
        %p330 = scmp.lt.s32.totalorder %s22, 1
        %s331 = scalar_select %p330, %s22, 1
        %p332 = scmp.lt.s32.totalorder %s323, 17
        %s333 = scalar_select %p332, %s323, 17
        %s334 = smul.addr %s333, 6
        %s335 = smul.addr %s331, 108
        %s336 = sadd.s32 %s334, %s335
        %s337 = smul.addr %s336, 4
        %s338 = scalar_lea.vmem %s0, %s337
        %s339 = sadd.s32 %s23, %s24
        %s340 = smul.u32 8, %s339
        %s341 = ssub.s32 18, %s340
        %p342 = scmp.lt.s32.totalorder %s341, 8
        %s343 = scalar_select %p342, %s341, 8
        %s344 = smul.u32 64, %s343
        %s345 = smul.u32 %s344, 3
        %s346 = smul.u32 %s345, 2
      $region24: #{resnet_forward.4} parent=19 // pred_fallthru
        _
      // Predicated region
      $region25: #{resnet_forward.4} parent=19 // pred_check
        %p347 = pneg %p94
      $region26: #{resnet_forward.4} parent=19 // pred_check_branch
        %349 = sbr.rel (%p347) target = $region28
      $region27: #{resnet_forward.4} parent=19 // pred_region
        %s350 = smul.u32 %s23, 8
        %s351 = sadd.s32 %s24, 1
        %s352 = smul.u32 %s351, 8
        %s353 = sadd.s32 %s350, %s352
        %p354 = scmp.lt.s32.totalorder %s22, 1
        %s355 = scalar_select %p354, %s22, 1
        %p356 = scmp.lt.s32.totalorder %s353, 17
        %s357 = scalar_select %p356, %s353, 17
        %s358 = smul.addr %s357, 6
        %s359 = smul.addr %s355, 108
        %s360 = sadd.s32 %s358, %s359
        %s361 = smul.addr %s360, 4
        %s362 = scalar_lea.vmem %s1, %s361
        %s363 = smul.u32 %s23, 8
        %s364 = sadd.s32 %s24, 1
        %s365 = smul.u32 %s364, 8
        %s366 = sadd.s32 %s363, %s365
      $region28: #{resnet_forward.4} parent=19 // pred_fallthru
        _
      // Predicated region
      $region29: #{resnet_forward.4} parent=19 // pred_check
        %p367 = pneg %p132
      $region30: #{resnet_forward.4} parent=19 // pred_check_branch
        %369 = sbr.rel (%p367) target = $region32
      $region31: #{resnet_forward.4} parent=19 // pred_region
        %s370 = smul.u32 %s23, 8
        %s371 = sadd.s32 %s24, 1
        %s372 = smul.u32 %s371, 8
        %s373 = sadd.s32 %s370, %s372
        %s374 = sadd.s32 %s373, 1
        %p375 = scmp.lt.s32.totalorder %s22, 1
        %s376 = scalar_select %p375, %s22, 1
        %p377 = scmp.lt.s32.totalorder %s374, 17
        %s378 = scalar_select %p377, %s374, 17
        %s379 = smul.addr %s378, 6
        %s380 = smul.addr %s376, 108
        %s381 = sadd.s32 %s379, %s380
        %s382 = smul.addr %s381, 4
        %s383 = scalar_lea.vmem %s2, %s382
        %s384 = smul.u32 %s23, 8
        %s385 = sadd.s32 %s24, 1
        %s386 = smul.u32 %s385, 8
        %s387 = sadd.s32 %s384, %s386
        %s388 = sadd.s32 %s387, 1
      $region32: #{resnet_forward.4} parent=19 // pred_fallthru
        _
      // Predicated region
      $region33: #{resnet_forward.4} parent=19 // pred_check
        %p389 = pneg %p158
      $region34: #{resnet_forward.4} parent=19 // pred_check_branch
        %391 = sbr.rel (%p389) target = $region36
      $region35: #{resnet_forward.4} parent=19 // pred_region
        %p392 = scmp.lt.s32.totalorder %s22, 1
        %s393 = scalar_select %p392, %s22, 1
        %s394 = smul.addr %s393, 2
        %s395 = scalar_lea.vmem %s3, %s394
      $region36: #{resnet_forward.4} parent=19 // pred_fallthru
        _
      // Predicated region
      $region37: #{resnet_forward.4} parent=19 // pred_check
        %p396 = pneg %p184
      $region38: #{resnet_forward.4} parent=19 // pred_check_branch
        %398 = sbr.rel (%p396) target = $region40
      $region39: #{resnet_forward.4} parent=19 // pred_region
        %p399 = scmp.lt.s32.totalorder %s22, 1
        %s400 = scalar_select %p399, %s22, 1
        %s401 = smul.addr %s400, 2
        %s402 = scalar_lea.vmem %s4, %s401
      $region40: #{resnet_forward.4} parent=19 // pred_fallthru
        _
    $region20: #{resnet_forward.4} parent=5 // pred_fallthru
      _
    %p403 = scmp.le.s32.totalorder 1, %s15
    %p404 = scmp.lt.s32.totalorder %s15, 5
    %p405 = pnand %p403, %p404
    %p406 = pneg %p405
    // Predicated region
    $region41: #{resnet_forward.4} parent=5 // pred_check
      _
    $region42: #{resnet_forward.4} parent=5 // pred_check_branch
      %408 = sbr.rel (%p405) target = $region44
    $region43: #{resnet_forward.4} parent=5 // pred_region
      %s409 = ssub.s32 %s15, 1
      %s410 = sadd.s32 %s26, %s27
      %s411 = smul.u32 8, %s410
      %s412 = ssub.s32 18, %s411
      %p413 = scmp.lt.s32.totalorder %s412, 8
      %s414 = scalar_select %p413, %s412, 8
      %s415 = smul.u32 64, %s414
      %s416 = smul.u32 %s415, 3
      %s417 = smul.u32 %s416, 2
      %p418 = scmp.lt.s32.totalorder %s25, 1
      %s419 = scalar_select %p418, %s25, 1
      %p420 = scmp.lt.s32.totalorder %s411, 17
      %s421 = scalar_select %p420, %s411, 17
      %s422 = smul.addr %s421, 6
      %s423 = smul.addr %s419, 108
      %s424 = sadd.s32 %s422, %s423
      %s425 = smul.addr %s424, 4
      %s426 = scalar_lea.vmem %s0, %s425
      %p427 = pneg %p64
      %p428 = pneg %p61
      %s429 = smul.u32 %s26, 8
      %s430 = sadd.s32 %s27, 1
      %s431 = smul.u32 %s430, 8
      %s432 = sadd.s32 %s429, %s431
      %p433 = scmp.lt.s32.totalorder %s25, 1
      %s434 = scalar_select %p433, %s25, 1
      %p435 = scmp.lt.s32.totalorder %s432, 17
      %s436 = scalar_select %p435, %s432, 17
      %s437 = smul.addr %s436, 6
      %s438 = smul.addr %s434, 108
      %s439 = sadd.s32 %s437, %s438
      %s440 = smul.addr %s439, 4
      %s441 = scalar_lea.vmem %s1, %s440
      %p442 = pneg %p100
      %p443 = pneg %p97
      %s444 = smul.u32 %s26, 8
      %s445 = sadd.s32 %s27, 1
      %s446 = smul.u32 %s445, 8
      %s447 = sadd.s32 %s444, %s446
      %s448 = sadd.s32 %s447, 1
      %p449 = scmp.lt.s32.totalorder %s25, 1
      %s450 = scalar_select %p449, %s25, 1
      %p451 = scmp.lt.s32.totalorder %s448, 17
      %s452 = scalar_select %p451, %s448, 17
      %s453 = smul.addr %s452, 6
      %s454 = smul.addr %s450, 108
      %s455 = sadd.s32 %s453, %s454
      %s456 = smul.addr %s455, 4
      %s457 = scalar_lea.vmem %s2, %s456
      %p458 = pneg %p138
      %p459 = pneg %p135
      %p460 = scmp.lt.s32.totalorder %s25, 1
      %s461 = scalar_select %p460, %s25, 1
      %s462 = smul.addr %s461, 2
      %s463 = scalar_lea.vmem %s3, %s462
      %p464 = pneg %p164
      %p465 = pneg %p161
      %p466 = scmp.lt.s32.totalorder %s25, 1
      %s467 = scalar_select %p466, %s25, 1
      %s468 = smul.addr %s467, 2
      %s469 = scalar_lea.vmem %s4, %s468
      %p470 = pneg %p190
      %p471 = pneg %p187
      %p472 = pneg %p211
      %p473 = pneg %p208
      %p474 = pneg %p241
      %p475 = pneg %p238
      %s476 = sadd.s32 %s26, %s27
      %s477 = smul.u32 8, %s476
      %p478 = scmp.lt.s32.totalorder %s25, 1
      %s479 = scalar_select %p478, %s25, 1
      %p480 = scmp.lt.s32.totalorder %s477, 15
      %s481 = scalar_select %p480, %s477, 15
      %s482 = smul.addr %s481, 4
      %s483 = smul.addr %s479, 64
      %s484 = sadd.s32 %s482, %s483
      %s485 = smul.addr %s484, 4
      %s486 = scalar_lea.vmem %s6, %s485
      %p487 = pneg %p269
      %p488 = pneg %p266
      %p489 = scmp.lt.s32.totalorder %s25, 1
      %s490 = scalar_select %p489, %s25, 1
      %p491 = scmp.lt.s32.totalorder %s26, 1
      %s492 = scalar_select %p491, %s26, 1
      %s493 = smul.addr %s492, 2
      %s494 = smul.addr %s490, 4
      %s495 = sadd.s32 %s493, %s494
      %s496 = scalar_lea.vmem %s7, %s495
      %p497 = pneg %p297
      %p498 = pneg %p294
      %p499 = scmp.lt.s32.totalorder %s25, 1
      %s500 = scalar_select %p499, %s25, 1
      %p501 = scmp.lt.s32.totalorder %s26, 1
      %s502 = scalar_select %p501, %s26, 1
      %s503 = smul.addr %s502, 2
      %s504 = smul.addr %s500, 4
      %s505 = sadd.s32 %s503, %s504
      %s506 = scalar_lea.vmem %s8, %s505
      %s507 = sadd.s32 %s26, %s27
      %s508 = smul.u32 8, %s507
      %s509 = ssub.s32 18, %s508
      %p510 = scmp.lt.s32.totalorder %s509, 8
      %s511 = scalar_select %p510, %s509, 8
      %s512 = smul.u32 64, %s511
      %s513 = smul.u32 %s512, 3
      %s514 = smul.u32 %s513, 2
      %p515 = scmp.lt.s32.totalorder %s25, 1
      %s516 = scalar_select %p515, %s25, 1
      %p517 = scmp.lt.s32.totalorder %s508, 17
      %s518 = scalar_select %p517, %s508, 17
      %s519 = smul.addr %s518, 6
      %s520 = smul.addr %s516, 108
      %s521 = sadd.s32 %s519, %s520
      %s522 = smul.addr %s521, 4
      %s523 = scalar_lea.vmem %s0, %s522
      %s524 = sadd.s32 %s26, %s27
      %s525 = smul.u32 8, %s524
      %s526 = ssub.s32 18, %s525
      %p527 = scmp.lt.s32.totalorder %s526, 8
      %s528 = scalar_select %p527, %s526, 8
      %s529 = smul.u32 64, %s528
      %s530 = smul.u32 %s529, 3
      %s531 = smul.u32 %s530, 2
      %s532 = smul.u32 %s26, 8
      %s533 = sadd.s32 %s27, 1
      %s534 = smul.u32 %s533, 8
      %s535 = sadd.s32 %s532, %s534
      %p536 = scmp.lt.s32.totalorder %s25, 1
      %s537 = scalar_select %p536, %s25, 1
      %p538 = scmp.lt.s32.totalorder %s535, 17
      %s539 = scalar_select %p538, %s535, 17
      %s540 = smul.addr %s539, 6
      %s541 = smul.addr %s537, 108
      %s542 = sadd.s32 %s540, %s541
      %s543 = smul.addr %s542, 4
      %s544 = scalar_lea.vmem %s1, %s543
      %s545 = smul.u32 %s26, 8
      %s546 = sadd.s32 %s27, 1
      %s547 = smul.u32 %s546, 8
      %s548 = sadd.s32 %s545, %s547
      %s549 = smul.u32 %s26, 8
      %s550 = sadd.s32 %s27, 1
      %s551 = smul.u32 %s550, 8
      %s552 = sadd.s32 %s549, %s551
      %s553 = sadd.s32 %s552, 1
      %p554 = scmp.lt.s32.totalorder %s25, 1
      %s555 = scalar_select %p554, %s25, 1
      %p556 = scmp.lt.s32.totalorder %s553, 17
      %s557 = scalar_select %p556, %s553, 17
      %s558 = smul.addr %s557, 6
      %s559 = smul.addr %s555, 108
      %s560 = sadd.s32 %s558, %s559
      %s561 = smul.addr %s560, 4
      %s562 = scalar_lea.vmem %s2, %s561
      %s563 = smul.u32 %s26, 8
      %s564 = sadd.s32 %s27, 1
      %s565 = smul.u32 %s564, 8
      %s566 = sadd.s32 %s563, %s565
      %s567 = sadd.s32 %s566, 1
      %p568 = scmp.lt.s32.totalorder %s25, 1
      %s569 = scalar_select %p568, %s25, 1
      %s570 = smul.addr %s569, 2
      %s571 = scalar_lea.vmem %s3, %s570
      %p572 = scmp.lt.s32.totalorder %s25, 1
      %s573 = scalar_select %p572, %s25, 1
      %s574 = smul.addr %s573, 2
      %s575 = scalar_lea.vmem %s4, %s574
      %s576 = sadd.s32 %s26, %s27
      %s577 = smul.u32 8, %s576
      %p578 = scmp.lt.s32.totalorder %s25, 1
      %s579 = scalar_select %p578, %s25, 1
      %p580 = scmp.lt.s32.totalorder %s577, 15
      %s581 = scalar_select %p580, %s577, 15
      %s582 = smul.addr %s581, 4
      %s583 = smul.addr %s579, 64
      %s584 = sadd.s32 %s582, %s583
      %s585 = smul.addr %s584, 4
      %s586 = scalar_lea.vmem %s6, %s585
      %s587 = sadd.s32 %s26, %s27
      %s588 = smul.u32 8, %s587
      %p589 = scmp.lt.s32.totalorder %s25, 1
      %s590 = scalar_select %p589, %s25, 1
      %p591 = scmp.lt.s32.totalorder %s26, 1
      %s592 = scalar_select %p591, %s26, 1
      %s593 = smul.addr %s592, 2
      %s594 = smul.addr %s590, 4
      %s595 = sadd.s32 %s593, %s594
      %s596 = scalar_lea.vmem %s7, %s595
      %p597 = scmp.lt.s32.totalorder %s25, 1
      %s598 = scalar_select %p597, %s25, 1
      %p599 = scmp.lt.s32.totalorder %s26, 1
      %s600 = scalar_select %p599, %s26, 1
      %s601 = smul.addr %s600, 2
      %s602 = smul.addr %s598, 4
      %s603 = sadd.s32 %s601, %s602
      %s604 = scalar_lea.vmem %s8, %s603
      %v605 = vld [vmem:[%s523] sm:$0xff]
      %v606 = vld [vmem:[%s523 + $0x8] sm:$0xff]
      %v607 = vld [vmem:[%s523 + $0x10] sm:$0x11]
      %v608 = vld [vmem:[%s523 + $0x18] sm:$0xff]
      %v609 = vld [vmem:[%s523 + $0x20] sm:$0xff]
      %v610 = vld [vmem:[%s523 + $0x28] sm:$0x11]
      %v611 = vld [vmem:[%s523 + $0x30] sm:$0xff]
      %v612 = vld [vmem:[%s523 + $0x38] sm:$0xff]
      %v613 = vld [vmem:[%s523 + $0x40] sm:$0x11]
      %v614 = vld [vmem:[%s523 + $0x48] sm:$0xff]
      %v615 = vld [vmem:[%s523 + $0x50] sm:$0xff]
      %v616 = vld [vmem:[%s523 + $0x58] sm:$0x11]
      %v617 = vld [vmem:[%s523 + $0x60] sm:$0xff]
      %v618 = vld [vmem:[%s523 + $0x68] sm:$0xff]
      %v619 = vld [vmem:[%s523 + $0x70] sm:$0x11]
      %v620 = vld [vmem:[%s523 + $0x78] sm:$0xff]
      %v621 = vld [vmem:[%s523 + $0x80] sm:$0xff]
      %v622 = vld [vmem:[%s523 + $0x88] sm:$0x11]
      %v623 = vld [vmem:[%s523 + $0x90] sm:$0xff]
      %v624 = vld [vmem:[%s523 + $0x98] sm:$0xff]
      %v625 = vld [vmem:[%s523 + $0xa0] sm:$0x11]
      %v626 = vld [vmem:[%s523 + $0xa8] sm:$0xff]
      %v627 = vld [vmem:[%s523 + $0xb0] sm:$0xff]
      %v628 = vld [vmem:[%s523 + $0xb8] sm:$0x11]
      %v629 = vld [vmem:[%s544] sm:$0xff]
      %v630 = vld [vmem:[%s544 + $0x8] sm:$0xff]
      %v631 = vld [vmem:[%s544 + $0x10] sm:$0x11]
      %v632 = vld [vmem:[%s562] sm:$0xff]
      %v633 = vld [vmem:[%s562 + $0x8] sm:$0xff]
      %v634 = vld [vmem:[%s562 + $0x10] sm:$0x11]
      %v635 = vunpack.c.l.bf16 %v605
      %v636 = vunpack.c.h.bf16 %v605
      %v637 = vunpack.c.l.bf16 %v606
      %v638 = vunpack.c.h.bf16 %v606
      %v639 = vunpack.c.l.bf16 %v607
      %v640 = vunpack.c.h.bf16 %v607
      %v641 = vunpack.c.l.bf16 %v608
      %v642 = vunpack.c.h.bf16 %v608
      %v643 = vunpack.c.l.bf16 %v609
      %v644 = vunpack.c.h.bf16 %v609
      %v645 = vunpack.c.l.bf16 %v610
      %v646 = vunpack.c.h.bf16 %v610
      %v647 = vunpack.c.l.bf16 %v611
      %v648 = vunpack.c.h.bf16 %v611
      %v649 = vunpack.c.l.bf16 %v612
      %v650 = vunpack.c.h.bf16 %v612
      %v651 = vunpack.c.l.bf16 %v613
      %v652 = vunpack.c.h.bf16 %v613
      %v653 = vunpack.c.l.bf16 %v614
      %v654 = vunpack.c.h.bf16 %v614
      %v655 = vunpack.c.l.bf16 %v615
      %v656 = vunpack.c.h.bf16 %v615
      %v657 = vunpack.c.l.bf16 %v616
      %v658 = vunpack.c.h.bf16 %v616
      %v659 = vunpack.c.l.bf16 %v617
      %v660 = vunpack.c.h.bf16 %v617
      %v661 = vunpack.c.l.bf16 %v618
      %v662 = vunpack.c.h.bf16 %v618
      %v663 = vunpack.c.l.bf16 %v619
      %v664 = vunpack.c.h.bf16 %v619
      %v665 = vunpack.c.l.bf16 %v620
      %v666 = vunpack.c.h.bf16 %v620
      %v667 = vunpack.c.l.bf16 %v621
      %v668 = vunpack.c.h.bf16 %v621
      %v669 = vunpack.c.l.bf16 %v622
      %v670 = vunpack.c.h.bf16 %v622
      %v671 = vunpack.c.l.bf16 %v623
      %v672 = vunpack.c.h.bf16 %v623
      %v673 = vunpack.c.l.bf16 %v624
      %v674 = vunpack.c.h.bf16 %v624
      %v675 = vunpack.c.l.bf16 %v625
      %v676 = vunpack.c.h.bf16 %v625
      %v677 = vunpack.c.l.bf16 %v626
      %v678 = vunpack.c.h.bf16 %v626
      %v679 = vunpack.c.l.bf16 %v627
      %v680 = vunpack.c.h.bf16 %v627
      %v681 = vunpack.c.l.bf16 %v628
      %v682 = vunpack.c.h.bf16 %v628
      %v683 = vunpack.c.l.bf16 %v629
      %v684 = vunpack.c.h.bf16 %v629
      %v685 = vunpack.c.l.bf16 %v630
      %v686 = vunpack.c.h.bf16 %v630
      %v687 = vunpack.c.l.bf16 %v631
      %v688 = vunpack.c.h.bf16 %v631
      %v689 = vunpack.c.l.bf16 %v632
      %v690 = vunpack.c.h.bf16 %v632
      %v691 = vunpack.c.l.bf16 %v633
      %v692 = vunpack.c.h.bf16 %v633
      %v693 = vunpack.c.l.bf16 %v634
      %v694 = vunpack.c.h.bf16 %v634
      %v695 = vld [vmem:[%s571] sm:$0x3]
      %v697 = vlaneseq
      %v698 = vshrl.u32 %v697, 7
      %v699 = vsub.s32 0, %v698
      %v700 = vrot.slane %v695, %v699
      %v701 = vlaneseq
      %v702 = vshrl.u32 %v701, 7
      %v703 = vsub.s32 1, %v702
      %v704 = vrot.slane %v695, %v703
      %v707 = vsub.f32 %v635, %v700
      %v708 = vsub.f32 %v636, %v704
      %v709 = vsub.f32 %v637, %v700
      %v710 = vsub.f32 %v638, %v704
      %v711 = vsub.f32 %v639, %v700
      %v712 = vsub.f32 %v640, %v704
      %v713 = vsub.f32 %v641, %v700
      %v714 = vsub.f32 %v642, %v704
      %v715 = vsub.f32 %v643, %v700
      %v716 = vsub.f32 %v644, %v704
      %v717 = vsub.f32 %v645, %v700
      %v718 = vsub.f32 %v646, %v704
      %v719 = vsub.f32 %v647, %v700
      %v720 = vsub.f32 %v648, %v704
      %v721 = vsub.f32 %v649, %v700
      %v722 = vsub.f32 %v650, %v704
      %v723 = vsub.f32 %v651, %v700
      %v724 = vsub.f32 %v652, %v704
      %v725 = vsub.f32 %v653, %v700
      %v726 = vsub.f32 %v654, %v704
      %v727 = vsub.f32 %v655, %v700
      %v728 = vsub.f32 %v656, %v704
      %v729 = vsub.f32 %v657, %v700
      %v730 = vsub.f32 %v658, %v704
      %v731 = vsub.f32 %v659, %v700
      %v732 = vsub.f32 %v660, %v704
      %v733 = vsub.f32 %v661, %v700
      %v734 = vsub.f32 %v662, %v704
      %v735 = vsub.f32 %v663, %v700
      %v736 = vsub.f32 %v664, %v704
      %v737 = vsub.f32 %v665, %v700
      %v738 = vsub.f32 %v666, %v704
      %v739 = vsub.f32 %v667, %v700
      %v740 = vsub.f32 %v668, %v704
      %v741 = vsub.f32 %v669, %v700
      %v742 = vsub.f32 %v670, %v704
      %v743 = vsub.f32 %v671, %v700
      %v744 = vsub.f32 %v672, %v704
      %v745 = vsub.f32 %v673, %v700
      %v746 = vsub.f32 %v674, %v704
      %v747 = vsub.f32 %v675, %v700
      %v748 = vsub.f32 %v676, %v704
      %v749 = vsub.f32 %v677, %v700
      %v750 = vsub.f32 %v678, %v704
      %v751 = vsub.f32 %v679, %v700
      %v752 = vsub.f32 %v680, %v704
      %v753 = vsub.f32 %v681, %v700
      %v754 = vsub.f32 %v682, %v704
      %v755 = vsub.f32 %v683, %v700
      %v756 = vsub.f32 %v684, %v704
      %v757 = vsub.f32 %v685, %v700
      %v758 = vsub.f32 %v686, %v704
      %v759 = vsub.f32 %v687, %v700
      %v760 = vsub.f32 %v688, %v704
      %v761 = vsub.f32 %v689, %v700
      %v762 = vsub.f32 %v690, %v704
      %v763 = vsub.f32 %v691, %v700
      %v764 = vsub.f32 %v692, %v704
      %v765 = vsub.f32 %v693, %v700
      %v766 = vsub.f32 %v694, %v704
      %v767 = vld [vmem:[%s575] sm:$0x3]
      %v769 = vlaneseq
      %v770 = vshrl.u32 %v769, 7
      %v771 = vsub.s32 0, %v770
      %v772 = vrot.slane %v767, %v771
      %v773 = vlaneseq
      %v774 = vshrl.u32 %v773, 7
      %v775 = vsub.s32 1, %v774
      %v776 = vrot.slane %v767, %v775
      %v779 = vmul.f32 %v707, %v772
      %v780 = vmul.f32 %v708, %v776
      %v781 = vmul.f32 %v709, %v772
      %v782 = vmul.f32 %v710, %v776
      %v783 = vmul.f32 %v711, %v772
      %v784 = vmul.f32 %v712, %v776
      %v785 = vmul.f32 %v713, %v772
      %v786 = vmul.f32 %v714, %v776
      %v787 = vmul.f32 %v715, %v772
      %v788 = vmul.f32 %v716, %v776
      %v789 = vmul.f32 %v717, %v772
      %v790 = vmul.f32 %v718, %v776
      %v791 = vmul.f32 %v719, %v772
      %v792 = vmul.f32 %v720, %v776
      %v793 = vmul.f32 %v721, %v772
      %v794 = vmul.f32 %v722, %v776
      %v795 = vmul.f32 %v723, %v772
      %v796 = vmul.f32 %v724, %v776
      %v797 = vmul.f32 %v725, %v772
      %v798 = vmul.f32 %v726, %v776
      %v799 = vmul.f32 %v727, %v772
      %v800 = vmul.f32 %v728, %v776
      %v801 = vmul.f32 %v729, %v772
      %v802 = vmul.f32 %v730, %v776
      %v803 = vmul.f32 %v731, %v772
      %v804 = vmul.f32 %v732, %v776
      %v805 = vmul.f32 %v733, %v772
      %v806 = vmul.f32 %v734, %v776
      %v807 = vmul.f32 %v735, %v772
      %v808 = vmul.f32 %v736, %v776
      %v809 = vmul.f32 %v737, %v772
      %v810 = vmul.f32 %v738, %v776
      %v811 = vmul.f32 %v739, %v772
      %v812 = vmul.f32 %v740, %v776
      %v813 = vmul.f32 %v741, %v772
      %v814 = vmul.f32 %v742, %v776
      %v815 = vmul.f32 %v743, %v772
      %v816 = vmul.f32 %v744, %v776
      %v817 = vmul.f32 %v745, %v772
      %v818 = vmul.f32 %v746, %v776
      %v819 = vmul.f32 %v747, %v772
      %v820 = vmul.f32 %v748, %v776
      %v821 = vmul.f32 %v749, %v772
      %v822 = vmul.f32 %v750, %v776
      %v823 = vmul.f32 %v751, %v772
      %v824 = vmul.f32 %v752, %v776
      %v825 = vmul.f32 %v753, %v772
      %v826 = vmul.f32 %v754, %v776
      %v827 = vmul.f32 %v755, %v772
      %v828 = vmul.f32 %v756, %v776
      %v829 = vmul.f32 %v757, %v772
      %v830 = vmul.f32 %v758, %v776
      %v831 = vmul.f32 %v759, %v772
      %v832 = vmul.f32 %v760, %v776
      %v833 = vmul.f32 %v761, %v772
      %v834 = vmul.f32 %v762, %v776
      %v835 = vmul.f32 %v763, %v772
      %v836 = vmul.f32 %v764, %v776
      %v837 = vmul.f32 %v765, %v772
      %v838 = vmul.f32 %v766, %v776
      %v839 = vmax.f32 %v779, 0.0
      %v840 = vmax.f32 %v780, 0.0
      %v841 = vmax.f32 %v781, 0.0
      %v842 = vmax.f32 %v782, 0.0
      %v843 = vmax.f32 %v783, 0.0
      %v844 = vmax.f32 %v784, 0.0
      %v845 = vmax.f32 %v785, 0.0
      %v846 = vmax.f32 %v786, 0.0
      %v847 = vmax.f32 %v787, 0.0
      %v848 = vmax.f32 %v788, 0.0
      %v849 = vmax.f32 %v789, 0.0
      %v850 = vmax.f32 %v790, 0.0
      %v851 = vmax.f32 %v791, 0.0
      %v852 = vmax.f32 %v792, 0.0
      %v853 = vmax.f32 %v793, 0.0
      %v854 = vmax.f32 %v794, 0.0
      %v855 = vmax.f32 %v795, 0.0
      %v856 = vmax.f32 %v796, 0.0
      %v857 = vmax.f32 %v797, 0.0
      %v858 = vmax.f32 %v798, 0.0
      %v859 = vmax.f32 %v799, 0.0
      %v860 = vmax.f32 %v800, 0.0
      %v861 = vmax.f32 %v801, 0.0
      %v862 = vmax.f32 %v802, 0.0
      %v863 = vmax.f32 %v803, 0.0
      %v864 = vmax.f32 %v804, 0.0
      %v865 = vmax.f32 %v805, 0.0
      %v866 = vmax.f32 %v806, 0.0
      %v867 = vmax.f32 %v807, 0.0
      %v868 = vmax.f32 %v808, 0.0
      %v869 = vmax.f32 %v809, 0.0
      %v870 = vmax.f32 %v810, 0.0
      %v871 = vmax.f32 %v811, 0.0
      %v872 = vmax.f32 %v812, 0.0
      %v873 = vmax.f32 %v813, 0.0
      %v874 = vmax.f32 %v814, 0.0
      %v875 = vmax.f32 %v815, 0.0
      %v876 = vmax.f32 %v816, 0.0
      %v877 = vmax.f32 %v817, 0.0
      %v878 = vmax.f32 %v818, 0.0
      %v879 = vmax.f32 %v819, 0.0
      %v880 = vmax.f32 %v820, 0.0
      %v881 = vmax.f32 %v821, 0.0
      %v882 = vmax.f32 %v822, 0.0
      %v883 = vmax.f32 %v823, 0.0
      %v884 = vmax.f32 %v824, 0.0
      %v885 = vmax.f32 %v825, 0.0
      %v886 = vmax.f32 %v826, 0.0
      %v887 = vmax.f32 %v827, 0.0
      %v888 = vmax.f32 %v828, 0.0
      %v889 = vmax.f32 %v829, 0.0
      %v890 = vmax.f32 %v830, 0.0
      %v891 = vmax.f32 %v831, 0.0
      %v892 = vmax.f32 %v832, 0.0
      %v893 = vmax.f32 %v833, 0.0
      %v894 = vmax.f32 %v834, 0.0
      %v895 = vmax.f32 %v835, 0.0
      %v896 = vmax.f32 %v836, 0.0
      %v897 = vmax.f32 %v837, 0.0
      %v898 = vmax.f32 %v838, 0.0
      %v899 = vpack.c.bf16 %v841, %v839
      %v900 = vpack.c.bf16 %v842, %v840
      %v901 = vpack.c.bf16 %v843, %v843
      %v902 = vpack.c.bf16 %v844, %v844
      %v903 = vpack.c.bf16 %v847, %v845
      %v904 = vpack.c.bf16 %v848, %v846
      %v905 = vpack.c.bf16 %v849, %v849
      %v906 = vpack.c.bf16 %v850, %v850
      %v907 = vpack.c.bf16 %v853, %v851
      %v908 = vpack.c.bf16 %v854, %v852
      %v909 = vpack.c.bf16 %v855, %v855
      %v910 = vpack.c.bf16 %v856, %v856
      %v911 = vpack.c.bf16 %v859, %v857
      %v912 = vpack.c.bf16 %v860, %v858
      %v913 = vpack.c.bf16 %v861, %v861
      %v914 = vpack.c.bf16 %v862, %v862
      %v915 = vpack.c.bf16 %v865, %v863
      %v916 = vpack.c.bf16 %v866, %v864
      %v917 = vpack.c.bf16 %v867, %v867
      %v918 = vpack.c.bf16 %v868, %v868
      %v919 = vpack.c.bf16 %v871, %v869
      %v920 = vpack.c.bf16 %v872, %v870
      %v921 = vpack.c.bf16 %v873, %v873
      %v922 = vpack.c.bf16 %v874, %v874
      %v923 = vpack.c.bf16 %v877, %v875
      %v924 = vpack.c.bf16 %v878, %v876
      %v925 = vpack.c.bf16 %v879, %v879
      %v926 = vpack.c.bf16 %v880, %v880
      %v927 = vpack.c.bf16 %v883, %v881
      %v928 = vpack.c.bf16 %v884, %v882
      %v929 = vpack.c.bf16 %v885, %v885
      %v930 = vpack.c.bf16 %v886, %v886
      %v931 = vpack.c.bf16 %v889, %v887
      %v932 = vpack.c.bf16 %v890, %v888
      %v933 = vpack.c.bf16 %v891, %v891
      %v934 = vpack.c.bf16 %v892, %v892
      %v935 = vpack.c.bf16 %v895, %v893
      %v936 = vpack.c.bf16 %v896, %v894
      %v937 = vpack.c.bf16 %v897, %v897
      %v938 = vpack.c.bf16 %v898, %v898
      %vm939 = vsmask.f32 7424
      %v941 = vshrl.u32 %v899, 16
      %v943 = vshll.u32 %v899, 16
      %v945 = vrot.slane %v943, 1
      %v946 = vor.u32 %v941, %v945
      %v948 = vshll.u32 %v901, 16
      %v950 = vrot.slane %v948, 1
      %v951 = vsel %vm939, %v946, %v950
      %v953 = vshrl.u32 %v900, 16
      %v955 = vshll.u32 %v900, 16
      %v957 = vrot.slane %v955, 1
      %v958 = vor.u32 %v953, %v957
      %v960 = vshll.u32 %v902, 16
      %v962 = vrot.slane %v960, 1
      %v963 = vsel %vm939, %v958, %v962
      %v965 = vshrl.u32 %v903, 16
      %v967 = vshll.u32 %v903, 16
      %v969 = vrot.slane %v967, 1
      %v970 = vor.u32 %v965, %v969
      %v972 = vshll.u32 %v905, 16
      %v974 = vrot.slane %v972, 1
      %v975 = vsel %vm939, %v970, %v974
      %v977 = vshrl.u32 %v904, 16
      %v979 = vshll.u32 %v904, 16
      %v981 = vrot.slane %v979, 1
      %v982 = vor.u32 %v977, %v981
      %v984 = vshll.u32 %v906, 16
      %v986 = vrot.slane %v984, 1
      %v987 = vsel %vm939, %v982, %v986
      %v989 = vshrl.u32 %v907, 16
      %v991 = vshll.u32 %v907, 16
      %v993 = vrot.slane %v991, 1
      %v994 = vor.u32 %v989, %v993
      %v996 = vshll.u32 %v909, 16
      %v998 = vrot.slane %v996, 1
      %v999 = vsel %vm939, %v994, %v998
      %v1001 = vshrl.u32 %v908, 16
      %v1003 = vshll.u32 %v908, 16
      %v1005 = vrot.slane %v1003, 1
      %v1006 = vor.u32 %v1001, %v1005
      %v1008 = vshll.u32 %v910, 16
      %v1010 = vrot.slane %v1008, 1
      %v1011 = vsel %vm939, %v1006, %v1010
      %v1013 = vshrl.u32 %v911, 16
      %v1015 = vshll.u32 %v911, 16
      %v1017 = vrot.slane %v1015, 1
      %v1018 = vor.u32 %v1013, %v1017
      %v1020 = vshll.u32 %v913, 16
      %v1022 = vrot.slane %v1020, 1
      %v1023 = vsel %vm939, %v1018, %v1022
      %v1025 = vshrl.u32 %v912, 16
      %v1027 = vshll.u32 %v912, 16
      %v1029 = vrot.slane %v1027, 1
      %v1030 = vor.u32 %v1025, %v1029
      %v1032 = vshll.u32 %v914, 16
      %v1034 = vrot.slane %v1032, 1
      %v1035 = vsel %vm939, %v1030, %v1034
      %v1037 = vshrl.u32 %v915, 16
      %v1039 = vshll.u32 %v915, 16
      %v1041 = vrot.slane %v1039, 1
      %v1042 = vor.u32 %v1037, %v1041
      %v1044 = vshll.u32 %v917, 16
      %v1046 = vrot.slane %v1044, 1
      %v1047 = vsel %vm939, %v1042, %v1046
      %v1049 = vshrl.u32 %v916, 16
      %v1051 = vshll.u32 %v916, 16
      %v1053 = vrot.slane %v1051, 1
      %v1054 = vor.u32 %v1049, %v1053
      %v1056 = vshll.u32 %v918, 16
      %v1058 = vrot.slane %v1056, 1
      %v1059 = vsel %vm939, %v1054, %v1058
      %v1061 = vshrl.u32 %v919, 16
      %v1063 = vshll.u32 %v919, 16
      %v1065 = vrot.slane %v1063, 1
      %v1066 = vor.u32 %v1061, %v1065
      %v1068 = vshll.u32 %v921, 16
      %v1070 = vrot.slane %v1068, 1
      %v1071 = vsel %vm939, %v1066, %v1070
      %v1073 = vshrl.u32 %v920, 16
      %v1075 = vshll.u32 %v920, 16
      %v1077 = vrot.slane %v1075, 1
      %v1078 = vor.u32 %v1073, %v1077
      %v1080 = vshll.u32 %v922, 16
      %v1082 = vrot.slane %v1080, 1
      %v1083 = vsel %vm939, %v1078, %v1082
      %v1085 = vshrl.u32 %v923, 16
      %v1087 = vshll.u32 %v923, 16
      %v1089 = vrot.slane %v1087, 1
      %v1090 = vor.u32 %v1085, %v1089
      %v1092 = vshll.u32 %v925, 16
      %v1094 = vrot.slane %v1092, 1
      %v1095 = vsel %vm939, %v1090, %v1094
      %v1097 = vshrl.u32 %v924, 16
      %v1099 = vshll.u32 %v924, 16
      %v1101 = vrot.slane %v1099, 1
      %v1102 = vor.u32 %v1097, %v1101
      %v1104 = vshll.u32 %v926, 16
      %v1106 = vrot.slane %v1104, 1
      %v1107 = vsel %vm939, %v1102, %v1106
      %v1109 = vshrl.u32 %v927, 16
      %v1111 = vshll.u32 %v927, 16
      %v1113 = vrot.slane %v1111, 1
      %v1114 = vor.u32 %v1109, %v1113
      %v1116 = vshll.u32 %v929, 16
      %v1118 = vrot.slane %v1116, 1
      %v1119 = vsel %vm939, %v1114, %v1118
      %v1121 = vshrl.u32 %v928, 16
      %v1123 = vshll.u32 %v928, 16
      %v1125 = vrot.slane %v1123, 1
      %v1126 = vor.u32 %v1121, %v1125
      %v1128 = vshll.u32 %v930, 16
      %v1130 = vrot.slane %v1128, 1
      %v1131 = vsel %vm939, %v1126, %v1130
      %vm1180 = vcmask 1046528
      %v1181 = vrot.slane %v899, 1
      %v1182 = vrot.slane %v901, 1
      %v1183 = vsel %vm1180, %v1181, %v1182
      %v1184 = vrot.slane %v900, 1
      %v1185 = vrot.slane %v902, 1
      %v1186 = vsel %vm1180, %v1184, %v1185
      %v1187 = vrot.slane %v903, 1
      %v1188 = vrot.slane %v905, 1
      %v1189 = vsel %vm1180, %v1187, %v1188
      %v1190 = vrot.slane %v904, 1
      %v1191 = vrot.slane %v906, 1
      %v1192 = vsel %vm1180, %v1190, %v1191
      %v1193 = vrot.slane %v907, 1
      %v1194 = vrot.slane %v909, 1
      %v1195 = vsel %vm1180, %v1193, %v1194
      %v1196 = vrot.slane %v908, 1
      %v1197 = vrot.slane %v910, 1
      %v1198 = vsel %vm1180, %v1196, %v1197
      %v1199 = vrot.slane %v911, 1
      %v1200 = vrot.slane %v913, 1
      %v1201 = vsel %vm1180, %v1199, %v1200
      %v1202 = vrot.slane %v912, 1
      %v1203 = vrot.slane %v914, 1
      %v1204 = vsel %vm1180, %v1202, %v1203
      %v1205 = vrot.slane %v915, 1
      %v1206 = vrot.slane %v917, 1
      %v1207 = vsel %vm1180, %v1205, %v1206
      %v1208 = vrot.slane %v916, 1
      %v1209 = vrot.slane %v918, 1
      %v1210 = vsel %vm1180, %v1208, %v1209
      %v1211 = vrot.slane %v919, 1
      %v1212 = vrot.slane %v921, 1
      %v1213 = vsel %vm1180, %v1211, %v1212
      %v1214 = vrot.slane %v920, 1
      %v1215 = vrot.slane %v922, 1
      %v1216 = vsel %vm1180, %v1214, %v1215
      %v1217 = vrot.slane %v923, 1
      %v1218 = vrot.slane %v925, 1
      %v1219 = vsel %vm1180, %v1217, %v1218
      %v1220 = vrot.slane %v924, 1
      %v1221 = vrot.slane %v926, 1
      %v1222 = vsel %vm1180, %v1220, %v1221
      %v1223 = vrot.slane %v927, 1
      %v1224 = vrot.slane %v929, 1
      %v1225 = vsel %vm1180, %v1223, %v1224
      %v1226 = vrot.slane %v928, 1
      %v1227 = vrot.slane %v930, 1
      %v1228 = vsel %vm1180, %v1226, %v1227
      %v1245 = vld [vmem:[%s5] sm:$0xff]
      %v1246 = vld [vmem:[%s5 + $0x8] sm:$0xff]
      %v1247 = vld [vmem:[%s5 + $0x10] sm:$0xff]
      %v1248 = vld [vmem:[%s5 + $0x18] sm:$0xff]
      %v1249 = vld [vmem:[%s5 + $0x20] sm:$0xff]
      %v1250 = vld [vmem:[%s5 + $0x28] sm:$0xff]
      %v1251 = vld [vmem:[%s5 + $0x30] sm:$0xff]
      %v1252 = vld [vmem:[%s5 + $0x38] sm:$0xff]
      %v1253 = vld [vmem:[%s5 + $0x40] sm:$0xff]
      %v1254 = vld [vmem:[%s5 + $0x48] sm:$0xff]
      %v1255 = vld [vmem:[%s5 + $0x50] sm:$0xff]
      %v1256 = vld [vmem:[%s5 + $0x58] sm:$0xff]
      %v1257 = vld [vmem:[%s5 + $0x60] sm:$0xff]
      %v1258 = vld [vmem:[%s5 + $0x68] sm:$0xff]
      %v1259 = vld [vmem:[%s5 + $0x70] sm:$0xff]
      %v1260 = vld [vmem:[%s5 + $0x78] sm:$0xff]
      %v1261 = vld [vmem:[%s5 + $0x80] sm:$0xff]
      %v1262 = vld [vmem:[%s5 + $0x88] sm:$0xff]
      %v1263 = vld [vmem:[%s5 + $0x90] sm:$0xff]
      %v1264 = vld [vmem:[%s5 + $0x98] sm:$0xff]
      %v1265 = vld [vmem:[%s5 + $0xa0] sm:$0xff]
      %v1266 = vld [vmem:[%s5 + $0xa8] sm:$0xff]
      %v1267 = vld [vmem:[%s5 + $0xb0] sm:$0xff]
      %v1268 = vld [vmem:[%s5 + $0xb8] sm:$0xff]
      %v1269 = vld [vmem:[%s5 + $0xc0] sm:$0xff]
      %v1270 = vld [vmem:[%s5 + $0xc8] sm:$0xff]
      %v1271 = vld [vmem:[%s5 + $0xd0] sm:$0xff]
      %v1272 = vld [vmem:[%s5 + $0xd8] sm:$0xff]
      %v1273 = vld [vmem:[%s5 + $0xe0] sm:$0xff]
      %v1274 = vld [vmem:[%s5 + $0xe8] sm:$0xff]
      %v1275 = vld [vmem:[%s5 + $0xf0] sm:$0xff]
      %v1276 = vld [vmem:[%s5 + $0xf8] sm:$0xff]
      %v1277 = vld [vmem:[%s5 + $0x100] sm:$0xff]
      %v1278 = vld [vmem:[%s5 + $0x108] sm:$0xff]
      %v1279 = vld [vmem:[%s5 + $0x110] sm:$0xff]
      %v1280 = vld [vmem:[%s5 + $0x118] sm:$0xff]
      %v1281 = vld [vmem:[%s5 + $0x120] sm:$0xff]
      %v1282 = vld [vmem:[%s5 + $0x128] sm:$0xff]
      %v1283 = vld [vmem:[%s5 + $0x130] sm:$0xff]
      %v1284 = vld [vmem:[%s5 + $0x138] sm:$0xff]
      %v1285 = vld [vmem:[%s5 + $0x140] sm:$0xff]
      %v1286 = vld [vmem:[%s5 + $0x148] sm:$0xff]
      %v1287 = vld [vmem:[%s5 + $0x150] sm:$0xff]
      %v1288 = vld [vmem:[%s5 + $0x158] sm:$0xff]
      %v1289 = vld [vmem:[%s5 + $0x160] sm:$0xff]
      %v1290 = vld [vmem:[%s5 + $0x168] sm:$0xff]
      %v1291 = vld [vmem:[%s5 + $0x170] sm:$0xff]
      %v1292 = vld [vmem:[%s5 + $0x178] sm:$0xff]
      %v1293 = vld [vmem:[%s5 + $0x180] sm:$0xff]
      %v1294 = vld [vmem:[%s5 + $0x188] sm:$0xff]
      %v1295 = vld [vmem:[%s5 + $0x190] sm:$0xff]
      %v1296 = vld [vmem:[%s5 + $0x198] sm:$0xff]
      %v1297 = vld [vmem:[%s5 + $0x1a0] sm:$0xff]
      %v1298 = vld [vmem:[%s5 + $0x1a8] sm:$0xff]
      %v1299 = vld [vmem:[%s5 + $0x1b0] sm:$0xff]
      %v1300 = vld [vmem:[%s5 + $0x1b8] sm:$0xff]
      %v1301 = vld [vmem:[%s5 + $0x1c0] sm:$0xff]
      %v1302 = vld [vmem:[%s5 + $0x1c8] sm:$0xff]
      %v1303 = vld [vmem:[%s5 + $0x1d0] sm:$0xff]
      %v1304 = vld [vmem:[%s5 + $0x1d8] sm:$0xff]
      %v1305 = vld [vmem:[%s5 + $0x1e0] sm:$0xff]
      %v1306 = vld [vmem:[%s5 + $0x1e8] sm:$0xff]
      %v1307 = vld [vmem:[%s5 + $0x1f0] sm:$0xff]
      %v1308 = vld [vmem:[%s5 + $0x1f8] sm:$0xff]
      %v1309 = vld [vmem:[%s5 + $0x200] sm:$0xff]
      %v1310 = vld [vmem:[%s5 + $0x208] sm:$0xff]
      %v1311 = vld [vmem:[%s5 + $0x210] sm:$0xff]
      %v1312 = vld [vmem:[%s5 + $0x218] sm:$0xff]
      %v1313 = vld [vmem:[%s5 + $0x220] sm:$0xff]
      %v1314 = vld [vmem:[%s5 + $0x228] sm:$0xff]
      %v1315 = vld [vmem:[%s5 + $0x230] sm:$0xff]
      %v1316 = vld [vmem:[%s5 + $0x238] sm:$0xff]
      %v1317 = vld [vmem:[%s5 + $0x240] sm:$0xff]
      %v1318 = vld [vmem:[%s5 + $0x248] sm:$0xff]
      %v1319 = vld [vmem:[%s5 + $0x250] sm:$0xff]
      %v1320 = vld [vmem:[%s5 + $0x258] sm:$0xff]
      %v1321 = vld [vmem:[%s5 + $0x260] sm:$0xff]
      %v1322 = vld [vmem:[%s5 + $0x268] sm:$0xff]
      %v1323 = vld [vmem:[%s5 + $0x270] sm:$0xff]
      %v1324 = vld [vmem:[%s5 + $0x278] sm:$0xff]
      %v1325 = vld [vmem:[%s5 + $0x280] sm:$0xff]
      %v1326 = vld [vmem:[%s5 + $0x288] sm:$0xff]
      %v1327 = vld [vmem:[%s5 + $0x290] sm:$0xff]
      %v1328 = vld [vmem:[%s5 + $0x298] sm:$0xff]
      %v1329 = vld [vmem:[%s5 + $0x2a0] sm:$0xff]
      %v1330 = vld [vmem:[%s5 + $0x2a8] sm:$0xff]
      %v1331 = vld [vmem:[%s5 + $0x2b0] sm:$0xff]
      %v1332 = vld [vmem:[%s5 + $0x2b8] sm:$0xff]
      %v1333 = vld [vmem:[%s5 + $0x2c0] sm:$0xff]
      %v1334 = vld [vmem:[%s5 + $0x2c8] sm:$0xff]
      %v1335 = vld [vmem:[%s5 + $0x2d0] sm:$0xff]
      %v1336 = vld [vmem:[%s5 + $0x2d8] sm:$0xff]
      %v1337 = vld [vmem:[%s5 + $0x2e0] sm:$0xff]
      %v1338 = vld [vmem:[%s5 + $0x2e8] sm:$0xff]
      %v1339 = vld [vmem:[%s5 + $0x2f0] sm:$0xff]
      %v1340 = vld [vmem:[%s5 + $0x2f8] sm:$0xff]
      %v1342 = vshrl.u32 %v931, 16
      %v1344 = vshll.u32 %v931, 16
      %v1346 = vrot.slane %v1344, 1
      %v1347 = vor.u32 %v1342, %v1346
      %v1349 = vshll.u32 %v933, 16
      %v1351 = vrot.slane %v1349, 1
      %v1352 = vsel %vm939, %v1347, %v1351
      %v1354 = vshrl.u32 %v932, 16
      %v1356 = vshll.u32 %v932, 16
      %v1358 = vrot.slane %v1356, 1
      %v1359 = vor.u32 %v1354, %v1358
      %v1361 = vshll.u32 %v934, 16
      %v1363 = vrot.slane %v1361, 1
      %v1364 = vsel %vm939, %v1359, %v1363
      %v1371 = vrot.slane %v931, 1
      %v1372 = vrot.slane %v933, 1
      %v1373 = vsel %vm1180, %v1371, %v1372
      %v1374 = vrot.slane %v932, 1
      %v1375 = vrot.slane %v934, 1
      %v1376 = vsel %vm1180, %v1374, %v1375
      %s1379 = scalar_lea.vmem %s5, 768
      %v1380 = vld [vmem:[%s1379] sm:$0xff]
      %v1381 = vld [vmem:[%s1379 + $0x8] sm:$0xff]
      %v1382 = vld [vmem:[%s1379 + $0x10] sm:$0xff]
      %v1383 = vld [vmem:[%s1379 + $0x18] sm:$0xff]
      %v1384 = vld [vmem:[%s1379 + $0x20] sm:$0xff]
      %v1385 = vld [vmem:[%s1379 + $0x28] sm:$0xff]
      %v1386 = vld [vmem:[%s1379 + $0x30] sm:$0xff]
      %v1387 = vld [vmem:[%s1379 + $0x38] sm:$0xff]
      %v1388 = vld [vmem:[%s1379 + $0x40] sm:$0xff]
      %v1389 = vld [vmem:[%s1379 + $0x48] sm:$0xff]
      %v1390 = vld [vmem:[%s1379 + $0x50] sm:$0xff]
      %v1391 = vld [vmem:[%s1379 + $0x58] sm:$0xff]
      %v1392 = vld [vmem:[%s1379 + $0x60] sm:$0xff]
      %v1393 = vld [vmem:[%s1379 + $0x68] sm:$0xff]
      %v1394 = vld [vmem:[%s1379 + $0x70] sm:$0xff]
      %v1395 = vld [vmem:[%s1379 + $0x78] sm:$0xff]
      %v1396 = vld [vmem:[%s1379 + $0x80] sm:$0xff]
      %v1397 = vld [vmem:[%s1379 + $0x88] sm:$0xff]
      %v1398 = vld [vmem:[%s1379 + $0x90] sm:$0xff]
      %v1399 = vld [vmem:[%s1379 + $0x98] sm:$0xff]
      %v1400 = vld [vmem:[%s1379 + $0xa0] sm:$0xff]
      %v1401 = vld [vmem:[%s1379 + $0xa8] sm:$0xff]
      %v1402 = vld [vmem:[%s1379 + $0xb0] sm:$0xff]
      %v1403 = vld [vmem:[%s1379 + $0xb8] sm:$0xff]
      %v1404 = vld [vmem:[%s1379 + $0xc0] sm:$0xff]
      %v1405 = vld [vmem:[%s1379 + $0xc8] sm:$0xff]
      %v1406 = vld [vmem:[%s1379 + $0xd0] sm:$0xff]
      %v1407 = vld [vmem:[%s1379 + $0xd8] sm:$0xff]
      %v1408 = vld [vmem:[%s1379 + $0xe0] sm:$0xff]
      %v1409 = vld [vmem:[%s1379 + $0xe8] sm:$0xff]
      %v1410 = vld [vmem:[%s1379 + $0xf0] sm:$0xff]
      %v1411 = vld [vmem:[%s1379 + $0xf8] sm:$0xff]
      %v1412 = vld [vmem:[%s1379 + $0x100] sm:$0xff]
      %v1413 = vld [vmem:[%s1379 + $0x108] sm:$0xff]
      %v1414 = vld [vmem:[%s1379 + $0x110] sm:$0xff]
      %v1415 = vld [vmem:[%s1379 + $0x118] sm:$0xff]
      %v1416 = vld [vmem:[%s1379 + $0x120] sm:$0xff]
      %v1417 = vld [vmem:[%s1379 + $0x128] sm:$0xff]
      %v1418 = vld [vmem:[%s1379 + $0x130] sm:$0xff]
      %v1419 = vld [vmem:[%s1379 + $0x138] sm:$0xff]
      %v1420 = vld [vmem:[%s1379 + $0x140] sm:$0xff]
      %v1421 = vld [vmem:[%s1379 + $0x148] sm:$0xff]
      %v1422 = vld [vmem:[%s1379 + $0x150] sm:$0xff]
      %v1423 = vld [vmem:[%s1379 + $0x158] sm:$0xff]
      %v1424 = vld [vmem:[%s1379 + $0x160] sm:$0xff]
      %v1425 = vld [vmem:[%s1379 + $0x168] sm:$0xff]
      %v1426 = vld [vmem:[%s1379 + $0x170] sm:$0xff]
      %v1427 = vld [vmem:[%s1379 + $0x178] sm:$0xff]
      %v1428 = vld [vmem:[%s1379 + $0x180] sm:$0xff]
      %v1429 = vld [vmem:[%s1379 + $0x188] sm:$0xff]
      %v1430 = vld [vmem:[%s1379 + $0x190] sm:$0xff]
      %v1431 = vld [vmem:[%s1379 + $0x198] sm:$0xff]
      %v1432 = vld [vmem:[%s1379 + $0x1a0] sm:$0xff]
      %v1433 = vld [vmem:[%s1379 + $0x1a8] sm:$0xff]
      %v1434 = vld [vmem:[%s1379 + $0x1b0] sm:$0xff]
      %v1435 = vld [vmem:[%s1379 + $0x1b8] sm:$0xff]
      %v1436 = vld [vmem:[%s1379 + $0x1c0] sm:$0xff]
      %v1437 = vld [vmem:[%s1379 + $0x1c8] sm:$0xff]
      %v1438 = vld [vmem:[%s1379 + $0x1d0] sm:$0xff]
      %v1439 = vld [vmem:[%s1379 + $0x1d8] sm:$0xff]
      %v1440 = vld [vmem:[%s1379 + $0x1e0] sm:$0xff]
      %v1441 = vld [vmem:[%s1379 + $0x1e8] sm:$0xff]
      %v1442 = vld [vmem:[%s1379 + $0x1f0] sm:$0xff]
      %v1443 = vld [vmem:[%s1379 + $0x1f8] sm:$0xff]
      %v1444 = vld [vmem:[%s1379 + $0x200] sm:$0xff]
      %v1445 = vld [vmem:[%s1379 + $0x208] sm:$0xff]
      %v1446 = vld [vmem:[%s1379 + $0x210] sm:$0xff]
      %v1447 = vld [vmem:[%s1379 + $0x218] sm:$0xff]
      %v1448 = vld [vmem:[%s1379 + $0x220] sm:$0xff]
      %v1449 = vld [vmem:[%s1379 + $0x228] sm:$0xff]
      %v1450 = vld [vmem:[%s1379 + $0x230] sm:$0xff]
      %v1451 = vld [vmem:[%s1379 + $0x238] sm:$0xff]
      %v1452 = vld [vmem:[%s1379 + $0x240] sm:$0xff]
      %v1453 = vld [vmem:[%s1379 + $0x248] sm:$0xff]
      %v1454 = vld [vmem:[%s1379 + $0x250] sm:$0xff]
      %v1455 = vld [vmem:[%s1379 + $0x258] sm:$0xff]
      %v1456 = vld [vmem:[%s1379 + $0x260] sm:$0xff]
      %v1457 = vld [vmem:[%s1379 + $0x268] sm:$0xff]
      %v1458 = vld [vmem:[%s1379 + $0x270] sm:$0xff]
      %v1459 = vld [vmem:[%s1379 + $0x278] sm:$0xff]
      %v1460 = vld [vmem:[%s1379 + $0x280] sm:$0xff]
      %v1461 = vld [vmem:[%s1379 + $0x288] sm:$0xff]
      %v1462 = vld [vmem:[%s1379 + $0x290] sm:$0xff]
      %v1463 = vld [vmem:[%s1379 + $0x298] sm:$0xff]
      %v1464 = vld [vmem:[%s1379 + $0x2a0] sm:$0xff]
      %v1465 = vld [vmem:[%s1379 + $0x2a8] sm:$0xff]
      %v1466 = vld [vmem:[%s1379 + $0x2b0] sm:$0xff]
      %v1467 = vld [vmem:[%s1379 + $0x2b8] sm:$0xff]
      %v1468 = vld [vmem:[%s1379 + $0x2c0] sm:$0xff]
      %v1469 = vld [vmem:[%s1379 + $0x2c8] sm:$0xff]
      %v1470 = vld [vmem:[%s1379 + $0x2d0] sm:$0xff]
      %v1471 = vld [vmem:[%s1379 + $0x2d8] sm:$0xff]
      %v1472 = vld [vmem:[%s1379 + $0x2e0] sm:$0xff]
      %v1473 = vld [vmem:[%s1379 + $0x2e8] sm:$0xff]
      %v1474 = vld [vmem:[%s1379 + $0x2f0] sm:$0xff]
      %v1475 = vld [vmem:[%s1379 + $0x2f8] sm:$0xff]
      %v1572 = vunpack.c.l.b16 %v1380
      %v1573 = vunpack.c.h.b16 %v1380
      %v1574 = vunpack.c.l.b16 %v1381
      %v1575 = vunpack.c.h.b16 %v1381
      %v1576 = vunpack.c.l.b16 %v1382
      %v1577 = vunpack.c.h.b16 %v1382
      %v1578 = vunpack.c.l.b16 %v1383
      %v1579 = vunpack.c.h.b16 %v1383
      %v1580 = vunpack.c.l.b16 %v1384
      %v1581 = vunpack.c.h.b16 %v1384
      %v1582 = vunpack.c.l.b16 %v1385
      %v1583 = vunpack.c.h.b16 %v1385
      %v1584 = vunpack.c.l.b16 %v1386
      %v1585 = vunpack.c.h.b16 %v1386
      %v1586 = vunpack.c.l.b16 %v1387
      %v1587 = vunpack.c.h.b16 %v1387
      %v1588 = vunpack.c.l.b16 %v1388
      %v1589 = vunpack.c.h.b16 %v1388
      %v1590 = vunpack.c.l.b16 %v1389
      %v1591 = vunpack.c.h.b16 %v1389
      %v1592 = vunpack.c.l.b16 %v1390
      %v1593 = vunpack.c.h.b16 %v1390
      %v1594 = vunpack.c.l.b16 %v1391
      %v1595 = vunpack.c.h.b16 %v1391
      %v1596 = vunpack.c.l.b16 %v1392
      %v1597 = vunpack.c.h.b16 %v1392
      %v1598 = vunpack.c.l.b16 %v1393
      %v1599 = vunpack.c.h.b16 %v1393
      %v1600 = vunpack.c.l.b16 %v1394
      %v1601 = vunpack.c.h.b16 %v1394
      %v1602 = vunpack.c.l.b16 %v1395
      %v1603 = vunpack.c.h.b16 %v1395
      %v1604 = vunpack.c.l.b16 %v1396
      %v1605 = vunpack.c.h.b16 %v1396
      %v1606 = vunpack.c.l.b16 %v1397
      %v1607 = vunpack.c.h.b16 %v1397
      %v1608 = vunpack.c.l.b16 %v1398
      %v1609 = vunpack.c.h.b16 %v1398
      %v1610 = vunpack.c.l.b16 %v1399
      %v1611 = vunpack.c.h.b16 %v1399
      %v1612 = vunpack.c.l.b16 %v1400
      %v1613 = vunpack.c.h.b16 %v1400
      %v1614 = vunpack.c.l.b16 %v1401
      %v1615 = vunpack.c.h.b16 %v1401
      %v1616 = vunpack.c.l.b16 %v1402
      %v1617 = vunpack.c.h.b16 %v1402
      %v1618 = vunpack.c.l.b16 %v1403
      %v1619 = vunpack.c.h.b16 %v1403
      %v1620 = vunpack.c.l.b16 %v1404
      %v1621 = vunpack.c.h.b16 %v1404
      %v1622 = vunpack.c.l.b16 %v1405
      %v1623 = vunpack.c.h.b16 %v1405
      %v1624 = vunpack.c.l.b16 %v1406
      %v1625 = vunpack.c.h.b16 %v1406
      %v1626 = vunpack.c.l.b16 %v1407
      %v1627 = vunpack.c.h.b16 %v1407
      %v1628 = vunpack.c.l.b16 %v1408
      %v1629 = vunpack.c.h.b16 %v1408
      %v1630 = vunpack.c.l.b16 %v1409
      %v1631 = vunpack.c.h.b16 %v1409
      %v1632 = vunpack.c.l.b16 %v1410
      %v1633 = vunpack.c.h.b16 %v1410
      %v1634 = vunpack.c.l.b16 %v1411
      %v1635 = vunpack.c.h.b16 %v1411
      %v1636 = vunpack.c.l.b16 %v1412
      %v1637 = vunpack.c.h.b16 %v1412
      %v1638 = vunpack.c.l.b16 %v1413
      %v1639 = vunpack.c.h.b16 %v1413
      %v1640 = vunpack.c.l.b16 %v1414
      %v1641 = vunpack.c.h.b16 %v1414
      %v1642 = vunpack.c.l.b16 %v1415
      %v1643 = vunpack.c.h.b16 %v1415
      %v1644 = vunpack.c.l.b16 %v1416
      %v1645 = vunpack.c.h.b16 %v1416
      %v1646 = vunpack.c.l.b16 %v1417
      %v1647 = vunpack.c.h.b16 %v1417
      %v1648 = vunpack.c.l.b16 %v1418
      %v1649 = vunpack.c.h.b16 %v1418
      %v1650 = vunpack.c.l.b16 %v1419
      %v1651 = vunpack.c.h.b16 %v1419
      %v1652 = vunpack.c.l.b16 %v1420
      %v1653 = vunpack.c.h.b16 %v1420
      %v1654 = vunpack.c.l.b16 %v1421
      %v1655 = vunpack.c.h.b16 %v1421
      %v1656 = vunpack.c.l.b16 %v1422
      %v1657 = vunpack.c.h.b16 %v1422
      %v1658 = vunpack.c.l.b16 %v1423
      %v1659 = vunpack.c.h.b16 %v1423
      %v1660 = vunpack.c.l.b16 %v1424
      %v1661 = vunpack.c.h.b16 %v1424
      %v1662 = vunpack.c.l.b16 %v1425
      %v1663 = vunpack.c.h.b16 %v1425
      %v1664 = vunpack.c.l.b16 %v1426
      %v1665 = vunpack.c.h.b16 %v1426
      %v1666 = vunpack.c.l.b16 %v1427
      %v1667 = vunpack.c.h.b16 %v1427
      %v1668 = vunpack.c.l.b16 %v1428
      %v1669 = vunpack.c.h.b16 %v1428
      %v1670 = vunpack.c.l.b16 %v1429
      %v1671 = vunpack.c.h.b16 %v1429
      %v1672 = vunpack.c.l.b16 %v1430
      %v1673 = vunpack.c.h.b16 %v1430
      %v1674 = vunpack.c.l.b16 %v1431
      %v1675 = vunpack.c.h.b16 %v1431
      %v1676 = vunpack.c.l.b16 %v1432
      %v1677 = vunpack.c.h.b16 %v1432
      %v1678 = vunpack.c.l.b16 %v1433
      %v1679 = vunpack.c.h.b16 %v1433
      %v1680 = vunpack.c.l.b16 %v1434
      %v1681 = vunpack.c.h.b16 %v1434
      %v1682 = vunpack.c.l.b16 %v1435
      %v1683 = vunpack.c.h.b16 %v1435
      %v1684 = vunpack.c.l.b16 %v1436
      %v1685 = vunpack.c.h.b16 %v1436
      %v1686 = vunpack.c.l.b16 %v1437
      %v1687 = vunpack.c.h.b16 %v1437
      %v1688 = vunpack.c.l.b16 %v1438
      %v1689 = vunpack.c.h.b16 %v1438
      %v1690 = vunpack.c.l.b16 %v1439
      %v1691 = vunpack.c.h.b16 %v1439
      %v1692 = vunpack.c.l.b16 %v1440
      %v1693 = vunpack.c.h.b16 %v1440
      %v1694 = vunpack.c.l.b16 %v1441
      %v1695 = vunpack.c.h.b16 %v1441
      %v1696 = vunpack.c.l.b16 %v1442
      %v1697 = vunpack.c.h.b16 %v1442
      %v1698 = vunpack.c.l.b16 %v1443
      %v1699 = vunpack.c.h.b16 %v1443
      %v1700 = vunpack.c.l.b16 %v1444
      %v1701 = vunpack.c.h.b16 %v1444
      %v1702 = vunpack.c.l.b16 %v1445
      %v1703 = vunpack.c.h.b16 %v1445
      %v1704 = vunpack.c.l.b16 %v1446
      %v1705 = vunpack.c.h.b16 %v1446
      %v1706 = vunpack.c.l.b16 %v1447
      %v1707 = vunpack.c.h.b16 %v1447
      %v1708 = vunpack.c.l.b16 %v1448
      %v1709 = vunpack.c.h.b16 %v1448
      %v1710 = vunpack.c.l.b16 %v1449
      %v1711 = vunpack.c.h.b16 %v1449
      %v1712 = vunpack.c.l.b16 %v1450
      %v1713 = vunpack.c.h.b16 %v1450
      %v1714 = vunpack.c.l.b16 %v1451
      %v1715 = vunpack.c.h.b16 %v1451
      %v1716 = vunpack.c.l.b16 %v1452
      %v1717 = vunpack.c.h.b16 %v1452
      %v1718 = vunpack.c.l.b16 %v1453
      %v1719 = vunpack.c.h.b16 %v1453
      %v1720 = vunpack.c.l.b16 %v1454
      %v1721 = vunpack.c.h.b16 %v1454
      %v1722 = vunpack.c.l.b16 %v1455
      %v1723 = vunpack.c.h.b16 %v1455
      %v1724 = vunpack.c.l.b16 %v1456
      %v1725 = vunpack.c.h.b16 %v1456
      %v1726 = vunpack.c.l.b16 %v1457
      %v1727 = vunpack.c.h.b16 %v1457
      %v1728 = vunpack.c.l.b16 %v1458
      %v1729 = vunpack.c.h.b16 %v1458
      %v1730 = vunpack.c.l.b16 %v1459
      %v1731 = vunpack.c.h.b16 %v1459
      %v1732 = vunpack.c.l.b16 %v1460
      %v1733 = vunpack.c.h.b16 %v1460
      %v1734 = vunpack.c.l.b16 %v1461
      %v1735 = vunpack.c.h.b16 %v1461
      %v1736 = vunpack.c.l.b16 %v1462
      %v1737 = vunpack.c.h.b16 %v1462
      %v1738 = vunpack.c.l.b16 %v1463
      %v1739 = vunpack.c.h.b16 %v1463
      %v1740 = vunpack.c.l.b16 %v1464
      %v1741 = vunpack.c.h.b16 %v1464
      %v1742 = vunpack.c.l.b16 %v1465
      %v1743 = vunpack.c.h.b16 %v1465
      %v1744 = vunpack.c.l.b16 %v1466
      %v1745 = vunpack.c.h.b16 %v1466
      %v1746 = vunpack.c.l.b16 %v1467
      %v1747 = vunpack.c.h.b16 %v1467
      %v1748 = vunpack.c.l.b16 %v1468
      %v1749 = vunpack.c.h.b16 %v1468
      %v1750 = vunpack.c.l.b16 %v1469
      %v1751 = vunpack.c.h.b16 %v1469
      %v1752 = vunpack.c.l.b16 %v1470
      %v1753 = vunpack.c.h.b16 %v1470
      %v1754 = vunpack.c.l.b16 %v1471
      %v1755 = vunpack.c.h.b16 %v1471
      %v1756 = vunpack.c.l.b16 %v1472
      %v1757 = vunpack.c.h.b16 %v1472
      %v1758 = vunpack.c.l.b16 %v1473
      %v1759 = vunpack.c.h.b16 %v1473
      %v1760 = vunpack.c.l.b16 %v1474
      %v1761 = vunpack.c.h.b16 %v1474
      %v1762 = vunpack.c.l.b16 %v1475
      %v1763 = vunpack.c.h.b16 %v1475
      %v1764 = vpack.c.b16 %v1574, %v1572
      %v1765 = vpack.c.b16 %v1575, %v1573
      %v1766 = vpack.c.b16 %v1578, %v1576
      %v1767 = vpack.c.b16 %v1579, %v1577
      %v1768 = vpack.c.b16 %v1582, %v1580
      %v1769 = vpack.c.b16 %v1583, %v1581
      %v1770 = vpack.c.b16 %v1586, %v1584
      %v1771 = vpack.c.b16 %v1587, %v1585
      %v1772 = vpack.c.b16 %v1590, %v1588
      %v1773 = vpack.c.b16 %v1591, %v1589
      %v1774 = vpack.c.b16 %v1594, %v1592
      %v1775 = vpack.c.b16 %v1595, %v1593
      %v1776 = vpack.c.b16 %v1598, %v1596
      %v1777 = vpack.c.b16 %v1599, %v1597
      %v1778 = vpack.c.b16 %v1602, %v1600
      %v1779 = vpack.c.b16 %v1603, %v1601
      %v1780 = vpack.c.b16 %v1606, %v1604
      %v1781 = vpack.c.b16 %v1607, %v1605
      %v1782 = vpack.c.b16 %v1610, %v1608
      %v1783 = vpack.c.b16 %v1611, %v1609
      %v1784 = vpack.c.b16 %v1614, %v1612
      %v1785 = vpack.c.b16 %v1615, %v1613
      %v1786 = vpack.c.b16 %v1618, %v1616
      %v1787 = vpack.c.b16 %v1619, %v1617
      %v1788 = vpack.c.b16 %v1622, %v1620
      %v1789 = vpack.c.b16 %v1623, %v1621
      %v1790 = vpack.c.b16 %v1626, %v1624
      %v1791 = vpack.c.b16 %v1627, %v1625
      %v1792 = vpack.c.b16 %v1630, %v1628
      %v1793 = vpack.c.b16 %v1631, %v1629
      %v1794 = vpack.c.b16 %v1634, %v1632
      %v1795 = vpack.c.b16 %v1635, %v1633
      %v1796 = vpack.c.b16 %v1638, %v1636
      %v1797 = vpack.c.b16 %v1639, %v1637
      %v1798 = vpack.c.b16 %v1642, %v1640
      %v1799 = vpack.c.b16 %v1643, %v1641
      %v1800 = vpack.c.b16 %v1646, %v1644
      %v1801 = vpack.c.b16 %v1647, %v1645
      %v1802 = vpack.c.b16 %v1650, %v1648
      %v1803 = vpack.c.b16 %v1651, %v1649
      %v1804 = vpack.c.b16 %v1654, %v1652
      %v1805 = vpack.c.b16 %v1655, %v1653
      %v1806 = vpack.c.b16 %v1658, %v1656
      %v1807 = vpack.c.b16 %v1659, %v1657
      %v1808 = vpack.c.b16 %v1662, %v1660
      %v1809 = vpack.c.b16 %v1663, %v1661
      %v1810 = vpack.c.b16 %v1666, %v1664
      %v1811 = vpack.c.b16 %v1667, %v1665
      %v1812 = vpack.c.b16 %v1670, %v1668
      %v1813 = vpack.c.b16 %v1671, %v1669
      %v1814 = vpack.c.b16 %v1674, %v1672
      %v1815 = vpack.c.b16 %v1675, %v1673
      %v1816 = vpack.c.b16 %v1678, %v1676
      %v1817 = vpack.c.b16 %v1679, %v1677
      %v1818 = vpack.c.b16 %v1682, %v1680
      %v1819 = vpack.c.b16 %v1683, %v1681
      %v1820 = vpack.c.b16 %v1686, %v1684
      %v1821 = vpack.c.b16 %v1687, %v1685
      %v1822 = vpack.c.b16 %v1690, %v1688
      %v1823 = vpack.c.b16 %v1691, %v1689
      %v1824 = vpack.c.b16 %v1694, %v1692
      %v1825 = vpack.c.b16 %v1695, %v1693
      %v1826 = vpack.c.b16 %v1698, %v1696
      %v1827 = vpack.c.b16 %v1699, %v1697
      %v1828 = vpack.c.b16 %v1702, %v1700
      %v1829 = vpack.c.b16 %v1703, %v1701
      %v1830 = vpack.c.b16 %v1706, %v1704
      %v1831 = vpack.c.b16 %v1707, %v1705
      %v1832 = vpack.c.b16 %v1710, %v1708
      %v1833 = vpack.c.b16 %v1711, %v1709
      %v1834 = vpack.c.b16 %v1714, %v1712
      %v1835 = vpack.c.b16 %v1715, %v1713
      %v1836 = vpack.c.b16 %v1718, %v1716
      %v1837 = vpack.c.b16 %v1719, %v1717
      %v1838 = vpack.c.b16 %v1722, %v1720
      %v1839 = vpack.c.b16 %v1723, %v1721
      %v1840 = vpack.c.b16 %v1726, %v1724
      %v1841 = vpack.c.b16 %v1727, %v1725
      %v1842 = vpack.c.b16 %v1730, %v1728
      %v1843 = vpack.c.b16 %v1731, %v1729
      %v1844 = vpack.c.b16 %v1734, %v1732
      %v1845 = vpack.c.b16 %v1735, %v1733
      %v1846 = vpack.c.b16 %v1738, %v1736
      %v1847 = vpack.c.b16 %v1739, %v1737
      %v1848 = vpack.c.b16 %v1742, %v1740
      %v1849 = vpack.c.b16 %v1743, %v1741
      %v1850 = vpack.c.b16 %v1746, %v1744
      %v1851 = vpack.c.b16 %v1747, %v1745
      %v1852 = vpack.c.b16 %v1750, %v1748
      %v1853 = vpack.c.b16 %v1751, %v1749
      %v1854 = vpack.c.b16 %v1754, %v1752
      %v1855 = vpack.c.b16 %v1755, %v1753
      %v1856 = vpack.c.b16 %v1758, %v1756
      %v1857 = vpack.c.b16 %v1759, %v1757
      %v1858 = vpack.c.b16 %v1762, %v1760
      %v1859 = vpack.c.b16 %v1763, %v1761
      %1956 = vmatprep.subr.bf16.mxu0 %v1779
      %1957 = vmatpush1.bf16.msra.mxu0 %v1778
      %1958 = vmatprep.subr.bf16.mxu0 %v1777
      %1959 = vmatpush1.bf16.msra.mxu0 %v1776
      %1960 = vmatprep.subr.bf16.mxu0 %v1775
      %1961 = vmatpush1.bf16.msra.mxu0 %v1774
      %1962 = vmatprep.subr.bf16.mxu0 %v1773
      %1963 = vmatpush1.bf16.msra.mxu0 %v1772
      %1964 = vmatprep.subr.bf16.mxu0 %v1771
      %1965 = vmatpush1.bf16.msra.mxu0 %v1770
      %1966 = vmatprep.subr.bf16.mxu0 %v1769
      %1967 = vmatpush1.bf16.msra.mxu0 %v1768
      %1968 = vmatprep.subr.bf16.mxu0 %v1767
      %1969 = vmatpush1.bf16.msra.mxu0 %v1766
      %1970 = vmatprep.subr.bf16.mxu0 %v1765
      %1971 = vmatpush1.bf16.msra.mxu0 %v1764
      %1972 = vmatprep.subr.bf16.mxu0 %v1795
      %1973 = vmatpush2.bf16.msra.mxu0 %v1794
      %1974 = vmatprep.subr.bf16.mxu0 %v1793
      %1975 = vmatpush2.bf16.msra.mxu0 %v1792
      %1976 = vmatprep.subr.bf16.mxu0 %v1791
      %1977 = vmatpush2.bf16.msra.mxu0 %v1790
      %1978 = vmatprep.subr.bf16.mxu0 %v1789
      %1979 = vmatpush2.bf16.msra.mxu0 %v1788
      %1980 = vmatprep.subr.bf16.mxu0 %v1787
      %1981 = vmatpush2.bf16.msra.mxu0 %v1786
      %1982 = vmatprep.subr.bf16.mxu0 %v1785
      %1983 = vmatpush2.bf16.msra.mxu0 %v1784
      %1984 = vmatprep.subr.bf16.mxu0 %v1783
      %1985 = vmatpush2.bf16.msra.mxu0 %v1782
      %1986 = vmatprep.subr.bf16.mxu0 %v1781
      %1987 = vmatpush2.bf16.msra.mxu0 %v1780
      %1988 = vmatprep.mubr.bf16.mxu0 %v904
      %1989 = vmatmul.mubr.bf16.gmra.mxu0 %v903
      %v1990 = vpop.f32.mrf.mxu0
      %v1991 = vadd.f32 0.0, %v1990
      %v1992 = vpop.f32.mrf.mxu0
      %v1993 = vadd.f32 0.0, %v1992
      %v1994 = vpop.f32.mrf.mxu0
      %v1995 = vadd.f32 0.0, %v1994
      %v1996 = vpop.f32.mrf.mxu0
      %v1997 = vadd.f32 0.0, %v1996
      %1998 = vmatprep.mubr.bf16.mxu0 %v908
      %1999 = vmatmul.mubr.bf16.gmra.mxu0 %v907
      %v2000 = vpop.f32.mrf.mxu0
      %v2001 = vadd.f32 0.0, %v2000
      %v2002 = vpop.f32.mrf.mxu0
      %v2003 = vadd.f32 0.0, %v2002
      %v2004 = vpop.f32.mrf.mxu0
      %v2005 = vadd.f32 0.0, %v2004
      %v2006 = vpop.f32.mrf.mxu0
      %v2007 = vadd.f32 0.0, %v2006
      %2008 = vmatprep.mubr.bf16.mxu0 %v912
      %2009 = vmatmul.mubr.bf16.gmra.mxu0 %v911
      %v2010 = vpop.f32.mrf.mxu0
      %v2011 = vadd.f32 0.0, %v2010
      %v2012 = vpop.f32.mrf.mxu0
      %v2013 = vadd.f32 0.0, %v2012
      %v2014 = vpop.f32.mrf.mxu0
      %v2015 = vadd.f32 0.0, %v2014
      %v2016 = vpop.f32.mrf.mxu0
      %v2017 = vadd.f32 0.0, %v2016
      %2018 = vmatprep.mubr.bf16.mxu0 %v916
      %2019 = vmatmul.mubr.bf16.gmra.mxu0 %v915
      %v2020 = vpop.f32.mrf.mxu0
      %v2021 = vadd.f32 0.0, %v2020
      %v2022 = vpop.f32.mrf.mxu0
      %v2023 = vadd.f32 0.0, %v2022
      %v2024 = vpop.f32.mrf.mxu0
      %v2025 = vadd.f32 0.0, %v2024
      %v2026 = vpop.f32.mrf.mxu0
      %v2027 = vadd.f32 0.0, %v2026
      %2028 = vmatprep.mubr.bf16.mxu0 %v920
      %2029 = vmatmul.mubr.bf16.gmra.mxu0 %v919
      %v2030 = vpop.f32.mrf.mxu0
      %v2031 = vadd.f32 0.0, %v2030
      %v2032 = vpop.f32.mrf.mxu0
      %v2033 = vadd.f32 0.0, %v2032
      %v2034 = vpop.f32.mrf.mxu0
      %v2035 = vadd.f32 0.0, %v2034
      %v2036 = vpop.f32.mrf.mxu0
      %v2037 = vadd.f32 0.0, %v2036
      %2038 = vmatprep.mubr.bf16.mxu0 %v924
      %2039 = vmatmul.mubr.bf16.gmra.mxu0 %v923
      %v2040 = vpop.f32.mrf.mxu0
      %v2041 = vadd.f32 0.0, %v2040
      %v2042 = vpop.f32.mrf.mxu0
      %v2043 = vadd.f32 0.0, %v2042
      %v2044 = vpop.f32.mrf.mxu0
      %v2045 = vadd.f32 0.0, %v2044
      %v2046 = vpop.f32.mrf.mxu0
      %v2047 = vadd.f32 0.0, %v2046
      %2048 = vmatprep.mubr.bf16.mxu0 %v928
      %2049 = vmatmul.mubr.bf16.gmra.mxu0 %v927
      %v2050 = vpop.f32.mrf.mxu0
      %v2051 = vadd.f32 0.0, %v2050
      %v2052 = vpop.f32.mrf.mxu0
      %v2053 = vadd.f32 0.0, %v2052
      %v2054 = vpop.f32.mrf.mxu0
      %v2055 = vadd.f32 0.0, %v2054
      %v2056 = vpop.f32.mrf.mxu0
      %v2057 = vadd.f32 0.0, %v2056
      %2058 = vmatprep.mubr.bf16.mxu0 %v932
      %2059 = vmatmul.mubr.bf16.gmra.mxu0 %v931
      %v2060 = vpop.f32.mrf.mxu0
      %v2061 = vadd.f32 0.0, %v2060
      %v2062 = vpop.f32.mrf.mxu0
      %v2063 = vadd.f32 0.0, %v2062
      %v2064 = vpop.f32.mrf.mxu0
      %v2065 = vadd.f32 0.0, %v2064
      %v2066 = vpop.f32.mrf.mxu0
      %v2067 = vadd.f32 0.0, %v2066
      %2068 = vdwg.mxu0
      %2069 = vmatprep.subr.bf16.mxu0 %v1811
      %2070 = vmatpush1.bf16.msra.mxu0 %v1810
      %2071 = vmatprep.subr.bf16.mxu0 %v1809
      %2072 = vmatpush1.bf16.msra.mxu0 %v1808
      %2073 = vmatprep.subr.bf16.mxu0 %v1807
      %2074 = vmatpush1.bf16.msra.mxu0 %v1806
      %2075 = vmatprep.subr.bf16.mxu0 %v1805
      %2076 = vmatpush1.bf16.msra.mxu0 %v1804
      %2077 = vmatprep.subr.bf16.mxu0 %v1803
      %2078 = vmatpush1.bf16.msra.mxu0 %v1802
      %2079 = vmatprep.subr.bf16.mxu0 %v1801
      %2080 = vmatpush1.bf16.msra.mxu0 %v1800
      %2081 = vmatprep.subr.bf16.mxu0 %v1799
      %2082 = vmatpush1.bf16.msra.mxu0 %v1798
      %2083 = vmatprep.subr.bf16.mxu0 %v1797
      %2084 = vmatpush1.bf16.msra.mxu0 %v1796
      %2085 = vmatprep.subr.bf16.mxu0 %v1827
      %2086 = vmatpush2.bf16.msra.mxu0 %v1826
      %2087 = vmatprep.subr.bf16.mxu0 %v1825
      %2088 = vmatpush2.bf16.msra.mxu0 %v1824
      %2089 = vmatprep.subr.bf16.mxu0 %v1823
      %2090 = vmatpush2.bf16.msra.mxu0 %v1822
      %2091 = vmatprep.subr.bf16.mxu0 %v1821
      %2092 = vmatpush2.bf16.msra.mxu0 %v1820
      %2093 = vmatprep.subr.bf16.mxu0 %v1819
      %2094 = vmatpush2.bf16.msra.mxu0 %v1818
      %2095 = vmatprep.subr.bf16.mxu0 %v1817
      %2096 = vmatpush2.bf16.msra.mxu0 %v1816
      %2097 = vmatprep.subr.bf16.mxu0 %v1815
      %2098 = vmatpush2.bf16.msra.mxu0 %v1814
      %2099 = vmatprep.subr.bf16.mxu0 %v1813
      %2100 = vmatpush2.bf16.msra.mxu0 %v1812
      %2101 = vmatprep.mubr.bf16.mxu0 %v987
      %2102 = vmatmul.mubr.bf16.gmra.mxu0 %v975
      %v2103 = vpop.f32.mrf.mxu0
      %v2104 = vadd.f32 %v1991, %v2103
      %v2105 = vpop.f32.mrf.mxu0
      %v2106 = vadd.f32 %v1993, %v2105
      %v2107 = vpop.f32.mrf.mxu0
      %v2108 = vadd.f32 %v1995, %v2107
      %v2109 = vpop.f32.mrf.mxu0
      %v2110 = vadd.f32 %v1997, %v2109
      %2111 = vmatprep.mubr.bf16.mxu0 %v1011
      %2112 = vmatmul.mubr.bf16.gmra.mxu0 %v999
      %v2113 = vpop.f32.mrf.mxu0
      %v2114 = vadd.f32 %v2001, %v2113
      %v2115 = vpop.f32.mrf.mxu0
      %v2116 = vadd.f32 %v2003, %v2115
      %v2117 = vpop.f32.mrf.mxu0
      %v2118 = vadd.f32 %v2005, %v2117
      %v2119 = vpop.f32.mrf.mxu0
      %v2120 = vadd.f32 %v2007, %v2119
      %2121 = vmatprep.mubr.bf16.mxu0 %v1035
      %2122 = vmatmul.mubr.bf16.gmra.mxu0 %v1023
      %v2123 = vpop.f32.mrf.mxu0
      %v2124 = vadd.f32 %v2011, %v2123
      %v2125 = vpop.f32.mrf.mxu0
      %v2126 = vadd.f32 %v2013, %v2125
      %v2127 = vpop.f32.mrf.mxu0
      %v2128 = vadd.f32 %v2015, %v2127
      %v2129 = vpop.f32.mrf.mxu0
      %v2130 = vadd.f32 %v2017, %v2129
      %2131 = vmatprep.mubr.bf16.mxu0 %v1059
      %2132 = vmatmul.mubr.bf16.gmra.mxu0 %v1047
      %v2133 = vpop.f32.mrf.mxu0
      %v2134 = vadd.f32 %v2021, %v2133
      %v2135 = vpop.f32.mrf.mxu0
      %v2136 = vadd.f32 %v2023, %v2135
      %v2137 = vpop.f32.mrf.mxu0
      %v2138 = vadd.f32 %v2025, %v2137
      %v2139 = vpop.f32.mrf.mxu0
      %v2140 = vadd.f32 %v2027, %v2139
      %2141 = vmatprep.mubr.bf16.mxu0 %v1083
      %2142 = vmatmul.mubr.bf16.gmra.mxu0 %v1071
      %v2143 = vpop.f32.mrf.mxu0
      %v2144 = vadd.f32 %v2031, %v2143
      %v2145 = vpop.f32.mrf.mxu0
      %v2146 = vadd.f32 %v2033, %v2145
      %v2147 = vpop.f32.mrf.mxu0
      %v2148 = vadd.f32 %v2035, %v2147
      %v2149 = vpop.f32.mrf.mxu0
      %v2150 = vadd.f32 %v2037, %v2149
      %2151 = vmatprep.mubr.bf16.mxu0 %v1107
      %2152 = vmatmul.mubr.bf16.gmra.mxu0 %v1095
      %v2153 = vpop.f32.mrf.mxu0
      %v2154 = vadd.f32 %v2041, %v2153
      %v2155 = vpop.f32.mrf.mxu0
      %v2156 = vadd.f32 %v2043, %v2155
      %v2157 = vpop.f32.mrf.mxu0
      %v2158 = vadd.f32 %v2045, %v2157
      %v2159 = vpop.f32.mrf.mxu0
      %v2160 = vadd.f32 %v2047, %v2159
      %2161 = vmatprep.mubr.bf16.mxu0 %v1131
      %2162 = vmatmul.mubr.bf16.gmra.mxu0 %v1119
      %v2163 = vpop.f32.mrf.mxu0
      %v2164 = vadd.f32 %v2051, %v2163
      %v2165 = vpop.f32.mrf.mxu0
      %v2166 = vadd.f32 %v2053, %v2165
      %v2167 = vpop.f32.mrf.mxu0
      %v2168 = vadd.f32 %v2055, %v2167
      %v2169 = vpop.f32.mrf.mxu0
      %v2170 = vadd.f32 %v2057, %v2169
      %2171 = vmatprep.mubr.bf16.mxu0 %v1364
      %2172 = vmatmul.mubr.bf16.gmra.mxu0 %v1352
      %v2173 = vpop.f32.mrf.mxu0
      %v2174 = vadd.f32 %v2061, %v2173
      %v2175 = vpop.f32.mrf.mxu0
      %v2176 = vadd.f32 %v2063, %v2175
      %v2177 = vpop.f32.mrf.mxu0
      %v2178 = vadd.f32 %v2065, %v2177
      %v2179 = vpop.f32.mrf.mxu0
      %v2180 = vadd.f32 %v2067, %v2179
      %2181 = vdwg.mxu0
      %2182 = vmatprep.subr.bf16.mxu0 %v1843
      %2183 = vmatpush1.bf16.msra.mxu0 %v1842
      %2184 = vmatprep.subr.bf16.mxu0 %v1841
      %2185 = vmatpush1.bf16.msra.mxu0 %v1840
      %2186 = vmatprep.subr.bf16.mxu0 %v1839
      %2187 = vmatpush1.bf16.msra.mxu0 %v1838
      %2188 = vmatprep.subr.bf16.mxu0 %v1837
      %2189 = vmatpush1.bf16.msra.mxu0 %v1836
      %2190 = vmatprep.subr.bf16.mxu0 %v1835
      %2191 = vmatpush1.bf16.msra.mxu0 %v1834
      %2192 = vmatprep.subr.bf16.mxu0 %v1833
      %2193 = vmatpush1.bf16.msra.mxu0 %v1832
      %2194 = vmatprep.subr.bf16.mxu0 %v1831
      %2195 = vmatpush1.bf16.msra.mxu0 %v1830
      %2196 = vmatprep.subr.bf16.mxu0 %v1829
      %2197 = vmatpush1.bf16.msra.mxu0 %v1828
      %2198 = vmatprep.subr.bf16.mxu0 %v1859
      %2199 = vmatpush2.bf16.msra.mxu0 %v1858
      %2200 = vmatprep.subr.bf16.mxu0 %v1857
      %2201 = vmatpush2.bf16.msra.mxu0 %v1856
      %2202 = vmatprep.subr.bf16.mxu0 %v1855
      %2203 = vmatpush2.bf16.msra.mxu0 %v1854
      %2204 = vmatprep.subr.bf16.mxu0 %v1853
      %2205 = vmatpush2.bf16.msra.mxu0 %v1852
      %2206 = vmatprep.subr.bf16.mxu0 %v1851
      %2207 = vmatpush2.bf16.msra.mxu0 %v1850
      %2208 = vmatprep.subr.bf16.mxu0 %v1849
      %2209 = vmatpush2.bf16.msra.mxu0 %v1848
      %2210 = vmatprep.subr.bf16.mxu0 %v1847
      %2211 = vmatpush2.bf16.msra.mxu0 %v1846
      %2212 = vmatprep.subr.bf16.mxu0 %v1845
      %2213 = vmatpush2.bf16.msra.mxu0 %v1844
      %2214 = vmatprep.mubr.bf16.mxu0 %v1192
      %2215 = vmatmul.mubr.bf16.gmra.mxu0 %v1189
      %v2216 = vpop.f32.mrf.mxu0
      %v2217 = vadd.f32 %v2104, %v2216
      %v2218 = vpop.f32.mrf.mxu0
      %v2219 = vadd.f32 %v2106, %v2218
      %v2220 = vpop.f32.mrf.mxu0
      %v2221 = vadd.f32 %v2108, %v2220
      %v2222 = vpop.f32.mrf.mxu0
      %v2223 = vadd.f32 %v2110, %v2222
      %2224 = vmatprep.mubr.bf16.mxu0 %v1198
      %2225 = vmatmul.mubr.bf16.gmra.mxu0 %v1195
      %v2226 = vpop.f32.mrf.mxu0
      %v2227 = vadd.f32 %v2114, %v2226
      %v2228 = vpop.f32.mrf.mxu0
      %v2229 = vadd.f32 %v2116, %v2228
      %v2230 = vpop.f32.mrf.mxu0
      %v2231 = vadd.f32 %v2118, %v2230
      %v2232 = vpop.f32.mrf.mxu0
      %v2233 = vadd.f32 %v2120, %v2232
      %2234 = vmatprep.mubr.bf16.mxu0 %v1204
      %2235 = vmatmul.mubr.bf16.gmra.mxu0 %v1201
      %v2236 = vpop.f32.mrf.mxu0
      %v2237 = vadd.f32 %v2124, %v2236
      %v2238 = vpop.f32.mrf.mxu0
      %v2239 = vadd.f32 %v2126, %v2238
      %v2240 = vpop.f32.mrf.mxu0
      %v2241 = vadd.f32 %v2128, %v2240
      %v2242 = vpop.f32.mrf.mxu0
      %v2243 = vadd.f32 %v2130, %v2242
      %2244 = vmatprep.mubr.bf16.mxu0 %v1210
      %2245 = vmatmul.mubr.bf16.gmra.mxu0 %v1207
      %v2246 = vpop.f32.mrf.mxu0
      %v2247 = vadd.f32 %v2134, %v2246
      %v2248 = vpop.f32.mrf.mxu0
      %v2249 = vadd.f32 %v2136, %v2248
      %v2250 = vpop.f32.mrf.mxu0
      %v2251 = vadd.f32 %v2138, %v2250
      %v2252 = vpop.f32.mrf.mxu0
      %v2253 = vadd.f32 %v2140, %v2252
      %2254 = vmatprep.mubr.bf16.mxu0 %v1216
      %2255 = vmatmul.mubr.bf16.gmra.mxu0 %v1213
      %v2256 = vpop.f32.mrf.mxu0
      %v2257 = vadd.f32 %v2144, %v2256
      %v2258 = vpop.f32.mrf.mxu0
      %v2259 = vadd.f32 %v2146, %v2258
      %v2260 = vpop.f32.mrf.mxu0
      %v2261 = vadd.f32 %v2148, %v2260
      %v2262 = vpop.f32.mrf.mxu0
      %v2263 = vadd.f32 %v2150, %v2262
      %2264 = vmatprep.mubr.bf16.mxu0 %v1222
      %2265 = vmatmul.mubr.bf16.gmra.mxu0 %v1219
      %v2266 = vpop.f32.mrf.mxu0
      %v2267 = vadd.f32 %v2154, %v2266
      %v2268 = vpop.f32.mrf.mxu0
      %v2269 = vadd.f32 %v2156, %v2268
      %v2270 = vpop.f32.mrf.mxu0
      %v2271 = vadd.f32 %v2158, %v2270
      %v2272 = vpop.f32.mrf.mxu0
      %v2273 = vadd.f32 %v2160, %v2272
      %2274 = vmatprep.mubr.bf16.mxu0 %v1228
      %2275 = vmatmul.mubr.bf16.gmra.mxu0 %v1225
      %v2276 = vpop.f32.mrf.mxu0
      %v2277 = vadd.f32 %v2164, %v2276
      %v2278 = vpop.f32.mrf.mxu0
      %v2279 = vadd.f32 %v2166, %v2278
      %v2280 = vpop.f32.mrf.mxu0
      %v2281 = vadd.f32 %v2168, %v2280
      %v2282 = vpop.f32.mrf.mxu0
      %v2283 = vadd.f32 %v2170, %v2282
      %2284 = vmatprep.mubr.bf16.mxu0 %v1376
      %2285 = vmatmul.mubr.bf16.gmra.mxu0 %v1373
      %v2286 = vpop.f32.mrf.mxu0
      %v2287 = vadd.f32 %v2174, %v2286
      %v2288 = vpop.f32.mrf.mxu0
      %v2289 = vadd.f32 %v2176, %v2288
      %v2290 = vpop.f32.mrf.mxu0
      %v2291 = vadd.f32 %v2178, %v2290
      %v2292 = vpop.f32.mrf.mxu0
      %v2293 = vadd.f32 %v2180, %v2292
      %2294 = vdwg.mxu0
      %v2391 = vunpack.c.l.b16 %v1245
      %v2392 = vunpack.c.h.b16 %v1245
      %v2393 = vunpack.c.l.b16 %v1246
      %v2394 = vunpack.c.h.b16 %v1246
      %v2395 = vunpack.c.l.b16 %v1247
      %v2396 = vunpack.c.h.b16 %v1247
      %v2397 = vunpack.c.l.b16 %v1248
      %v2398 = vunpack.c.h.b16 %v1248
      %v2399 = vunpack.c.l.b16 %v1249
      %v2400 = vunpack.c.h.b16 %v1249
      %v2401 = vunpack.c.l.b16 %v1250
      %v2402 = vunpack.c.h.b16 %v1250
      %v2403 = vunpack.c.l.b16 %v1251
      %v2404 = vunpack.c.h.b16 %v1251
      %v2405 = vunpack.c.l.b16 %v1252
      %v2406 = vunpack.c.h.b16 %v1252
      %v2407 = vunpack.c.l.b16 %v1253
      %v2408 = vunpack.c.h.b16 %v1253
      %v2409 = vunpack.c.l.b16 %v1254
      %v2410 = vunpack.c.h.b16 %v1254
      %v2411 = vunpack.c.l.b16 %v1255
      %v2412 = vunpack.c.h.b16 %v1255
      %v2413 = vunpack.c.l.b16 %v1256
      %v2414 = vunpack.c.h.b16 %v1256
      %v2415 = vunpack.c.l.b16 %v1257
      %v2416 = vunpack.c.h.b16 %v1257
      %v2417 = vunpack.c.l.b16 %v1258
      %v2418 = vunpack.c.h.b16 %v1258
      %v2419 = vunpack.c.l.b16 %v1259
      %v2420 = vunpack.c.h.b16 %v1259
      %v2421 = vunpack.c.l.b16 %v1260
      %v2422 = vunpack.c.h.b16 %v1260
      %v2423 = vunpack.c.l.b16 %v1261
      %v2424 = vunpack.c.h.b16 %v1261
      %v2425 = vunpack.c.l.b16 %v1262
      %v2426 = vunpack.c.h.b16 %v1262
      %v2427 = vunpack.c.l.b16 %v1263
      %v2428 = vunpack.c.h.b16 %v1263
      %v2429 = vunpack.c.l.b16 %v1264
      %v2430 = vunpack.c.h.b16 %v1264
      %v2431 = vunpack.c.l.b16 %v1265
      %v2432 = vunpack.c.h.b16 %v1265
      %v2433 = vunpack.c.l.b16 %v1266
      %v2434 = vunpack.c.h.b16 %v1266
      %v2435 = vunpack.c.l.b16 %v1267
      %v2436 = vunpack.c.h.b16 %v1267
      %v2437 = vunpack.c.l.b16 %v1268
      %v2438 = vunpack.c.h.b16 %v1268
      %v2439 = vunpack.c.l.b16 %v1269
      %v2440 = vunpack.c.h.b16 %v1269
      %v2441 = vunpack.c.l.b16 %v1270
      %v2442 = vunpack.c.h.b16 %v1270
      %v2443 = vunpack.c.l.b16 %v1271
      %v2444 = vunpack.c.h.b16 %v1271
      %v2445 = vunpack.c.l.b16 %v1272
      %v2446 = vunpack.c.h.b16 %v1272
      %v2447 = vunpack.c.l.b16 %v1273
      %v2448 = vunpack.c.h.b16 %v1273
      %v2449 = vunpack.c.l.b16 %v1274
      %v2450 = vunpack.c.h.b16 %v1274
      %v2451 = vunpack.c.l.b16 %v1275
      %v2452 = vunpack.c.h.b16 %v1275
      %v2453 = vunpack.c.l.b16 %v1276
      %v2454 = vunpack.c.h.b16 %v1276
      %v2455 = vunpack.c.l.b16 %v1277
      %v2456 = vunpack.c.h.b16 %v1277
      %v2457 = vunpack.c.l.b16 %v1278
      %v2458 = vunpack.c.h.b16 %v1278
      %v2459 = vunpack.c.l.b16 %v1279
      %v2460 = vunpack.c.h.b16 %v1279
      %v2461 = vunpack.c.l.b16 %v1280
      %v2462 = vunpack.c.h.b16 %v1280
      %v2463 = vunpack.c.l.b16 %v1281
      %v2464 = vunpack.c.h.b16 %v1281
      %v2465 = vunpack.c.l.b16 %v1282
      %v2466 = vunpack.c.h.b16 %v1282
      %v2467 = vunpack.c.l.b16 %v1283
      %v2468 = vunpack.c.h.b16 %v1283
      %v2469 = vunpack.c.l.b16 %v1284
      %v2470 = vunpack.c.h.b16 %v1284
      %v2471 = vunpack.c.l.b16 %v1285
      %v2472 = vunpack.c.h.b16 %v1285
      %v2473 = vunpack.c.l.b16 %v1286
      %v2474 = vunpack.c.h.b16 %v1286
      %v2475 = vunpack.c.l.b16 %v1287
      %v2476 = vunpack.c.h.b16 %v1287
      %v2477 = vunpack.c.l.b16 %v1288
      %v2478 = vunpack.c.h.b16 %v1288
      %v2479 = vunpack.c.l.b16 %v1289
      %v2480 = vunpack.c.h.b16 %v1289
      %v2481 = vunpack.c.l.b16 %v1290
      %v2482 = vunpack.c.h.b16 %v1290
      %v2483 = vunpack.c.l.b16 %v1291
      %v2484 = vunpack.c.h.b16 %v1291
      %v2485 = vunpack.c.l.b16 %v1292
      %v2486 = vunpack.c.h.b16 %v1292
      %v2487 = vunpack.c.l.b16 %v1293
      %v2488 = vunpack.c.h.b16 %v1293
      %v2489 = vunpack.c.l.b16 %v1294
      %v2490 = vunpack.c.h.b16 %v1294
      %v2491 = vunpack.c.l.b16 %v1295
      %v2492 = vunpack.c.h.b16 %v1295
      %v2493 = vunpack.c.l.b16 %v1296
      %v2494 = vunpack.c.h.b16 %v1296
      %v2495 = vunpack.c.l.b16 %v1297
      %v2496 = vunpack.c.h.b16 %v1297
      %v2497 = vunpack.c.l.b16 %v1298
      %v2498 = vunpack.c.h.b16 %v1298
      %v2499 = vunpack.c.l.b16 %v1299
      %v2500 = vunpack.c.h.b16 %v1299
      %v2501 = vunpack.c.l.b16 %v1300
      %v2502 = vunpack.c.h.b16 %v1300
      %v2503 = vunpack.c.l.b16 %v1301
      %v2504 = vunpack.c.h.b16 %v1301
      %v2505 = vunpack.c.l.b16 %v1302
      %v2506 = vunpack.c.h.b16 %v1302
      %v2507 = vunpack.c.l.b16 %v1303
      %v2508 = vunpack.c.h.b16 %v1303
      %v2509 = vunpack.c.l.b16 %v1304
      %v2510 = vunpack.c.h.b16 %v1304
      %v2511 = vunpack.c.l.b16 %v1305
      %v2512 = vunpack.c.h.b16 %v1305
      %v2513 = vunpack.c.l.b16 %v1306
      %v2514 = vunpack.c.h.b16 %v1306
      %v2515 = vunpack.c.l.b16 %v1307
      %v2516 = vunpack.c.h.b16 %v1307
      %v2517 = vunpack.c.l.b16 %v1308
      %v2518 = vunpack.c.h.b16 %v1308
      %v2519 = vunpack.c.l.b16 %v1309
      %v2520 = vunpack.c.h.b16 %v1309
      %v2521 = vunpack.c.l.b16 %v1310
      %v2522 = vunpack.c.h.b16 %v1310
      %v2523 = vunpack.c.l.b16 %v1311
      %v2524 = vunpack.c.h.b16 %v1311
      %v2525 = vunpack.c.l.b16 %v1312
      %v2526 = vunpack.c.h.b16 %v1312
      %v2527 = vunpack.c.l.b16 %v1313
      %v2528 = vunpack.c.h.b16 %v1313
      %v2529 = vunpack.c.l.b16 %v1314
      %v2530 = vunpack.c.h.b16 %v1314
      %v2531 = vunpack.c.l.b16 %v1315
      %v2532 = vunpack.c.h.b16 %v1315
      %v2533 = vunpack.c.l.b16 %v1316
      %v2534 = vunpack.c.h.b16 %v1316
      %v2535 = vunpack.c.l.b16 %v1317
      %v2536 = vunpack.c.h.b16 %v1317
      %v2537 = vunpack.c.l.b16 %v1318
      %v2538 = vunpack.c.h.b16 %v1318
      %v2539 = vunpack.c.l.b16 %v1319
      %v2540 = vunpack.c.h.b16 %v1319
      %v2541 = vunpack.c.l.b16 %v1320
      %v2542 = vunpack.c.h.b16 %v1320
      %v2543 = vunpack.c.l.b16 %v1321
      %v2544 = vunpack.c.h.b16 %v1321
      %v2545 = vunpack.c.l.b16 %v1322
      %v2546 = vunpack.c.h.b16 %v1322
      %v2547 = vunpack.c.l.b16 %v1323
      %v2548 = vunpack.c.h.b16 %v1323
      %v2549 = vunpack.c.l.b16 %v1324
      %v2550 = vunpack.c.h.b16 %v1324
      %v2551 = vunpack.c.l.b16 %v1325
      %v2552 = vunpack.c.h.b16 %v1325
      %v2553 = vunpack.c.l.b16 %v1326
      %v2554 = vunpack.c.h.b16 %v1326
      %v2555 = vunpack.c.l.b16 %v1327
      %v2556 = vunpack.c.h.b16 %v1327
      %v2557 = vunpack.c.l.b16 %v1328
      %v2558 = vunpack.c.h.b16 %v1328
      %v2559 = vunpack.c.l.b16 %v1329
      %v2560 = vunpack.c.h.b16 %v1329
      %v2561 = vunpack.c.l.b16 %v1330
      %v2562 = vunpack.c.h.b16 %v1330
      %v2563 = vunpack.c.l.b16 %v1331
      %v2564 = vunpack.c.h.b16 %v1331
      %v2565 = vunpack.c.l.b16 %v1332
      %v2566 = vunpack.c.h.b16 %v1332
      %v2567 = vunpack.c.l.b16 %v1333
      %v2568 = vunpack.c.h.b16 %v1333
      %v2569 = vunpack.c.l.b16 %v1334
      %v2570 = vunpack.c.h.b16 %v1334
      %v2571 = vunpack.c.l.b16 %v1335
      %v2572 = vunpack.c.h.b16 %v1335
      %v2573 = vunpack.c.l.b16 %v1336
      %v2574 = vunpack.c.h.b16 %v1336
      %v2575 = vunpack.c.l.b16 %v1337
      %v2576 = vunpack.c.h.b16 %v1337
      %v2577 = vunpack.c.l.b16 %v1338
      %v2578 = vunpack.c.h.b16 %v1338
      %v2579 = vunpack.c.l.b16 %v1339
      %v2580 = vunpack.c.h.b16 %v1339
      %v2581 = vunpack.c.l.b16 %v1340
      %v2582 = vunpack.c.h.b16 %v1340
      %v2583 = vpack.c.b16 %v2393, %v2391
      %v2584 = vpack.c.b16 %v2394, %v2392
      %v2585 = vpack.c.b16 %v2397, %v2395
      %v2586 = vpack.c.b16 %v2398, %v2396
      %v2587 = vpack.c.b16 %v2401, %v2399
      %v2588 = vpack.c.b16 %v2402, %v2400
      %v2589 = vpack.c.b16 %v2405, %v2403
      %v2590 = vpack.c.b16 %v2406, %v2404
      %v2591 = vpack.c.b16 %v2409, %v2407
      %v2592 = vpack.c.b16 %v2410, %v2408
      %v2593 = vpack.c.b16 %v2413, %v2411
      %v2594 = vpack.c.b16 %v2414, %v2412
      %v2595 = vpack.c.b16 %v2417, %v2415
      %v2596 = vpack.c.b16 %v2418, %v2416
      %v2597 = vpack.c.b16 %v2421, %v2419
      %v2598 = vpack.c.b16 %v2422, %v2420
      %v2599 = vpack.c.b16 %v2425, %v2423
      %v2600 = vpack.c.b16 %v2426, %v2424
      %v2601 = vpack.c.b16 %v2429, %v2427
      %v2602 = vpack.c.b16 %v2430, %v2428
      %v2603 = vpack.c.b16 %v2433, %v2431
      %v2604 = vpack.c.b16 %v2434, %v2432
      %v2605 = vpack.c.b16 %v2437, %v2435
      %v2606 = vpack.c.b16 %v2438, %v2436
      %v2607 = vpack.c.b16 %v2441, %v2439
      %v2608 = vpack.c.b16 %v2442, %v2440
      %v2609 = vpack.c.b16 %v2445, %v2443
      %v2610 = vpack.c.b16 %v2446, %v2444
      %v2611 = vpack.c.b16 %v2449, %v2447
      %v2612 = vpack.c.b16 %v2450, %v2448
      %v2613 = vpack.c.b16 %v2453, %v2451
      %v2614 = vpack.c.b16 %v2454, %v2452
      %v2615 = vpack.c.b16 %v2457, %v2455
      %v2616 = vpack.c.b16 %v2458, %v2456
      %v2617 = vpack.c.b16 %v2461, %v2459
      %v2618 = vpack.c.b16 %v2462, %v2460
      %v2619 = vpack.c.b16 %v2465, %v2463
      %v2620 = vpack.c.b16 %v2466, %v2464
      %v2621 = vpack.c.b16 %v2469, %v2467
      %v2622 = vpack.c.b16 %v2470, %v2468
      %v2623 = vpack.c.b16 %v2473, %v2471
      %v2624 = vpack.c.b16 %v2474, %v2472
      %v2625 = vpack.c.b16 %v2477, %v2475
      %v2626 = vpack.c.b16 %v2478, %v2476
      %v2627 = vpack.c.b16 %v2481, %v2479
      %v2628 = vpack.c.b16 %v2482, %v2480
      %v2629 = vpack.c.b16 %v2485, %v2483
      %v2630 = vpack.c.b16 %v2486, %v2484
      %v2631 = vpack.c.b16 %v2489, %v2487
      %v2632 = vpack.c.b16 %v2490, %v2488
      %v2633 = vpack.c.b16 %v2493, %v2491
      %v2634 = vpack.c.b16 %v2494, %v2492
      %v2635 = vpack.c.b16 %v2497, %v2495
      %v2636 = vpack.c.b16 %v2498, %v2496
      %v2637 = vpack.c.b16 %v2501, %v2499
      %v2638 = vpack.c.b16 %v2502, %v2500
      %v2639 = vpack.c.b16 %v2505, %v2503
      %v2640 = vpack.c.b16 %v2506, %v2504
      %v2641 = vpack.c.b16 %v2509, %v2507
      %v2642 = vpack.c.b16 %v2510, %v2508
      %v2643 = vpack.c.b16 %v2513, %v2511
      %v2644 = vpack.c.b16 %v2514, %v2512
      %v2645 = vpack.c.b16 %v2517, %v2515
      %v2646 = vpack.c.b16 %v2518, %v2516
      %v2647 = vpack.c.b16 %v2521, %v2519
      %v2648 = vpack.c.b16 %v2522, %v2520
      %v2649 = vpack.c.b16 %v2525, %v2523
      %v2650 = vpack.c.b16 %v2526, %v2524
      %v2651 = vpack.c.b16 %v2529, %v2527
      %v2652 = vpack.c.b16 %v2530, %v2528
      %v2653 = vpack.c.b16 %v2533, %v2531
      %v2654 = vpack.c.b16 %v2534, %v2532
      %v2655 = vpack.c.b16 %v2537, %v2535
      %v2656 = vpack.c.b16 %v2538, %v2536
      %v2657 = vpack.c.b16 %v2541, %v2539
      %v2658 = vpack.c.b16 %v2542, %v2540
      %v2659 = vpack.c.b16 %v2545, %v2543
      %v2660 = vpack.c.b16 %v2546, %v2544
      %v2661 = vpack.c.b16 %v2549, %v2547
      %v2662 = vpack.c.b16 %v2550, %v2548
      %v2663 = vpack.c.b16 %v2553, %v2551
      %v2664 = vpack.c.b16 %v2554, %v2552
      %v2665 = vpack.c.b16 %v2557, %v2555
      %v2666 = vpack.c.b16 %v2558, %v2556
      %v2667 = vpack.c.b16 %v2561, %v2559
      %v2668 = vpack.c.b16 %v2562, %v2560
      %v2669 = vpack.c.b16 %v2565, %v2563
      %v2670 = vpack.c.b16 %v2566, %v2564
      %v2671 = vpack.c.b16 %v2569, %v2567
      %v2672 = vpack.c.b16 %v2570, %v2568
      %v2673 = vpack.c.b16 %v2573, %v2571
      %v2674 = vpack.c.b16 %v2574, %v2572
      %v2675 = vpack.c.b16 %v2577, %v2575
      %v2676 = vpack.c.b16 %v2578, %v2576
      %v2677 = vpack.c.b16 %v2581, %v2579
      %v2678 = vpack.c.b16 %v2582, %v2580
      %2775 = vmatprep.subr.bf16.mxu0 %v2598
      %2776 = vmatpush1.bf16.msra.mxu0 %v2597
      %2777 = vmatprep.subr.bf16.mxu0 %v2596
      %2778 = vmatpush1.bf16.msra.mxu0 %v2595
      %2779 = vmatprep.subr.bf16.mxu0 %v2594
      %2780 = vmatpush1.bf16.msra.mxu0 %v2593
      %2781 = vmatprep.subr.bf16.mxu0 %v2592
      %2782 = vmatpush1.bf16.msra.mxu0 %v2591
      %2783 = vmatprep.subr.bf16.mxu0 %v2590
      %2784 = vmatpush1.bf16.msra.mxu0 %v2589
      %2785 = vmatprep.subr.bf16.mxu0 %v2588
      %2786 = vmatpush1.bf16.msra.mxu0 %v2587
      %2787 = vmatprep.subr.bf16.mxu0 %v2586
      %2788 = vmatpush1.bf16.msra.mxu0 %v2585
      %2789 = vmatprep.subr.bf16.mxu0 %v2584
      %2790 = vmatpush1.bf16.msra.mxu0 %v2583
      %2791 = vmatprep.subr.bf16.mxu0 %v2614
      %2792 = vmatpush2.bf16.msra.mxu0 %v2613
      %2793 = vmatprep.subr.bf16.mxu0 %v2612
      %2794 = vmatpush2.bf16.msra.mxu0 %v2611
      %2795 = vmatprep.subr.bf16.mxu0 %v2610
      %2796 = vmatpush2.bf16.msra.mxu0 %v2609
      %2797 = vmatprep.subr.bf16.mxu0 %v2608
      %2798 = vmatpush2.bf16.msra.mxu0 %v2607
      %2799 = vmatprep.subr.bf16.mxu0 %v2606
      %2800 = vmatpush2.bf16.msra.mxu0 %v2605
      %2801 = vmatprep.subr.bf16.mxu0 %v2604
      %2802 = vmatpush2.bf16.msra.mxu0 %v2603
      %2803 = vmatprep.subr.bf16.mxu0 %v2602
      %2804 = vmatpush2.bf16.msra.mxu0 %v2601
      %2805 = vmatprep.subr.bf16.mxu0 %v2600
      %2806 = vmatpush2.bf16.msra.mxu0 %v2599
      %2807 = vmatprep.mubr.bf16.mxu0 %v900
      %2808 = vmatmul.mubr.bf16.gmra.mxu0 %v899
      %v2809 = vpop.f32.mrf.mxu0
      %v2810 = vadd.f32 %v2217, %v2809
      %v2811 = vpop.f32.mrf.mxu0
      %v2812 = vadd.f32 %v2219, %v2811
      %v2813 = vpop.f32.mrf.mxu0
      %v2814 = vadd.f32 %v2221, %v2813
      %v2815 = vpop.f32.mrf.mxu0
      %v2816 = vadd.f32 %v2223, %v2815
      %2817 = vmatprep.mubr.bf16.mxu0 %v904
      %2818 = vmatmul.mubr.bf16.gmra.mxu0 %v903
      %v2819 = vpop.f32.mrf.mxu0
      %v2820 = vadd.f32 %v2227, %v2819
      %v2821 = vpop.f32.mrf.mxu0
      %v2822 = vadd.f32 %v2229, %v2821
      %v2823 = vpop.f32.mrf.mxu0
      %v2824 = vadd.f32 %v2231, %v2823
      %v2825 = vpop.f32.mrf.mxu0
      %v2826 = vadd.f32 %v2233, %v2825
      %2827 = vmatprep.mubr.bf16.mxu0 %v908
      %2828 = vmatmul.mubr.bf16.gmra.mxu0 %v907
      %v2829 = vpop.f32.mrf.mxu0
      %v2830 = vadd.f32 %v2237, %v2829
      %v2831 = vpop.f32.mrf.mxu0
      %v2832 = vadd.f32 %v2239, %v2831
      %v2833 = vpop.f32.mrf.mxu0
      %v2834 = vadd.f32 %v2241, %v2833
      %v2835 = vpop.f32.mrf.mxu0
      %v2836 = vadd.f32 %v2243, %v2835
      %2837 = vmatprep.mubr.bf16.mxu0 %v912
      %2838 = vmatmul.mubr.bf16.gmra.mxu0 %v911
      %v2839 = vpop.f32.mrf.mxu0
      %v2840 = vadd.f32 %v2247, %v2839
      %v2841 = vpop.f32.mrf.mxu0
      %v2842 = vadd.f32 %v2249, %v2841
      %v2843 = vpop.f32.mrf.mxu0
      %v2844 = vadd.f32 %v2251, %v2843
      %v2845 = vpop.f32.mrf.mxu0
      %v2846 = vadd.f32 %v2253, %v2845
      %2847 = vmatprep.mubr.bf16.mxu0 %v916
      %2848 = vmatmul.mubr.bf16.gmra.mxu0 %v915
      %v2849 = vpop.f32.mrf.mxu0
      %v2850 = vadd.f32 %v2257, %v2849
      %v2851 = vpop.f32.mrf.mxu0
      %v2852 = vadd.f32 %v2259, %v2851
      %v2853 = vpop.f32.mrf.mxu0
      %v2854 = vadd.f32 %v2261, %v2853
      %v2855 = vpop.f32.mrf.mxu0
      %v2856 = vadd.f32 %v2263, %v2855
      %2857 = vmatprep.mubr.bf16.mxu0 %v920
      %2858 = vmatmul.mubr.bf16.gmra.mxu0 %v919
      %v2859 = vpop.f32.mrf.mxu0
      %v2860 = vadd.f32 %v2267, %v2859
      %v2861 = vpop.f32.mrf.mxu0
      %v2862 = vadd.f32 %v2269, %v2861
      %v2863 = vpop.f32.mrf.mxu0
      %v2864 = vadd.f32 %v2271, %v2863
      %v2865 = vpop.f32.mrf.mxu0
      %v2866 = vadd.f32 %v2273, %v2865
      %2867 = vmatprep.mubr.bf16.mxu0 %v924
      %2868 = vmatmul.mubr.bf16.gmra.mxu0 %v923
      %v2869 = vpop.f32.mrf.mxu0
      %v2870 = vadd.f32 %v2277, %v2869
      %v2871 = vpop.f32.mrf.mxu0
      %v2872 = vadd.f32 %v2279, %v2871
      %v2873 = vpop.f32.mrf.mxu0
      %v2874 = vadd.f32 %v2281, %v2873
      %v2875 = vpop.f32.mrf.mxu0
      %v2876 = vadd.f32 %v2283, %v2875
      %2877 = vmatprep.mubr.bf16.mxu0 %v928
      %2878 = vmatmul.mubr.bf16.gmra.mxu0 %v927
      %v2879 = vpop.f32.mrf.mxu0
      %v2880 = vadd.f32 %v2287, %v2879
      %v2881 = vpop.f32.mrf.mxu0
      %v2882 = vadd.f32 %v2289, %v2881
      %v2883 = vpop.f32.mrf.mxu0
      %v2884 = vadd.f32 %v2291, %v2883
      %v2885 = vpop.f32.mrf.mxu0
      %v2886 = vadd.f32 %v2293, %v2885
      %2887 = vdwg.mxu0
      %2888 = vmatprep.subr.bf16.mxu0 %v2630
      %2889 = vmatpush1.bf16.msra.mxu0 %v2629
      %2890 = vmatprep.subr.bf16.mxu0 %v2628
      %2891 = vmatpush1.bf16.msra.mxu0 %v2627
      %2892 = vmatprep.subr.bf16.mxu0 %v2626
      %2893 = vmatpush1.bf16.msra.mxu0 %v2625
      %2894 = vmatprep.subr.bf16.mxu0 %v2624
      %2895 = vmatpush1.bf16.msra.mxu0 %v2623
      %2896 = vmatprep.subr.bf16.mxu0 %v2622
      %2897 = vmatpush1.bf16.msra.mxu0 %v2621
      %2898 = vmatprep.subr.bf16.mxu0 %v2620
      %2899 = vmatpush1.bf16.msra.mxu0 %v2619
      %2900 = vmatprep.subr.bf16.mxu0 %v2618
      %2901 = vmatpush1.bf16.msra.mxu0 %v2617
      %2902 = vmatprep.subr.bf16.mxu0 %v2616
      %2903 = vmatpush1.bf16.msra.mxu0 %v2615
      %2904 = vmatprep.subr.bf16.mxu0 %v2646
      %2905 = vmatpush2.bf16.msra.mxu0 %v2645
      %2906 = vmatprep.subr.bf16.mxu0 %v2644
      %2907 = vmatpush2.bf16.msra.mxu0 %v2643
      %2908 = vmatprep.subr.bf16.mxu0 %v2642
      %2909 = vmatpush2.bf16.msra.mxu0 %v2641
      %2910 = vmatprep.subr.bf16.mxu0 %v2640
      %2911 = vmatpush2.bf16.msra.mxu0 %v2639
      %2912 = vmatprep.subr.bf16.mxu0 %v2638
      %2913 = vmatpush2.bf16.msra.mxu0 %v2637
      %2914 = vmatprep.subr.bf16.mxu0 %v2636
      %2915 = vmatpush2.bf16.msra.mxu0 %v2635
      %2916 = vmatprep.subr.bf16.mxu0 %v2634
      %2917 = vmatpush2.bf16.msra.mxu0 %v2633
      %2918 = vmatprep.subr.bf16.mxu0 %v2632
      %2919 = vmatpush2.bf16.msra.mxu0 %v2631
      %2920 = vmatprep.mubr.bf16.mxu0 %v963
      %2921 = vmatmul.mubr.bf16.gmra.mxu0 %v951
      %v2922 = vpop.f32.mrf.mxu0
      %v2923 = vadd.f32 %v2810, %v2922
      %v2924 = vpop.f32.mrf.mxu0
      %v2925 = vadd.f32 %v2812, %v2924
      %v2926 = vpop.f32.mrf.mxu0
      %v2927 = vadd.f32 %v2814, %v2926
      %v2928 = vpop.f32.mrf.mxu0
      %v2929 = vadd.f32 %v2816, %v2928
      %2930 = vmatprep.mubr.bf16.mxu0 %v987
      %2931 = vmatmul.mubr.bf16.gmra.mxu0 %v975
      %v2932 = vpop.f32.mrf.mxu0
      %v2933 = vadd.f32 %v2820, %v2932
      %v2934 = vpop.f32.mrf.mxu0
      %v2935 = vadd.f32 %v2822, %v2934
      %v2936 = vpop.f32.mrf.mxu0
      %v2937 = vadd.f32 %v2824, %v2936
      %v2938 = vpop.f32.mrf.mxu0
      %v2939 = vadd.f32 %v2826, %v2938
      %2940 = vmatprep.mubr.bf16.mxu0 %v1011
      %2941 = vmatmul.mubr.bf16.gmra.mxu0 %v999
      %v2942 = vpop.f32.mrf.mxu0
      %v2943 = vadd.f32 %v2830, %v2942
      %v2944 = vpop.f32.mrf.mxu0
      %v2945 = vadd.f32 %v2832, %v2944
      %v2946 = vpop.f32.mrf.mxu0
      %v2947 = vadd.f32 %v2834, %v2946
      %v2948 = vpop.f32.mrf.mxu0
      %v2949 = vadd.f32 %v2836, %v2948
      %2950 = vmatprep.mubr.bf16.mxu0 %v1035
      %2951 = vmatmul.mubr.bf16.gmra.mxu0 %v1023
      %v2952 = vpop.f32.mrf.mxu0
      %v2953 = vadd.f32 %v2840, %v2952
      %v2954 = vpop.f32.mrf.mxu0
      %v2955 = vadd.f32 %v2842, %v2954
      %v2956 = vpop.f32.mrf.mxu0
      %v2957 = vadd.f32 %v2844, %v2956
      %v2958 = vpop.f32.mrf.mxu0
      %v2959 = vadd.f32 %v2846, %v2958
      %2960 = vmatprep.mubr.bf16.mxu0 %v1059
      %2961 = vmatmul.mubr.bf16.gmra.mxu0 %v1047
      %v2962 = vpop.f32.mrf.mxu0
      %v2963 = vadd.f32 %v2850, %v2962
      %v2964 = vpop.f32.mrf.mxu0
      %v2965 = vadd.f32 %v2852, %v2964
      %v2966 = vpop.f32.mrf.mxu0
      %v2967 = vadd.f32 %v2854, %v2966
      %v2968 = vpop.f32.mrf.mxu0
      %v2969 = vadd.f32 %v2856, %v2968
      %2970 = vmatprep.mubr.bf16.mxu0 %v1083
      %2971 = vmatmul.mubr.bf16.gmra.mxu0 %v1071
      %v2972 = vpop.f32.mrf.mxu0
      %v2973 = vadd.f32 %v2860, %v2972
      %v2974 = vpop.f32.mrf.mxu0
      %v2975 = vadd.f32 %v2862, %v2974
      %v2976 = vpop.f32.mrf.mxu0
      %v2977 = vadd.f32 %v2864, %v2976
      %v2978 = vpop.f32.mrf.mxu0
      %v2979 = vadd.f32 %v2866, %v2978
      %2980 = vmatprep.mubr.bf16.mxu0 %v1107
      %2981 = vmatmul.mubr.bf16.gmra.mxu0 %v1095
      %v2982 = vpop.f32.mrf.mxu0
      %v2983 = vadd.f32 %v2870, %v2982
      %v2984 = vpop.f32.mrf.mxu0
      %v2985 = vadd.f32 %v2872, %v2984
      %v2986 = vpop.f32.mrf.mxu0
      %v2987 = vadd.f32 %v2874, %v2986
      %v2988 = vpop.f32.mrf.mxu0
      %v2989 = vadd.f32 %v2876, %v2988
      %2990 = vmatprep.mubr.bf16.mxu0 %v1131
      %2991 = vmatmul.mubr.bf16.gmra.mxu0 %v1119
      %v2992 = vpop.f32.mrf.mxu0
      %v2993 = vadd.f32 %v2880, %v2992
      %v2994 = vpop.f32.mrf.mxu0
      %v2995 = vadd.f32 %v2882, %v2994
      %v2996 = vpop.f32.mrf.mxu0
      %v2997 = vadd.f32 %v2884, %v2996
      %v2998 = vpop.f32.mrf.mxu0
      %v2999 = vadd.f32 %v2886, %v2998
      %3000 = vdwg.mxu0
      %3001 = vmatprep.subr.bf16.mxu0 %v2662
      %3002 = vmatpush1.bf16.msra.mxu0 %v2661
      %3003 = vmatprep.subr.bf16.mxu0 %v2660
      %3004 = vmatpush1.bf16.msra.mxu0 %v2659
      %3005 = vmatprep.subr.bf16.mxu0 %v2658
      %3006 = vmatpush1.bf16.msra.mxu0 %v2657
      %3007 = vmatprep.subr.bf16.mxu0 %v2656
      %3008 = vmatpush1.bf16.msra.mxu0 %v2655
      %3009 = vmatprep.subr.bf16.mxu0 %v2654
      %3010 = vmatpush1.bf16.msra.mxu0 %v2653
      %3011 = vmatprep.subr.bf16.mxu0 %v2652
      %3012 = vmatpush1.bf16.msra.mxu0 %v2651
      %3013 = vmatprep.subr.bf16.mxu0 %v2650
      %3014 = vmatpush1.bf16.msra.mxu0 %v2649
      %3015 = vmatprep.subr.bf16.mxu0 %v2648
      %3016 = vmatpush1.bf16.msra.mxu0 %v2647
      %3017 = vmatprep.subr.bf16.mxu0 %v2678
      %3018 = vmatpush2.bf16.msra.mxu0 %v2677
      %3019 = vmatprep.subr.bf16.mxu0 %v2676
      %3020 = vmatpush2.bf16.msra.mxu0 %v2675
      %3021 = vmatprep.subr.bf16.mxu0 %v2674
      %3022 = vmatpush2.bf16.msra.mxu0 %v2673
      %3023 = vmatprep.subr.bf16.mxu0 %v2672
      %3024 = vmatpush2.bf16.msra.mxu0 %v2671
      %3025 = vmatprep.subr.bf16.mxu0 %v2670
      %3026 = vmatpush2.bf16.msra.mxu0 %v2669
      %3027 = vmatprep.subr.bf16.mxu0 %v2668
      %3028 = vmatpush2.bf16.msra.mxu0 %v2667
      %3029 = vmatprep.subr.bf16.mxu0 %v2666
      %3030 = vmatpush2.bf16.msra.mxu0 %v2665
      %3031 = vmatprep.subr.bf16.mxu0 %v2664
      %3032 = vmatpush2.bf16.msra.mxu0 %v2663
      %3033 = vmatprep.mubr.bf16.mxu0 %v1186
      %3034 = vmatmul.mubr.bf16.gmra.mxu0 %v1183
      %v3035 = vpop.f32.mrf.mxu0
      %v3036 = vadd.f32 %v2923, %v3035
      %v3037 = vpop.f32.mrf.mxu0
      %v3038 = vadd.f32 %v2925, %v3037
      %v3039 = vpop.f32.mrf.mxu0
      %v3040 = vadd.f32 %v2927, %v3039
      %v3041 = vpop.f32.mrf.mxu0
      %v3042 = vadd.f32 %v2929, %v3041
      %3043 = vmatprep.mubr.bf16.mxu0 %v1192
      %3044 = vmatmul.mubr.bf16.gmra.mxu0 %v1189
      %v3045 = vpop.f32.mrf.mxu0
      %v3046 = vadd.f32 %v2933, %v3045
      %v3047 = vpop.f32.mrf.mxu0
      %v3048 = vadd.f32 %v2935, %v3047
      %v3049 = vpop.f32.mrf.mxu0
      %v3050 = vadd.f32 %v2937, %v3049
      %v3051 = vpop.f32.mrf.mxu0
      %v3052 = vadd.f32 %v2939, %v3051
      %3053 = vmatprep.mubr.bf16.mxu0 %v1198
      %3054 = vmatmul.mubr.bf16.gmra.mxu0 %v1195
      %v3055 = vpop.f32.mrf.mxu0
      %v3056 = vadd.f32 %v2943, %v3055
      %v3057 = vpop.f32.mrf.mxu0
      %v3058 = vadd.f32 %v2945, %v3057
      %v3059 = vpop.f32.mrf.mxu0
      %v3060 = vadd.f32 %v2947, %v3059
      %v3061 = vpop.f32.mrf.mxu0
      %v3062 = vadd.f32 %v2949, %v3061
      %3063 = vmatprep.mubr.bf16.mxu0 %v1204
      %3064 = vmatmul.mubr.bf16.gmra.mxu0 %v1201
      %v3065 = vpop.f32.mrf.mxu0
      %v3066 = vadd.f32 %v2953, %v3065
      %v3067 = vpop.f32.mrf.mxu0
      %v3068 = vadd.f32 %v2955, %v3067
      %v3069 = vpop.f32.mrf.mxu0
      %v3070 = vadd.f32 %v2957, %v3069
      %v3071 = vpop.f32.mrf.mxu0
      %v3072 = vadd.f32 %v2959, %v3071
      %3073 = vmatprep.mubr.bf16.mxu0 %v1210
      %3074 = vmatmul.mubr.bf16.gmra.mxu0 %v1207
      %v3075 = vpop.f32.mrf.mxu0
      %v3076 = vadd.f32 %v2963, %v3075
      %v3077 = vpop.f32.mrf.mxu0
      %v3078 = vadd.f32 %v2965, %v3077
      %v3079 = vpop.f32.mrf.mxu0
      %v3080 = vadd.f32 %v2967, %v3079
      %v3081 = vpop.f32.mrf.mxu0
      %v3082 = vadd.f32 %v2969, %v3081
      %3083 = vmatprep.mubr.bf16.mxu0 %v1216
      %3084 = vmatmul.mubr.bf16.gmra.mxu0 %v1213
      %v3085 = vpop.f32.mrf.mxu0
      %v3086 = vadd.f32 %v2973, %v3085
      %v3087 = vpop.f32.mrf.mxu0
      %v3088 = vadd.f32 %v2975, %v3087
      %v3089 = vpop.f32.mrf.mxu0
      %v3090 = vadd.f32 %v2977, %v3089
      %v3091 = vpop.f32.mrf.mxu0
      %v3092 = vadd.f32 %v2979, %v3091
      %3093 = vmatprep.mubr.bf16.mxu0 %v1222
      %3094 = vmatmul.mubr.bf16.gmra.mxu0 %v1219
      %v3095 = vpop.f32.mrf.mxu0
      %v3096 = vadd.f32 %v2983, %v3095
      %v3097 = vpop.f32.mrf.mxu0
      %v3098 = vadd.f32 %v2985, %v3097
      %v3099 = vpop.f32.mrf.mxu0
      %v3100 = vadd.f32 %v2987, %v3099
      %v3101 = vpop.f32.mrf.mxu0
      %v3102 = vadd.f32 %v2989, %v3101
      %3103 = vmatprep.mubr.bf16.mxu0 %v1228
      %3104 = vmatmul.mubr.bf16.gmra.mxu0 %v1225
      %v3105 = vpop.f32.mrf.mxu0
      %v3106 = vadd.f32 %v2993, %v3105
      %v3107 = vpop.f32.mrf.mxu0
      %v3108 = vadd.f32 %v2995, %v3107
      %v3109 = vpop.f32.mrf.mxu0
      %v3110 = vadd.f32 %v2997, %v3109
      %v3111 = vpop.f32.mrf.mxu0
      %v3112 = vadd.f32 %v2999, %v3111
      %3113 = vdwg.mxu0
      %v3115 = vshrl.u32 %v935, 16
      %v3117 = vshll.u32 %v935, 16
      %v3119 = vrot.slane %v3117, 1
      %v3120 = vor.u32 %v3115, %v3119
      %v3122 = vshll.u32 %v937, 16
      %v3124 = vrot.slane %v3122, 1
      %v3125 = vsel %vm939, %v3120, %v3124
      %v3127 = vshrl.u32 %v936, 16
      %v3129 = vshll.u32 %v936, 16
      %v3131 = vrot.slane %v3129, 1
      %v3132 = vor.u32 %v3127, %v3131
      %v3134 = vshll.u32 %v938, 16
      %v3136 = vrot.slane %v3134, 1
      %v3137 = vsel %vm939, %v3132, %v3136
      %v3144 = vrot.slane %v935, 1
      %v3145 = vrot.slane %v937, 1
      %v3146 = vsel %vm1180, %v3144, %v3145
      %v3147 = vrot.slane %v936, 1
      %v3148 = vrot.slane %v938, 1
      %v3149 = vsel %vm1180, %v3147, %v3148
      %s3152 = scalar_lea.vmem %s5, 1536
      %v3153 = vld [vmem:[%s3152] sm:$0xff]
      %v3154 = vld [vmem:[%s3152 + $0x8] sm:$0xff]
      %v3155 = vld [vmem:[%s3152 + $0x10] sm:$0xff]
      %v3156 = vld [vmem:[%s3152 + $0x18] sm:$0xff]
      %v3157 = vld [vmem:[%s3152 + $0x20] sm:$0xff]
      %v3158 = vld [vmem:[%s3152 + $0x28] sm:$0xff]
      %v3159 = vld [vmem:[%s3152 + $0x30] sm:$0xff]
      %v3160 = vld [vmem:[%s3152 + $0x38] sm:$0xff]
      %v3161 = vld [vmem:[%s3152 + $0x40] sm:$0xff]
      %v3162 = vld [vmem:[%s3152 + $0x48] sm:$0xff]
      %v3163 = vld [vmem:[%s3152 + $0x50] sm:$0xff]
      %v3164 = vld [vmem:[%s3152 + $0x58] sm:$0xff]
      %v3165 = vld [vmem:[%s3152 + $0x60] sm:$0xff]
      %v3166 = vld [vmem:[%s3152 + $0x68] sm:$0xff]
      %v3167 = vld [vmem:[%s3152 + $0x70] sm:$0xff]
      %v3168 = vld [vmem:[%s3152 + $0x78] sm:$0xff]
      %v3169 = vld [vmem:[%s3152 + $0x80] sm:$0xff]
      %v3170 = vld [vmem:[%s3152 + $0x88] sm:$0xff]
      %v3171 = vld [vmem:[%s3152 + $0x90] sm:$0xff]
      %v3172 = vld [vmem:[%s3152 + $0x98] sm:$0xff]
      %v3173 = vld [vmem:[%s3152 + $0xa0] sm:$0xff]
      %v3174 = vld [vmem:[%s3152 + $0xa8] sm:$0xff]
      %v3175 = vld [vmem:[%s3152 + $0xb0] sm:$0xff]
      %v3176 = vld [vmem:[%s3152 + $0xb8] sm:$0xff]
      %v3177 = vld [vmem:[%s3152 + $0xc0] sm:$0xff]
      %v3178 = vld [vmem:[%s3152 + $0xc8] sm:$0xff]
      %v3179 = vld [vmem:[%s3152 + $0xd0] sm:$0xff]
      %v3180 = vld [vmem:[%s3152 + $0xd8] sm:$0xff]
      %v3181 = vld [vmem:[%s3152 + $0xe0] sm:$0xff]
      %v3182 = vld [vmem:[%s3152 + $0xe8] sm:$0xff]
      %v3183 = vld [vmem:[%s3152 + $0xf0] sm:$0xff]
      %v3184 = vld [vmem:[%s3152 + $0xf8] sm:$0xff]
      %v3185 = vld [vmem:[%s3152 + $0x100] sm:$0xff]
      %v3186 = vld [vmem:[%s3152 + $0x108] sm:$0xff]
      %v3187 = vld [vmem:[%s3152 + $0x110] sm:$0xff]
      %v3188 = vld [vmem:[%s3152 + $0x118] sm:$0xff]
      %v3189 = vld [vmem:[%s3152 + $0x120] sm:$0xff]
      %v3190 = vld [vmem:[%s3152 + $0x128] sm:$0xff]
      %v3191 = vld [vmem:[%s3152 + $0x130] sm:$0xff]
      %v3192 = vld [vmem:[%s3152 + $0x138] sm:$0xff]
      %v3193 = vld [vmem:[%s3152 + $0x140] sm:$0xff]
      %v3194 = vld [vmem:[%s3152 + $0x148] sm:$0xff]
      %v3195 = vld [vmem:[%s3152 + $0x150] sm:$0xff]
      %v3196 = vld [vmem:[%s3152 + $0x158] sm:$0xff]
      %v3197 = vld [vmem:[%s3152 + $0x160] sm:$0xff]
      %v3198 = vld [vmem:[%s3152 + $0x168] sm:$0xff]
      %v3199 = vld [vmem:[%s3152 + $0x170] sm:$0xff]
      %v3200 = vld [vmem:[%s3152 + $0x178] sm:$0xff]
      %v3201 = vld [vmem:[%s3152 + $0x180] sm:$0xff]
      %v3202 = vld [vmem:[%s3152 + $0x188] sm:$0xff]
      %v3203 = vld [vmem:[%s3152 + $0x190] sm:$0xff]
      %v3204 = vld [vmem:[%s3152 + $0x198] sm:$0xff]
      %v3205 = vld [vmem:[%s3152 + $0x1a0] sm:$0xff]
      %v3206 = vld [vmem:[%s3152 + $0x1a8] sm:$0xff]
      %v3207 = vld [vmem:[%s3152 + $0x1b0] sm:$0xff]
      %v3208 = vld [vmem:[%s3152 + $0x1b8] sm:$0xff]
      %v3209 = vld [vmem:[%s3152 + $0x1c0] sm:$0xff]
      %v3210 = vld [vmem:[%s3152 + $0x1c8] sm:$0xff]
      %v3211 = vld [vmem:[%s3152 + $0x1d0] sm:$0xff]
      %v3212 = vld [vmem:[%s3152 + $0x1d8] sm:$0xff]
      %v3213 = vld [vmem:[%s3152 + $0x1e0] sm:$0xff]
      %v3214 = vld [vmem:[%s3152 + $0x1e8] sm:$0xff]
      %v3215 = vld [vmem:[%s3152 + $0x1f0] sm:$0xff]
      %v3216 = vld [vmem:[%s3152 + $0x1f8] sm:$0xff]
      %v3217 = vld [vmem:[%s3152 + $0x200] sm:$0xff]
      %v3218 = vld [vmem:[%s3152 + $0x208] sm:$0xff]
      %v3219 = vld [vmem:[%s3152 + $0x210] sm:$0xff]
      %v3220 = vld [vmem:[%s3152 + $0x218] sm:$0xff]
      %v3221 = vld [vmem:[%s3152 + $0x220] sm:$0xff]
      %v3222 = vld [vmem:[%s3152 + $0x228] sm:$0xff]
      %v3223 = vld [vmem:[%s3152 + $0x230] sm:$0xff]
      %v3224 = vld [vmem:[%s3152 + $0x238] sm:$0xff]
      %v3225 = vld [vmem:[%s3152 + $0x240] sm:$0xff]
      %v3226 = vld [vmem:[%s3152 + $0x248] sm:$0xff]
      %v3227 = vld [vmem:[%s3152 + $0x250] sm:$0xff]
      %v3228 = vld [vmem:[%s3152 + $0x258] sm:$0xff]
      %v3229 = vld [vmem:[%s3152 + $0x260] sm:$0xff]
      %v3230 = vld [vmem:[%s3152 + $0x268] sm:$0xff]
      %v3231 = vld [vmem:[%s3152 + $0x270] sm:$0xff]
      %v3232 = vld [vmem:[%s3152 + $0x278] sm:$0xff]
      %v3233 = vld [vmem:[%s3152 + $0x280] sm:$0xff]
      %v3234 = vld [vmem:[%s3152 + $0x288] sm:$0xff]
      %v3235 = vld [vmem:[%s3152 + $0x290] sm:$0xff]
      %v3236 = vld [vmem:[%s3152 + $0x298] sm:$0xff]
      %v3237 = vld [vmem:[%s3152 + $0x2a0] sm:$0xff]
      %v3238 = vld [vmem:[%s3152 + $0x2a8] sm:$0xff]
      %v3239 = vld [vmem:[%s3152 + $0x2b0] sm:$0xff]
      %v3240 = vld [vmem:[%s3152 + $0x2b8] sm:$0xff]
      %v3241 = vld [vmem:[%s3152 + $0x2c0] sm:$0xff]
      %v3242 = vld [vmem:[%s3152 + $0x2c8] sm:$0xff]
      %v3243 = vld [vmem:[%s3152 + $0x2d0] sm:$0xff]
      %v3244 = vld [vmem:[%s3152 + $0x2d8] sm:$0xff]
      %v3245 = vld [vmem:[%s3152 + $0x2e0] sm:$0xff]
      %v3246 = vld [vmem:[%s3152 + $0x2e8] sm:$0xff]
      %v3247 = vld [vmem:[%s3152 + $0x2f0] sm:$0xff]
      %v3248 = vld [vmem:[%s3152 + $0x2f8] sm:$0xff]
      %v3345 = vunpack.c.l.b16 %v3153
      %v3346 = vunpack.c.h.b16 %v3153
      %v3347 = vunpack.c.l.b16 %v3154
      %v3348 = vunpack.c.h.b16 %v3154
      %v3349 = vunpack.c.l.b16 %v3155
      %v3350 = vunpack.c.h.b16 %v3155
      %v3351 = vunpack.c.l.b16 %v3156
      %v3352 = vunpack.c.h.b16 %v3156
      %v3353 = vunpack.c.l.b16 %v3157
      %v3354 = vunpack.c.h.b16 %v3157
      %v3355 = vunpack.c.l.b16 %v3158
      %v3356 = vunpack.c.h.b16 %v3158
      %v3357 = vunpack.c.l.b16 %v3159
      %v3358 = vunpack.c.h.b16 %v3159
      %v3359 = vunpack.c.l.b16 %v3160
      %v3360 = vunpack.c.h.b16 %v3160
      %v3361 = vunpack.c.l.b16 %v3161
      %v3362 = vunpack.c.h.b16 %v3161
      %v3363 = vunpack.c.l.b16 %v3162
      %v3364 = vunpack.c.h.b16 %v3162
      %v3365 = vunpack.c.l.b16 %v3163
      %v3366 = vunpack.c.h.b16 %v3163
      %v3367 = vunpack.c.l.b16 %v3164
      %v3368 = vunpack.c.h.b16 %v3164
      %v3369 = vunpack.c.l.b16 %v3165
      %v3370 = vunpack.c.h.b16 %v3165
      %v3371 = vunpack.c.l.b16 %v3166
      %v3372 = vunpack.c.h.b16 %v3166
      %v3373 = vunpack.c.l.b16 %v3167
      %v3374 = vunpack.c.h.b16 %v3167
      %v3375 = vunpack.c.l.b16 %v3168
      %v3376 = vunpack.c.h.b16 %v3168
      %v3377 = vunpack.c.l.b16 %v3169
      %v3378 = vunpack.c.h.b16 %v3169
      %v3379 = vunpack.c.l.b16 %v3170
      %v3380 = vunpack.c.h.b16 %v3170
      %v3381 = vunpack.c.l.b16 %v3171
      %v3382 = vunpack.c.h.b16 %v3171
      %v3383 = vunpack.c.l.b16 %v3172
      %v3384 = vunpack.c.h.b16 %v3172
      %v3385 = vunpack.c.l.b16 %v3173
      %v3386 = vunpack.c.h.b16 %v3173
      %v3387 = vunpack.c.l.b16 %v3174
      %v3388 = vunpack.c.h.b16 %v3174
      %v3389 = vunpack.c.l.b16 %v3175
      %v3390 = vunpack.c.h.b16 %v3175
      %v3391 = vunpack.c.l.b16 %v3176
      %v3392 = vunpack.c.h.b16 %v3176
      %v3393 = vunpack.c.l.b16 %v3177
      %v3394 = vunpack.c.h.b16 %v3177
      %v3395 = vunpack.c.l.b16 %v3178
      %v3396 = vunpack.c.h.b16 %v3178
      %v3397 = vunpack.c.l.b16 %v3179
      %v3398 = vunpack.c.h.b16 %v3179
      %v3399 = vunpack.c.l.b16 %v3180
      %v3400 = vunpack.c.h.b16 %v3180
      %v3401 = vunpack.c.l.b16 %v3181
      %v3402 = vunpack.c.h.b16 %v3181
      %v3403 = vunpack.c.l.b16 %v3182
      %v3404 = vunpack.c.h.b16 %v3182
      %v3405 = vunpack.c.l.b16 %v3183
      %v3406 = vunpack.c.h.b16 %v3183
      %v3407 = vunpack.c.l.b16 %v3184
      %v3408 = vunpack.c.h.b16 %v3184
      %v3409 = vunpack.c.l.b16 %v3185
      %v3410 = vunpack.c.h.b16 %v3185
      %v3411 = vunpack.c.l.b16 %v3186
      %v3412 = vunpack.c.h.b16 %v3186
      %v3413 = vunpack.c.l.b16 %v3187
      %v3414 = vunpack.c.h.b16 %v3187
      %v3415 = vunpack.c.l.b16 %v3188
      %v3416 = vunpack.c.h.b16 %v3188
      %v3417 = vunpack.c.l.b16 %v3189
      %v3418 = vunpack.c.h.b16 %v3189
      %v3419 = vunpack.c.l.b16 %v3190
      %v3420 = vunpack.c.h.b16 %v3190
      %v3421 = vunpack.c.l.b16 %v3191
      %v3422 = vunpack.c.h.b16 %v3191
      %v3423 = vunpack.c.l.b16 %v3192
      %v3424 = vunpack.c.h.b16 %v3192
      %v3425 = vunpack.c.l.b16 %v3193
      %v3426 = vunpack.c.h.b16 %v3193
      %v3427 = vunpack.c.l.b16 %v3194
      %v3428 = vunpack.c.h.b16 %v3194
      %v3429 = vunpack.c.l.b16 %v3195
      %v3430 = vunpack.c.h.b16 %v3195
      %v3431 = vunpack.c.l.b16 %v3196
      %v3432 = vunpack.c.h.b16 %v3196
      %v3433 = vunpack.c.l.b16 %v3197
      %v3434 = vunpack.c.h.b16 %v3197
      %v3435 = vunpack.c.l.b16 %v3198
      %v3436 = vunpack.c.h.b16 %v3198
      %v3437 = vunpack.c.l.b16 %v3199
      %v3438 = vunpack.c.h.b16 %v3199
      %v3439 = vunpack.c.l.b16 %v3200
      %v3440 = vunpack.c.h.b16 %v3200
      %v3441 = vunpack.c.l.b16 %v3201
      %v3442 = vunpack.c.h.b16 %v3201
      %v3443 = vunpack.c.l.b16 %v3202
      %v3444 = vunpack.c.h.b16 %v3202
      %v3445 = vunpack.c.l.b16 %v3203
      %v3446 = vunpack.c.h.b16 %v3203
      %v3447 = vunpack.c.l.b16 %v3204
      %v3448 = vunpack.c.h.b16 %v3204
      %v3449 = vunpack.c.l.b16 %v3205
      %v3450 = vunpack.c.h.b16 %v3205
      %v3451 = vunpack.c.l.b16 %v3206
      %v3452 = vunpack.c.h.b16 %v3206
      %v3453 = vunpack.c.l.b16 %v3207
      %v3454 = vunpack.c.h.b16 %v3207
      %v3455 = vunpack.c.l.b16 %v3208
      %v3456 = vunpack.c.h.b16 %v3208
      %v3457 = vunpack.c.l.b16 %v3209
      %v3458 = vunpack.c.h.b16 %v3209
      %v3459 = vunpack.c.l.b16 %v3210
      %v3460 = vunpack.c.h.b16 %v3210
      %v3461 = vunpack.c.l.b16 %v3211
      %v3462 = vunpack.c.h.b16 %v3211
      %v3463 = vunpack.c.l.b16 %v3212
      %v3464 = vunpack.c.h.b16 %v3212
      %v3465 = vunpack.c.l.b16 %v3213
      %v3466 = vunpack.c.h.b16 %v3213
      %v3467 = vunpack.c.l.b16 %v3214
      %v3468 = vunpack.c.h.b16 %v3214
      %v3469 = vunpack.c.l.b16 %v3215
      %v3470 = vunpack.c.h.b16 %v3215
      %v3471 = vunpack.c.l.b16 %v3216
      %v3472 = vunpack.c.h.b16 %v3216
      %v3473 = vunpack.c.l.b16 %v3217
      %v3474 = vunpack.c.h.b16 %v3217
      %v3475 = vunpack.c.l.b16 %v3218
      %v3476 = vunpack.c.h.b16 %v3218
      %v3477 = vunpack.c.l.b16 %v3219
      %v3478 = vunpack.c.h.b16 %v3219
      %v3479 = vunpack.c.l.b16 %v3220
      %v3480 = vunpack.c.h.b16 %v3220
      %v3481 = vunpack.c.l.b16 %v3221
      %v3482 = vunpack.c.h.b16 %v3221
      %v3483 = vunpack.c.l.b16 %v3222
      %v3484 = vunpack.c.h.b16 %v3222
      %v3485 = vunpack.c.l.b16 %v3223
      %v3486 = vunpack.c.h.b16 %v3223
      %v3487 = vunpack.c.l.b16 %v3224
      %v3488 = vunpack.c.h.b16 %v3224
      %v3489 = vunpack.c.l.b16 %v3225
      %v3490 = vunpack.c.h.b16 %v3225
      %v3491 = vunpack.c.l.b16 %v3226
      %v3492 = vunpack.c.h.b16 %v3226
      %v3493 = vunpack.c.l.b16 %v3227
      %v3494 = vunpack.c.h.b16 %v3227
      %v3495 = vunpack.c.l.b16 %v3228
      %v3496 = vunpack.c.h.b16 %v3228
      %v3497 = vunpack.c.l.b16 %v3229
      %v3498 = vunpack.c.h.b16 %v3229
      %v3499 = vunpack.c.l.b16 %v3230
      %v3500 = vunpack.c.h.b16 %v3230
      %v3501 = vunpack.c.l.b16 %v3231
      %v3502 = vunpack.c.h.b16 %v3231
      %v3503 = vunpack.c.l.b16 %v3232
      %v3504 = vunpack.c.h.b16 %v3232
      %v3505 = vunpack.c.l.b16 %v3233
      %v3506 = vunpack.c.h.b16 %v3233
      %v3507 = vunpack.c.l.b16 %v3234
      %v3508 = vunpack.c.h.b16 %v3234
      %v3509 = vunpack.c.l.b16 %v3235
      %v3510 = vunpack.c.h.b16 %v3235
      %v3511 = vunpack.c.l.b16 %v3236
      %v3512 = vunpack.c.h.b16 %v3236
      %v3513 = vunpack.c.l.b16 %v3237
      %v3514 = vunpack.c.h.b16 %v3237
      %v3515 = vunpack.c.l.b16 %v3238
      %v3516 = vunpack.c.h.b16 %v3238
      %v3517 = vunpack.c.l.b16 %v3239
      %v3518 = vunpack.c.h.b16 %v3239
      %v3519 = vunpack.c.l.b16 %v3240
      %v3520 = vunpack.c.h.b16 %v3240
      %v3521 = vunpack.c.l.b16 %v3241
      %v3522 = vunpack.c.h.b16 %v3241
      %v3523 = vunpack.c.l.b16 %v3242
      %v3524 = vunpack.c.h.b16 %v3242
      %v3525 = vunpack.c.l.b16 %v3243
      %v3526 = vunpack.c.h.b16 %v3243
      %v3527 = vunpack.c.l.b16 %v3244
      %v3528 = vunpack.c.h.b16 %v3244
      %v3529 = vunpack.c.l.b16 %v3245
      %v3530 = vunpack.c.h.b16 %v3245
      %v3531 = vunpack.c.l.b16 %v3246
      %v3532 = vunpack.c.h.b16 %v3246
      %v3533 = vunpack.c.l.b16 %v3247
      %v3534 = vunpack.c.h.b16 %v3247
      %v3535 = vunpack.c.l.b16 %v3248
      %v3536 = vunpack.c.h.b16 %v3248
      %v3537 = vpack.c.b16 %v3347, %v3345
      %v3538 = vpack.c.b16 %v3348, %v3346
      %v3539 = vpack.c.b16 %v3351, %v3349
      %v3540 = vpack.c.b16 %v3352, %v3350
      %v3541 = vpack.c.b16 %v3355, %v3353
      %v3542 = vpack.c.b16 %v3356, %v3354
      %v3543 = vpack.c.b16 %v3359, %v3357
      %v3544 = vpack.c.b16 %v3360, %v3358
      %v3545 = vpack.c.b16 %v3363, %v3361
      %v3546 = vpack.c.b16 %v3364, %v3362
      %v3547 = vpack.c.b16 %v3367, %v3365
      %v3548 = vpack.c.b16 %v3368, %v3366
      %v3549 = vpack.c.b16 %v3371, %v3369
      %v3550 = vpack.c.b16 %v3372, %v3370
      %v3551 = vpack.c.b16 %v3375, %v3373
      %v3552 = vpack.c.b16 %v3376, %v3374
      %v3553 = vpack.c.b16 %v3379, %v3377
      %v3554 = vpack.c.b16 %v3380, %v3378
      %v3555 = vpack.c.b16 %v3383, %v3381
      %v3556 = vpack.c.b16 %v3384, %v3382
      %v3557 = vpack.c.b16 %v3387, %v3385
      %v3558 = vpack.c.b16 %v3388, %v3386
      %v3559 = vpack.c.b16 %v3391, %v3389
      %v3560 = vpack.c.b16 %v3392, %v3390
      %v3561 = vpack.c.b16 %v3395, %v3393
      %v3562 = vpack.c.b16 %v3396, %v3394
      %v3563 = vpack.c.b16 %v3399, %v3397
      %v3564 = vpack.c.b16 %v3400, %v3398
      %v3565 = vpack.c.b16 %v3403, %v3401
      %v3566 = vpack.c.b16 %v3404, %v3402
      %v3567 = vpack.c.b16 %v3407, %v3405
      %v3568 = vpack.c.b16 %v3408, %v3406
      %v3569 = vpack.c.b16 %v3411, %v3409
      %v3570 = vpack.c.b16 %v3412, %v3410
      %v3571 = vpack.c.b16 %v3415, %v3413
      %v3572 = vpack.c.b16 %v3416, %v3414
      %v3573 = vpack.c.b16 %v3419, %v3417
      %v3574 = vpack.c.b16 %v3420, %v3418
      %v3575 = vpack.c.b16 %v3423, %v3421
      %v3576 = vpack.c.b16 %v3424, %v3422
      %v3577 = vpack.c.b16 %v3427, %v3425
      %v3578 = vpack.c.b16 %v3428, %v3426
      %v3579 = vpack.c.b16 %v3431, %v3429
      %v3580 = vpack.c.b16 %v3432, %v3430
      %v3581 = vpack.c.b16 %v3435, %v3433
      %v3582 = vpack.c.b16 %v3436, %v3434
      %v3583 = vpack.c.b16 %v3439, %v3437
      %v3584 = vpack.c.b16 %v3440, %v3438
      %v3585 = vpack.c.b16 %v3443, %v3441
      %v3586 = vpack.c.b16 %v3444, %v3442
      %v3587 = vpack.c.b16 %v3447, %v3445
      %v3588 = vpack.c.b16 %v3448, %v3446
      %v3589 = vpack.c.b16 %v3451, %v3449
      %v3590 = vpack.c.b16 %v3452, %v3450
      %v3591 = vpack.c.b16 %v3455, %v3453
      %v3592 = vpack.c.b16 %v3456, %v3454
      %v3593 = vpack.c.b16 %v3459, %v3457
      %v3594 = vpack.c.b16 %v3460, %v3458
      %v3595 = vpack.c.b16 %v3463, %v3461
      %v3596 = vpack.c.b16 %v3464, %v3462
      %v3597 = vpack.c.b16 %v3467, %v3465
      %v3598 = vpack.c.b16 %v3468, %v3466
      %v3599 = vpack.c.b16 %v3471, %v3469
      %v3600 = vpack.c.b16 %v3472, %v3470
      %v3601 = vpack.c.b16 %v3475, %v3473
      %v3602 = vpack.c.b16 %v3476, %v3474
      %v3603 = vpack.c.b16 %v3479, %v3477
      %v3604 = vpack.c.b16 %v3480, %v3478
      %v3605 = vpack.c.b16 %v3483, %v3481
      %v3606 = vpack.c.b16 %v3484, %v3482
      %v3607 = vpack.c.b16 %v3487, %v3485
      %v3608 = vpack.c.b16 %v3488, %v3486
      %v3609 = vpack.c.b16 %v3491, %v3489
      %v3610 = vpack.c.b16 %v3492, %v3490
      %v3611 = vpack.c.b16 %v3495, %v3493
      %v3612 = vpack.c.b16 %v3496, %v3494
      %v3613 = vpack.c.b16 %v3499, %v3497
      %v3614 = vpack.c.b16 %v3500, %v3498
      %v3615 = vpack.c.b16 %v3503, %v3501
      %v3616 = vpack.c.b16 %v3504, %v3502
      %v3617 = vpack.c.b16 %v3507, %v3505
      %v3618 = vpack.c.b16 %v3508, %v3506
      %v3619 = vpack.c.b16 %v3511, %v3509
      %v3620 = vpack.c.b16 %v3512, %v3510
      %v3621 = vpack.c.b16 %v3515, %v3513
      %v3622 = vpack.c.b16 %v3516, %v3514
      %v3623 = vpack.c.b16 %v3519, %v3517
      %v3624 = vpack.c.b16 %v3520, %v3518
      %v3625 = vpack.c.b16 %v3523, %v3521
      %v3626 = vpack.c.b16 %v3524, %v3522
      %v3627 = vpack.c.b16 %v3527, %v3525
      %v3628 = vpack.c.b16 %v3528, %v3526
      %v3629 = vpack.c.b16 %v3531, %v3529
      %v3630 = vpack.c.b16 %v3532, %v3530
      %v3631 = vpack.c.b16 %v3535, %v3533
      %v3632 = vpack.c.b16 %v3536, %v3534
      %3729 = vmatprep.subr.bf16.mxu0 %v3552
      %3730 = vmatpush1.bf16.msra.mxu0 %v3551
      %3731 = vmatprep.subr.bf16.mxu0 %v3550
      %3732 = vmatpush1.bf16.msra.mxu0 %v3549
      %3733 = vmatprep.subr.bf16.mxu0 %v3548
      %3734 = vmatpush1.bf16.msra.mxu0 %v3547
      %3735 = vmatprep.subr.bf16.mxu0 %v3546
      %3736 = vmatpush1.bf16.msra.mxu0 %v3545
      %3737 = vmatprep.subr.bf16.mxu0 %v3544
      %3738 = vmatpush1.bf16.msra.mxu0 %v3543
      %3739 = vmatprep.subr.bf16.mxu0 %v3542
      %3740 = vmatpush1.bf16.msra.mxu0 %v3541
      %3741 = vmatprep.subr.bf16.mxu0 %v3540
      %3742 = vmatpush1.bf16.msra.mxu0 %v3539
      %3743 = vmatprep.subr.bf16.mxu0 %v3538
      %3744 = vmatpush1.bf16.msra.mxu0 %v3537
      %3745 = vmatprep.subr.bf16.mxu0 %v3568
      %3746 = vmatpush2.bf16.msra.mxu0 %v3567
      %3747 = vmatprep.subr.bf16.mxu0 %v3566
      %3748 = vmatpush2.bf16.msra.mxu0 %v3565
      %3749 = vmatprep.subr.bf16.mxu0 %v3564
      %3750 = vmatpush2.bf16.msra.mxu0 %v3563
      %3751 = vmatprep.subr.bf16.mxu0 %v3562
      %3752 = vmatpush2.bf16.msra.mxu0 %v3561
      %3753 = vmatprep.subr.bf16.mxu0 %v3560
      %3754 = vmatpush2.bf16.msra.mxu0 %v3559
      %3755 = vmatprep.subr.bf16.mxu0 %v3558
      %3756 = vmatpush2.bf16.msra.mxu0 %v3557
      %3757 = vmatprep.subr.bf16.mxu0 %v3556
      %3758 = vmatpush2.bf16.msra.mxu0 %v3555
      %3759 = vmatprep.subr.bf16.mxu0 %v3554
      %3760 = vmatpush2.bf16.msra.mxu0 %v3553
      %3761 = vmatprep.mubr.bf16.mxu0 %v908
      %3762 = vmatmul.mubr.bf16.gmra.mxu0 %v907
      %v3763 = vpop.f32.mrf.mxu0
      %v3764 = vadd.f32 0.0, %v3763
      %v3765 = vpop.f32.mrf.mxu0
      %v3766 = vadd.f32 0.0, %v3765
      %v3767 = vpop.f32.mrf.mxu0
      %v3768 = vadd.f32 0.0, %v3767
      %v3769 = vpop.f32.mrf.mxu0
      %v3770 = vadd.f32 0.0, %v3769
      %3771 = vmatprep.mubr.bf16.mxu0 %v912
      %3772 = vmatmul.mubr.bf16.gmra.mxu0 %v911
      %v3773 = vpop.f32.mrf.mxu0
      %v3774 = vadd.f32 0.0, %v3773
      %v3775 = vpop.f32.mrf.mxu0
      %v3776 = vadd.f32 0.0, %v3775
      %v3777 = vpop.f32.mrf.mxu0
      %v3778 = vadd.f32 0.0, %v3777
      %v3779 = vpop.f32.mrf.mxu0
      %v3780 = vadd.f32 0.0, %v3779
      %3781 = vmatprep.mubr.bf16.mxu0 %v916
      %3782 = vmatmul.mubr.bf16.gmra.mxu0 %v915
      %v3783 = vpop.f32.mrf.mxu0
      %v3784 = vadd.f32 0.0, %v3783
      %v3785 = vpop.f32.mrf.mxu0
      %v3786 = vadd.f32 0.0, %v3785
      %v3787 = vpop.f32.mrf.mxu0
      %v3788 = vadd.f32 0.0, %v3787
      %v3789 = vpop.f32.mrf.mxu0
      %v3790 = vadd.f32 0.0, %v3789
      %3791 = vmatprep.mubr.bf16.mxu0 %v920
      %3792 = vmatmul.mubr.bf16.gmra.mxu0 %v919
      %v3793 = vpop.f32.mrf.mxu0
      %v3794 = vadd.f32 0.0, %v3793
      %v3795 = vpop.f32.mrf.mxu0
      %v3796 = vadd.f32 0.0, %v3795
      %v3797 = vpop.f32.mrf.mxu0
      %v3798 = vadd.f32 0.0, %v3797
      %v3799 = vpop.f32.mrf.mxu0
      %v3800 = vadd.f32 0.0, %v3799
      %3801 = vmatprep.mubr.bf16.mxu0 %v924
      %3802 = vmatmul.mubr.bf16.gmra.mxu0 %v923
      %v3803 = vpop.f32.mrf.mxu0
      %v3804 = vadd.f32 0.0, %v3803
      %v3805 = vpop.f32.mrf.mxu0
      %v3806 = vadd.f32 0.0, %v3805
      %v3807 = vpop.f32.mrf.mxu0
      %v3808 = vadd.f32 0.0, %v3807
      %v3809 = vpop.f32.mrf.mxu0
      %v3810 = vadd.f32 0.0, %v3809
      %3811 = vmatprep.mubr.bf16.mxu0 %v928
      %3812 = vmatmul.mubr.bf16.gmra.mxu0 %v927
      %v3813 = vpop.f32.mrf.mxu0
      %v3814 = vadd.f32 0.0, %v3813
      %v3815 = vpop.f32.mrf.mxu0
      %v3816 = vadd.f32 0.0, %v3815
      %v3817 = vpop.f32.mrf.mxu0
      %v3818 = vadd.f32 0.0, %v3817
      %v3819 = vpop.f32.mrf.mxu0
      %v3820 = vadd.f32 0.0, %v3819
      %3821 = vmatprep.mubr.bf16.mxu0 %v932
      %3822 = vmatmul.mubr.bf16.gmra.mxu0 %v931
      %v3823 = vpop.f32.mrf.mxu0
      %v3824 = vadd.f32 0.0, %v3823
      %v3825 = vpop.f32.mrf.mxu0
      %v3826 = vadd.f32 0.0, %v3825
      %v3827 = vpop.f32.mrf.mxu0
      %v3828 = vadd.f32 0.0, %v3827
      %v3829 = vpop.f32.mrf.mxu0
      %v3830 = vadd.f32 0.0, %v3829
      %3831 = vmatprep.mubr.bf16.mxu0 %v936
      %3832 = vmatmul.mubr.bf16.gmra.mxu0 %v935
      %v3833 = vpop.f32.mrf.mxu0
      %v3834 = vadd.f32 0.0, %v3833
      %v3835 = vpop.f32.mrf.mxu0
      %v3836 = vadd.f32 0.0, %v3835
      %v3837 = vpop.f32.mrf.mxu0
      %v3838 = vadd.f32 0.0, %v3837
      %v3839 = vpop.f32.mrf.mxu0
      %v3840 = vadd.f32 0.0, %v3839
      %3841 = vdwg.mxu0
      %3842 = vmatprep.subr.bf16.mxu0 %v3584
      %3843 = vmatpush1.bf16.msra.mxu0 %v3583
      %3844 = vmatprep.subr.bf16.mxu0 %v3582
      %3845 = vmatpush1.bf16.msra.mxu0 %v3581
      %3846 = vmatprep.subr.bf16.mxu0 %v3580
      %3847 = vmatpush1.bf16.msra.mxu0 %v3579
      %3848 = vmatprep.subr.bf16.mxu0 %v3578
      %3849 = vmatpush1.bf16.msra.mxu0 %v3577
      %3850 = vmatprep.subr.bf16.mxu0 %v3576
      %3851 = vmatpush1.bf16.msra.mxu0 %v3575
      %3852 = vmatprep.subr.bf16.mxu0 %v3574
      %3853 = vmatpush1.bf16.msra.mxu0 %v3573
      %3854 = vmatprep.subr.bf16.mxu0 %v3572
      %3855 = vmatpush1.bf16.msra.mxu0 %v3571
      %3856 = vmatprep.subr.bf16.mxu0 %v3570
      %3857 = vmatpush1.bf16.msra.mxu0 %v3569
      %3858 = vmatprep.subr.bf16.mxu0 %v3600
      %3859 = vmatpush2.bf16.msra.mxu0 %v3599
      %3860 = vmatprep.subr.bf16.mxu0 %v3598
      %3861 = vmatpush2.bf16.msra.mxu0 %v3597
      %3862 = vmatprep.subr.bf16.mxu0 %v3596
      %3863 = vmatpush2.bf16.msra.mxu0 %v3595
      %3864 = vmatprep.subr.bf16.mxu0 %v3594
      %3865 = vmatpush2.bf16.msra.mxu0 %v3593
      %3866 = vmatprep.subr.bf16.mxu0 %v3592
      %3867 = vmatpush2.bf16.msra.mxu0 %v3591
      %3868 = vmatprep.subr.bf16.mxu0 %v3590
      %3869 = vmatpush2.bf16.msra.mxu0 %v3589
      %3870 = vmatprep.subr.bf16.mxu0 %v3588
      %3871 = vmatpush2.bf16.msra.mxu0 %v3587
      %3872 = vmatprep.subr.bf16.mxu0 %v3586
      %3873 = vmatpush2.bf16.msra.mxu0 %v3585
      %3874 = vmatprep.mubr.bf16.mxu0 %v1011
      %3875 = vmatmul.mubr.bf16.gmra.mxu0 %v999
      %v3876 = vpop.f32.mrf.mxu0
      %v3877 = vadd.f32 %v3764, %v3876
      %v3878 = vpop.f32.mrf.mxu0
      %v3879 = vadd.f32 %v3766, %v3878
      %v3880 = vpop.f32.mrf.mxu0
      %v3881 = vadd.f32 %v3768, %v3880
      %v3882 = vpop.f32.mrf.mxu0
      %v3883 = vadd.f32 %v3770, %v3882
      %3884 = vmatprep.mubr.bf16.mxu0 %v1035
      %3885 = vmatmul.mubr.bf16.gmra.mxu0 %v1023
      %v3886 = vpop.f32.mrf.mxu0
      %v3887 = vadd.f32 %v3774, %v3886
      %v3888 = vpop.f32.mrf.mxu0
      %v3889 = vadd.f32 %v3776, %v3888
      %v3890 = vpop.f32.mrf.mxu0
      %v3891 = vadd.f32 %v3778, %v3890
      %v3892 = vpop.f32.mrf.mxu0
      %v3893 = vadd.f32 %v3780, %v3892
      %3894 = vmatprep.mubr.bf16.mxu0 %v1059
      %3895 = vmatmul.mubr.bf16.gmra.mxu0 %v1047
      %v3896 = vpop.f32.mrf.mxu0
      %v3897 = vadd.f32 %v3784, %v3896
      %v3898 = vpop.f32.mrf.mxu0
      %v3899 = vadd.f32 %v3786, %v3898
      %v3900 = vpop.f32.mrf.mxu0
      %v3901 = vadd.f32 %v3788, %v3900
      %v3902 = vpop.f32.mrf.mxu0
      %v3903 = vadd.f32 %v3790, %v3902
      %3904 = vmatprep.mubr.bf16.mxu0 %v1083
      %3905 = vmatmul.mubr.bf16.gmra.mxu0 %v1071
      %v3906 = vpop.f32.mrf.mxu0
      %v3907 = vadd.f32 %v3794, %v3906
      %v3908 = vpop.f32.mrf.mxu0
      %v3909 = vadd.f32 %v3796, %v3908
      %v3910 = vpop.f32.mrf.mxu0
      %v3911 = vadd.f32 %v3798, %v3910
      %v3912 = vpop.f32.mrf.mxu0
      %v3913 = vadd.f32 %v3800, %v3912
      %3914 = vmatprep.mubr.bf16.mxu0 %v1107
      %3915 = vmatmul.mubr.bf16.gmra.mxu0 %v1095
      %v3916 = vpop.f32.mrf.mxu0
      %v3917 = vadd.f32 %v3804, %v3916
      %v3918 = vpop.f32.mrf.mxu0
      %v3919 = vadd.f32 %v3806, %v3918
      %v3920 = vpop.f32.mrf.mxu0
      %v3921 = vadd.f32 %v3808, %v3920
      %v3922 = vpop.f32.mrf.mxu0
      %v3923 = vadd.f32 %v3810, %v3922
      %3924 = vmatprep.mubr.bf16.mxu0 %v1131
      %3925 = vmatmul.mubr.bf16.gmra.mxu0 %v1119
      %v3926 = vpop.f32.mrf.mxu0
      %v3927 = vadd.f32 %v3814, %v3926
      %v3928 = vpop.f32.mrf.mxu0
      %v3929 = vadd.f32 %v3816, %v3928
      %v3930 = vpop.f32.mrf.mxu0
      %v3931 = vadd.f32 %v3818, %v3930
      %v3932 = vpop.f32.mrf.mxu0
      %v3933 = vadd.f32 %v3820, %v3932
      %3934 = vmatprep.mubr.bf16.mxu0 %v1364
      %3935 = vmatmul.mubr.bf16.gmra.mxu0 %v1352
      %v3936 = vpop.f32.mrf.mxu0
      %v3937 = vadd.f32 %v3824, %v3936
      %v3938 = vpop.f32.mrf.mxu0
      %v3939 = vadd.f32 %v3826, %v3938
      %v3940 = vpop.f32.mrf.mxu0
      %v3941 = vadd.f32 %v3828, %v3940
      %v3942 = vpop.f32.mrf.mxu0
      %v3943 = vadd.f32 %v3830, %v3942
      %3944 = vmatprep.mubr.bf16.mxu0 %v3137
      %3945 = vmatmul.mubr.bf16.gmra.mxu0 %v3125
      %v3946 = vpop.f32.mrf.mxu0
      %v3947 = vadd.f32 %v3834, %v3946
      %v3948 = vpop.f32.mrf.mxu0
      %v3949 = vadd.f32 %v3836, %v3948
      %v3950 = vpop.f32.mrf.mxu0
      %v3951 = vadd.f32 %v3838, %v3950
      %v3952 = vpop.f32.mrf.mxu0
      %v3953 = vadd.f32 %v3840, %v3952
      %3954 = vdwg.mxu0
      %3955 = vmatprep.subr.bf16.mxu0 %v3616
      %3956 = vmatpush1.bf16.msra.mxu0 %v3615
      %3957 = vmatprep.subr.bf16.mxu0 %v3614
      %3958 = vmatpush1.bf16.msra.mxu0 %v3613
      %3959 = vmatprep.subr.bf16.mxu0 %v3612
      %3960 = vmatpush1.bf16.msra.mxu0 %v3611
      %3961 = vmatprep.subr.bf16.mxu0 %v3610
      %3962 = vmatpush1.bf16.msra.mxu0 %v3609
      %3963 = vmatprep.subr.bf16.mxu0 %v3608
      %3964 = vmatpush1.bf16.msra.mxu0 %v3607
      %3965 = vmatprep.subr.bf16.mxu0 %v3606
      %3966 = vmatpush1.bf16.msra.mxu0 %v3605
      %3967 = vmatprep.subr.bf16.mxu0 %v3604
      %3968 = vmatpush1.bf16.msra.mxu0 %v3603
      %3969 = vmatprep.subr.bf16.mxu0 %v3602
      %3970 = vmatpush1.bf16.msra.mxu0 %v3601
      %3971 = vmatprep.subr.bf16.mxu0 %v3632
      %3972 = vmatpush2.bf16.msra.mxu0 %v3631
      %3973 = vmatprep.subr.bf16.mxu0 %v3630
      %3974 = vmatpush2.bf16.msra.mxu0 %v3629
      %3975 = vmatprep.subr.bf16.mxu0 %v3628
      %3976 = vmatpush2.bf16.msra.mxu0 %v3627
      %3977 = vmatprep.subr.bf16.mxu0 %v3626
      %3978 = vmatpush2.bf16.msra.mxu0 %v3625
      %3979 = vmatprep.subr.bf16.mxu0 %v3624
      %3980 = vmatpush2.bf16.msra.mxu0 %v3623
      %3981 = vmatprep.subr.bf16.mxu0 %v3622
      %3982 = vmatpush2.bf16.msra.mxu0 %v3621
      %3983 = vmatprep.subr.bf16.mxu0 %v3620
      %3984 = vmatpush2.bf16.msra.mxu0 %v3619
      %3985 = vmatprep.subr.bf16.mxu0 %v3618
      %3986 = vmatpush2.bf16.msra.mxu0 %v3617
      %3987 = vmatprep.mubr.bf16.mxu0 %v1198
      %3988 = vmatmul.mubr.bf16.gmra.mxu0 %v1195
      %v3989 = vpop.f32.mrf.mxu0
      %v3990 = vadd.f32 %v3877, %v3989
      %v3991 = vpop.f32.mrf.mxu0
      %v3992 = vadd.f32 %v3879, %v3991
      %v3993 = vpop.f32.mrf.mxu0
      %v3994 = vadd.f32 %v3881, %v3993
      %v3995 = vpop.f32.mrf.mxu0
      %v3996 = vadd.f32 %v3883, %v3995
      %3997 = vmatprep.mubr.bf16.mxu0 %v1204
      %3998 = vmatmul.mubr.bf16.gmra.mxu0 %v1201
      %v3999 = vpop.f32.mrf.mxu0
      %v4000 = vadd.f32 %v3887, %v3999
      %v4001 = vpop.f32.mrf.mxu0
      %v4002 = vadd.f32 %v3889, %v4001
      %v4003 = vpop.f32.mrf.mxu0
      %v4004 = vadd.f32 %v3891, %v4003
      %v4005 = vpop.f32.mrf.mxu0
      %v4006 = vadd.f32 %v3893, %v4005
      %4007 = vmatprep.mubr.bf16.mxu0 %v1210
      %4008 = vmatmul.mubr.bf16.gmra.mxu0 %v1207
      %v4009 = vpop.f32.mrf.mxu0
      %v4010 = vadd.f32 %v3897, %v4009
      %v4011 = vpop.f32.mrf.mxu0
      %v4012 = vadd.f32 %v3899, %v4011
      %v4013 = vpop.f32.mrf.mxu0
      %v4014 = vadd.f32 %v3901, %v4013
      %v4015 = vpop.f32.mrf.mxu0
      %v4016 = vadd.f32 %v3903, %v4015
      %4017 = vmatprep.mubr.bf16.mxu0 %v1216
      %4018 = vmatmul.mubr.bf16.gmra.mxu0 %v1213
      %v4019 = vpop.f32.mrf.mxu0
      %v4020 = vadd.f32 %v3907, %v4019
      %v4021 = vpop.f32.mrf.mxu0
      %v4022 = vadd.f32 %v3909, %v4021
      %v4023 = vpop.f32.mrf.mxu0
      %v4024 = vadd.f32 %v3911, %v4023
      %v4025 = vpop.f32.mrf.mxu0
      %v4026 = vadd.f32 %v3913, %v4025
      %4027 = vmatprep.mubr.bf16.mxu0 %v1222
      %4028 = vmatmul.mubr.bf16.gmra.mxu0 %v1219
      %v4029 = vpop.f32.mrf.mxu0
      %v4030 = vadd.f32 %v3917, %v4029
      %v4031 = vpop.f32.mrf.mxu0
      %v4032 = vadd.f32 %v3919, %v4031
      %v4033 = vpop.f32.mrf.mxu0
      %v4034 = vadd.f32 %v3921, %v4033
      %v4035 = vpop.f32.mrf.mxu0
      %v4036 = vadd.f32 %v3923, %v4035
      %4037 = vmatprep.mubr.bf16.mxu0 %v1228
      %4038 = vmatmul.mubr.bf16.gmra.mxu0 %v1225
      %v4039 = vpop.f32.mrf.mxu0
      %v4040 = vadd.f32 %v3927, %v4039
      %v4041 = vpop.f32.mrf.mxu0
      %v4042 = vadd.f32 %v3929, %v4041
      %v4043 = vpop.f32.mrf.mxu0
      %v4044 = vadd.f32 %v3931, %v4043
      %v4045 = vpop.f32.mrf.mxu0
      %v4046 = vadd.f32 %v3933, %v4045
      %4047 = vmatprep.mubr.bf16.mxu0 %v1376
      %4048 = vmatmul.mubr.bf16.gmra.mxu0 %v1373
      %v4049 = vpop.f32.mrf.mxu0
      %v4050 = vadd.f32 %v3937, %v4049
      %v4051 = vpop.f32.mrf.mxu0
      %v4052 = vadd.f32 %v3939, %v4051
      %v4053 = vpop.f32.mrf.mxu0
      %v4054 = vadd.f32 %v3941, %v4053
      %v4055 = vpop.f32.mrf.mxu0
      %v4056 = vadd.f32 %v3943, %v4055
      %4057 = vmatprep.mubr.bf16.mxu0 %v3149
      %4058 = vmatmul.mubr.bf16.gmra.mxu0 %v3146
      %v4059 = vpop.f32.mrf.mxu0
      %v4060 = vadd.f32 %v3947, %v4059
      %v4061 = vpop.f32.mrf.mxu0
      %v4062 = vadd.f32 %v3949, %v4061
      %v4063 = vpop.f32.mrf.mxu0
      %v4064 = vadd.f32 %v3951, %v4063
      %v4065 = vpop.f32.mrf.mxu0
      %v4066 = vadd.f32 %v3953, %v4065
      %4067 = vdwg.mxu0
      %v4068 = vadd.f32 %v3036, %v3990
      %v4069 = vadd.f32 %v3038, %v3992
      %v4070 = vadd.f32 %v3040, %v3994
      %v4071 = vadd.f32 %v3042, %v3996
      %v4072 = vadd.f32 %v3046, %v4000
      %v4073 = vadd.f32 %v3048, %v4002
      %v4074 = vadd.f32 %v3050, %v4004
      %v4075 = vadd.f32 %v3052, %v4006
      %v4076 = vadd.f32 %v3056, %v4010
      %v4077 = vadd.f32 %v3058, %v4012
      %v4078 = vadd.f32 %v3060, %v4014
      %v4079 = vadd.f32 %v3062, %v4016
      %v4080 = vadd.f32 %v3066, %v4020
      %v4081 = vadd.f32 %v3068, %v4022
      %v4082 = vadd.f32 %v3070, %v4024
      %v4083 = vadd.f32 %v3072, %v4026
      %v4084 = vadd.f32 %v3076, %v4030
      %v4085 = vadd.f32 %v3078, %v4032
      %v4086 = vadd.f32 %v3080, %v4034
      %v4087 = vadd.f32 %v3082, %v4036
      %v4088 = vadd.f32 %v3086, %v4040
      %v4089 = vadd.f32 %v3088, %v4042
      %v4090 = vadd.f32 %v3090, %v4044
      %v4091 = vadd.f32 %v3092, %v4046
      %v4092 = vadd.f32 %v3096, %v4050
      %v4093 = vadd.f32 %v3098, %v4052
      %v4094 = vadd.f32 %v3100, %v4054
      %v4095 = vadd.f32 %v3102, %v4056
      %v4096 = vadd.f32 %v3106, %v4060
      %v4097 = vadd.f32 %v3108, %v4062
      %v4098 = vadd.f32 %v3110, %v4064
      %v4099 = vadd.f32 %v3112, %v4066
      %v4100 = vpack.c.bf16 %v4070, %v4068
      %v4101 = vpack.c.bf16 %v4071, %v4069
      %v4102 = vpack.c.bf16 %v4074, %v4072
      %v4103 = vpack.c.bf16 %v4075, %v4073
      %v4104 = vpack.c.bf16 %v4078, %v4076
      %v4105 = vpack.c.bf16 %v4079, %v4077
      %v4106 = vpack.c.bf16 %v4082, %v4080
      %v4107 = vpack.c.bf16 %v4083, %v4081
      %v4108 = vpack.c.bf16 %v4086, %v4084
      %v4109 = vpack.c.bf16 %v4087, %v4085
      %v4110 = vpack.c.bf16 %v4090, %v4088
      %v4111 = vpack.c.bf16 %v4091, %v4089
      %v4112 = vpack.c.bf16 %v4094, %v4092
      %v4113 = vpack.c.bf16 %v4095, %v4093
      %v4114 = vpack.c.bf16 %v4098, %v4096
      %v4115 = vpack.c.bf16 %v4099, %v4097
      %v4132 = vunpack.c.l.b16 %v4100
      %v4133 = vunpack.c.l.b16 %v4101
      %v4134 = vunpack.c.h.b16 %v4100
      %v4135 = vunpack.c.h.b16 %v4101
      %v4136 = vunpack.c.l.b16 %v4102
      %v4137 = vunpack.c.l.b16 %v4103
      %v4138 = vunpack.c.h.b16 %v4102
      %v4139 = vunpack.c.h.b16 %v4103
      %v4140 = vunpack.c.l.b16 %v4104
      %v4141 = vunpack.c.l.b16 %v4105
      %v4142 = vunpack.c.h.b16 %v4104
      %v4143 = vunpack.c.h.b16 %v4105
      %v4144 = vunpack.c.l.b16 %v4106
      %v4145 = vunpack.c.l.b16 %v4107
      %v4146 = vunpack.c.h.b16 %v4106
      %v4147 = vunpack.c.h.b16 %v4107
      %v4148 = vunpack.c.l.b16 %v4108
      %v4149 = vunpack.c.l.b16 %v4109
      %v4150 = vunpack.c.h.b16 %v4108
      %v4151 = vunpack.c.h.b16 %v4109
      %v4152 = vunpack.c.l.b16 %v4110
      %v4153 = vunpack.c.l.b16 %v4111
      %v4154 = vunpack.c.h.b16 %v4110
      %v4155 = vunpack.c.h.b16 %v4111
      %v4156 = vunpack.c.l.b16 %v4112
      %v4157 = vunpack.c.l.b16 %v4113
      %v4158 = vunpack.c.h.b16 %v4112
      %v4159 = vunpack.c.h.b16 %v4113
      %v4160 = vunpack.c.l.b16 %v4114
      %v4161 = vunpack.c.l.b16 %v4115
      %v4162 = vunpack.c.h.b16 %v4114
      %v4163 = vunpack.c.h.b16 %v4115
      %v4164 = vpack.c.b16 %v4133, %v4132
      %v4165 = vpack.c.b16 %v4135, %v4134
      %v4166 = vpack.c.b16 %v4137, %v4136
      %v4167 = vpack.c.b16 %v4139, %v4138
      %v4168 = vpack.c.b16 %v4141, %v4140
      %v4169 = vpack.c.b16 %v4143, %v4142
      %v4170 = vpack.c.b16 %v4145, %v4144
      %v4171 = vpack.c.b16 %v4147, %v4146
      %v4172 = vpack.c.b16 %v4149, %v4148
      %v4173 = vpack.c.b16 %v4151, %v4150
      %v4174 = vpack.c.b16 %v4153, %v4152
      %v4175 = vpack.c.b16 %v4155, %v4154
      %v4176 = vpack.c.b16 %v4157, %v4156
      %v4177 = vpack.c.b16 %v4159, %v4158
      %v4178 = vpack.c.b16 %v4161, %v4160
      %v4179 = vpack.c.b16 %v4163, %v4162
      %4196 = vst [vmem:[%s586] sm:$0xff] %v4164
      %4197 = vst [vmem:[%s586 + $0x8] sm:$0xff] %v4165
      %4198 = vst [vmem:[%s586 + $0x10] sm:$0xff] %v4166
      %4199 = vst [vmem:[%s586 + $0x18] sm:$0xff] %v4167
      %4200 = vst [vmem:[%s586 + $0x20] sm:$0xff] %v4168
      %4201 = vst [vmem:[%s586 + $0x28] sm:$0xff] %v4169
      %4202 = vst [vmem:[%s586 + $0x30] sm:$0xff] %v4170
      %4203 = vst [vmem:[%s586 + $0x38] sm:$0xff] %v4171
      %4204 = vst [vmem:[%s586 + $0x40] sm:$0xff] %v4172
      %4205 = vst [vmem:[%s586 + $0x48] sm:$0xff] %v4173
      %4206 = vst [vmem:[%s586 + $0x50] sm:$0xff] %v4174
      %4207 = vst [vmem:[%s586 + $0x58] sm:$0xff] %v4175
      %4208 = vst [vmem:[%s586 + $0x60] sm:$0xff] %v4176
      %4209 = vst [vmem:[%s586 + $0x68] sm:$0xff] %v4177
      %4210 = vst [vmem:[%s586 + $0x70] sm:$0xff] %v4178
      %4211 = vst [vmem:[%s586 + $0x78] sm:$0xff] %v4179
      %v4212 = vadd.f32 %v4068, %v4070
      %v4213 = vadd.f32 %v4212, %v4072
      %v4214 = vadd.f32 %v4213, %v4074
      %v4215 = vadd.f32 %v4214, %v4076
      %v4216 = vadd.f32 %v4215, %v4078
      %v4217 = vadd.f32 %v4216, %v4080
      %v4218 = vadd.f32 %v4217, %v4082
      %v4219 = vadd.f32 %v4218, %v4084
      %v4220 = vadd.f32 %v4219, %v4086
      %v4221 = vadd.f32 %v4220, %v4088
      %v4222 = vadd.f32 %v4221, %v4090
      %v4223 = vadd.f32 %v4222, %v4092
      %v4224 = vadd.f32 %v4223, %v4094
      %v4225 = vadd.f32 %v4224, %v4096
      %v4226 = vadd.f32 %v4225, %v4098
      %v4227 = vrot.slane %v4226, 4
      %v4228 = vadd.f32 %v4226, %v4227
      %v4229 = vrot.slane %v4228, 2
      %v4230 = vadd.f32 %v4228, %v4229
      %v4231 = vrot.slane %v4230, 1
      %v4232 = vadd.f32 %v4230, %v4231
      %v4233 = vadd.f32 %v4069, %v4071
      %v4234 = vadd.f32 %v4233, %v4073
      %v4235 = vadd.f32 %v4234, %v4075
      %v4236 = vadd.f32 %v4235, %v4077
      %v4237 = vadd.f32 %v4236, %v4079
      %v4238 = vadd.f32 %v4237, %v4081
      %v4239 = vadd.f32 %v4238, %v4083
      %v4240 = vadd.f32 %v4239, %v4085
      %v4241 = vadd.f32 %v4240, %v4087
      %v4242 = vadd.f32 %v4241, %v4089
      %v4243 = vadd.f32 %v4242, %v4091
      %v4244 = vadd.f32 %v4243, %v4093
      %v4245 = vadd.f32 %v4244, %v4095
      %v4246 = vadd.f32 %v4245, %v4097
      %v4247 = vadd.f32 %v4246, %v4099
      %v4248 = vrot.slane %v4247, 4
      %v4249 = vadd.f32 %v4247, %v4248
      %v4250 = vrot.slane %v4249, 2
      %v4251 = vadd.f32 %v4249, %v4250
      %v4252 = vrot.slane %v4251, 1
      %v4253 = vadd.f32 %v4251, %v4252
      %v4254 = vrcp.pop 128.0
      %v4255 = vmul.f32 %v4232, %v4254
      %v4256 = vmul.f32 %v4253, %v4254
      %v4257 = vsub.f32 %v4068, %v4255
      %v4258 = vsub.f32 %v4069, %v4256
      %v4259 = vsub.f32 %v4070, %v4255
      %v4260 = vsub.f32 %v4071, %v4256
      %v4261 = vsub.f32 %v4072, %v4255
      %v4262 = vsub.f32 %v4073, %v4256
      %v4263 = vsub.f32 %v4074, %v4255
      %v4264 = vsub.f32 %v4075, %v4256
      %v4265 = vsub.f32 %v4076, %v4255
      %v4266 = vsub.f32 %v4077, %v4256
      %v4267 = vsub.f32 %v4078, %v4255
      %v4268 = vsub.f32 %v4079, %v4256
      %v4269 = vsub.f32 %v4080, %v4255
      %v4270 = vsub.f32 %v4081, %v4256
      %v4271 = vsub.f32 %v4082, %v4255
      %v4272 = vsub.f32 %v4083, %v4256
      %v4273 = vsub.f32 %v4084, %v4255
      %v4274 = vsub.f32 %v4085, %v4256
      %v4275 = vsub.f32 %v4086, %v4255
      %v4276 = vsub.f32 %v4087, %v4256
      %v4277 = vsub.f32 %v4088, %v4255
      %v4278 = vsub.f32 %v4089, %v4256
      %v4279 = vsub.f32 %v4090, %v4255
      %v4280 = vsub.f32 %v4091, %v4256
      %v4281 = vsub.f32 %v4092, %v4255
      %v4282 = vsub.f32 %v4093, %v4256
      %v4283 = vsub.f32 %v4094, %v4255
      %v4284 = vsub.f32 %v4095, %v4256
      %v4285 = vsub.f32 %v4096, %v4255
      %v4286 = vsub.f32 %v4097, %v4256
      %v4287 = vsub.f32 %v4098, %v4255
      %v4288 = vsub.f32 %v4099, %v4256
      %v4289 = vmul.f32 %v4257, %v4257
      %v4290 = vmul.f32 %v4258, %v4258
      %v4291 = vmul.f32 %v4259, %v4259
      %v4292 = vmul.f32 %v4260, %v4260
      %v4293 = vmul.f32 %v4261, %v4261
      %v4294 = vmul.f32 %v4262, %v4262
      %v4295 = vmul.f32 %v4263, %v4263
      %v4296 = vmul.f32 %v4264, %v4264
      %v4297 = vmul.f32 %v4265, %v4265
      %v4298 = vmul.f32 %v4266, %v4266
      %v4299 = vmul.f32 %v4267, %v4267
      %v4300 = vmul.f32 %v4268, %v4268
      %v4301 = vmul.f32 %v4269, %v4269
      %v4302 = vmul.f32 %v4270, %v4270
      %v4303 = vmul.f32 %v4271, %v4271
      %v4304 = vmul.f32 %v4272, %v4272
      %v4305 = vmul.f32 %v4273, %v4273
      %v4306 = vmul.f32 %v4274, %v4274
      %v4307 = vmul.f32 %v4275, %v4275
      %v4308 = vmul.f32 %v4276, %v4276
      %v4309 = vmul.f32 %v4277, %v4277
      %v4310 = vmul.f32 %v4278, %v4278
      %v4311 = vmul.f32 %v4279, %v4279
      %v4312 = vmul.f32 %v4280, %v4280
      %v4313 = vmul.f32 %v4281, %v4281
      %v4314 = vmul.f32 %v4282, %v4282
      %v4315 = vmul.f32 %v4283, %v4283
      %v4316 = vmul.f32 %v4284, %v4284
      %v4317 = vmul.f32 %v4285, %v4285
      %v4318 = vmul.f32 %v4286, %v4286
      %v4319 = vmul.f32 %v4287, %v4287
      %v4320 = vmul.f32 %v4288, %v4288
      %v4321 = vadd.f32 %v4289, %v4291
      %v4322 = vadd.f32 %v4321, %v4293
      %v4323 = vadd.f32 %v4322, %v4295
      %v4324 = vadd.f32 %v4323, %v4297
      %v4325 = vadd.f32 %v4324, %v4299
      %v4326 = vadd.f32 %v4325, %v4301
      %v4327 = vadd.f32 %v4326, %v4303
      %v4328 = vadd.f32 %v4327, %v4305
      %v4329 = vadd.f32 %v4328, %v4307
      %v4330 = vadd.f32 %v4329, %v4309
      %v4331 = vadd.f32 %v4330, %v4311
      %v4332 = vadd.f32 %v4331, %v4313
      %v4333 = vadd.f32 %v4332, %v4315
      %v4334 = vadd.f32 %v4333, %v4317
      %v4335 = vadd.f32 %v4334, %v4319
      %v4336 = vrot.slane %v4335, 4
      %v4337 = vadd.f32 %v4335, %v4336
      %v4338 = vrot.slane %v4337, 2
      %v4339 = vadd.f32 %v4337, %v4338
      %v4340 = vrot.slane %v4339, 1
      %v4341 = vadd.f32 %v4339, %v4340
      %v4342 = vadd.f32 %v4290, %v4292
      %v4343 = vadd.f32 %v4342, %v4294
      %v4344 = vadd.f32 %v4343, %v4296
      %v4345 = vadd.f32 %v4344, %v4298
      %v4346 = vadd.f32 %v4345, %v4300
      %v4347 = vadd.f32 %v4346, %v4302
      %v4348 = vadd.f32 %v4347, %v4304
      %v4349 = vadd.f32 %v4348, %v4306
      %v4350 = vadd.f32 %v4349, %v4308
      %v4351 = vadd.f32 %v4350, %v4310
      %v4352 = vadd.f32 %v4351, %v4312
      %v4353 = vadd.f32 %v4352, %v4314
      %v4354 = vadd.f32 %v4353, %v4316
      %v4355 = vadd.f32 %v4354, %v4318
      %v4356 = vadd.f32 %v4355, %v4320
      %v4357 = vrot.slane %v4356, 4
      %v4358 = vadd.f32 %v4356, %v4357
      %v4359 = vrot.slane %v4358, 2
      %v4360 = vadd.f32 %v4358, %v4359
      %v4361 = vrot.slane %v4360, 1
      %v4362 = vadd.f32 %v4360, %v4361
      %p4363 = scmp.eq.s32.totalorder %s27, 0
      // Predicated region
      $region45: #{resnet_forward.4} parent=43 // pred_check
        %p4364 = pneg %p4363
      $region46: #{resnet_forward.4} parent=43 // pred_check_branch
        %4366 = sbr.rel (%p4364) target = $region48
      $region47: #{resnet_forward.4} parent=43 // pred_region
        %v4369 = vcombine.low %v4255, %v4256
        %v4371 = vunpack.c.l.s4 1966171168
        %v4372 = vunpack.c.0.s8 %v4371
        %v4373 = vlaneseq
        %v4374 = vshrl.u32 %v4373, 7
        %v4375 = vsub.s32 %v4372, %v4374
        %v4376 = vrot.slane %v4369, %v4375
        %v4378 = vunpack.c.l.s4 1966171168
        %v4379 = vunpack.c.0.s8 %v4378
        %v4380 = vlaneseq
        %v4381 = vshrl.u32 %v4380, 7
        %v4382 = vsub.s32 %v4379, %v4381
        %v4383 = vrot.slane %v4376, %v4382
        %v4385 = vlaneseq
        %vm4386 = vcmp.ge.s32.totalorder %v4385, 0
        %vm4387 = vcmp.lt.s32.totalorder %v4385, 256
        %vm4388 = vmand %vm4386, %vm4387
        %4389 = vst.msk [vmem:[%s596] sm:$0x3] %vm4388, %v4383
        %v4392 = vcombine.low %v4341, %v4362
        %v4394 = vunpack.c.l.s4 1966171168
        %v4395 = vunpack.c.0.s8 %v4394
        %v4396 = vlaneseq
        %v4397 = vshrl.u32 %v4396, 7
        %v4398 = vsub.s32 %v4395, %v4397
        %v4399 = vrot.slane %v4392, %v4398
        %v4401 = vunpack.c.l.s4 1966171168
        %v4402 = vunpack.c.0.s8 %v4401
        %v4403 = vlaneseq
        %v4404 = vshrl.u32 %v4403, 7
        %v4405 = vsub.s32 %v4402, %v4404
        %v4406 = vrot.slane %v4399, %v4405
        %4408 = vst.msk [vmem:[%s604] sm:$0x3] %vm4388, %v4406
      $region48: #{resnet_forward.4} parent=43 // pred_fallthru
        _
      %p4409 = scmp.gt.s32.totalorder %s27, 0
      // Predicated region
      $region49: #{resnet_forward.4} parent=43 // pred_check
        %p4410 = pneg %p4409
      $region50: #{resnet_forward.4} parent=43 // pred_check_branch
        %4412 = sbr.rel (%p4410) target = $region52
      $region51: #{resnet_forward.4} parent=43 // pred_region
        %s4413 = scvt.s32.f32 %s27
        %s4414 = smul.f32 %s4413, 128.0
        %s4415 = sadd.f32 %s4414, 128.0
        %v4416 = vld [vmem:[%s596] sm:$0x3]
        %v4418 = vlaneseq
        %v4419 = vshrl.u32 %v4418, 7
        %v4420 = vsub.s32 0, %v4419
        %v4421 = vrot.slane %v4416, %v4420
        %v4422 = vlaneseq
        %v4423 = vshrl.u32 %v4422, 7
        %v4424 = vsub.s32 1, %v4423
        %v4425 = vrot.slane %v4416, %v4424
        %v4428 = vsub.f32 %v4255, %v4421
        %v4429 = vsub.f32 %v4256, %v4425
        %v4430 = vstv %s4415
        %v4431 = vrcp.pop %v4430
        %s4432 = vtos %v4431
        %s4433 = smul.f32 128.0, %s4432
        %v4434 = vstv %s4433
        %v4435 = vmul.f32 %v4428, %v4434
        %v4436 = vmul.f32 %v4429, %v4434
        %v4439 = vcombine.low %v4435, %v4436
        %v4441 = vunpack.c.l.s4 1966171168
        %v4442 = vunpack.c.0.s8 %v4441
        %v4443 = vlaneseq
        %v4444 = vshrl.u32 %v4443, 7
        %v4445 = vsub.s32 %v4442, %v4444
        %v4446 = vrot.slane %v4439, %v4445
        %v4448 = vunpack.c.l.s4 1966171168
        %v4449 = vunpack.c.0.s8 %v4448
        %v4450 = vlaneseq
        %v4451 = vshrl.u32 %v4450, 7
        %v4452 = vsub.s32 %v4449, %v4451
        %v4453 = vrot.slane %v4446, %v4452
        %v4455 = vadd.f32 %v4416, %v4453
        %v4456 = vlaneseq
        %vm4457 = vcmp.ge.s32.totalorder %v4456, 0
        %vm4458 = vcmp.lt.s32.totalorder %v4456, 256
        %vm4459 = vmand %vm4457, %vm4458
        %4460 = vst.msk [vmem:[%s596] sm:$0x3] %vm4459, %v4455
        %v4461 = vld [vmem:[%s604] sm:$0x3]
        %v4464 = vcombine.low %v4341, %v4362
        %v4466 = vunpack.c.l.s4 1966171168
        %v4467 = vunpack.c.0.s8 %v4466
        %v4468 = vlaneseq
        %v4469 = vshrl.u32 %v4468, 7
        %v4470 = vsub.s32 %v4467, %v4469
        %v4471 = vrot.slane %v4464, %v4470
        %v4473 = vunpack.c.l.s4 1966171168
        %v4474 = vunpack.c.0.s8 %v4473
        %v4475 = vlaneseq
        %v4476 = vshrl.u32 %v4475, 7
        %v4477 = vsub.s32 %v4474, %v4476
        %v4478 = vrot.slane %v4471, %v4477
        %v4480 = vadd.f32 %v4461, %v4478
        %v4481 = vmul.f32 %v4428, %v4428
        %v4482 = vmul.f32 %v4429, %v4429
        %s4483 = smul.f32 %s4414, 128.0
        %v4484 = vstv %s4415
        %v4485 = vrcp.pop %v4484
        %s4486 = vtos %v4485
        %s4487 = smul.f32 %s4483, %s4486
        %v4488 = vstv %s4487
        %v4489 = vmul.f32 %v4481, %v4488
        %v4490 = vmul.f32 %v4482, %v4488
        %v4493 = vcombine.low %v4489, %v4490
        %v4495 = vunpack.c.l.s4 1966171168
        %v4496 = vunpack.c.0.s8 %v4495
        %v4497 = vlaneseq
        %v4498 = vshrl.u32 %v4497, 7
        %v4499 = vsub.s32 %v4496, %v4498
        %v4500 = vrot.slane %v4493, %v4499
        %v4502 = vunpack.c.l.s4 1966171168
        %v4503 = vunpack.c.0.s8 %v4502
        %v4504 = vlaneseq
        %v4505 = vshrl.u32 %v4504, 7
        %v4506 = vsub.s32 %v4503, %v4505
        %v4507 = vrot.slane %v4500, %v4506
        %v4509 = vadd.f32 %v4480, %v4507
        %4510 = vst.msk [vmem:[%s604] sm:$0x3] %vm4459, %v4509
      $region52: #{resnet_forward.4} parent=43 // pred_fallthru
        _
      %s4511 = sadd.s32 %s26, %s27
      %s4512 = smul.u32 8, %s4511
      %p4513 = scmp.lt.s32.totalorder %s25, 1
      %s4514 = scalar_select %p4513, %s25, 1
      %p4515 = scmp.lt.s32.totalorder %s4512, 15
      %s4516 = scalar_select %p4515, %s4512, 15
      %s4517 = smul.addr %s4516, 4
      %s4518 = smul.addr %s4514, 64
      %s4519 = sadd.s32 %s4517, %s4518
      %s4520 = smul.addr %s4519, 4
      %s4521 = scalar_lea.vmem %s6, %s4520
      %p4522 = scmp.lt.s32.totalorder %s25, 1
      %s4523 = scalar_select %p4522, %s25, 1
      %p4524 = scmp.lt.s32.totalorder %s26, 1
      %s4525 = scalar_select %p4524, %s26, 1
      %s4526 = smul.addr %s4525, 2
      %s4527 = smul.addr %s4523, 4
      %s4528 = sadd.s32 %s4526, %s4527
      %s4529 = scalar_lea.vmem %s7, %s4528
      %p4530 = scmp.lt.s32.totalorder %s25, 1
      %s4531 = scalar_select %p4530, %s25, 1
      %p4532 = scmp.lt.s32.totalorder %s26, 1
      %s4533 = scalar_select %p4532, %s26, 1
      %s4534 = smul.addr %s4533, 2
      %s4535 = smul.addr %s4531, 4
      %s4536 = sadd.s32 %s4534, %s4535
      %s4537 = scalar_lea.vmem %s8, %s4536
      // Predicated region
      $region53: #{resnet_forward.4} parent=43 // pred_check
        %p4538 = pneg %p238
      $region54: #{resnet_forward.4} parent=43 // pred_check_branch
        %4540 = sbr.rel (%p4538) target = $region56
      $region55: #{resnet_forward.4} parent=43 // pred_region
        %s4541 = sadd.s32 %s26, %s27
        %s4542 = smul.u32 8, %s4541
      $region56: #{resnet_forward.4} parent=43 // pred_fallthru
        _
      // Predicated region
      $region57: #{resnet_forward.4} parent=43 // pred_check
        %p4543 = pneg %p266
      $region58: #{resnet_forward.4} parent=43 // pred_check_branch
        %4545 = sbr.rel (%p4543) target = $region60
      $region59: #{resnet_forward.4} parent=43 // pred_region
        _
      $region60: #{resnet_forward.4} parent=43 // pred_fallthru
        _
      // Predicated region
      $region61: #{resnet_forward.4} parent=43 // pred_check
        %p4546 = pneg %p294
      $region62: #{resnet_forward.4} parent=43 // pred_check_branch
        %4548 = sbr.rel (%p4546) target = $region64
      $region63: #{resnet_forward.4} parent=43 // pred_region
        _
      $region64: #{resnet_forward.4} parent=43 // pred_fallthru
        _
    $region44: #{resnet_forward.4} parent=5 // pred_fallthru
      _
    %p4549 = scmp.le.s32.totalorder 2, %s15
    // Predicated region
    $region65: #{resnet_forward.4} parent=5 // pred_check
      %p4550 = pneg %p4549
    $region66: #{resnet_forward.4} parent=5 // pred_check_branch
      %4552 = sbr.rel (%p4550) target = $region68
    $region67: #{resnet_forward.4} parent=5 // pred_region
      %s4553 = ssub.s32 %s15, 2
      // Predicated region
      $region69: #{resnet_forward.4} parent=67 // pred_check
        %p4554 = pneg %p244
      $region70: #{resnet_forward.4} parent=67 // pred_check_branch
        %4556 = sbr.rel (%p4554) target = $region72
      $region71: #{resnet_forward.4} parent=67 // pred_region
        %s4557 = sadd.s32 %s29, %s30
        %s4558 = smul.u32 8, %s4557
        %p4559 = scmp.lt.s32.totalorder %s28, 1
        %s4560 = scalar_select %p4559, %s28, 1
        %p4561 = scmp.lt.s32.totalorder %s4558, 15
        %s4562 = scalar_select %p4561, %s4558, 15
        %s4563 = smul.addr %s4562, 4
        %s4564 = smul.addr %s4560, 64
        %s4565 = sadd.s32 %s4563, %s4564
        %s4566 = smul.addr %s4565, 4
        %s4567 = scalar_lea.vmem %s6, %s4566
      $region72: #{resnet_forward.4} parent=67 // pred_fallthru
        _
      // Predicated region
      $region73: #{resnet_forward.4} parent=67 // pred_check
        %p4568 = pneg %p272
      $region74: #{resnet_forward.4} parent=67 // pred_check_branch
        %4570 = sbr.rel (%p4568) target = $region76
      $region75: #{resnet_forward.4} parent=67 // pred_region
        %p4571 = scmp.lt.s32.totalorder %s28, 1
        %s4572 = scalar_select %p4571, %s28, 1
        %p4573 = scmp.lt.s32.totalorder %s29, 1
        %s4574 = scalar_select %p4573, %s29, 1
        %s4575 = smul.addr %s4574, 2
        %s4576 = smul.addr %s4572, 4
        %s4577 = sadd.s32 %s4575, %s4576
        %s4578 = scalar_lea.vmem %s7, %s4577
      $region76: #{resnet_forward.4} parent=67 // pred_fallthru
        _
      // Predicated region
      $region77: #{resnet_forward.4} parent=67 // pred_check
        %p4579 = pneg %p300
      $region78: #{resnet_forward.4} parent=67 // pred_check_branch
        %4581 = sbr.rel (%p4579) target = $region80
      $region79: #{resnet_forward.4} parent=67 // pred_region
        %p4582 = scmp.lt.s32.totalorder %s28, 1
        %s4583 = scalar_select %p4582, %s28, 1
        %p4584 = scmp.lt.s32.totalorder %s29, 1
        %s4585 = scalar_select %p4584, %s29, 1
        %s4586 = smul.addr %s4585, 2
        %s4587 = smul.addr %s4583, 4
        %s4588 = sadd.s32 %s4586, %s4587
        %s4589 = scalar_lea.vmem %s8, %s4588
      $region80: #{resnet_forward.4} parent=67 // pred_fallthru
        _
    $region68: #{resnet_forward.4} parent=5 // pred_fallthru
      _
  $region6: #{resnet_forward.4} parent=0 // loop_footer
    %s19 = sadd.s32 1, %s15
  $region7: #{resnet_forward.4} parent=0 // loop_footer_branch
    %14 = sbr.rel target = $region3
  $region8: #{resnet_forward.4} parent=0 // loop_exit
    _

</llo_original>
